<compile_context>
chip_gen: v6e
topology: v6e:2x2x1
jax: 0.10.0
libtpu: 0.0.40
codegen_flags: <defaults>
</compile_context>

<pallas_src>
import functools

import jax
import jax.numpy as jnp
from jax.experimental import pallas as pl
from jax.experimental.pallas import tpu as pltpu

_VMEM_LIMIT_BYTES = 32 * 1024 * 1024   # safe on v5e/v6e (128 MiB) and v7x (64 MiB) VMEM
_MAX_TILE_M = 256                      # 2 parallel steps for the M=512 layers (v7x megacore)
_CIN_PAD = 8                           # raw image channels 3 -> 8 (K alignment for conv1)
_ENC_C = 128                           # carried (lane-dense) channel width in the encoder
_DEC_C = 64                            # carried channel width in the decoder (2*64 = 128 lanes)


# ----------------------------- Pallas kernels ------------------------------ #
def _matmul_bias_act_kernel(x_ref, w_ref, b_ref, o_ref, *, activation):
    acc = jnp.dot(x_ref[...], w_ref[...], preferred_element_type=jnp.float32)
    acc = acc + b_ref[...]                       # (TM, N) + (1, N)
    if activation == "relu":
        acc = jnp.maximum(acc, 0.0)
    elif activation == "tanh":
        acc = jnp.tanh(acc)
    o_ref[...] = acc.astype(o_ref.dtype)


def matmul_bias_act(x, w, b, activation="none", out_dtype=jnp.bfloat16):
    """y = act(x @ w + b). x/w already packed bf16, b f32 (1, N), N multiple of 128."""
    M, K = x.shape
    K2, N = w.shape
    assert K == K2 and N % 128 == 0
    TM = _MAX_TILE_M if (M > _MAX_TILE_M and M % _MAX_TILE_M == 0) else M
    kernel = functools.partial(_matmul_bias_act_kernel, activation=activation)
    trans = M * N if activation == "tanh" else 0
    return pl.pallas_call(
        kernel,
        out_shape=jax.ShapeDtypeStruct((M, N), out_dtype),
        grid=(M // TM,),
        in_specs=[
            pl.BlockSpec((TM, K), lambda i: (i, 0)),
            pl.BlockSpec((K, N), lambda i: (0, 0)),
            pl.BlockSpec((1, N), lambda i: (0, 0)),
        ],
        out_specs=pl.BlockSpec((TM, N), lambda i: (i, 0)),
        compiler_params=pltpu.CompilerParams(
            dimension_semantics=("parallel",),
            vmem_limit_bytes=_VMEM_LIMIT_BYTES,
        ),
        cost_estimate=pl.CostEstimate(
            flops=2 * M * K * N,
            transcendentals=trans,
            bytes_accessed=(M * K + K * N) * 2 + N * 4
            + M * N * jnp.dtype(out_dtype).itemsize,
        ),
    )(x, w, b)


def _bottleneck_kernel(x_ref, w1_ref, b1_ref, w2_ref, b2_ref, o_ref):
    # encoder Linear (no activation) -> decoder Linear + ReLU; latent stays in VMEM.
    latent = jnp.dot(x_ref[...], w1_ref[...], preferred_element_type=jnp.float32)
    latent = latent + b1_ref[...]
    d = jnp.dot(latent.astype(w2_ref.dtype), w2_ref[...],
                preferred_element_type=jnp.float32)
    d = jnp.maximum(d + b2_ref[...], 0.0)
    o_ref[...] = d.astype(o_ref.dtype)


def fused_bottleneck(flat, w1, b1, w2, b2):
    """flat: (B, 2048) bf16, w1: (2048, L) bf16, w2: (L, 2048) bf16. Returns bf16 (B, 2048)."""
    B, K = flat.shape
    L = w1.shape[1]
    N = w2.shape[1]
    return pl.pallas_call(
        _bottleneck_kernel,
        out_shape=jax.ShapeDtypeStruct((B, N), jnp.bfloat16),
        grid=(1,),
        in_specs=[
            pl.BlockSpec((B, K), lambda i: (0, 0)),
            pl.BlockSpec((K, L), lambda i: (0, 0)),
            pl.BlockSpec((1, L), lambda i: (0, 0)),
            pl.BlockSpec((L, N), lambda i: (0, 0)),
            pl.BlockSpec((1, N), lambda i: (0, 0)),
        ],
        out_specs=pl.BlockSpec((B, N), lambda i: (0, 0)),
        compiler_params=pltpu.CompilerParams(
            dimension_semantics=("arbitrary",),
            vmem_limit_bytes=_VMEM_LIMIT_BYTES,
        ),
        cost_estimate=pl.CostEstimate(
            flops=2 * B * K * L + 2 * B * L * N,
            transcendentals=0,
            bytes_accessed=(B * K + K * L + L * N) * 2 + (L + N) * 4 + B * N * 2,
        ),
    )(flat, w1, b1, w2, b2)


def _deconv_phase_kernel(x_ref, w_ref, b_ref, o_ref, *, activation):
    # one row-phase r per grid step; columns of w are the (s, cout) phase pair.
    acc = jnp.dot(x_ref[...], w_ref[0], preferred_element_type=jnp.float32)
    acc = acc + b_ref[...]
    if activation == "relu":
        acc = jnp.maximum(acc, 0.0)
    elif activation == "tanh":
        acc = jnp.tanh(acc)
    rows, _, w_dim, c2 = o_ref.shape
    o_ref[...] = acc.reshape(rows, 1, w_dim, c2).astype(o_ref.dtype)


# ------------------------------ conv wrappers ------------------------------ #
def conv2d_s2(x, wmat, bias, activation="relu", out_dtype=jnp.bfloat16):
    """PyTorch Conv2d(k=3, s=2, p=1). x: (B,H,W,Cp) bf16, wmat: (9*Cp, Np) packed bf16."""
    B, H, W, C = x.shape
    OH, OW = H // 2, W // 2
    N = wmat.shape[1]
    xp = jnp.pad(x, ((0, 0), (1, 1), (1, 1), (0, 0)))
    cols = [xp[:, di:di + 2 * OH:2, dj:dj + 2 * OW:2, :]
            for di in range(3) for dj in range(3)]          # K order (di, dj, c)
    patches = jnp.concatenate(cols, axis=-1).reshape(B * OH * OW, 9 * C)
    out = matmul_bias_act(patches, wmat, bias, activation, out_dtype)
    return out.reshape(B, OH, OW, N)


def conv_transpose2d_s2(x, wmat, bias, activation="relu", out_dtype=jnp.bfloat16):
    """PyTorch ConvTranspose2d(k=3, s=2, p=1, output_padding=1), sub-pixel decomposition.
    x: (B,H,W,Cp) bf16, wmat: (2, 4*Cp, 2*Coutp) packed bf16 (phase r major),
    bias: (1, 2*Coutp) f32. Kernel writes each r-phase into its strided rows; the
    trailing reshape to (B, 2H, 2W, Coutp) is a pure metadata reshape."""
    B, H, W, C = x.shape
    C2 = wmat.shape[-1]
    coutp = C2 // 2
    xp = jnp.pad(x, ((0, 0), (0, 1), (0, 1), (0, 0)))        # bottom/right halo
    taps = [xp[:, u:u + H, v:v + W, :] for u in range(2) for v in range(2)]
    patches = jnp.concatenate(taps, axis=-1).reshape(B * H * W, 4 * C)
    M = B * H * W

    kernel = functools.partial(_deconv_phase_kernel, activation=activation)
    trans = 2 * M * C2 if activation == "tanh" else 0
    out = pl.pallas_call(
        kernel,
        out_shape=jax.ShapeDtypeStruct((B * H, 2, W, C2), out_dtype),
        grid=(2,),
        in_specs=[
            pl.BlockSpec((M, 4 * C), lambda r: (0, 0)),
            pl.BlockSpec((1, 4 * C, C2), lambda r: (r, 0, 0)),
            pl.BlockSpec((1, C2), lambda r: (0, 0)),
        ],
        out_specs=pl.BlockSpec((B * H, 1, W, C2), lambda r: (0, r, 0, 0)),
        compiler_params=pltpu.CompilerParams(
            dimension_semantics=("parallel",),
            vmem_limit_bytes=_VMEM_LIMIT_BYTES,
        ),
        cost_estimate=pl.CostEstimate(
            flops=2 * (2 * M * (4 * C) * C2),
            transcendentals=trans,
            bytes_accessed=2 * (M * 4 * C * 2 + 4 * C * C2 * 2 + C2 * 4
                                + M * C2 * jnp.dtype(out_dtype).itemsize),
        ),
    )(patches, wmat, bias)
    # (B*H, 2, W, 2, Coutp) in memory order (b, i, r, j, s, c) -> (B, 2H, 2W, Coutp)
    return out.reshape(B, 2 * H, 2 * W, coutp)


# --------------------------- model parameters ----------------------------- #
def init_params(key, latent_dim=128):
    def winit(k, shape, scale=0.05):
        return scale * jax.random.normal(k, shape, jnp.float32)

    ks = jax.random.split(key, 16)
    p = {}
    p["c1_w"], p["c1_b"] = winit(ks[0], (32, 3, 3, 3)),   winit(ks[1], (32,))
    p["c2_w"], p["c2_b"] = winit(ks[2], (64, 32, 3, 3)),  winit(ks[3], (64,))
    p["c3_w"], p["c3_b"] = winit(ks[4], (128, 64, 3, 3)), winit(ks[5], (128,))
    p["fe_w"], p["fe_b"] = winit(ks[6], (latent_dim, 128 * 4 * 4)), winit(ks[7], (latent_dim,))
    p["fd_w"], p["fd_b"] = winit(ks[8], (128 * 4 * 4, latent_dim)), winit(ks[9], (128 * 4 * 4,))
    p["d1_w"], p["d1_b"] = winit(ks[10], (128, 64, 3, 3)), winit(ks[11], (64,))
    p["d2_w"], p["d2_b"] = winit(ks[12], (64, 32, 3, 3)),  winit(ks[13], (32,))
    p["d3_w"], p["d3_b"] = winit(ks[14], (32, 3, 3, 3)),   winit(ks[15], (3,))
    return p


def pack_params(p, latent_dim=128):
    """One-time weight packing: bf16, lane-padded, im2col/sub-pixel layouts, FC re-permute."""
    L = latent_dim

    def pack_conv(w, b, cin_p, cout_p):
        cout, cin = w.shape[0], w.shape[1]
        wm = jnp.zeros((3, 3, cin_p, cout_p), jnp.float32)
        wm = wm.at[:, :, :cin, :cout].set(jnp.transpose(w, (2, 3, 1, 0)))
        bm = jnp.zeros((1, cout_p), jnp.float32).at[0, :cout].set(b)
        return wm.reshape(9 * cin_p, cout_p).astype(jnp.bfloat16), bm

    def pack_deconv(wt, b, cin_p, cout_p):
        cin, cout = wt.shape[0], wt.shape[1]
        wm = jnp.zeros((2, 2, 2, cin_p, 2, cout_p), jnp.float32)  # (r, u, v, cin, s, cout)
        for r in range(2):
            for u in range(2):
                for v in range(2):
                    for s in range(2):
                        di, dj = 1 + r - 2 * u, 1 + s - 2 * v
                        if 0 <= di <= 2 and 0 <= dj <= 2:
                            wm = wm.at[r, u, v, :cin, s, :cout].set(wt[:, :, di, dj])
        bm = jnp.zeros((1, 2 * cout_p), jnp.float32)
        bm = bm.at[0, :cout].set(b).at[0, cout_p:cout_p + cout].set(b)
        return wm.reshape(2, 4 * cin_p, 2 * cout_p).astype(jnp.bfloat16), bm

    packed = {}
    packed["c1_w"], packed["c1_b"] = pack_conv(p["c1_w"], p["c1_b"], _CIN_PAD, _ENC_C)
    packed["c2_w"], packed["c2_b"] = pack_conv(p["c2_w"], p["c2_b"], _ENC_C, _ENC_C)
    packed["c3_w"], packed["c3_b"] = pack_conv(p["c3_w"], p["c3_b"], _ENC_C, _ENC_C)
    # FC weights: re-permute torch NCHW-flatten order -> NHWC-flatten order, once.
    w1 = p["fe_w"].reshape(L, 128, 4, 4).transpose(2, 3, 1, 0).reshape(2048, L)
    w2 = p["fd_w"].reshape(128, 4, 4, L).transpose(1, 2, 0, 3).reshape(2048, L).T
    b2 = p["fd_b"].reshape(128, 4, 4).transpose(1, 2, 0).reshape(2048)
    packed["fe_w"] = w1.astype(jnp.bfloat16)
    packed["fe_b"] = p["fe_b"].astype(jnp.float32).reshape(1, L)
    packed["fd_w"] = w2.astype(jnp.bfloat16)
    packed["fd_b"] = b2.astype(jnp.float32).reshape(1, 2048)
    packed["d1_w"], packed["d1_b"] = pack_deconv(p["d1_w"], p["d1_b"], 128, _DEC_C)
    packed["d2_w"], packed["d2_b"] = pack_deconv(p["d2_w"], p["d2_b"], _DEC_C, _DEC_C)
    packed["d3_w"], packed["d3_b"] = pack_deconv(p["d3_w"], p["d3_b"], _DEC_C, _DEC_C)
    return packed


# ------------------------------- forward ---------------------------------- #
def forward(packed, x):
    """x: (B, 3, 32, 32) NCHW float32 -> reconstruction (B, 3, 32, 32) float32."""
    B = x.shape[0]
    h = jnp.transpose(x, (0, 2, 3, 1))                                  # NCHW -> NHWC
    h = jnp.pad(h, ((0, 0), (0, 0), (0, 0), (0, _CIN_PAD - 3))).astype(jnp.bfloat16)
    # encoder (channels carried zero-padded to 128, bf16)
    h = conv2d_s2(h, packed["c1_w"], packed["c1_b"], "relu")            # (B,16,16,128)
    h = conv2d_s2(h, packed["c2_w"], packed["c2_b"], "relu")            # (B, 8, 8,128)
    h = conv2d_s2(h, packed["c3_w"], packed["c3_b"], "relu")            # (B, 4, 4,128)
    flat = h.reshape(B, 4 * 4 * 128)                                    # NHWC flatten (i,j,c)
    # fused encoder Linear -> decoder Linear + ReLU (latent stays in VMEM)
    d = fused_bottleneck(flat, packed["fe_w"], packed["fe_b"],
                         packed["fd_w"], packed["fd_b"])                # (B, 2048) bf16
    d = d.reshape(B, 4, 4, 128)
    # decoder (channels carried zero-padded to 64, bf16; final layer f32)
    d = conv_transpose2d_s2(d, packed["d1_w"], packed["d1_b"], "relu")  # (B, 8, 8,64)
    d = conv_transpose2d_s2(d, packed["d2_w"], packed["d2_b"], "relu")  # (B,16,16,64)
    d = conv_transpose2d_s2(d, packed["d3_w"], packed["d3_b"], "tanh",
                            out_dtype=jnp.float32)                      # (B,32,32,64)
    d = d[..., :3]                                                      # drop padded channels
    return jnp.transpose(d, (0, 3, 1, 2))                               # NHWC -> NCHW


# ----------------------- pure-JAX reference (f32) -------------------------- #
def _ref_im2col_nchw(x, kh, kw, stride, pad):
    B, C, H, W = x.shape
    xp = jnp.pad(x, ((0, 0), (0, 0), (pad, pad), (pad, pad)))
    OH = (H + 2 * pad - kh) // stride + 1
    OW = (W + 2 * pad - kw) // stride + 1
    cols = [xp[:, :, di:di + stride * OH:stride, dj:dj + stride * OW:stride]
            for di in range(kh) for dj in range(kw)]
    cols = jnp.stack(cols, axis=2).transpose(0, 3, 4, 1, 2)
    return cols.reshape(B * OH * OW, C * kh * kw), OH, OW


def _ref_conv2d(x, w, b, stride, pad, act):
    B = x.shape[0]
    Cout, Cin, kh, kw = w.shape
    patches, OH, OW = _ref_im2col_nchw(x, kh, kw, stride, pad)
    out = patches @ w.reshape(Cout, -1).T + b
    if act == "relu":
        out = jnp.maximum(out, 0.0)
    elif act == "tanh":
        out = jnp.tanh(out)
    return out.reshape(B, OH, OW, Cout).transpose(0, 3, 1, 2)


def _ref_conv_transpose2d(x, w_t, b, stride, pad, opad, act):
    B, Cin, H, W = x.shape
    _, Cout, kh, kw = w_t.shape
    xd = jnp.zeros((B, Cin, (H - 1) * stride + 1, (W - 1) * stride + 1), x.dtype)
    xd = xd.at[:, :, ::stride, ::stride].set(x)
    lo, hi = kh - 1 - pad, kh - 1 - pad + opad
    xp = jnp.pad(xd, ((0, 0), (0, 0), (lo, hi), (lo, hi)))
    w = jnp.flip(w_t, axis=(2, 3)).transpose(1, 0, 2, 3)
    return _ref_conv2d(xp, w, b, 1, 0, act)


def reference_forward(params, x):
    B = x.shape[0]
    h = _ref_conv2d(x, params["c1_w"], params["c1_b"], 2, 1, "relu")
    h = _ref_conv2d(h, params["c2_w"], params["c2_b"], 2, 1, "relu")
    h = _ref_conv2d(h, params["c3_w"], params["c3_b"], 2, 1, "relu")
    latent = h.reshape(B, -1) @ params["fe_w"].T + params["fe_b"]
    d = jnp.maximum(latent @ params["fd_w"].T + params["fd_b"], 0.0).reshape(B, 128, 4, 4)
    d = _ref_conv_transpose2d(d, params["d1_w"], params["d1_b"], 2, 1, 1, "relu")
    d = _ref_conv_transpose2d(d, params["d2_w"], params["d2_b"], 2, 1, 1, "relu")
    d = _ref_conv_transpose2d(d, params["d3_w"], params["d3_b"], 2, 1, 1, "tanh")
    return d


if __name__ == "__main__":
    key = jax.random.PRNGKey(0)
    pkey, xkey = jax.random.split(key)
    params = init_params(pkey, latent_dim=128)
    packed = pack_params(params, latent_dim=128)        # one-time weight packing
    # CIFAR-10-shaped input (small batch); spatial must be 32 for the 128*4*4 linear.
    x = jax.random.normal(xkey, (2, 3, 32, 32), jnp.float32)

    recon = jax.block_until_ready(jax.jit(forward)(packed, x))

    assert recon.shape == (2, 3, 32, 32)
    assert recon.dtype == jnp.float32
    assert bool(jnp.all(jnp.isfinite(recon)))
    assert bool(jnp.all(jnp.abs(recon) <= 1.0))          # tanh output range

    # numerical check against a pure-JAX f32 reference (bf16 activation tolerance)
    ref = jax.block_until_ready(jax.jit(reference_forward)(params, x))
    max_err = float(jnp.max(jnp.abs(recon - ref)))
    assert max_err < 3e-2, f"mismatch vs reference: {max_err}"

    print("KERNEL_OK")
</pallas_src>

<mosaic_0001>
module attributes {stable_mosaic.version = 11 : i64} {
  func.func @_matmul_bias_act_kernel(%arg0: i32, %arg1: memref<256x72xbf16, #tpu.memory_space<vmem>>, %arg2: memref<72x128xbf16, #tpu.memory_space<vmem>>, %arg3: memref<1x128xf32, #tpu.memory_space<vmem>>, %arg4: memref<256x128xbf16, #tpu.memory_space<vmem>>) attributes {dimension_semantics = [#tpu.dimension_semantics<parallel>], iteration_bounds = array<i64: 2>, scalar_prefetch = 0 : i64, scratch_operands = 0 : i64, tpu.core_type = #tpu.core_type<tc>, window_params = [{transform_indices = @transform_0, window_bounds = array<i64: 256, 72>}, {pipeline_mode = #tpu.pipeline_mode<synchronous>, transform_indices = @transform_1, window_bounds = array<i64: 72, 128>}, {pipeline_mode = #tpu.pipeline_mode<synchronous>, transform_indices = @transform_2, window_bounds = array<i64: 1, 128>}, {transform_indices = @transform_3, window_bounds = array<i64: 256, 128>}]} {
    %c0 = arith.constant 0 : index
    %c0_0 = arith.constant 0 : index
    %0 = vector.load %arg1[%c0, %c0_0] : memref<256x72xbf16, #tpu.memory_space<vmem>>, vector<256x72xbf16>
    %c0_1 = arith.constant 0 : index
    %c0_2 = arith.constant 0 : index
    %1 = vector.load %arg2[%c0_1, %c0_2] : memref<72x128xbf16, #tpu.memory_space<vmem>>, vector<72x128xbf16>
    %cst = arith.constant dense<0.000000e+00> : vector<256x128xf32>
    %2 = tpu.matmul %0, %1, %cst {dimension_numbers = #tpu.dot_dimension_numbers<[1], [0], [0], [1], [0, 0, 1, 1], [], []>} : vector<256x72xbf16>, vector<72x128xbf16>, vector<256x128xf32> -> vector<256x128xf32>
    %c0_3 = arith.constant 0 : index
    %c0_4 = arith.constant 0 : index
    %3 = vector.load %arg3[%c0_3, %c0_4] : memref<1x128xf32, #tpu.memory_space<vmem>>, vector<1x128xf32>
    %4 = vector.broadcast %3 : vector<1x128xf32> to vector<256x128xf32>
    %5 = arith.addf %2, %4 : vector<256x128xf32>
    %cst_5 = arith.constant 0.000000e+00 : f32
    %6 = vector.broadcast %cst_5 : f32 to vector<256x128xf32>
    %7 = arith.maximumf %5, %6 : vector<256x128xf32>
    %8 = arith.truncf %7 : vector<256x128xf32> to vector<256x128xbf16>
    %c0_6 = arith.constant 0 : index
    %c0_7 = arith.constant 0 : index
    %9 = vector.load %arg4[%c0_6, %c0_7] : memref<256x128xbf16, #tpu.memory_space<vmem>>, vector<256x128xbf16>
    tpu.vector_store %arg4[%c0_6, %c0_7], %8 {strides = array<i32>} : memref<256x128xbf16, #tpu.memory_space<vmem>>, vector<256x128xbf16>,
    return
  }
  func.func @transform_0(%arg0: i32) -> (i32, i32) {
    %c0_i32 = arith.constant 0 : i32
    %c0_i32_0 = arith.constant 0 : i32
    return %arg0, %c0_i32 : i32, i32
  }
  func.func @transform_1(%arg0: i32) -> (i32, i32) {
    %c0_i32 = arith.constant 0 : i32
    %c0_i32_0 = arith.constant 0 : i32
    %c0_i32_1 = arith.constant 0 : i32
    return %c0_i32, %c0_i32_0 : i32, i32
  }
  func.func @transform_2(%arg0: i32) -> (i32, i32) {
    %c0_i32 = arith.constant 0 : i32
    %c0_i32_0 = arith.constant 0 : i32
    %c0_i32_1 = arith.constant 0 : i32
    return %c0_i32, %c0_i32_0 : i32, i32
  }
  func.func @transform_3(%arg0: i32) -> (i32, i32) {
    %c0_i32 = arith.constant 0 : i32
    %c0_i32_0 = arith.constant 0 : i32
    return %arg0, %c0_i32 : i32, i32
  }
}

module attributes {stable_mosaic.version = 11 : i64} {
  func.func @_matmul_bias_act_kernel(%arg0: i32, %arg1: memref<128x1152xbf16, #tpu.memory_space<vmem>>, %arg2: memref<1152x128xbf16, #tpu.memory_space<vmem>>, %arg3: memref<1x128xf32, #tpu.memory_space<vmem>>, %arg4: memref<128x128xbf16, #tpu.memory_space<vmem>>) attributes {dimension_semantics = [#tpu.dimension_semantics<parallel>], iteration_bounds = array<i64: 1>, scalar_prefetch = 0 : i64, scratch_operands = 0 : i64, tpu.core_type = #tpu.core_type<tc>, window_params = [{transform_indices = @transform_0, window_bounds = array<i64: 128, 1152>}, {pipeline_mode = #tpu.pipeline_mode<synchronous>, transform_indices = @transform_1, window_bounds = array<i64: 1152, 128>}, {pipeline_mode = #tpu.pipeline_mode<synchronous>, transform_indices = @transform_2, window_bounds = array<i64: 1, 128>}, {transform_indices = @transform_3, window_bounds = array<i64: 128, 128>}]} {
    %c0 = arith.constant 0 : index
    %c0_0 = arith.constant 0 : index
    %0 = vector.load %arg1[%c0, %c0_0] : memref<128x1152xbf16, #tpu.memory_space<vmem>>, vector<128x1152xbf16>
    %c0_1 = arith.constant 0 : index
    %c0_2 = arith.constant 0 : index
    %1 = vector.load %arg2[%c0_1, %c0_2] : memref<1152x128xbf16, #tpu.memory_space<vmem>>, vector<1152x128xbf16>
    %cst = arith.constant dense<0.000000e+00> : vector<128x128xf32>
    %2 = tpu.matmul %0, %1, %cst {dimension_numbers = #tpu.dot_dimension_numbers<[1], [0], [0], [1], [0, 0, 1, 1], [], []>} : vector<128x1152xbf16>, vector<1152x128xbf16>, vector<128x128xf32> -> vector<128x128xf32>
    %c0_3 = arith.constant 0 : index
    %c0_4 = arith.constant 0 : index
    %3 = vector.load %arg3[%c0_3, %c0_4] : memref<1x128xf32, #tpu.memory_space<vmem>>, vector<1x128xf32>
    %4 = vector.broadcast %3 : vector<1x128xf32> to vector<128x128xf32>
    %5 = arith.addf %2, %4 : vector<128x128xf32>
    %cst_5 = arith.constant 0.000000e+00 : f32
    %6 = vector.broadcast %cst_5 : f32 to vector<128x128xf32>
    %7 = arith.maximumf %5, %6 : vector<128x128xf32>
    %8 = arith.truncf %7 : vector<128x128xf32> to vector<128x128xbf16>
    %c0_6 = arith.constant 0 : index
    %c0_7 = arith.constant 0 : index
    %9 = vector.load %arg4[%c0_6, %c0_7] : memref<128x128xbf16, #tpu.memory_space<vmem>>, vector<128x128xbf16>
    tpu.vector_store %arg4[%c0_6, %c0_7], %8 {strides = array<i32>} : memref<128x128xbf16, #tpu.memory_space<vmem>>, vector<128x128xbf16>,
    return
  }
  func.func @transform_0(%arg0: i32) -> (i32, i32) {
    %c0_i32 = arith.constant 0 : i32
    %c0_i32_0 = arith.constant 0 : i32
    return %arg0, %c0_i32 : i32, i32
  }
  func.func @transform_1(%arg0: i32) -> (i32, i32) {
    %c0_i32 = arith.constant 0 : i32
    %c0_i32_0 = arith.constant 0 : i32
    %c0_i32_1 = arith.constant 0 : i32
    return %c0_i32, %c0_i32_0 : i32, i32
  }
  func.func @transform_2(%arg0: i32) -> (i32, i32) {
    %c0_i32 = arith.constant 0 : i32
    %c0_i32_0 = arith.constant 0 : i32
    %c0_i32_1 = arith.constant 0 : i32
    return %c0_i32, %c0_i32_0 : i32, i32
  }
  func.func @transform_3(%arg0: i32) -> (i32, i32) {
    %c0_i32 = arith.constant 0 : i32
    %c0_i32_0 = arith.constant 0 : i32
    return %arg0, %c0_i32 : i32, i32
  }
}

module attributes {stable_mosaic.version = 11 : i64} {
  func.func @_bottleneck_kernel(%arg0: i32, %arg1: memref<2x2048xbf16, #tpu.memory_space<vmem>>, %arg2: memref<2048x128xbf16, #tpu.memory_space<vmem>>, %arg3: memref<1x128xf32, #tpu.memory_space<vmem>>, %arg4: memref<128x2048xbf16, #tpu.memory_space<vmem>>, %arg5: memref<1x2048xf32, #tpu.memory_space<vmem>>, %arg6: memref<2x2048xbf16, #tpu.memory_space<vmem>>) attributes {dimension_semantics = [#tpu.dimension_semantics<arbitrary>], iteration_bounds = array<i64: 1>, scalar_prefetch = 0 : i64, scratch_operands = 0 : i64, tpu.core_type = #tpu.core_type<tc>, window_params = [{pipeline_mode = #tpu.pipeline_mode<synchronous>, transform_indices = @transform_0, window_bounds = array<i64: 2, 2048>}, {pipeline_mode = #tpu.pipeline_mode<synchronous>, transform_indices = @transform_1, window_bounds = array<i64: 2048, 128>}, {pipeline_mode = #tpu.pipeline_mode<synchronous>, transform_indices = @transform_2, window_bounds = array<i64: 1, 128>}, {pipeline_mode = #tpu.pipeline_mode<synchronous>, transform_indices = @transform_3, window_bounds = array<i64: 128, 2048>}, {pipeline_mode = #tpu.pipeline_mode<synchronous>, transform_indices = @transform_4, window_bounds = array<i64: 1, 2048>}, {pipeline_mode = #tpu.pipeline_mode<synchronous>, transform_indices = @transform_5, window_bounds = array<i64: 2, 2048>}]} {
    %c0 = arith.constant 0 : index
    %c0_0 = arith.constant 0 : index
    %0 = vector.load %arg1[%c0, %c0_0] : memref<2x2048xbf16, #tpu.memory_space<vmem>>, vector<2x2048xbf16>
    %c0_1 = arith.constant 0 : index
    %c0_2 = arith.constant 0 : index
    %1 = vector.load %arg2[%c0_1, %c0_2] : memref<2048x128xbf16, #tpu.memory_space<vmem>>, vector<2048x128xbf16>
    %cst = arith.constant dense<0.000000e+00> : vector<2x128xf32>
    %2 = tpu.matmul %0, %1, %cst {dimension_numbers = #tpu.dot_dimension_numbers<[1], [0], [0], [1], [0, 0, 1, 1], [], []>} : vector<2x2048xbf16>, vector<2048x128xbf16>, vector<2x128xf32> -> vector<2x128xf32>
    %c0_3 = arith.constant 0 : index
    %c0_4 = arith.constant 0 : index
    %3 = vector.load %arg3[%c0_3, %c0_4] : memref<1x128xf32, #tpu.memory_space<vmem>>, vector<1x128xf32>
    %4 = vector.broadcast %3 : vector<1x128xf32> to vector<2x128xf32>
    %5 = arith.addf %2, %4 : vector<2x128xf32>
    %6 = arith.truncf %5 : vector<2x128xf32> to vector<2x128xbf16>
    %c0_5 = arith.constant 0 : index
    %c0_6 = arith.constant 0 : index
    %7 = vector.load %arg4[%c0_5, %c0_6] : memref<128x2048xbf16, #tpu.memory_space<vmem>>, vector<128x2048xbf16>
    %cst_7 = arith.constant dense<0.000000e+00> : vector<2x2048xf32>
    %8 = tpu.matmul %6, %7, %cst_7 {dimension_numbers = #tpu.dot_dimension_numbers<[1], [0], [0], [1], [0, 0, 1, 1], [], []>} : vector<2x128xbf16>, vector<128x2048xbf16>, vector<2x2048xf32> -> vector<2x2048xf32>
    %c0_8 = arith.constant 0 : index
    %c0_9 = arith.constant 0 : index
    %9 = vector.load %arg5[%c0_8, %c0_9] : memref<1x2048xf32, #tpu.memory_space<vmem>>, vector<1x2048xf32>
    %10 = vector.broadcast %9 : vector<1x2048xf32> to vector<2x2048xf32>
    %11 = arith.addf %8, %10 : vector<2x2048xf32>
    %cst_10 = arith.constant 0.000000e+00 : f32
    %12 = vector.broadcast %cst_10 : f32 to vector<2x2048xf32>
    %13 = arith.maximumf %11, %12 : vector<2x2048xf32>
    %14 = arith.truncf %13 : vector<2x2048xf32> to vector<2x2048xbf16>
    %c0_11 = arith.constant 0 : index
    %c0_12 = arith.constant 0 : index
    %15 = vector.load %arg6[%c0_11, %c0_12] : memref<2x2048xbf16, #tpu.memory_space<vmem>>, vector<2x2048xbf16>
    tpu.vector_store %arg6[%c0_11, %c0_12], %14 {strides = array<i32>} : memref<2x2048xbf16, #tpu.memory_space<vmem>>, vector<2x2048xbf16>,
    return
  }
  func.func @transform_0(%arg0: i32) -> (i32, i32) {
    %c0_i32 = arith.constant 0 : i32
    %c0_i32_0 = arith.constant 0 : i32
    %c0_i32_1 = arith.constant 0 : i32
    return %c0_i32, %c0_i32_0 : i32, i32
  }
  func.func @transform_1(%arg0: i32) -> (i32, i32) {
    %c0_i32 = arith.constant 0 : i32
    %c0_i32_0 = arith.constant 0 : i32
    %c0_i32_1 = arith.constant 0 : i32
    return %c0_i32, %c0_i32_0 : i32, i32
  }
  func.func @transform_2(%arg0: i32) -> (i32, i32) {
    %c0_i32 = arith.constant 0 : i32
    %c0_i32_0 = arith.constant 0 : i32
    %c0_i32_1 = arith.constant 0 : i32
    return %c0_i32, %c0_i32_0 : i32, i32
  }
  func.func @transform_3(%arg0: i32) -> (i32, i32) {
    %c0_i32 = arith.constant 0 : i32
    %c0_i32_0 = arith.constant 0 : i32
    %c0_i32_1 = arith.constant 0 : i32
    return %c0_i32, %c0_i32_0 : i32, i32
  }
  func.func @transform_4(%arg0: i32) -> (i32, i32) {
    %c0_i32 = arith.constant 0 : i32
    %c0_i32_0 = arith.constant 0 : i32
    %c0_i32_1 = arith.constant 0 : i32
    return %c0_i32, %c0_i32_0 : i32, i32
  }
  func.func @transform_5(%arg0: i32) -> (i32, i32) {
    %c0_i32 = arith.constant 0 : i32
    %c0_i32_0 = arith.constant 0 : i32
    %c0_i32_1 = arith.constant 0 : i32
    return %c0_i32, %c0_i32_0 : i32, i32
  }
}

module attributes {stable_mosaic.version = 11 : i64} {
  func.func @_matmul_bias_act_kernel(%arg0: i32, %arg1: memref<32x1152xbf16, #tpu.memory_space<vmem>>, %arg2: memref<1152x128xbf16, #tpu.memory_space<vmem>>, %arg3: memref<1x128xf32, #tpu.memory_space<vmem>>, %arg4: memref<32x128xbf16, #tpu.memory_space<vmem>>) attributes {dimension_semantics = [#tpu.dimension_semantics<parallel>], iteration_bounds = array<i64: 1>, scalar_prefetch = 0 : i64, scratch_operands = 0 : i64, tpu.core_type = #tpu.core_type<tc>, window_params = [{transform_indices = @transform_0, window_bounds = array<i64: 32, 1152>}, {pipeline_mode = #tpu.pipeline_mode<synchronous>, transform_indices = @transform_1, window_bounds = array<i64: 1152, 128>}, {pipeline_mode = #tpu.pipeline_mode<synchronous>, transform_indices = @transform_2, window_bounds = array<i64: 1, 128>}, {transform_indices = @transform_3, window_bounds = array<i64: 32, 128>}]} {
    %c0 = arith.constant 0 : index
    %c0_0 = arith.constant 0 : index
    %0 = vector.load %arg1[%c0, %c0_0] : memref<32x1152xbf16, #tpu.memory_space<vmem>>, vector<32x1152xbf16>
    %c0_1 = arith.constant 0 : index
    %c0_2 = arith.constant 0 : index
    %1 = vector.load %arg2[%c0_1, %c0_2] : memref<1152x128xbf16, #tpu.memory_space<vmem>>, vector<1152x128xbf16>
    %cst = arith.constant dense<0.000000e+00> : vector<32x128xf32>
    %2 = tpu.matmul %0, %1, %cst {dimension_numbers = #tpu.dot_dimension_numbers<[1], [0], [0], [1], [0, 0, 1, 1], [], []>} : vector<32x1152xbf16>, vector<1152x128xbf16>, vector<32x128xf32> -> vector<32x128xf32>
    %c0_3 = arith.constant 0 : index
    %c0_4 = arith.constant 0 : index
    %3 = vector.load %arg3[%c0_3, %c0_4] : memref<1x128xf32, #tpu.memory_space<vmem>>, vector<1x128xf32>
    %4 = vector.broadcast %3 : vector<1x128xf32> to vector<32x128xf32>
    %5 = arith.addf %2, %4 : vector<32x128xf32>
    %cst_5 = arith.constant 0.000000e+00 : f32
    %6 = vector.broadcast %cst_5 : f32 to vector<32x128xf32>
    %7 = arith.maximumf %5, %6 : vector<32x128xf32>
    %8 = arith.truncf %7 : vector<32x128xf32> to vector<32x128xbf16>
    %c0_6 = arith.constant 0 : index
    %c0_7 = arith.constant 0 : index
    %9 = vector.load %arg4[%c0_6, %c0_7] : memref<32x128xbf16, #tpu.memory_space<vmem>>, vector<32x128xbf16>
    tpu.vector_store %arg4[%c0_6, %c0_7], %8 {strides = array<i32>} : memref<32x128xbf16, #tpu.memory_space<vmem>>, vector<32x128xbf16>,
    return
  }
  func.func @transform_0(%arg0: i32) -> (i32, i32) {
    %c0_i32 = arith.constant 0 : i32
    %c0_i32_0 = arith.constant 0 : i32
    return %arg0, %c0_i32 : i32, i32
  }
  func.func @transform_1(%arg0: i32) -> (i32, i32) {
    %c0_i32 = arith.constant 0 : i32
    %c0_i32_0 = arith.constant 0 : i32
    %c0_i32_1 = arith.constant 0 : i32
    return %c0_i32, %c0_i32_0 : i32, i32
  }
  func.func @transform_2(%arg0: i32) -> (i32, i32) {
    %c0_i32 = arith.constant 0 : i32
    %c0_i32_0 = arith.constant 0 : i32
    %c0_i32_1 = arith.constant 0 : i32
    return %c0_i32, %c0_i32_0 : i32, i32
  }
  func.func @transform_3(%arg0: i32) -> (i32, i32) {
    %c0_i32 = arith.constant 0 : i32
    %c0_i32_0 = arith.constant 0 : i32
    return %arg0, %c0_i32 : i32, i32
  }
}

module attributes {stable_mosaic.version = 11 : i64} {
  func.func @_deconv_phase_kernel(%arg0: i32, %arg1: memref<32x512xbf16, #tpu.memory_space<vmem>>, %arg2: memref<1x512x128xbf16, #tpu.memory_space<vmem>>, %arg3: memref<1x128xf32, #tpu.memory_space<vmem>>, %arg4: memref<8x1x4x128xbf16, #tpu.memory_space<vmem>>) attributes {dimension_semantics = [#tpu.dimension_semantics<parallel>], iteration_bounds = array<i64: 2>, scalar_prefetch = 0 : i64, scratch_operands = 0 : i64, tpu.core_type = #tpu.core_type<tc>, window_params = [{pipeline_mode = #tpu.pipeline_mode<synchronous>, transform_indices = @transform_0, window_bounds = array<i64: 32, 512>}, {transform_indices = @transform_1, window_bounds = array<i64: 1, 512, 128>}, {pipeline_mode = #tpu.pipeline_mode<synchronous>, transform_indices = @transform_2, window_bounds = array<i64: 1, 128>}, {transform_indices = @transform_3, window_bounds = array<i64: 8, 1, 4, 128>}]} {
    %c0 = arith.constant 0 : index
    %c0_0 = arith.constant 0 : index
    %0 = vector.load %arg1[%c0, %c0_0] : memref<32x512xbf16, #tpu.memory_space<vmem>>, vector<32x512xbf16>
    %c0_1 = arith.constant 0 : index
    %c0_2 = arith.constant 0 : index
    %c0_3 = arith.constant 0 : index
    %1 = vector.load %arg2[%c0_1, %c0_2, %c0_3] : memref<1x512x128xbf16, #tpu.memory_space<vmem>>, vector<1x512x128xbf16>
    %2 = vector.shape_cast %1 : vector<1x512x128xbf16> to vector<512x128xbf16>
    %cst = arith.constant dense<0.000000e+00> : vector<32x128xf32>
    %3 = tpu.matmul %0, %2, %cst {dimension_numbers = #tpu.dot_dimension_numbers<[1], [0], [0], [1], [0, 0, 1, 1], [], []>} : vector<32x512xbf16>, vector<512x128xbf16>, vector<32x128xf32> -> vector<32x128xf32>
    %c0_4 = arith.constant 0 : index
    %c0_5 = arith.constant 0 : index
    %4 = vector.load %arg3[%c0_4, %c0_5] : memref<1x128xf32, #tpu.memory_space<vmem>>, vector<1x128xf32>
    %5 = vector.broadcast %4 : vector<1x128xf32> to vector<32x128xf32>
    %6 = arith.addf %3, %5 : vector<32x128xf32>
    %cst_6 = arith.constant 0.000000e+00 : f32
    %7 = vector.broadcast %cst_6 : f32 to vector<32x128xf32>
    %8 = arith.maximumf %6, %7 : vector<32x128xf32>
    %9 = vector.shape_cast %8 : vector<32x128xf32> to vector<8x1x4x128xf32>
    %10 = arith.truncf %9 : vector<8x1x4x128xf32> to vector<8x1x4x128xbf16>
    %c0_7 = arith.constant 0 : index
    %c0_8 = arith.constant 0 : index
    %c0_9 = arith.constant 0 : index
    %c0_10 = arith.constant 0 : index
    %11 = vector.load %arg4[%c0_7, %c0_8, %c0_9, %c0_10] : memref<8x1x4x128xbf16, #tpu.memory_space<vmem>>, vector<8x1x4x128xbf16>
    tpu.vector_store %arg4[%c0_7, %c0_8, %c0_9, %c0_10], %10 {strides = array<i32>} : memref<8x1x4x128xbf16, #tpu.memory_space<vmem>>, vector<8x1x4x128xbf16>,
    return
  }
  func.func @transform_0(%arg0: i32) -> (i32, i32) {
    %c0_i32 = arith.constant 0 : i32
    %c0_i32_0 = arith.constant 0 : i32
    %c0_i32_1 = arith.constant 0 : i32
    return %c0_i32, %c0_i32_0 : i32, i32
  }
  func.func @transform_1(%arg0: i32) -> (i32, i32, i32) {
    %c0_i32 = arith.constant 0 : i32
    %c0_i32_0 = arith.constant 0 : i32
    %c0_i32_1 = arith.constant 0 : i32
    return %arg0, %c0_i32, %c0_i32_0 : i32, i32, i32
  }
  func.func @transform_2(%arg0: i32) -> (i32, i32) {
    %c0_i32 = arith.constant 0 : i32
    %c0_i32_0 = arith.constant 0 : i32
    %c0_i32_1 = arith.constant 0 : i32
    return %c0_i32, %c0_i32_0 : i32, i32
  }
  func.func @transform_3(%arg0: i32) -> (i32, i32, i32, i32) {
    %c0_i32 = arith.constant 0 : i32
    %c0_i32_0 = arith.constant 0 : i32
    %c0_i32_1 = arith.constant 0 : i32
    %c0_i32_2 = arith.constant 0 : i32
    return %c0_i32, %arg0, %c0_i32_0, %c0_i32_1 : i32, i32, i32, i32
  }
}

module attributes {stable_mosaic.version = 11 : i64} {
  func.func @_deconv_phase_kernel(%arg0: i32, %arg1: memref<128x256xbf16, #tpu.memory_space<vmem>>, %arg2: memref<1x256x128xbf16, #tpu.memory_space<vmem>>, %arg3: memref<1x128xf32, #tpu.memory_space<vmem>>, %arg4: memref<16x1x8x128xbf16, #tpu.memory_space<vmem>>) attributes {dimension_semantics = [#tpu.dimension_semantics<parallel>], iteration_bounds = array<i64: 2>, scalar_prefetch = 0 : i64, scratch_operands = 0 : i64, tpu.core_type = #tpu.core_type<tc>, window_params = [{pipeline_mode = #tpu.pipeline_mode<synchronous>, transform_indices = @transform_0, window_bounds = array<i64: 128, 256>}, {transform_indices = @transform_1, window_bounds = array<i64: 1, 256, 128>}, {pipeline_mode = #tpu.pipeline_mode<synchronous>, transform_indices = @transform_2, window_bounds = array<i64: 1, 128>}, {transform_indices = @transform_3, window_bounds = array<i64: 16, 1, 8, 128>}]} {
    %c0 = arith.constant 0 : index
    %c0_0 = arith.constant 0 : index
    %0 = vector.load %arg1[%c0, %c0_0] : memref<128x256xbf16, #tpu.memory_space<vmem>>, vector<128x256xbf16>
    %c0_1 = arith.constant 0 : index
    %c0_2 = arith.constant 0 : index
    %c0_3 = arith.constant 0 : index
    %1 = vector.load %arg2[%c0_1, %c0_2, %c0_3] : memref<1x256x128xbf16, #tpu.memory_space<vmem>>, vector<1x256x128xbf16>
    %2 = vector.shape_cast %1 : vector<1x256x128xbf16> to vector<256x128xbf16>
    %cst = arith.constant dense<0.000000e+00> : vector<128x128xf32>
    %3 = tpu.matmul %0, %2, %cst {dimension_numbers = #tpu.dot_dimension_numbers<[1], [0], [0], [1], [0, 0, 1, 1], [], []>} : vector<128x256xbf16>, vector<256x128xbf16>, vector<128x128xf32> -> vector<128x128xf32>
    %c0_4 = arith.constant 0 : index
    %c0_5 = arith.constant 0 : index
    %4 = vector.load %arg3[%c0_4, %c0_5] : memref<1x128xf32, #tpu.memory_space<vmem>>, vector<1x128xf32>
    %5 = vector.broadcast %4 : vector<1x128xf32> to vector<128x128xf32>
    %6 = arith.addf %3, %5 : vector<128x128xf32>
    %cst_6 = arith.constant 0.000000e+00 : f32
    %7 = vector.broadcast %cst_6 : f32 to vector<128x128xf32>
    %8 = arith.maximumf %6, %7 : vector<128x128xf32>
    %9 = vector.shape_cast %8 : vector<128x128xf32> to vector<16x1x8x128xf32>
    %10 = arith.truncf %9 : vector<16x1x8x128xf32> to vector<16x1x8x128xbf16>
    %c0_7 = arith.constant 0 : index
    %c0_8 = arith.constant 0 : index
    %c0_9 = arith.constant 0 : index
    %c0_10 = arith.constant 0 : index
    %11 = vector.load %arg4[%c0_7, %c0_8, %c0_9, %c0_10] : memref<16x1x8x128xbf16, #tpu.memory_space<vmem>>, vector<16x1x8x128xbf16>
    tpu.vector_store %arg4[%c0_7, %c0_8, %c0_9, %c0_10], %10 {strides = array<i32>} : memref<16x1x8x128xbf16, #tpu.memory_space<vmem>>, vector<16x1x8x128xbf16>,
    return
  }
  func.func @transform_0(%arg0: i32) -> (i32, i32) {
    %c0_i32 = arith.constant 0 : i32
    %c0_i32_0 = arith.constant 0 : i32
    %c0_i32_1 = arith.constant 0 : i32
    return %c0_i32, %c0_i32_0 : i32, i32
  }
  func.func @transform_1(%arg0: i32) -> (i32, i32, i32) {
    %c0_i32 = arith.constant 0 : i32
    %c0_i32_0 = arith.constant 0 : i32
    %c0_i32_1 = arith.constant 0 : i32
    return %arg0, %c0_i32, %c0_i32_0 : i32, i32, i32
  }
  func.func @transform_2(%arg0: i32) -> (i32, i32) {
    %c0_i32 = arith.constant 0 : i32
    %c0_i32_0 = arith.constant 0 : i32
    %c0_i32_1 = arith.constant 0 : i32
    return %c0_i32, %c0_i32_0 : i32, i32
  }
  func.func @transform_3(%arg0: i32) -> (i32, i32, i32, i32) {
    %c0_i32 = arith.constant 0 : i32
    %c0_i32_0 = arith.constant 0 : i32
    %c0_i32_1 = arith.constant 0 : i32
    %c0_i32_2 = arith.constant 0 : i32
    return %c0_i32, %arg0, %c0_i32_0, %c0_i32_1 : i32, i32, i32, i32
  }
}

module attributes {stable_mosaic.version = 11 : i64} {
  func.func @_deconv_phase_kernel(%arg0: i32, %arg1: memref<512x256xbf16, #tpu.memory_space<vmem>>, %arg2: memref<1x256x128xbf16, #tpu.memory_space<vmem>>, %arg3: memref<1x128xf32, #tpu.memory_space<vmem>>, %arg4: memref<32x1x16x128xf32, #tpu.memory_space<vmem>>) attributes {dimension_semantics = [#tpu.dimension_semantics<parallel>], iteration_bounds = array<i64: 2>, scalar_prefetch = 0 : i64, scratch_operands = 0 : i64, tpu.core_type = #tpu.core_type<tc>, window_params = [{pipeline_mode = #tpu.pipeline_mode<synchronous>, transform_indices = @transform_0, window_bounds = array<i64: 512, 256>}, {transform_indices = @transform_1, window_bounds = array<i64: 1, 256, 128>}, {pipeline_mode = #tpu.pipeline_mode<synchronous>, transform_indices = @transform_2, window_bounds = array<i64: 1, 128>}, {transform_indices = @transform_3, window_bounds = array<i64: 32, 1, 16, 128>}]} {
    %c0 = arith.constant 0 : index
    %c0_0 = arith.constant 0 : index
    %0 = vector.load %arg1[%c0, %c0_0] : memref<512x256xbf16, #tpu.memory_space<vmem>>, vector<512x256xbf16>
    %c0_1 = arith.constant 0 : index
    %c0_2 = arith.constant 0 : index
    %c0_3 = arith.constant 0 : index
    %1 = vector.load %arg2[%c0_1, %c0_2, %c0_3] : memref<1x256x128xbf16, #tpu.memory_space<vmem>>, vector<1x256x128xbf16>
    %2 = vector.shape_cast %1 : vector<1x256x128xbf16> to vector<256x128xbf16>
    %cst = arith.constant dense<0.000000e+00> : vector<512x128xf32>
    %3 = tpu.matmul %0, %2, %cst {dimension_numbers = #tpu.dot_dimension_numbers<[1], [0], [0], [1], [0, 0, 1, 1], [], []>} : vector<512x256xbf16>, vector<256x128xbf16>, vector<512x128xf32> -> vector<512x128xf32>
    %c0_4 = arith.constant 0 : index
    %c0_5 = arith.constant 0 : index
    %4 = vector.load %arg3[%c0_4, %c0_5] : memref<1x128xf32, #tpu.memory_space<vmem>>, vector<1x128xf32>
    %5 = vector.broadcast %4 : vector<1x128xf32> to vector<512x128xf32>
    %6 = arith.addf %3, %5 : vector<512x128xf32>
    %7 = math.tanh %6 : vector<512x128xf32>
    %8 = vector.shape_cast %7 : vector<512x128xf32> to vector<32x1x16x128xf32>
    %c0_6 = arith.constant 0 : index
    %c0_7 = arith.constant 0 : index
    %c0_8 = arith.constant 0 : index
    %c0_9 = arith.constant 0 : index
    %9 = vector.load %arg4[%c0_6, %c0_7, %c0_8, %c0_9] : memref<32x1x16x128xf32, #tpu.memory_space<vmem>>, vector<32x1x16x128xf32>
    tpu.vector_store %arg4[%c0_6, %c0_7, %c0_8, %c0_9], %8 {strides = array<i32>} : memref<32x1x16x128xf32, #tpu.memory_space<vmem>>, vector<32x1x16x128xf32>,
    return
  }
  func.func @transform_0(%arg0: i32) -> (i32, i32) {
    %c0_i32 = arith.constant 0 : i32
    %c0_i32_0 = arith.constant 0 : i32
    %c0_i32_1 = arith.constant 0 : i32
    return %c0_i32, %c0_i32_0 : i32, i32
  }
  func.func @transform_1(%arg0: i32) -> (i32, i32, i32) {
    %c0_i32 = arith.constant 0 : i32
    %c0_i32_0 = arith.constant 0 : i32
    %c0_i32_1 = arith.constant 0 : i32
    return %arg0, %c0_i32, %c0_i32_0 : i32, i32, i32
  }
  func.func @transform_2(%arg0: i32) -> (i32, i32) {
    %c0_i32 = arith.constant 0 : i32
    %c0_i32_0 = arith.constant 0 : i32
    %c0_i32_1 = arith.constant 0 : i32
    return %c0_i32, %c0_i32_0 : i32, i32
  }
  func.func @transform_3(%arg0: i32) -> (i32, i32, i32, i32) {
    %c0_i32 = arith.constant 0 : i32
    %c0_i32_0 = arith.constant 0 : i32
    %c0_i32_1 = arith.constant 0 : i32
    %c0_i32_2 = arith.constant 0 : i32
    return %c0_i32, %arg0, %c0_i32_0, %c0_i32_1 : i32, i32, i32, i32
  }
}

</mosaic_0001>

<llo_original>
// kernel: forward.7
$region0: #{forward.7}
  #allocation0 [shape = 'u32[]', space=smem, size = 0x4, offset = 0x4, fixed_abs, tag = 'smem constant byte address 0x4 - core index']
  #allocation1 [shape = 'u32[144,128]{1,0:T(1,128)}', space=vmem, size = 0x12000, scoped, tag = 'internal scratch']
  %s0 = inlined_call_operand.vmem [shape: bf16[512,72], index: 0, kind: input, shape index: {}]
  %s1 = inlined_call_operand.vmem [shape: bf16[72,128], index: 1, kind: input, shape index: {}]
  %s2 = inlined_call_operand.vmem [shape: f32[1,128], index: 2, kind: input, shape index: {}]
  %s3 = inlined_call_operand.vmem [shape: bf16[512,128], index: 3, kind: output, shape index: {}]
  %s4 = sld [smem:[#allocation0]]
  $region45: #{forward.7} parent=0
    _
  %s6 = ssub.s32 1, %s4
  %s7 = scalar_select 0, %s6, %s4
  loop: start=0, step=1, limit=4
  $region2: #{forward.7} parent=0 // loop_pre_header
    _
  $region3: #{forward.7} parent=0 // loop_header
    %s9 = sphi 0, %s13
    %p10 = scmp.ge.s32.totalorder %s9, 4
    %s19 = sphi 0, %s21
    %s22 = sphi 0, %s19
    %s23 = sphi 0, %s22
    %s39 = sphi 0, %s23
    %s43 = sphi 0, %s43
    %s45 = sphi 0, %s43
    %s46 = sphi 0, %s45
    %s60 = sphi 0, %s46
    %s64 = sphi 0, %s64
    %s66 = sphi 0, %s64
    %s67 = sphi 0, %s66
    %s81 = sphi 0, %s67
    %s87 = sphi 0, %s89
    %s90 = sphi 0, %s87
    %s91 = sphi 0, %s90
    %s107 = sphi 0, %s91
  $region4: #{forward.7} parent=0 // loop_header_branch
    %12 = sbr.rel (%p10) target = $region8
  $region5: #{forward.7} parent=0 // loop_body
    %s14 = ssub.s32 %s9, 1
    %s15 = ssub.s32 %s9, 2
    %s16 = sadd.s32 %s9, 1
    %s17 = ssub.s32 %s9, %s16
    %p18 = scmp.eq.s32.totalorder %s17, 0
    %s20 = sadd.s32 %s19, 1
    %s21 = scalar_select %p18, %s19, %s20
    %p24 = pneg %p18
    %p25 = scmp.eq.s32.totalorder %s9, 1
    %p26 = por %p24, %p25
    %p27 = scmp.ne.s32.totalorder %s19, %s22
    %p28 = scmp.eq.s32.totalorder %s9, 0
    %p29 = por %p27, %p28
    %p30 = scmp.ne.s32.totalorder %s19, %s22
    %p31 = scmp.eq.s32.totalorder %s14, 1
    %p32 = por %p30, %p31
    %p33 = scmp.ne.s32.totalorder %s22, %s23
    %p34 = scmp.eq.s32.totalorder %s14, 0
    %p35 = por %p33, %p34
    %p36 = scmp.ne.s32.totalorder %s22, %s23
    %p37 = scmp.eq.s32.totalorder %s15, 1
    %p38 = por %p36, %p37
    %p40 = scmp.ne.s32.totalorder %s23, %s39
    %p41 = scmp.eq.s32.totalorder %s15, 0
    %p42 = por %p40, %p41
    %s44 = sadd.s32 %s43, 1
    %p47 = scmp.eq.s32.totalorder %s9, 1
    %p48 = scmp.ne.s32.totalorder %s43, %s45
    %p49 = scmp.eq.s32.totalorder %s9, 0
    %p50 = por %p48, %p49
    %p51 = scmp.ne.s32.totalorder %s43, %s45
    %p52 = scmp.eq.s32.totalorder %s14, 1
    %p53 = por %p51, %p52
    %p54 = scmp.ne.s32.totalorder %s45, %s46
    %p55 = scmp.eq.s32.totalorder %s14, 0
    %p56 = por %p54, %p55
    %p57 = scmp.ne.s32.totalorder %s45, %s46
    %p58 = scmp.eq.s32.totalorder %s15, 1
    %p59 = por %p57, %p58
    %p61 = scmp.ne.s32.totalorder %s46, %s60
    %p62 = scmp.eq.s32.totalorder %s15, 0
    %p63 = por %p61, %p62
    %s65 = sadd.s32 %s64, 1
    %p68 = scmp.eq.s32.totalorder %s9, 1
    %p69 = scmp.ne.s32.totalorder %s64, %s66
    %p70 = scmp.eq.s32.totalorder %s9, 0
    %p71 = por %p69, %p70
    %p72 = scmp.ne.s32.totalorder %s64, %s66
    %p73 = scmp.eq.s32.totalorder %s14, 1
    %p74 = por %p72, %p73
    %p75 = scmp.ne.s32.totalorder %s66, %s67
    %p76 = scmp.eq.s32.totalorder %s14, 0
    %p77 = por %p75, %p76
    %p78 = scmp.ne.s32.totalorder %s66, %s67
    %p79 = scmp.eq.s32.totalorder %s15, 1
    %p80 = por %p78, %p79
    %p82 = scmp.ne.s32.totalorder %s67, %s81
    %p83 = scmp.eq.s32.totalorder %s15, 0
    %p84 = por %p82, %p83
    %s85 = ssub.s32 %s9, %s16
    %p86 = scmp.eq.s32.totalorder %s85, 0
    %s88 = sadd.s32 %s87, 1
    %s89 = scalar_select %p86, %s87, %s88
    %p92 = pneg %p86
    %p93 = scmp.eq.s32.totalorder %s9, 1
    %p94 = por %p92, %p93
    %p95 = scmp.ne.s32.totalorder %s87, %s90
    %p96 = scmp.eq.s32.totalorder %s9, 0
    %p97 = por %p95, %p96
    %p98 = scmp.ne.s32.totalorder %s87, %s90
    %p99 = scmp.eq.s32.totalorder %s14, 1
    %p100 = por %p98, %p99
    %p101 = scmp.ne.s32.totalorder %s90, %s91
    %p102 = scmp.eq.s32.totalorder %s14, 0
    %p103 = por %p101, %p102
    %p104 = scmp.ne.s32.totalorder %s90, %s91
    %p105 = scmp.eq.s32.totalorder %s15, 1
    %p106 = por %p104, %p105
    %p108 = scmp.ne.s32.totalorder %s91, %s107
    %p109 = scmp.eq.s32.totalorder %s15, 0
    %p110 = por %p108, %p109
    %p111 = scmp.le.s32.totalorder 1, %s9
    %p112 = scmp.lt.s32.totalorder %s9, 3
    %p113 = pnand %p111, %p112
    %p114 = pneg %p113
    // Predicated region
    $region9: #{forward.7} parent=5 // pred_check
      _
    $region10: #{forward.7} parent=5 // pred_check_branch
      %116 = sbr.rel (%p113) target = $region12
    $region11: #{forward.7} parent=5 // pred_region
      %s117 = ssub.s32 %s9, 1
      // Predicated region
      $region13: #{forward.7} parent=11 // pred_check
        %p118 = pneg %p56
      $region14: #{forward.7} parent=11 // pred_check_branch
        %120 = sbr.rel (%p118) target = $region16
      $region15: #{forward.7} parent=11 // pred_region
        _
      $region16: #{forward.7} parent=11 // pred_fallthru
        _
      // Predicated region
      $region17: #{forward.7} parent=11 // pred_check
        %p121 = pneg %p77
      $region18: #{forward.7} parent=11 // pred_check_branch
        %123 = sbr.rel (%p121) target = $region20
      $region19: #{forward.7} parent=11 // pred_region
        _
      $region20: #{forward.7} parent=11 // pred_fallthru
        _
    $region12: #{forward.7} parent=5 // pred_fallthru
      _
    %p124 = scmp.lt.s32.totalorder %s9, 2
    // Predicated region
    $region21: #{forward.7} parent=5 // pred_check
      %p125 = pneg %p124
    $region22: #{forward.7} parent=5 // pred_check_branch
      %127 = sbr.rel (%p125) target = $region24
    $region23: #{forward.7} parent=5 // pred_region
      // Predicated region
      $region25: #{forward.7} parent=23 // pred_check
        %p128 = pneg %p29
      $region26: #{forward.7} parent=23 // pred_check_branch
        %130 = sbr.rel (%p128) target = $region28
      $region27: #{forward.7} parent=23 // pred_region
        %s131 = smul.u32 32, %s9
        %p132 = scmp.lt.s32.totalorder %s131, 63
        %s133 = scalar_select %p132, %s131, 63
        %s134 = smul.addr %s133, 4
        %s135 = scalar_lea.vmem %s0, %s134
        %s136 = smul.u32 32, %s9
      $region28: #{forward.7} parent=23 // pred_fallthru
        _
    $region24: #{forward.7} parent=5 // pred_fallthru
      _
    %p137 = scmp.le.s32.totalorder 1, %s9
    %p138 = scmp.lt.s32.totalorder %s9, 3
    %p139 = pnand %p137, %p138
    %p140 = pneg %p139
    // Predicated region
    $region29: #{forward.7} parent=5 // pred_check
      _
    $region30: #{forward.7} parent=5 // pred_check_branch
      %142 = sbr.rel (%p139) target = $region32
    $region31: #{forward.7} parent=5 // pred_region
      %s143 = ssub.s32 %s9, 1
      %s144 = smul.u32 32, %s14
      %p145 = scmp.lt.s32.totalorder %s144, 63
      %s146 = scalar_select %p145, %s144, 63
      %s147 = smul.addr %s146, 4
      %s148 = scalar_lea.vmem %s0, %s147
      %p149 = pneg %p35
      %p150 = pneg %p32
      %p151 = pneg %p56
      %p152 = pneg %p53
      %p153 = pneg %p77
      %p154 = pneg %p74
      %p155 = pneg %p103
      %p156 = pneg %p100
      %s157 = smul.u32 32, %s14
      %p158 = scmp.lt.s32.totalorder %s157, 63
      %s159 = scalar_select %p158, %s157, 63
      %s160 = smul.addr %s159, 4
      %s161 = scalar_lea.vmem %s3, %s160
      %s162 = smul.u32 32, %s14
      %p163 = scmp.lt.s32.totalorder %s162, 63
      %s164 = scalar_select %p163, %s162, 63
      %s165 = smul.addr %s164, 4
      %s166 = scalar_lea.vmem %s0, %s165
      %s167 = smul.u32 32, %s14
      %s168 = smul.u32 32, %s14
      %p169 = scmp.lt.s32.totalorder %s168, 63
      %s170 = scalar_select %p169, %s168, 63
      %s171 = smul.addr %s170, 4
      %s172 = scalar_lea.vmem %s3, %s171
      %s173 = smul.u32 32, %s14
      %v175 = vld [vmem:[%s166] sm:$0xf]
      %v176 = vld [vmem:[%s166 + $0x4] sm:$0xf]
      %v177 = vld [vmem:[%s166 + $0x8] sm:$0xf]
      %v178 = vld [vmem:[%s166 + $0xc] sm:$0xf]
      %v179 = vld [vmem:[%s166 + $0x10] sm:$0xf]
      %v180 = vld [vmem:[%s166 + $0x14] sm:$0xf]
      %v181 = vld [vmem:[%s166 + $0x18] sm:$0xf]
      %v182 = vld [vmem:[%s166 + $0x1c] sm:$0xf]
      %v183 = vld [vmem:[%s166 + $0x20] sm:$0xf]
      %v184 = vld [vmem:[%s166 + $0x24] sm:$0xf]
      %v185 = vld [vmem:[%s166 + $0x28] sm:$0xf]
      %v186 = vld [vmem:[%s166 + $0x2c] sm:$0xf]
      %v187 = vld [vmem:[%s166 + $0x30] sm:$0xf]
      %v188 = vld [vmem:[%s166 + $0x34] sm:$0xf]
      %v189 = vld [vmem:[%s166 + $0x38] sm:$0xf]
      %v190 = vld [vmem:[%s166 + $0x3c] sm:$0xf]
      %v191 = vld [vmem:[%s166 + $0x40] sm:$0xf]
      %v192 = vld [vmem:[%s166 + $0x44] sm:$0xf]
      %v193 = vld [vmem:[%s166 + $0x48] sm:$0xf]
      %v194 = vld [vmem:[%s166 + $0x4c] sm:$0xf]
      %v195 = vld [vmem:[%s166 + $0x50] sm:$0xf]
      %v196 = vld [vmem:[%s166 + $0x54] sm:$0xf]
      %v197 = vld [vmem:[%s166 + $0x58] sm:$0xf]
      %v198 = vld [vmem:[%s166 + $0x5c] sm:$0xf]
      %v199 = vld [vmem:[%s166 + $0x60] sm:$0xf]
      %v200 = vld [vmem:[%s166 + $0x64] sm:$0xf]
      %v201 = vld [vmem:[%s166 + $0x68] sm:$0xf]
      %v202 = vld [vmem:[%s166 + $0x6c] sm:$0xf]
      %v203 = vld [vmem:[%s166 + $0x70] sm:$0xf]
      %v204 = vld [vmem:[%s166 + $0x74] sm:$0xf]
      %v205 = vld [vmem:[%s166 + $0x78] sm:$0xf]
      %v206 = vld [vmem:[%s166 + $0x7c] sm:$0xf]
      %v207 = vld [vmem:[%s1] sm:$0xf]
      %v208 = vld [vmem:[%s1 + $0x4] sm:$0xf]
      %v209 = vld [vmem:[%s1 + $0x8] sm:$0xf]
      %v210 = vld [vmem:[%s1 + $0xc] sm:$0xf]
      %v211 = vld [vmem:[%s1 + $0x10] sm:$0xf]
      %v212 = vld [vmem:[%s1 + $0x14] sm:$0xf]
      %v213 = vld [vmem:[%s1 + $0x18] sm:$0xf]
      %v214 = vld [vmem:[%s1 + $0x1c] sm:$0xf]
      %v215 = vld [vmem:[%s1 + $0x20] sm:$0xf]
      %v216 = vld [vmem:[%s2] sm:$0x1]
      %v218 = vlaneseq
      %v219 = vshrl.u32 %v218, 7
      %v220 = vsub.s32 0, %v219
      %v221 = vrot.slane %v216, %v220
      %v255 = vunpack.c.l.b16 %v175
      %v256 = vunpack.c.l.b16 %v176
      %v257 = vunpack.c.l.b16 %v177
      %v258 = vunpack.c.l.b16 %v178
      %v259 = vunpack.c.l.b16 %v179
      %v260 = vunpack.c.l.b16 %v180
      %v261 = vunpack.c.l.b16 %v181
      %v262 = vunpack.c.l.b16 %v182
      %v263 = vunpack.c.l.b16 %v183
      %v264 = vunpack.c.l.b16 %v184
      %v265 = vunpack.c.l.b16 %v185
      %v266 = vunpack.c.l.b16 %v186
      %v267 = vunpack.c.l.b16 %v187
      %v268 = vunpack.c.l.b16 %v188
      %v269 = vunpack.c.l.b16 %v189
      %v270 = vunpack.c.l.b16 %v190
      %v271 = vunpack.c.l.b16 %v191
      %v272 = vunpack.c.l.b16 %v192
      %v273 = vunpack.c.l.b16 %v193
      %v274 = vunpack.c.l.b16 %v194
      %v275 = vunpack.c.l.b16 %v195
      %v276 = vunpack.c.l.b16 %v196
      %v277 = vunpack.c.l.b16 %v197
      %v278 = vunpack.c.l.b16 %v198
      %v279 = vunpack.c.l.b16 %v199
      %v280 = vunpack.c.l.b16 %v200
      %v281 = vunpack.c.l.b16 %v201
      %v282 = vunpack.c.l.b16 %v202
      %v283 = vunpack.c.l.b16 %v203
      %v284 = vunpack.c.l.b16 %v204
      %v285 = vunpack.c.l.b16 %v205
      %v286 = vunpack.c.l.b16 %v206
      %v287 = vpack.c.b16 %v256, %v255
      %v288 = vpack.c.b16 %v258, %v257
      %v289 = vpack.c.b16 %v260, %v259
      %v290 = vpack.c.b16 %v262, %v261
      %v291 = vpack.c.b16 %v264, %v263
      %v292 = vpack.c.b16 %v266, %v265
      %v293 = vpack.c.b16 %v268, %v267
      %v294 = vpack.c.b16 %v270, %v269
      %v295 = vpack.c.b16 %v272, %v271
      %v296 = vpack.c.b16 %v274, %v273
      %v297 = vpack.c.b16 %v276, %v275
      %v298 = vpack.c.b16 %v278, %v277
      %v299 = vpack.c.b16 %v280, %v279
      %v300 = vpack.c.b16 %v282, %v281
      %v301 = vpack.c.b16 %v284, %v283
      %v302 = vpack.c.b16 %v286, %v285
      %v312 = vunpack.c.l.b16 %v207
      %v313 = vunpack.c.l.b16 %v208
      %v314 = vunpack.c.l.b16 %v209
      %v315 = vunpack.c.l.b16 %v210
      %v316 = vunpack.c.l.b16 %v211
      %v317 = vunpack.c.l.b16 %v212
      %v318 = vunpack.c.l.b16 %v213
      %v319 = vunpack.c.l.b16 %v214
      %v320 = vunpack.c.l.b16 %v215
      %v321 = vpack.c.b16 %v313, %v312
      %v322 = vpack.c.b16 %v315, %v314
      %v323 = vpack.c.b16 %v317, %v316
      %v324 = vpack.c.b16 %v319, %v318
      %v325 = vpack.c.b16 %v320, %v320
      %vm330 = vcmask 588800
      %v332 = vsel %vm330, %v287, 0
      %v335 = vsel %vm330, %v288, 0
      %v338 = vsel %vm330, %v289, 0
      %v341 = vsel %vm330, %v290, 0
      %v344 = vsel %vm330, %v291, 0
      %v347 = vsel %vm330, %v292, 0
      %v350 = vsel %vm330, %v293, 0
      %v353 = vsel %vm330, %v294, 0
      %v356 = vsel %vm330, %v295, 0
      %v359 = vsel %vm330, %v296, 0
      %v362 = vsel %vm330, %v297, 0
      %v365 = vsel %vm330, %v298, 0
      %v368 = vsel %vm330, %v299, 0
      %v371 = vsel %vm330, %v300, 0
      %v374 = vsel %vm330, %v301, 0
      %v377 = vsel %vm330, %v302, 0
      %vm379 = vcmask 1043456
      %v381 = vsel %vm379, %v325, 0
      %383 = vmatprep.subr.bf16.mxu0 0
      %384 = vmatpush1.bf16.msra.mxu0 0
      %385 = vmatprep.subr.bf16.mxu0 0
      %386 = vmatpush1.bf16.msra.mxu0 0
      %387 = vmatprep.subr.bf16.mxu0 0
      %388 = vmatpush1.bf16.msra.mxu0 0
      %389 = vmatprep.subr.bf16.mxu0 0
      %390 = vmatpush1.bf16.msra.mxu0 %v381
      %391 = vmatprep.subr.bf16.mxu0 0
      %392 = vmatpush1.bf16.msra.mxu0 %v324
      %393 = vmatprep.subr.bf16.mxu0 0
      %394 = vmatpush1.bf16.msra.mxu0 %v323
      %395 = vmatprep.subr.bf16.mxu0 0
      %396 = vmatpush1.bf16.msra.mxu0 %v322
      %397 = vmatprep.subr.bf16.mxu0 0
      %398 = vmatpush1.bf16.msra.mxu0 %v321
      %399 = vmatprep.subr.bf16.mxu0 0
      %400 = vmatpush2.bf16.msra.mxu0 0
      %401 = vmatprep.subr.bf16.mxu0 0
      %402 = vmatpush2.bf16.msra.mxu0 0
      %403 = vmatprep.subr.bf16.mxu0 0
      %404 = vmatpush2.bf16.msra.mxu0 0
      %405 = vmatprep.subr.bf16.mxu0 0
      %406 = vmatpush2.bf16.msra.mxu0 0
      %407 = vmatprep.subr.bf16.mxu0 0
      %408 = vmatpush2.bf16.msra.mxu0 0
      %409 = vmatprep.subr.bf16.mxu0 0
      %410 = vmatpush2.bf16.msra.mxu0 0
      %411 = vmatprep.subr.bf16.mxu0 0
      %412 = vmatpush2.bf16.msra.mxu0 0
      %413 = vmatprep.subr.bf16.mxu0 0
      %414 = vmatpush2.bf16.msra.mxu0 0
      %415 = vmatprep.mubr.bf16.mxu0 0
      %416 = vmatmul.mubr.bf16.gmra.mxu0 %v332
      %v417 = vpop.f32.mrf.mxu0
      %v418 = vadd.f32 %v221, %v417
      %v419 = vpop.f32.mrf.mxu0
      %v420 = vpop.f32.mrf.mxu0
      %v421 = vadd.f32 %v221, %v420
      %v422 = vpop.f32.mrf.mxu0
      %423 = vmatprep.mubr.bf16.mxu0 0
      %424 = vmatmul.mubr.bf16.gmra.mxu0 %v335
      %v425 = vpop.f32.mrf.mxu0
      %v426 = vadd.f32 %v221, %v425
      %v427 = vpop.f32.mrf.mxu0
      %v428 = vpop.f32.mrf.mxu0
      %v429 = vadd.f32 %v221, %v428
      %v430 = vpop.f32.mrf.mxu0
      %431 = vmatprep.mubr.bf16.mxu0 0
      %432 = vmatmul.mubr.bf16.gmra.mxu0 %v338
      %v433 = vpop.f32.mrf.mxu0
      %v434 = vadd.f32 %v221, %v433
      %v435 = vpop.f32.mrf.mxu0
      %v436 = vpop.f32.mrf.mxu0
      %v437 = vadd.f32 %v221, %v436
      %v438 = vpop.f32.mrf.mxu0
      %439 = vmatprep.mubr.bf16.mxu0 0
      %440 = vmatmul.mubr.bf16.gmra.mxu0 %v341
      %v441 = vpop.f32.mrf.mxu0
      %v442 = vadd.f32 %v221, %v441
      %v443 = vpop.f32.mrf.mxu0
      %v444 = vpop.f32.mrf.mxu0
      %v445 = vadd.f32 %v221, %v444
      %v446 = vpop.f32.mrf.mxu0
      %447 = vmatprep.mubr.bf16.mxu0 0
      %448 = vmatmul.mubr.bf16.gmra.mxu0 %v344
      %v449 = vpop.f32.mrf.mxu0
      %v450 = vadd.f32 %v221, %v449
      %v451 = vpop.f32.mrf.mxu0
      %v452 = vpop.f32.mrf.mxu0
      %v453 = vadd.f32 %v221, %v452
      %v454 = vpop.f32.mrf.mxu0
      %455 = vmatprep.mubr.bf16.mxu0 0
      %456 = vmatmul.mubr.bf16.gmra.mxu0 %v347
      %v457 = vpop.f32.mrf.mxu0
      %v458 = vadd.f32 %v221, %v457
      %v459 = vpop.f32.mrf.mxu0
      %v460 = vpop.f32.mrf.mxu0
      %v461 = vadd.f32 %v221, %v460
      %v462 = vpop.f32.mrf.mxu0
      %463 = vmatprep.mubr.bf16.mxu0 0
      %464 = vmatmul.mubr.bf16.gmra.mxu0 %v350
      %v465 = vpop.f32.mrf.mxu0
      %v466 = vadd.f32 %v221, %v465
      %v467 = vpop.f32.mrf.mxu0
      %v468 = vpop.f32.mrf.mxu0
      %v469 = vadd.f32 %v221, %v468
      %v470 = vpop.f32.mrf.mxu0
      %471 = vmatprep.mubr.bf16.mxu0 0
      %472 = vmatmul.mubr.bf16.gmra.mxu0 %v353
      %v473 = vpop.f32.mrf.mxu0
      %v474 = vadd.f32 %v221, %v473
      %v475 = vpop.f32.mrf.mxu0
      %v476 = vpop.f32.mrf.mxu0
      %v477 = vadd.f32 %v221, %v476
      %v478 = vpop.f32.mrf.mxu0
      %479 = vmatprep.mubr.bf16.mxu0 0
      %480 = vmatmul.mubr.bf16.gmra.mxu0 %v356
      %v481 = vpop.f32.mrf.mxu0
      %v482 = vadd.f32 %v221, %v481
      %v483 = vpop.f32.mrf.mxu0
      %v484 = vpop.f32.mrf.mxu0
      %v485 = vadd.f32 %v221, %v484
      %v486 = vpop.f32.mrf.mxu0
      %487 = vmatprep.mubr.bf16.mxu0 0
      %488 = vmatmul.mubr.bf16.gmra.mxu0 %v359
      %v489 = vpop.f32.mrf.mxu0
      %v490 = vadd.f32 %v221, %v489
      %v491 = vpop.f32.mrf.mxu0
      %v492 = vpop.f32.mrf.mxu0
      %v493 = vadd.f32 %v221, %v492
      %v494 = vpop.f32.mrf.mxu0
      %495 = vmatprep.mubr.bf16.mxu0 0
      %496 = vmatmul.mubr.bf16.gmra.mxu0 %v362
      %v497 = vpop.f32.mrf.mxu0
      %v498 = vadd.f32 %v221, %v497
      %v499 = vpop.f32.mrf.mxu0
      %v500 = vpop.f32.mrf.mxu0
      %v501 = vadd.f32 %v221, %v500
      %v502 = vpop.f32.mrf.mxu0
      %503 = vmatprep.mubr.bf16.mxu0 0
      %504 = vmatmul.mubr.bf16.gmra.mxu0 %v365
      %v505 = vpop.f32.mrf.mxu0
      %v506 = vadd.f32 %v221, %v505
      %v507 = vpop.f32.mrf.mxu0
      %v508 = vpop.f32.mrf.mxu0
      %v509 = vadd.f32 %v221, %v508
      %v510 = vpop.f32.mrf.mxu0
      %511 = vmatprep.mubr.bf16.mxu0 0
      %512 = vmatmul.mubr.bf16.gmra.mxu0 %v368
      %v513 = vpop.f32.mrf.mxu0
      %v514 = vadd.f32 %v221, %v513
      %v515 = vpop.f32.mrf.mxu0
      %v516 = vpop.f32.mrf.mxu0
      %v517 = vadd.f32 %v221, %v516
      %v518 = vpop.f32.mrf.mxu0
      %519 = vmatprep.mubr.bf16.mxu0 0
      %520 = vmatmul.mubr.bf16.gmra.mxu0 %v371
      %v521 = vpop.f32.mrf.mxu0
      %v522 = vadd.f32 %v221, %v521
      %v523 = vpop.f32.mrf.mxu0
      %v524 = vpop.f32.mrf.mxu0
      %v525 = vadd.f32 %v221, %v524
      %v526 = vpop.f32.mrf.mxu0
      %527 = vmatprep.mubr.bf16.mxu0 0
      %528 = vmatmul.mubr.bf16.gmra.mxu0 %v374
      %v529 = vpop.f32.mrf.mxu0
      %v530 = vadd.f32 %v221, %v529
      %v531 = vpop.f32.mrf.mxu0
      %v532 = vpop.f32.mrf.mxu0
      %v533 = vadd.f32 %v221, %v532
      %v534 = vpop.f32.mrf.mxu0
      %535 = vmatprep.mubr.bf16.mxu0 0
      %536 = vmatmul.mubr.bf16.gmra.mxu0 %v377
      %v537 = vpop.f32.mrf.mxu0
      %v538 = vadd.f32 %v221, %v537
      %v539 = vpop.f32.mrf.mxu0
      %v540 = vpop.f32.mrf.mxu0
      %v541 = vadd.f32 %v221, %v540
      %v542 = vpop.f32.mrf.mxu0
      %543 = vdwg.mxu0
      %v544 = vmax.f32 %v418, 0.0
      %v545 = vmax.f32 %v421, 0.0
      %v546 = vmax.f32 %v426, 0.0
      %v547 = vmax.f32 %v429, 0.0
      %v548 = vmax.f32 %v434, 0.0
      %v549 = vmax.f32 %v437, 0.0
      %v550 = vmax.f32 %v442, 0.0
      %v551 = vmax.f32 %v445, 0.0
      %v552 = vmax.f32 %v450, 0.0
      %v553 = vmax.f32 %v453, 0.0
      %v554 = vmax.f32 %v458, 0.0
      %v555 = vmax.f32 %v461, 0.0
      %v556 = vmax.f32 %v466, 0.0
      %v557 = vmax.f32 %v469, 0.0
      %v558 = vmax.f32 %v474, 0.0
      %v559 = vmax.f32 %v477, 0.0
      %v560 = vmax.f32 %v482, 0.0
      %v561 = vmax.f32 %v485, 0.0
      %v562 = vmax.f32 %v490, 0.0
      %v563 = vmax.f32 %v493, 0.0
      %v564 = vmax.f32 %v498, 0.0
      %v565 = vmax.f32 %v501, 0.0
      %v566 = vmax.f32 %v506, 0.0
      %v567 = vmax.f32 %v509, 0.0
      %v568 = vmax.f32 %v514, 0.0
      %v569 = vmax.f32 %v517, 0.0
      %v570 = vmax.f32 %v522, 0.0
      %v571 = vmax.f32 %v525, 0.0
      %v572 = vmax.f32 %v530, 0.0
      %v573 = vmax.f32 %v533, 0.0
      %v574 = vmax.f32 %v538, 0.0
      %v575 = vmax.f32 %v541, 0.0
      %v576 = vpack.c.bf16 %v545, %v544
      %v577 = vpack.c.bf16 %v547, %v546
      %v578 = vpack.c.bf16 %v549, %v548
      %v579 = vpack.c.bf16 %v551, %v550
      %v580 = vpack.c.bf16 %v553, %v552
      %v581 = vpack.c.bf16 %v555, %v554
      %v582 = vpack.c.bf16 %v557, %v556
      %v583 = vpack.c.bf16 %v559, %v558
      %v584 = vpack.c.bf16 %v561, %v560
      %v585 = vpack.c.bf16 %v563, %v562
      %v586 = vpack.c.bf16 %v565, %v564
      %v587 = vpack.c.bf16 %v567, %v566
      %v588 = vpack.c.bf16 %v569, %v568
      %v589 = vpack.c.bf16 %v571, %v570
      %v590 = vpack.c.bf16 %v573, %v572
      %v591 = vpack.c.bf16 %v575, %v574
      %v608 = vunpack.c.l.b16 %v576
      %v609 = vunpack.c.h.b16 %v576
      %v610 = vunpack.c.l.b16 %v577
      %v611 = vunpack.c.h.b16 %v577
      %v612 = vunpack.c.l.b16 %v578
      %v613 = vunpack.c.h.b16 %v578
      %v614 = vunpack.c.l.b16 %v579
      %v615 = vunpack.c.h.b16 %v579
      %v616 = vunpack.c.l.b16 %v580
      %v617 = vunpack.c.h.b16 %v580
      %v618 = vunpack.c.l.b16 %v581
      %v619 = vunpack.c.h.b16 %v581
      %v620 = vunpack.c.l.b16 %v582
      %v621 = vunpack.c.h.b16 %v582
      %v622 = vunpack.c.l.b16 %v583
      %v623 = vunpack.c.h.b16 %v583
      %v624 = vunpack.c.l.b16 %v584
      %v625 = vunpack.c.h.b16 %v584
      %v626 = vunpack.c.l.b16 %v585
      %v627 = vunpack.c.h.b16 %v585
      %v628 = vunpack.c.l.b16 %v586
      %v629 = vunpack.c.h.b16 %v586
      %v630 = vunpack.c.l.b16 %v587
      %v631 = vunpack.c.h.b16 %v587
      %v632 = vunpack.c.l.b16 %v588
      %v633 = vunpack.c.h.b16 %v588
      %v634 = vunpack.c.l.b16 %v589
      %v635 = vunpack.c.h.b16 %v589
      %v636 = vunpack.c.l.b16 %v590
      %v637 = vunpack.c.h.b16 %v590
      %v638 = vunpack.c.l.b16 %v591
      %v639 = vunpack.c.h.b16 %v591
      %v640 = vpack.c.b16 %v608, %v608
      %v641 = vpack.c.b16 %v609, %v609
      %v642 = vpack.c.b16 %v610, %v610
      %v643 = vpack.c.b16 %v611, %v611
      %v644 = vpack.c.b16 %v612, %v612
      %v645 = vpack.c.b16 %v613, %v613
      %v646 = vpack.c.b16 %v614, %v614
      %v647 = vpack.c.b16 %v615, %v615
      %v648 = vpack.c.b16 %v616, %v616
      %v649 = vpack.c.b16 %v617, %v617
      %v650 = vpack.c.b16 %v618, %v618
      %v651 = vpack.c.b16 %v619, %v619
      %v652 = vpack.c.b16 %v620, %v620
      %v653 = vpack.c.b16 %v621, %v621
      %v654 = vpack.c.b16 %v622, %v622
      %v655 = vpack.c.b16 %v623, %v623
      %v656 = vpack.c.b16 %v624, %v624
      %v657 = vpack.c.b16 %v625, %v625
      %v658 = vpack.c.b16 %v626, %v626
      %v659 = vpack.c.b16 %v627, %v627
      %v660 = vpack.c.b16 %v628, %v628
      %v661 = vpack.c.b16 %v629, %v629
      %v662 = vpack.c.b16 %v630, %v630
      %v663 = vpack.c.b16 %v631, %v631
      %v664 = vpack.c.b16 %v632, %v632
      %v665 = vpack.c.b16 %v633, %v633
      %v666 = vpack.c.b16 %v634, %v634
      %v667 = vpack.c.b16 %v635, %v635
      %v668 = vpack.c.b16 %v636, %v636
      %v669 = vpack.c.b16 %v637, %v637
      %v670 = vpack.c.b16 %v638, %v638
      %v671 = vpack.c.b16 %v639, %v639
      %704 = vst [vmem:[%s172] sm:$0xf] %v640
      %705 = vst [vmem:[%s172 + $0x4] sm:$0xf] %v641
      %706 = vst [vmem:[%s172 + $0x8] sm:$0xf] %v642
      %707 = vst [vmem:[%s172 + $0xc] sm:$0xf] %v643
      %708 = vst [vmem:[%s172 + $0x10] sm:$0xf] %v644
      %709 = vst [vmem:[%s172 + $0x14] sm:$0xf] %v645
      %710 = vst [vmem:[%s172 + $0x18] sm:$0xf] %v646
      %711 = vst [vmem:[%s172 + $0x1c] sm:$0xf] %v647
      %712 = vst [vmem:[%s172 + $0x20] sm:$0xf] %v648
      %713 = vst [vmem:[%s172 + $0x24] sm:$0xf] %v649
      %714 = vst [vmem:[%s172 + $0x28] sm:$0xf] %v650
      %715 = vst [vmem:[%s172 + $0x2c] sm:$0xf] %v651
      %716 = vst [vmem:[%s172 + $0x30] sm:$0xf] %v652
      %717 = vst [vmem:[%s172 + $0x34] sm:$0xf] %v653
      %718 = vst [vmem:[%s172 + $0x38] sm:$0xf] %v654
      %719 = vst [vmem:[%s172 + $0x3c] sm:$0xf] %v655
      %720 = vst [vmem:[%s172 + $0x40] sm:$0xf] %v656
      %721 = vst [vmem:[%s172 + $0x44] sm:$0xf] %v657
      %722 = vst [vmem:[%s172 + $0x48] sm:$0xf] %v658
      %723 = vst [vmem:[%s172 + $0x4c] sm:$0xf] %v659
      %724 = vst [vmem:[%s172 + $0x50] sm:$0xf] %v660
      %725 = vst [vmem:[%s172 + $0x54] sm:$0xf] %v661
      %726 = vst [vmem:[%s172 + $0x58] sm:$0xf] %v662
      %727 = vst [vmem:[%s172 + $0x5c] sm:$0xf] %v663
      %728 = vst [vmem:[%s172 + $0x60] sm:$0xf] %v664
      %729 = vst [vmem:[%s172 + $0x64] sm:$0xf] %v665
      %730 = vst [vmem:[%s172 + $0x68] sm:$0xf] %v666
      %731 = vst [vmem:[%s172 + $0x6c] sm:$0xf] %v667
      %732 = vst [vmem:[%s172 + $0x70] sm:$0xf] %v668
      %733 = vst [vmem:[%s172 + $0x74] sm:$0xf] %v669
      %734 = vst [vmem:[%s172 + $0x78] sm:$0xf] %v670
      %735 = vst [vmem:[%s172 + $0x7c] sm:$0xf] %v671
      %s736 = smul.u32 32, %s14
      %p737 = scmp.lt.s32.totalorder %s736, 63
      %s738 = scalar_select %p737, %s736, 63
      %s739 = smul.addr %s738, 4
      %s740 = scalar_lea.vmem %s3, %s739
      // Predicated region
      $region33: #{forward.7} parent=31 // pred_check
        %p741 = pneg %p100
      $region34: #{forward.7} parent=31 // pred_check_branch
        %743 = sbr.rel (%p741) target = $region36
      $region35: #{forward.7} parent=31 // pred_region
        %s744 = smul.u32 32, %s14
      $region36: #{forward.7} parent=31 // pred_fallthru
        _
    $region32: #{forward.7} parent=5 // pred_fallthru
      _
    %p745 = scmp.le.s32.totalorder 2, %s9
    // Predicated region
    $region37: #{forward.7} parent=5 // pred_check
      %p746 = pneg %p745
    $region38: #{forward.7} parent=5 // pred_check_branch
      %748 = sbr.rel (%p746) target = $region40
    $region39: #{forward.7} parent=5 // pred_region
      %s749 = ssub.s32 %s9, 2
      // Predicated region
      $region41: #{forward.7} parent=39 // pred_check
        %p750 = pneg %p106
      $region42: #{forward.7} parent=39 // pred_check_branch
        %752 = sbr.rel (%p750) target = $region44
      $region43: #{forward.7} parent=39 // pred_region
        %s753 = smul.u32 32, %s15
        %p754 = scmp.lt.s32.totalorder %s753, 63
        %s755 = scalar_select %p754, %s753, 63
        %s756 = smul.addr %s755, 4
        %s757 = scalar_lea.vmem %s3, %s756
      $region44: #{forward.7} parent=39 // pred_fallthru
        _
    $region40: #{forward.7} parent=5 // pred_fallthru
      _
  $region6: #{forward.7} parent=0 // loop_footer
    %s13 = sadd.s32 1, %s9
  $region7: #{forward.7} parent=0 // loop_footer_branch
    %8 = sbr.rel target = $region3
  $region8: #{forward.7} parent=0 // loop_exit
    _

// kernel: forward.8
$region0: #{forward.8}
  #allocation0 [shape = 'u32[]', space=smem, size = 0x4, offset = 0x4, fixed_abs, tag = 'smem constant byte address 0x4 - core index']
  #allocation1 [shape = 'u32[144,128]{1,0:T(1,128)}', space=vmem, size = 0x12000, scoped, tag = 'internal scratch']
  %s0 = inlined_call_operand.vmem [shape: bf16[128,1152], index: 0, kind: input, shape index: {}]
  %s1 = inlined_call_operand.vmem [shape: bf16[1152,128], index: 1, kind: input, shape index: {}]
  %s2 = inlined_call_operand.vmem [shape: f32[1,128], index: 2, kind: input, shape index: {}]
  %s3 = inlined_call_operand.vmem [shape: bf16[128,128], index: 3, kind: output, shape index: {}]
  %s4 = sld [smem:[#allocation0]]
  $region22: #{forward.8} parent=0
    _
  %s6 = ssub.s32 1, %s4
  %s7 = scalar_select 0, %s6, %s4
  // Predicated region
  $region2: #{forward.8} parent=0 // pred_check
    _
  $region3: #{forward.8} parent=0 // pred_check_branch
    %9 = sbr.rel (0) target = $region5
  $region4: #{forward.8} parent=0 // pred_region
    _
  $region5: #{forward.8} parent=0 // pred_fallthru
    _
  // Predicated region
  $region6: #{forward.8} parent=0 // pred_check
    _
  $region7: #{forward.8} parent=0 // pred_check_branch
    %11 = sbr.rel (0) target = $region9
  $region8: #{forward.8} parent=0 // pred_region
    _
  $region9: #{forward.8} parent=0 // pred_fallthru
    _
  // Predicated region
  $region10: #{forward.8} parent=0 // pred_check
    _
  $region11: #{forward.8} parent=0 // pred_check_branch
    %13 = sbr.rel (0) target = $region13
  $region12: #{forward.8} parent=0 // pred_region
    _
  $region13: #{forward.8} parent=0 // pred_fallthru
    _
  %v15 = vld [vmem:[%s0] sm:$0xff]
  %v16 = vld [vmem:[%s0 + $0x8] sm:$0xff]
  %v17 = vld [vmem:[%s0 + $0x10] sm:$0xff]
  %v18 = vld [vmem:[%s0 + $0x18] sm:$0xff]
  %v19 = vld [vmem:[%s0 + $0x20] sm:$0xf]
  %v20 = vld [vmem:[%s0 + $0x24] sm:$0xff]
  %v21 = vld [vmem:[%s0 + $0x2c] sm:$0xff]
  %v22 = vld [vmem:[%s0 + $0x34] sm:$0xff]
  %v23 = vld [vmem:[%s0 + $0x3c] sm:$0xff]
  %v24 = vld [vmem:[%s0 + $0x44] sm:$0xf]
  %v25 = vld [vmem:[%s0 + $0x48] sm:$0xff]
  %v26 = vld [vmem:[%s0 + $0x50] sm:$0xff]
  %v27 = vld [vmem:[%s0 + $0x58] sm:$0xff]
  %v28 = vld [vmem:[%s0 + $0x60] sm:$0xff]
  %v29 = vld [vmem:[%s0 + $0x68] sm:$0xf]
  %v30 = vld [vmem:[%s0 + $0x6c] sm:$0xff]
  %v31 = vld [vmem:[%s0 + $0x74] sm:$0xff]
  %v32 = vld [vmem:[%s0 + $0x7c] sm:$0xff]
  %v33 = vld [vmem:[%s0 + $0x84] sm:$0xff]
  %v34 = vld [vmem:[%s0 + $0x8c] sm:$0xf]
  %v35 = vld [vmem:[%s0 + $0x90] sm:$0xff]
  %v36 = vld [vmem:[%s0 + $0x98] sm:$0xff]
  %v37 = vld [vmem:[%s0 + $0xa0] sm:$0xff]
  %v38 = vld [vmem:[%s0 + $0xa8] sm:$0xff]
  %v39 = vld [vmem:[%s0 + $0xb0] sm:$0xf]
  %v40 = vld [vmem:[%s0 + $0xb4] sm:$0xff]
  %v41 = vld [vmem:[%s0 + $0xbc] sm:$0xff]
  %v42 = vld [vmem:[%s0 + $0xc4] sm:$0xff]
  %v43 = vld [vmem:[%s0 + $0xcc] sm:$0xff]
  %v44 = vld [vmem:[%s0 + $0xd4] sm:$0xf]
  %v45 = vld [vmem:[%s0 + $0xd8] sm:$0xff]
  %v46 = vld [vmem:[%s0 + $0xe0] sm:$0xff]
  %v47 = vld [vmem:[%s0 + $0xe8] sm:$0xff]
  %v48 = vld [vmem:[%s0 + $0xf0] sm:$0xff]
  %v49 = vld [vmem:[%s0 + $0xf8] sm:$0xf]
  %v50 = vld [vmem:[%s0 + $0xfc] sm:$0xff]
  %v51 = vld [vmem:[%s0 + $0x104] sm:$0xff]
  %v52 = vld [vmem:[%s0 + $0x10c] sm:$0xff]
  %v53 = vld [vmem:[%s0 + $0x114] sm:$0xff]
  %v54 = vld [vmem:[%s0 + $0x11c] sm:$0xf]
  %v55 = vld [vmem:[%s0 + $0x120] sm:$0xff]
  %v56 = vld [vmem:[%s0 + $0x128] sm:$0xff]
  %v57 = vld [vmem:[%s0 + $0x130] sm:$0xff]
  %v58 = vld [vmem:[%s0 + $0x138] sm:$0xff]
  %v59 = vld [vmem:[%s0 + $0x140] sm:$0xf]
  %v60 = vld [vmem:[%s0 + $0x144] sm:$0xff]
  %v61 = vld [vmem:[%s0 + $0x14c] sm:$0xff]
  %v62 = vld [vmem:[%s0 + $0x154] sm:$0xff]
  %v63 = vld [vmem:[%s0 + $0x15c] sm:$0xff]
  %v64 = vld [vmem:[%s0 + $0x164] sm:$0xf]
  %v65 = vld [vmem:[%s0 + $0x168] sm:$0xff]
  %v66 = vld [vmem:[%s0 + $0x170] sm:$0xff]
  %v67 = vld [vmem:[%s0 + $0x178] sm:$0xff]
  %v68 = vld [vmem:[%s0 + $0x180] sm:$0xff]
  %v69 = vld [vmem:[%s0 + $0x188] sm:$0xf]
  %v70 = vld [vmem:[%s0 + $0x18c] sm:$0xff]
  %v71 = vld [vmem:[%s0 + $0x194] sm:$0xff]
  %v72 = vld [vmem:[%s0 + $0x19c] sm:$0xff]
  %v73 = vld [vmem:[%s0 + $0x1a4] sm:$0xff]
  %v74 = vld [vmem:[%s0 + $0x1ac] sm:$0xf]
  %v75 = vld [vmem:[%s0 + $0x1b0] sm:$0xff]
  %v76 = vld [vmem:[%s0 + $0x1b8] sm:$0xff]
  %v77 = vld [vmem:[%s0 + $0x1c0] sm:$0xff]
  %v78 = vld [vmem:[%s0 + $0x1c8] sm:$0xff]
  %v79 = vld [vmem:[%s0 + $0x1d0] sm:$0xf]
  %v80 = vld [vmem:[%s0 + $0x1d4] sm:$0xff]
  %v81 = vld [vmem:[%s0 + $0x1dc] sm:$0xff]
  %v82 = vld [vmem:[%s0 + $0x1e4] sm:$0xff]
  %v83 = vld [vmem:[%s0 + $0x1ec] sm:$0xff]
  %v84 = vld [vmem:[%s0 + $0x1f4] sm:$0xf]
  %v85 = vld [vmem:[%s0 + $0x1f8] sm:$0xff]
  %v86 = vld [vmem:[%s0 + $0x200] sm:$0xff]
  %v87 = vld [vmem:[%s0 + $0x208] sm:$0xff]
  %v88 = vld [vmem:[%s0 + $0x210] sm:$0xff]
  %v89 = vld [vmem:[%s0 + $0x218] sm:$0xf]
  %v90 = vld [vmem:[%s0 + $0x21c] sm:$0xff]
  %v91 = vld [vmem:[%s0 + $0x224] sm:$0xff]
  %v92 = vld [vmem:[%s0 + $0x22c] sm:$0xff]
  %v93 = vld [vmem:[%s0 + $0x234] sm:$0xff]
  %v94 = vld [vmem:[%s0 + $0x23c] sm:$0xf]
  %v95 = vld [vmem:[%s1] sm:$0xf]
  %v96 = vld [vmem:[%s1 + $0x4] sm:$0xf]
  %v97 = vld [vmem:[%s1 + $0x8] sm:$0xf]
  %v98 = vld [vmem:[%s1 + $0xc] sm:$0xf]
  %v99 = vld [vmem:[%s1 + $0x10] sm:$0xf]
  %v100 = vld [vmem:[%s1 + $0x14] sm:$0xf]
  %v101 = vld [vmem:[%s1 + $0x18] sm:$0xf]
  %v102 = vld [vmem:[%s1 + $0x1c] sm:$0xf]
  %v103 = vld [vmem:[%s1 + $0x20] sm:$0xf]
  %v104 = vld [vmem:[%s1 + $0x24] sm:$0xf]
  %v105 = vld [vmem:[%s1 + $0x28] sm:$0xf]
  %v106 = vld [vmem:[%s1 + $0x2c] sm:$0xf]
  %v107 = vld [vmem:[%s1 + $0x30] sm:$0xf]
  %v108 = vld [vmem:[%s1 + $0x34] sm:$0xf]
  %v109 = vld [vmem:[%s1 + $0x38] sm:$0xf]
  %v110 = vld [vmem:[%s1 + $0x3c] sm:$0xf]
  %v111 = vld [vmem:[%s1 + $0x40] sm:$0xf]
  %v112 = vld [vmem:[%s1 + $0x44] sm:$0xf]
  %v113 = vld [vmem:[%s1 + $0x48] sm:$0xf]
  %v114 = vld [vmem:[%s1 + $0x4c] sm:$0xf]
  %v115 = vld [vmem:[%s1 + $0x50] sm:$0xf]
  %v116 = vld [vmem:[%s1 + $0x54] sm:$0xf]
  %v117 = vld [vmem:[%s1 + $0x58] sm:$0xf]
  %v118 = vld [vmem:[%s1 + $0x5c] sm:$0xf]
  %v119 = vld [vmem:[%s1 + $0x60] sm:$0xf]
  %v120 = vld [vmem:[%s1 + $0x64] sm:$0xf]
  %v121 = vld [vmem:[%s1 + $0x68] sm:$0xf]
  %v122 = vld [vmem:[%s1 + $0x6c] sm:$0xf]
  %v123 = vld [vmem:[%s1 + $0x70] sm:$0xf]
  %v124 = vld [vmem:[%s1 + $0x74] sm:$0xf]
  %v125 = vld [vmem:[%s1 + $0x78] sm:$0xf]
  %v126 = vld [vmem:[%s1 + $0x7c] sm:$0xf]
  %v127 = vld [vmem:[%s1 + $0x80] sm:$0xf]
  %v128 = vld [vmem:[%s1 + $0x84] sm:$0xf]
  %v129 = vld [vmem:[%s1 + $0x88] sm:$0xf]
  %v130 = vld [vmem:[%s1 + $0x8c] sm:$0xf]
  %v131 = vld [vmem:[%s1 + $0x90] sm:$0xf]
  %v132 = vld [vmem:[%s1 + $0x94] sm:$0xf]
  %v133 = vld [vmem:[%s1 + $0x98] sm:$0xf]
  %v134 = vld [vmem:[%s1 + $0x9c] sm:$0xf]
  %v135 = vld [vmem:[%s1 + $0xa0] sm:$0xf]
  %v136 = vld [vmem:[%s1 + $0xa4] sm:$0xf]
  %v137 = vld [vmem:[%s1 + $0xa8] sm:$0xf]
  %v138 = vld [vmem:[%s1 + $0xac] sm:$0xf]
  %v139 = vld [vmem:[%s1 + $0xb0] sm:$0xf]
  %v140 = vld [vmem:[%s1 + $0xb4] sm:$0xf]
  %v141 = vld [vmem:[%s1 + $0xb8] sm:$0xf]
  %v142 = vld [vmem:[%s1 + $0xbc] sm:$0xf]
  %v143 = vld [vmem:[%s1 + $0xc0] sm:$0xf]
  %v144 = vld [vmem:[%s1 + $0xc4] sm:$0xf]
  %v145 = vld [vmem:[%s1 + $0xc8] sm:$0xf]
  %v146 = vld [vmem:[%s1 + $0xcc] sm:$0xf]
  %v147 = vld [vmem:[%s1 + $0xd0] sm:$0xf]
  %v148 = vld [vmem:[%s1 + $0xd4] sm:$0xf]
  %v149 = vld [vmem:[%s1 + $0xd8] sm:$0xf]
  %v150 = vld [vmem:[%s1 + $0xdc] sm:$0xf]
  %v151 = vld [vmem:[%s1 + $0xe0] sm:$0xf]
  %v152 = vld [vmem:[%s1 + $0xe4] sm:$0xf]
  %v153 = vld [vmem:[%s1 + $0xe8] sm:$0xf]
  %v154 = vld [vmem:[%s1 + $0xec] sm:$0xf]
  %v155 = vld [vmem:[%s1 + $0xf0] sm:$0xf]
  %v156 = vld [vmem:[%s1 + $0xf4] sm:$0xf]
  %v157 = vld [vmem:[%s1 + $0xf8] sm:$0xf]
  %v158 = vld [vmem:[%s1 + $0xfc] sm:$0xf]
  %v159 = vld [vmem:[%s1 + $0x100] sm:$0xf]
  %v160 = vld [vmem:[%s1 + $0x104] sm:$0xf]
  %v161 = vld [vmem:[%s1 + $0x108] sm:$0xf]
  %v162 = vld [vmem:[%s1 + $0x10c] sm:$0xf]
  %v163 = vld [vmem:[%s1 + $0x110] sm:$0xf]
  %v164 = vld [vmem:[%s1 + $0x114] sm:$0xf]
  %v165 = vld [vmem:[%s1 + $0x118] sm:$0xf]
  %v166 = vld [vmem:[%s1 + $0x11c] sm:$0xf]
  %v167 = vld [vmem:[%s1 + $0x120] sm:$0xf]
  %v168 = vld [vmem:[%s1 + $0x124] sm:$0xf]
  %v169 = vld [vmem:[%s1 + $0x128] sm:$0xf]
  %v170 = vld [vmem:[%s1 + $0x12c] sm:$0xf]
  %v171 = vld [vmem:[%s1 + $0x130] sm:$0xf]
  %v172 = vld [vmem:[%s1 + $0x134] sm:$0xf]
  %v173 = vld [vmem:[%s1 + $0x138] sm:$0xf]
  %v174 = vld [vmem:[%s1 + $0x13c] sm:$0xf]
  %v175 = vld [vmem:[%s1 + $0x140] sm:$0xf]
  %v176 = vld [vmem:[%s1 + $0x144] sm:$0xf]
  %v177 = vld [vmem:[%s1 + $0x148] sm:$0xf]
  %v178 = vld [vmem:[%s1 + $0x14c] sm:$0xf]
  %v179 = vld [vmem:[%s1 + $0x150] sm:$0xf]
  %v180 = vld [vmem:[%s1 + $0x154] sm:$0xf]
  %v181 = vld [vmem:[%s1 + $0x158] sm:$0xf]
  %v182 = vld [vmem:[%s1 + $0x15c] sm:$0xf]
  %v183 = vld [vmem:[%s1 + $0x160] sm:$0xf]
  %v184 = vld [vmem:[%s1 + $0x164] sm:$0xf]
  %v185 = vld [vmem:[%s1 + $0x168] sm:$0xf]
  %v186 = vld [vmem:[%s1 + $0x16c] sm:$0xf]
  %v187 = vld [vmem:[%s1 + $0x170] sm:$0xf]
  %v188 = vld [vmem:[%s1 + $0x174] sm:$0xf]
  %v189 = vld [vmem:[%s1 + $0x178] sm:$0xf]
  %v190 = vld [vmem:[%s1 + $0x17c] sm:$0xf]
  %v191 = vld [vmem:[%s1 + $0x180] sm:$0xf]
  %v192 = vld [vmem:[%s1 + $0x184] sm:$0xf]
  %v193 = vld [vmem:[%s1 + $0x188] sm:$0xf]
  %v194 = vld [vmem:[%s1 + $0x18c] sm:$0xf]
  %v195 = vld [vmem:[%s1 + $0x190] sm:$0xf]
  %v196 = vld [vmem:[%s1 + $0x194] sm:$0xf]
  %v197 = vld [vmem:[%s1 + $0x198] sm:$0xf]
  %v198 = vld [vmem:[%s1 + $0x19c] sm:$0xf]
  %v199 = vld [vmem:[%s1 + $0x1a0] sm:$0xf]
  %v200 = vld [vmem:[%s1 + $0x1a4] sm:$0xf]
  %v201 = vld [vmem:[%s1 + $0x1a8] sm:$0xf]
  %v202 = vld [vmem:[%s1 + $0x1ac] sm:$0xf]
  %v203 = vld [vmem:[%s1 + $0x1b0] sm:$0xf]
  %v204 = vld [vmem:[%s1 + $0x1b4] sm:$0xf]
  %v205 = vld [vmem:[%s1 + $0x1b8] sm:$0xf]
  %v206 = vld [vmem:[%s1 + $0x1bc] sm:$0xf]
  %v207 = vld [vmem:[%s1 + $0x1c0] sm:$0xf]
  %v208 = vld [vmem:[%s1 + $0x1c4] sm:$0xf]
  %v209 = vld [vmem:[%s1 + $0x1c8] sm:$0xf]
  %v210 = vld [vmem:[%s1 + $0x1cc] sm:$0xf]
  %v211 = vld [vmem:[%s1 + $0x1d0] sm:$0xf]
  %v212 = vld [vmem:[%s1 + $0x1d4] sm:$0xf]
  %v213 = vld [vmem:[%s1 + $0x1d8] sm:$0xf]
  %v214 = vld [vmem:[%s1 + $0x1dc] sm:$0xf]
  %v215 = vld [vmem:[%s1 + $0x1e0] sm:$0xf]
  %v216 = vld [vmem:[%s1 + $0x1e4] sm:$0xf]
  %v217 = vld [vmem:[%s1 + $0x1e8] sm:$0xf]
  %v218 = vld [vmem:[%s1 + $0x1ec] sm:$0xf]
  %v219 = vld [vmem:[%s1 + $0x1f0] sm:$0xf]
  %v220 = vld [vmem:[%s1 + $0x1f4] sm:$0xf]
  %v221 = vld [vmem:[%s1 + $0x1f8] sm:$0xf]
  %v222 = vld [vmem:[%s1 + $0x1fc] sm:$0xf]
  %v223 = vld [vmem:[%s1 + $0x200] sm:$0xf]
  %v224 = vld [vmem:[%s1 + $0x204] sm:$0xf]
  %v225 = vld [vmem:[%s1 + $0x208] sm:$0xf]
  %v226 = vld [vmem:[%s1 + $0x20c] sm:$0xf]
  %v227 = vld [vmem:[%s1 + $0x210] sm:$0xf]
  %v228 = vld [vmem:[%s1 + $0x214] sm:$0xf]
  %v229 = vld [vmem:[%s1 + $0x218] sm:$0xf]
  %v230 = vld [vmem:[%s1 + $0x21c] sm:$0xf]
  %v231 = vld [vmem:[%s1 + $0x220] sm:$0xf]
  %v232 = vld [vmem:[%s1 + $0x224] sm:$0xf]
  %v233 = vld [vmem:[%s1 + $0x228] sm:$0xf]
  %v234 = vld [vmem:[%s1 + $0x22c] sm:$0xf]
  %v235 = vld [vmem:[%s1 + $0x230] sm:$0xf]
  %v236 = vld [vmem:[%s1 + $0x234] sm:$0xf]
  %v237 = vld [vmem:[%s1 + $0x238] sm:$0xf]
  %v238 = vld [vmem:[%s1 + $0x23c] sm:$0xf]
  %v239 = vld [vmem:[%s2] sm:$0x1]
  %v241 = vlaneseq
  %v242 = vshrl.u32 %v241, 7
  %v243 = vsub.s32 0, %v242
  %v244 = vrot.slane %v239, %v243
  %v326 = vunpack.c.l.b16 %v15
  %v327 = vunpack.c.h.b16 %v15
  %v328 = vunpack.c.l.b16 %v16
  %v329 = vunpack.c.h.b16 %v16
  %v330 = vunpack.c.l.b16 %v17
  %v331 = vunpack.c.h.b16 %v17
  %v332 = vunpack.c.l.b16 %v18
  %v333 = vunpack.c.h.b16 %v18
  %v334 = vunpack.c.l.b16 %v19
  %v335 = vunpack.c.l.b16 %v20
  %v336 = vunpack.c.h.b16 %v20
  %v337 = vunpack.c.l.b16 %v21
  %v338 = vunpack.c.h.b16 %v21
  %v339 = vunpack.c.l.b16 %v22
  %v340 = vunpack.c.h.b16 %v22
  %v341 = vunpack.c.l.b16 %v23
  %v342 = vunpack.c.h.b16 %v23
  %v343 = vunpack.c.l.b16 %v24
  %v344 = vunpack.c.l.b16 %v25
  %v345 = vunpack.c.h.b16 %v25
  %v346 = vunpack.c.l.b16 %v26
  %v347 = vunpack.c.h.b16 %v26
  %v348 = vunpack.c.l.b16 %v27
  %v349 = vunpack.c.h.b16 %v27
  %v350 = vunpack.c.l.b16 %v28
  %v351 = vunpack.c.h.b16 %v28
  %v352 = vunpack.c.l.b16 %v29
  %v353 = vunpack.c.l.b16 %v30
  %v354 = vunpack.c.h.b16 %v30
  %v355 = vunpack.c.l.b16 %v31
  %v356 = vunpack.c.h.b16 %v31
  %v357 = vunpack.c.l.b16 %v32
  %v358 = vunpack.c.h.b16 %v32
  %v359 = vunpack.c.l.b16 %v33
  %v360 = vunpack.c.h.b16 %v33
  %v361 = vunpack.c.l.b16 %v34
  %v362 = vunpack.c.l.b16 %v35
  %v363 = vunpack.c.h.b16 %v35
  %v364 = vunpack.c.l.b16 %v36
  %v365 = vunpack.c.h.b16 %v36
  %v366 = vunpack.c.l.b16 %v37
  %v367 = vunpack.c.h.b16 %v37
  %v368 = vunpack.c.l.b16 %v38
  %v369 = vunpack.c.h.b16 %v38
  %v370 = vunpack.c.l.b16 %v39
  %v371 = vunpack.c.l.b16 %v40
  %v372 = vunpack.c.h.b16 %v40
  %v373 = vunpack.c.l.b16 %v41
  %v374 = vunpack.c.h.b16 %v41
  %v375 = vunpack.c.l.b16 %v42
  %v376 = vunpack.c.h.b16 %v42
  %v377 = vunpack.c.l.b16 %v43
  %v378 = vunpack.c.h.b16 %v43
  %v379 = vunpack.c.l.b16 %v44
  %v380 = vunpack.c.l.b16 %v45
  %v381 = vunpack.c.h.b16 %v45
  %v382 = vunpack.c.l.b16 %v46
  %v383 = vunpack.c.h.b16 %v46
  %v384 = vunpack.c.l.b16 %v47
  %v385 = vunpack.c.h.b16 %v47
  %v386 = vunpack.c.l.b16 %v48
  %v387 = vunpack.c.h.b16 %v48
  %v388 = vunpack.c.l.b16 %v49
  %v389 = vunpack.c.l.b16 %v50
  %v390 = vunpack.c.h.b16 %v50
  %v391 = vunpack.c.l.b16 %v51
  %v392 = vunpack.c.h.b16 %v51
  %v393 = vunpack.c.l.b16 %v52
  %v394 = vunpack.c.h.b16 %v52
  %v395 = vunpack.c.l.b16 %v53
  %v396 = vunpack.c.h.b16 %v53
  %v397 = vunpack.c.l.b16 %v54
  %v398 = vunpack.c.l.b16 %v55
  %v399 = vunpack.c.h.b16 %v55
  %v400 = vunpack.c.l.b16 %v56
  %v401 = vunpack.c.h.b16 %v56
  %v402 = vunpack.c.l.b16 %v57
  %v403 = vunpack.c.h.b16 %v57
  %v404 = vunpack.c.l.b16 %v58
  %v405 = vunpack.c.h.b16 %v58
  %v406 = vunpack.c.l.b16 %v59
  %v407 = vunpack.c.l.b16 %v60
  %v408 = vunpack.c.h.b16 %v60
  %v409 = vunpack.c.l.b16 %v61
  %v410 = vunpack.c.h.b16 %v61
  %v411 = vunpack.c.l.b16 %v62
  %v412 = vunpack.c.h.b16 %v62
  %v413 = vunpack.c.l.b16 %v63
  %v414 = vunpack.c.h.b16 %v63
  %v415 = vunpack.c.l.b16 %v64
  %v416 = vunpack.c.l.b16 %v65
  %v417 = vunpack.c.h.b16 %v65
  %v418 = vunpack.c.l.b16 %v66
  %v419 = vunpack.c.h.b16 %v66
  %v420 = vunpack.c.l.b16 %v67
  %v421 = vunpack.c.h.b16 %v67
  %v422 = vunpack.c.l.b16 %v68
  %v423 = vunpack.c.h.b16 %v68
  %v424 = vunpack.c.l.b16 %v69
  %v425 = vunpack.c.l.b16 %v70
  %v426 = vunpack.c.h.b16 %v70
  %v427 = vunpack.c.l.b16 %v71
  %v428 = vunpack.c.h.b16 %v71
  %v429 = vunpack.c.l.b16 %v72
  %v430 = vunpack.c.h.b16 %v72
  %v431 = vunpack.c.l.b16 %v73
  %v432 = vunpack.c.h.b16 %v73
  %v433 = vunpack.c.l.b16 %v74
  %v434 = vunpack.c.l.b16 %v75
  %v435 = vunpack.c.h.b16 %v75
  %v436 = vunpack.c.l.b16 %v76
  %v437 = vunpack.c.h.b16 %v76
  %v438 = vunpack.c.l.b16 %v77
  %v439 = vunpack.c.h.b16 %v77
  %v440 = vunpack.c.l.b16 %v78
  %v441 = vunpack.c.h.b16 %v78
  %v442 = vunpack.c.l.b16 %v79
  %v443 = vunpack.c.l.b16 %v80
  %v444 = vunpack.c.h.b16 %v80
  %v445 = vunpack.c.l.b16 %v81
  %v446 = vunpack.c.h.b16 %v81
  %v447 = vunpack.c.l.b16 %v82
  %v448 = vunpack.c.h.b16 %v82
  %v449 = vunpack.c.l.b16 %v83
  %v450 = vunpack.c.h.b16 %v83
  %v451 = vunpack.c.l.b16 %v84
  %v452 = vunpack.c.l.b16 %v85
  %v453 = vunpack.c.h.b16 %v85
  %v454 = vunpack.c.l.b16 %v86
  %v455 = vunpack.c.h.b16 %v86
  %v456 = vunpack.c.l.b16 %v87
  %v457 = vunpack.c.h.b16 %v87
  %v458 = vunpack.c.l.b16 %v88
  %v459 = vunpack.c.h.b16 %v88
  %v460 = vunpack.c.l.b16 %v89
  %v461 = vunpack.c.l.b16 %v90
  %v462 = vunpack.c.h.b16 %v90
  %v463 = vunpack.c.l.b16 %v91
  %v464 = vunpack.c.h.b16 %v91
  %v465 = vunpack.c.l.b16 %v92
  %v466 = vunpack.c.h.b16 %v92
  %v467 = vunpack.c.l.b16 %v93
  %v468 = vunpack.c.h.b16 %v93
  %v469 = vunpack.c.l.b16 %v94
  %v470 = vpack.c.b16 %v335, %v326
  %v471 = vpack.c.b16 %v336, %v327
  %v472 = vpack.c.b16 %v337, %v328
  %v473 = vpack.c.b16 %v338, %v329
  %v474 = vpack.c.b16 %v339, %v330
  %v475 = vpack.c.b16 %v340, %v331
  %v476 = vpack.c.b16 %v341, %v332
  %v477 = vpack.c.b16 %v342, %v333
  %v478 = vpack.c.b16 %v343, %v334
  %v479 = vpack.c.b16 %v353, %v344
  %v480 = vpack.c.b16 %v354, %v345
  %v481 = vpack.c.b16 %v355, %v346
  %v482 = vpack.c.b16 %v356, %v347
  %v483 = vpack.c.b16 %v357, %v348
  %v484 = vpack.c.b16 %v358, %v349
  %v485 = vpack.c.b16 %v359, %v350
  %v486 = vpack.c.b16 %v360, %v351
  %v487 = vpack.c.b16 %v361, %v352
  %v488 = vpack.c.b16 %v371, %v362
  %v489 = vpack.c.b16 %v372, %v363
  %v490 = vpack.c.b16 %v373, %v364
  %v491 = vpack.c.b16 %v374, %v365
  %v492 = vpack.c.b16 %v375, %v366
  %v493 = vpack.c.b16 %v376, %v367
  %v494 = vpack.c.b16 %v377, %v368
  %v495 = vpack.c.b16 %v378, %v369
  %v496 = vpack.c.b16 %v379, %v370
  %v497 = vpack.c.b16 %v389, %v380
  %v498 = vpack.c.b16 %v390, %v381
  %v499 = vpack.c.b16 %v391, %v382
  %v500 = vpack.c.b16 %v392, %v383
  %v501 = vpack.c.b16 %v393, %v384
  %v502 = vpack.c.b16 %v394, %v385
  %v503 = vpack.c.b16 %v395, %v386
  %v504 = vpack.c.b16 %v396, %v387
  %v505 = vpack.c.b16 %v397, %v388
  %v506 = vpack.c.b16 %v407, %v398
  %v507 = vpack.c.b16 %v408, %v399
  %v508 = vpack.c.b16 %v409, %v400
  %v509 = vpack.c.b16 %v410, %v401
  %v510 = vpack.c.b16 %v411, %v402
  %v511 = vpack.c.b16 %v412, %v403
  %v512 = vpack.c.b16 %v413, %v404
  %v513 = vpack.c.b16 %v414, %v405
  %v514 = vpack.c.b16 %v415, %v406
  %v515 = vpack.c.b16 %v425, %v416
  %v516 = vpack.c.b16 %v426, %v417
  %v517 = vpack.c.b16 %v427, %v418
  %v518 = vpack.c.b16 %v428, %v419
  %v519 = vpack.c.b16 %v429, %v420
  %v520 = vpack.c.b16 %v430, %v421
  %v521 = vpack.c.b16 %v431, %v422
  %v522 = vpack.c.b16 %v432, %v423
  %v523 = vpack.c.b16 %v433, %v424
  %v524 = vpack.c.b16 %v443, %v434
  %v525 = vpack.c.b16 %v444, %v435
  %v526 = vpack.c.b16 %v445, %v436
  %v527 = vpack.c.b16 %v446, %v437
  %v528 = vpack.c.b16 %v447, %v438
  %v529 = vpack.c.b16 %v448, %v439
  %v530 = vpack.c.b16 %v449, %v440
  %v531 = vpack.c.b16 %v450, %v441
  %v532 = vpack.c.b16 %v451, %v442
  %v533 = vpack.c.b16 %v461, %v452
  %v534 = vpack.c.b16 %v462, %v453
  %v535 = vpack.c.b16 %v463, %v454
  %v536 = vpack.c.b16 %v464, %v455
  %v537 = vpack.c.b16 %v465, %v456
  %v538 = vpack.c.b16 %v466, %v457
  %v539 = vpack.c.b16 %v467, %v458
  %v540 = vpack.c.b16 %v468, %v459
  %v541 = vpack.c.b16 %v469, %v460
  %v758 = vunpack.c.l.b16 %v95
  %v759 = vunpack.c.l.b16 %v96
  %v760 = vunpack.c.l.b16 %v97
  %v761 = vunpack.c.l.b16 %v98
  %v762 = vunpack.c.l.b16 %v99
  %v763 = vunpack.c.l.b16 %v100
  %v764 = vunpack.c.l.b16 %v101
  %v765 = vunpack.c.l.b16 %v102
  %v766 = vunpack.c.l.b16 %v103
  %v767 = vunpack.c.l.b16 %v104
  %v768 = vunpack.c.l.b16 %v105
  %v769 = vunpack.c.l.b16 %v106
  %v770 = vunpack.c.l.b16 %v107
  %v771 = vunpack.c.l.b16 %v108
  %v772 = vunpack.c.l.b16 %v109
  %v773 = vunpack.c.l.b16 %v110
  %v774 = vunpack.c.l.b16 %v111
  %v775 = vunpack.c.l.b16 %v112
  %v776 = vunpack.c.l.b16 %v113
  %v777 = vunpack.c.l.b16 %v114
  %v778 = vunpack.c.l.b16 %v115
  %v779 = vunpack.c.l.b16 %v116
  %v780 = vunpack.c.l.b16 %v117
  %v781 = vunpack.c.l.b16 %v118
  %v782 = vunpack.c.l.b16 %v119
  %v783 = vunpack.c.l.b16 %v120
  %v784 = vunpack.c.l.b16 %v121
  %v785 = vunpack.c.l.b16 %v122
  %v786 = vunpack.c.l.b16 %v123
  %v787 = vunpack.c.l.b16 %v124
  %v788 = vunpack.c.l.b16 %v125
  %v789 = vunpack.c.l.b16 %v126
  %v790 = vunpack.c.l.b16 %v127
  %v791 = vunpack.c.l.b16 %v128
  %v792 = vunpack.c.l.b16 %v129
  %v793 = vunpack.c.l.b16 %v130
  %v794 = vunpack.c.l.b16 %v131
  %v795 = vunpack.c.l.b16 %v132
  %v796 = vunpack.c.l.b16 %v133
  %v797 = vunpack.c.l.b16 %v134
  %v798 = vunpack.c.l.b16 %v135
  %v799 = vunpack.c.l.b16 %v136
  %v800 = vunpack.c.l.b16 %v137
  %v801 = vunpack.c.l.b16 %v138
  %v802 = vunpack.c.l.b16 %v139
  %v803 = vunpack.c.l.b16 %v140
  %v804 = vunpack.c.l.b16 %v141
  %v805 = vunpack.c.l.b16 %v142
  %v806 = vunpack.c.l.b16 %v143
  %v807 = vunpack.c.l.b16 %v144
  %v808 = vunpack.c.l.b16 %v145
  %v809 = vunpack.c.l.b16 %v146
  %v810 = vunpack.c.l.b16 %v147
  %v811 = vunpack.c.l.b16 %v148
  %v812 = vunpack.c.l.b16 %v149
  %v813 = vunpack.c.l.b16 %v150
  %v814 = vunpack.c.l.b16 %v151
  %v815 = vunpack.c.l.b16 %v152
  %v816 = vunpack.c.l.b16 %v153
  %v817 = vunpack.c.l.b16 %v154
  %v818 = vunpack.c.l.b16 %v155
  %v819 = vunpack.c.l.b16 %v156
  %v820 = vunpack.c.l.b16 %v157
  %v821 = vunpack.c.l.b16 %v158
  %v822 = vunpack.c.l.b16 %v159
  %v823 = vunpack.c.l.b16 %v160
  %v824 = vunpack.c.l.b16 %v161
  %v825 = vunpack.c.l.b16 %v162
  %v826 = vunpack.c.l.b16 %v163
  %v827 = vunpack.c.l.b16 %v164
  %v828 = vunpack.c.l.b16 %v165
  %v829 = vunpack.c.l.b16 %v166
  %v830 = vunpack.c.l.b16 %v167
  %v831 = vunpack.c.l.b16 %v168
  %v832 = vunpack.c.l.b16 %v169
  %v833 = vunpack.c.l.b16 %v170
  %v834 = vunpack.c.l.b16 %v171
  %v835 = vunpack.c.l.b16 %v172
  %v836 = vunpack.c.l.b16 %v173
  %v837 = vunpack.c.l.b16 %v174
  %v838 = vunpack.c.l.b16 %v175
  %v839 = vunpack.c.l.b16 %v176
  %v840 = vunpack.c.l.b16 %v177
  %v841 = vunpack.c.l.b16 %v178
  %v842 = vunpack.c.l.b16 %v179
  %v843 = vunpack.c.l.b16 %v180
  %v844 = vunpack.c.l.b16 %v181
  %v845 = vunpack.c.l.b16 %v182
  %v846 = vunpack.c.l.b16 %v183
  %v847 = vunpack.c.l.b16 %v184
  %v848 = vunpack.c.l.b16 %v185
  %v849 = vunpack.c.l.b16 %v186
  %v850 = vunpack.c.l.b16 %v187
  %v851 = vunpack.c.l.b16 %v188
  %v852 = vunpack.c.l.b16 %v189
  %v853 = vunpack.c.l.b16 %v190
  %v854 = vunpack.c.l.b16 %v191
  %v855 = vunpack.c.l.b16 %v192
  %v856 = vunpack.c.l.b16 %v193
  %v857 = vunpack.c.l.b16 %v194
  %v858 = vunpack.c.l.b16 %v195
  %v859 = vunpack.c.l.b16 %v196
  %v860 = vunpack.c.l.b16 %v197
  %v861 = vunpack.c.l.b16 %v198
  %v862 = vunpack.c.l.b16 %v199
  %v863 = vunpack.c.l.b16 %v200
  %v864 = vunpack.c.l.b16 %v201
  %v865 = vunpack.c.l.b16 %v202
  %v866 = vunpack.c.l.b16 %v203
  %v867 = vunpack.c.l.b16 %v204
  %v868 = vunpack.c.l.b16 %v205
  %v869 = vunpack.c.l.b16 %v206
  %v870 = vunpack.c.l.b16 %v207
  %v871 = vunpack.c.l.b16 %v208
  %v872 = vunpack.c.l.b16 %v209
  %v873 = vunpack.c.l.b16 %v210
  %v874 = vunpack.c.l.b16 %v211
  %v875 = vunpack.c.l.b16 %v212
  %v876 = vunpack.c.l.b16 %v213
  %v877 = vunpack.c.l.b16 %v214
  %v878 = vunpack.c.l.b16 %v215
  %v879 = vunpack.c.l.b16 %v216
  %v880 = vunpack.c.l.b16 %v217
  %v881 = vunpack.c.l.b16 %v218
  %v882 = vunpack.c.l.b16 %v219
  %v883 = vunpack.c.l.b16 %v220
  %v884 = vunpack.c.l.b16 %v221
  %v885 = vunpack.c.l.b16 %v222
  %v886 = vunpack.c.l.b16 %v223
  %v887 = vunpack.c.l.b16 %v224
  %v888 = vunpack.c.l.b16 %v225
  %v889 = vunpack.c.l.b16 %v226
  %v890 = vunpack.c.l.b16 %v227
  %v891 = vunpack.c.l.b16 %v228
  %v892 = vunpack.c.l.b16 %v229
  %v893 = vunpack.c.l.b16 %v230
  %v894 = vunpack.c.l.b16 %v231
  %v895 = vunpack.c.l.b16 %v232
  %v896 = vunpack.c.l.b16 %v233
  %v897 = vunpack.c.l.b16 %v234
  %v898 = vunpack.c.l.b16 %v235
  %v899 = vunpack.c.l.b16 %v236
  %v900 = vunpack.c.l.b16 %v237
  %v901 = vunpack.c.l.b16 %v238
  %v902 = vpack.c.b16 %v759, %v758
  %v903 = vpack.c.b16 %v761, %v760
  %v904 = vpack.c.b16 %v763, %v762
  %v905 = vpack.c.b16 %v765, %v764
  %v906 = vpack.c.b16 %v767, %v766
  %v907 = vpack.c.b16 %v769, %v768
  %v908 = vpack.c.b16 %v771, %v770
  %v909 = vpack.c.b16 %v773, %v772
  %v910 = vpack.c.b16 %v775, %v774
  %v911 = vpack.c.b16 %v777, %v776
  %v912 = vpack.c.b16 %v779, %v778
  %v913 = vpack.c.b16 %v781, %v780
  %v914 = vpack.c.b16 %v783, %v782
  %v915 = vpack.c.b16 %v785, %v784
  %v916 = vpack.c.b16 %v787, %v786
  %v917 = vpack.c.b16 %v789, %v788
  %v918 = vpack.c.b16 %v791, %v790
  %v919 = vpack.c.b16 %v793, %v792
  %v920 = vpack.c.b16 %v795, %v794
  %v921 = vpack.c.b16 %v797, %v796
  %v922 = vpack.c.b16 %v799, %v798
  %v923 = vpack.c.b16 %v801, %v800
  %v924 = vpack.c.b16 %v803, %v802
  %v925 = vpack.c.b16 %v805, %v804
  %v926 = vpack.c.b16 %v807, %v806
  %v927 = vpack.c.b16 %v809, %v808
  %v928 = vpack.c.b16 %v811, %v810
  %v929 = vpack.c.b16 %v813, %v812
  %v930 = vpack.c.b16 %v815, %v814
  %v931 = vpack.c.b16 %v817, %v816
  %v932 = vpack.c.b16 %v819, %v818
  %v933 = vpack.c.b16 %v821, %v820
  %v934 = vpack.c.b16 %v823, %v822
  %v935 = vpack.c.b16 %v825, %v824
  %v936 = vpack.c.b16 %v827, %v826
  %v937 = vpack.c.b16 %v829, %v828
  %v938 = vpack.c.b16 %v831, %v830
  %v939 = vpack.c.b16 %v833, %v832
  %v940 = vpack.c.b16 %v835, %v834
  %v941 = vpack.c.b16 %v837, %v836
  %v942 = vpack.c.b16 %v839, %v838
  %v943 = vpack.c.b16 %v841, %v840
  %v944 = vpack.c.b16 %v843, %v842
  %v945 = vpack.c.b16 %v845, %v844
  %v946 = vpack.c.b16 %v847, %v846
  %v947 = vpack.c.b16 %v849, %v848
  %v948 = vpack.c.b16 %v851, %v850
  %v949 = vpack.c.b16 %v853, %v852
  %v950 = vpack.c.b16 %v855, %v854
  %v951 = vpack.c.b16 %v857, %v856
  %v952 = vpack.c.b16 %v859, %v858
  %v953 = vpack.c.b16 %v861, %v860
  %v954 = vpack.c.b16 %v863, %v862
  %v955 = vpack.c.b16 %v865, %v864
  %v956 = vpack.c.b16 %v867, %v866
  %v957 = vpack.c.b16 %v869, %v868
  %v958 = vpack.c.b16 %v871, %v870
  %v959 = vpack.c.b16 %v873, %v872
  %v960 = vpack.c.b16 %v875, %v874
  %v961 = vpack.c.b16 %v877, %v876
  %v962 = vpack.c.b16 %v879, %v878
  %v963 = vpack.c.b16 %v881, %v880
  %v964 = vpack.c.b16 %v883, %v882
  %v965 = vpack.c.b16 %v885, %v884
  %v966 = vpack.c.b16 %v887, %v886
  %v967 = vpack.c.b16 %v889, %v888
  %v968 = vpack.c.b16 %v891, %v890
  %v969 = vpack.c.b16 %v893, %v892
  %v970 = vpack.c.b16 %v895, %v894
  %v971 = vpack.c.b16 %v897, %v896
  %v972 = vpack.c.b16 %v899, %v898
  %v973 = vpack.c.b16 %v901, %v900
  %1046 = vmatprep.subr.bf16.mxu0 0
  %1047 = vmatpush1.bf16.msra.mxu0 %v909
  %1048 = vmatprep.subr.bf16.mxu0 0
  %1049 = vmatpush1.bf16.msra.mxu0 %v908
  %1050 = vmatprep.subr.bf16.mxu0 0
  %1051 = vmatpush1.bf16.msra.mxu0 %v907
  %1052 = vmatprep.subr.bf16.mxu0 0
  %1053 = vmatpush1.bf16.msra.mxu0 %v906
  %1054 = vmatprep.subr.bf16.mxu0 0
  %1055 = vmatpush1.bf16.msra.mxu0 %v905
  %1056 = vmatprep.subr.bf16.mxu0 0
  %1057 = vmatpush1.bf16.msra.mxu0 %v904
  %1058 = vmatprep.subr.bf16.mxu0 0
  %1059 = vmatpush1.bf16.msra.mxu0 %v903
  %1060 = vmatprep.subr.bf16.mxu0 0
  %1061 = vmatpush1.bf16.msra.mxu0 %v902
  %1062 = vmatprep.subr.bf16.mxu0 0
  %1063 = vmatpush2.bf16.msra.mxu0 %v917
  %1064 = vmatprep.subr.bf16.mxu0 0
  %1065 = vmatpush2.bf16.msra.mxu0 %v916
  %1066 = vmatprep.subr.bf16.mxu0 0
  %1067 = vmatpush2.bf16.msra.mxu0 %v915
  %1068 = vmatprep.subr.bf16.mxu0 0
  %1069 = vmatpush2.bf16.msra.mxu0 %v914
  %1070 = vmatprep.subr.bf16.mxu0 0
  %1071 = vmatpush2.bf16.msra.mxu0 %v913
  %1072 = vmatprep.subr.bf16.mxu0 0
  %1073 = vmatpush2.bf16.msra.mxu0 %v912
  %1074 = vmatprep.subr.bf16.mxu0 0
  %1075 = vmatpush2.bf16.msra.mxu0 %v911
  %1076 = vmatprep.subr.bf16.mxu0 0
  %1077 = vmatpush2.bf16.msra.mxu0 %v910
  %1078 = vmatprep.mubr.bf16.mxu0 %v471
  %1079 = vmatmul.mubr.bf16.gmra.mxu0 %v470
  %v1080 = vpop.f32.mrf.mxu0
  %v1081 = vadd.f32 %v244, %v1080
  %v1082 = vpop.f32.mrf.mxu0
  %v1083 = vpop.f32.mrf.mxu0
  %v1084 = vadd.f32 %v244, %v1083
  %v1085 = vpop.f32.mrf.mxu0
  %1086 = vmatprep.mubr.bf16.mxu0 %v480
  %1087 = vmatmul.mubr.bf16.gmra.mxu0 %v479
  %v1088 = vpop.f32.mrf.mxu0
  %v1089 = vadd.f32 %v244, %v1088
  %v1090 = vpop.f32.mrf.mxu0
  %v1091 = vpop.f32.mrf.mxu0
  %v1092 = vadd.f32 %v244, %v1091
  %v1093 = vpop.f32.mrf.mxu0
  %1094 = vmatprep.mubr.bf16.mxu0 %v489
  %1095 = vmatmul.mubr.bf16.gmra.mxu0 %v488
  %v1096 = vpop.f32.mrf.mxu0
  %v1097 = vadd.f32 %v244, %v1096
  %v1098 = vpop.f32.mrf.mxu0
  %v1099 = vpop.f32.mrf.mxu0
  %v1100 = vadd.f32 %v244, %v1099
  %v1101 = vpop.f32.mrf.mxu0
  %1102 = vmatprep.mubr.bf16.mxu0 %v498
  %1103 = vmatmul.mubr.bf16.gmra.mxu0 %v497
  %v1104 = vpop.f32.mrf.mxu0
  %v1105 = vadd.f32 %v244, %v1104
  %v1106 = vpop.f32.mrf.mxu0
  %v1107 = vpop.f32.mrf.mxu0
  %v1108 = vadd.f32 %v244, %v1107
  %v1109 = vpop.f32.mrf.mxu0
  %1110 = vmatprep.mubr.bf16.mxu0 %v507
  %1111 = vmatmul.mubr.bf16.gmra.mxu0 %v506
  %v1112 = vpop.f32.mrf.mxu0
  %v1113 = vadd.f32 %v244, %v1112
  %v1114 = vpop.f32.mrf.mxu0
  %v1115 = vpop.f32.mrf.mxu0
  %v1116 = vadd.f32 %v244, %v1115
  %v1117 = vpop.f32.mrf.mxu0
  %1118 = vmatprep.mubr.bf16.mxu0 %v516
  %1119 = vmatmul.mubr.bf16.gmra.mxu0 %v515
  %v1120 = vpop.f32.mrf.mxu0
  %v1121 = vadd.f32 %v244, %v1120
  %v1122 = vpop.f32.mrf.mxu0
  %v1123 = vpop.f32.mrf.mxu0
  %v1124 = vadd.f32 %v244, %v1123
  %v1125 = vpop.f32.mrf.mxu0
  %1126 = vmatprep.mubr.bf16.mxu0 %v525
  %1127 = vmatmul.mubr.bf16.gmra.mxu0 %v524
  %v1128 = vpop.f32.mrf.mxu0
  %v1129 = vadd.f32 %v244, %v1128
  %v1130 = vpop.f32.mrf.mxu0
  %v1131 = vpop.f32.mrf.mxu0
  %v1132 = vadd.f32 %v244, %v1131
  %v1133 = vpop.f32.mrf.mxu0
  %1134 = vmatprep.mubr.bf16.mxu0 %v534
  %1135 = vmatmul.mubr.bf16.gmra.mxu0 %v533
  %v1136 = vpop.f32.mrf.mxu0
  %v1137 = vadd.f32 %v244, %v1136
  %v1138 = vpop.f32.mrf.mxu0
  %v1139 = vpop.f32.mrf.mxu0
  %v1140 = vadd.f32 %v244, %v1139
  %v1141 = vpop.f32.mrf.mxu0
  %1142 = vdwg.mxu0
  %1143 = vmatprep.subr.bf16.mxu0 0
  %1144 = vmatpush1.bf16.msra.mxu0 %v925
  %1145 = vmatprep.subr.bf16.mxu0 0
  %1146 = vmatpush1.bf16.msra.mxu0 %v924
  %1147 = vmatprep.subr.bf16.mxu0 0
  %1148 = vmatpush1.bf16.msra.mxu0 %v923
  %1149 = vmatprep.subr.bf16.mxu0 0
  %1150 = vmatpush1.bf16.msra.mxu0 %v922
  %1151 = vmatprep.subr.bf16.mxu0 0
  %1152 = vmatpush1.bf16.msra.mxu0 %v921
  %1153 = vmatprep.subr.bf16.mxu0 0
  %1154 = vmatpush1.bf16.msra.mxu0 %v920
  %1155 = vmatprep.subr.bf16.mxu0 0
  %1156 = vmatpush1.bf16.msra.mxu0 %v919
  %1157 = vmatprep.subr.bf16.mxu0 0
  %1158 = vmatpush1.bf16.msra.mxu0 %v918
  %1159 = vmatprep.subr.bf16.mxu0 0
  %1160 = vmatpush2.bf16.msra.mxu0 %v933
  %1161 = vmatprep.subr.bf16.mxu0 0
  %1162 = vmatpush2.bf16.msra.mxu0 %v932
  %1163 = vmatprep.subr.bf16.mxu0 0
  %1164 = vmatpush2.bf16.msra.mxu0 %v931
  %1165 = vmatprep.subr.bf16.mxu0 0
  %1166 = vmatpush2.bf16.msra.mxu0 %v930
  %1167 = vmatprep.subr.bf16.mxu0 0
  %1168 = vmatpush2.bf16.msra.mxu0 %v929
  %1169 = vmatprep.subr.bf16.mxu0 0
  %1170 = vmatpush2.bf16.msra.mxu0 %v928
  %1171 = vmatprep.subr.bf16.mxu0 0
  %1172 = vmatpush2.bf16.msra.mxu0 %v927
  %1173 = vmatprep.subr.bf16.mxu0 0
  %1174 = vmatpush2.bf16.msra.mxu0 %v926
  %1175 = vmatprep.mubr.bf16.mxu0 %v473
  %1176 = vmatmul.mubr.bf16.gmra.mxu0 %v472
  %v1177 = vpop.f32.mrf.mxu0
  %v1178 = vadd.f32 %v1081, %v1177
  %v1179 = vpop.f32.mrf.mxu0
  %v1180 = vpop.f32.mrf.mxu0
  %v1181 = vadd.f32 %v1084, %v1180
  %v1182 = vpop.f32.mrf.mxu0
  %1183 = vmatprep.mubr.bf16.mxu0 %v482
  %1184 = vmatmul.mubr.bf16.gmra.mxu0 %v481
  %v1185 = vpop.f32.mrf.mxu0
  %v1186 = vadd.f32 %v1089, %v1185
  %v1187 = vpop.f32.mrf.mxu0
  %v1188 = vpop.f32.mrf.mxu0
  %v1189 = vadd.f32 %v1092, %v1188
  %v1190 = vpop.f32.mrf.mxu0
  %1191 = vmatprep.mubr.bf16.mxu0 %v491
  %1192 = vmatmul.mubr.bf16.gmra.mxu0 %v490
  %v1193 = vpop.f32.mrf.mxu0
  %v1194 = vadd.f32 %v1097, %v1193
  %v1195 = vpop.f32.mrf.mxu0
  %v1196 = vpop.f32.mrf.mxu0
  %v1197 = vadd.f32 %v1100, %v1196
  %v1198 = vpop.f32.mrf.mxu0
  %1199 = vmatprep.mubr.bf16.mxu0 %v500
  %1200 = vmatmul.mubr.bf16.gmra.mxu0 %v499
  %v1201 = vpop.f32.mrf.mxu0
  %v1202 = vadd.f32 %v1105, %v1201
  %v1203 = vpop.f32.mrf.mxu0
  %v1204 = vpop.f32.mrf.mxu0
  %v1205 = vadd.f32 %v1108, %v1204
  %v1206 = vpop.f32.mrf.mxu0
  %1207 = vmatprep.mubr.bf16.mxu0 %v509
  %1208 = vmatmul.mubr.bf16.gmra.mxu0 %v508
  %v1209 = vpop.f32.mrf.mxu0
  %v1210 = vadd.f32 %v1113, %v1209
  %v1211 = vpop.f32.mrf.mxu0
  %v1212 = vpop.f32.mrf.mxu0
  %v1213 = vadd.f32 %v1116, %v1212
  %v1214 = vpop.f32.mrf.mxu0
  %1215 = vmatprep.mubr.bf16.mxu0 %v518
  %1216 = vmatmul.mubr.bf16.gmra.mxu0 %v517
  %v1217 = vpop.f32.mrf.mxu0
  %v1218 = vadd.f32 %v1121, %v1217
  %v1219 = vpop.f32.mrf.mxu0
  %v1220 = vpop.f32.mrf.mxu0
  %v1221 = vadd.f32 %v1124, %v1220
  %v1222 = vpop.f32.mrf.mxu0
  %1223 = vmatprep.mubr.bf16.mxu0 %v527
  %1224 = vmatmul.mubr.bf16.gmra.mxu0 %v526
  %v1225 = vpop.f32.mrf.mxu0
  %v1226 = vadd.f32 %v1129, %v1225
  %v1227 = vpop.f32.mrf.mxu0
  %v1228 = vpop.f32.mrf.mxu0
  %v1229 = vadd.f32 %v1132, %v1228
  %v1230 = vpop.f32.mrf.mxu0
  %1231 = vmatprep.mubr.bf16.mxu0 %v536
  %1232 = vmatmul.mubr.bf16.gmra.mxu0 %v535
  %v1233 = vpop.f32.mrf.mxu0
  %v1234 = vadd.f32 %v1137, %v1233
  %v1235 = vpop.f32.mrf.mxu0
  %v1236 = vpop.f32.mrf.mxu0
  %v1237 = vadd.f32 %v1140, %v1236
  %v1238 = vpop.f32.mrf.mxu0
  %1239 = vdwg.mxu0
  %1240 = vmatprep.subr.bf16.mxu0 0
  %1241 = vmatpush1.bf16.msra.mxu0 %v941
  %1242 = vmatprep.subr.bf16.mxu0 0
  %1243 = vmatpush1.bf16.msra.mxu0 %v940
  %1244 = vmatprep.subr.bf16.mxu0 0
  %1245 = vmatpush1.bf16.msra.mxu0 %v939
  %1246 = vmatprep.subr.bf16.mxu0 0
  %1247 = vmatpush1.bf16.msra.mxu0 %v938
  %1248 = vmatprep.subr.bf16.mxu0 0
  %1249 = vmatpush1.bf16.msra.mxu0 %v937
  %1250 = vmatprep.subr.bf16.mxu0 0
  %1251 = vmatpush1.bf16.msra.mxu0 %v936
  %1252 = vmatprep.subr.bf16.mxu0 0
  %1253 = vmatpush1.bf16.msra.mxu0 %v935
  %1254 = vmatprep.subr.bf16.mxu0 0
  %1255 = vmatpush1.bf16.msra.mxu0 %v934
  %1256 = vmatprep.subr.bf16.mxu0 0
  %1257 = vmatpush2.bf16.msra.mxu0 %v949
  %1258 = vmatprep.subr.bf16.mxu0 0
  %1259 = vmatpush2.bf16.msra.mxu0 %v948
  %1260 = vmatprep.subr.bf16.mxu0 0
  %1261 = vmatpush2.bf16.msra.mxu0 %v947
  %1262 = vmatprep.subr.bf16.mxu0 0
  %1263 = vmatpush2.bf16.msra.mxu0 %v946
  %1264 = vmatprep.subr.bf16.mxu0 0
  %1265 = vmatpush2.bf16.msra.mxu0 %v945
  %1266 = vmatprep.subr.bf16.mxu0 0
  %1267 = vmatpush2.bf16.msra.mxu0 %v944
  %1268 = vmatprep.subr.bf16.mxu0 0
  %1269 = vmatpush2.bf16.msra.mxu0 %v943
  %1270 = vmatprep.subr.bf16.mxu0 0
  %1271 = vmatpush2.bf16.msra.mxu0 %v942
  %1272 = vmatprep.mubr.bf16.mxu0 %v475
  %1273 = vmatmul.mubr.bf16.gmra.mxu0 %v474
  %v1274 = vpop.f32.mrf.mxu0
  %v1275 = vadd.f32 %v1178, %v1274
  %v1276 = vpop.f32.mrf.mxu0
  %v1277 = vpop.f32.mrf.mxu0
  %v1278 = vadd.f32 %v1181, %v1277
  %v1279 = vpop.f32.mrf.mxu0
  %1280 = vmatprep.mubr.bf16.mxu0 %v484
  %1281 = vmatmul.mubr.bf16.gmra.mxu0 %v483
  %v1282 = vpop.f32.mrf.mxu0
  %v1283 = vadd.f32 %v1186, %v1282
  %v1284 = vpop.f32.mrf.mxu0
  %v1285 = vpop.f32.mrf.mxu0
  %v1286 = vadd.f32 %v1189, %v1285
  %v1287 = vpop.f32.mrf.mxu0
  %1288 = vmatprep.mubr.bf16.mxu0 %v493
  %1289 = vmatmul.mubr.bf16.gmra.mxu0 %v492
  %v1290 = vpop.f32.mrf.mxu0
  %v1291 = vadd.f32 %v1194, %v1290
  %v1292 = vpop.f32.mrf.mxu0
  %v1293 = vpop.f32.mrf.mxu0
  %v1294 = vadd.f32 %v1197, %v1293
  %v1295 = vpop.f32.mrf.mxu0
  %1296 = vmatprep.mubr.bf16.mxu0 %v502
  %1297 = vmatmul.mubr.bf16.gmra.mxu0 %v501
  %v1298 = vpop.f32.mrf.mxu0
  %v1299 = vadd.f32 %v1202, %v1298
  %v1300 = vpop.f32.mrf.mxu0
  %v1301 = vpop.f32.mrf.mxu0
  %v1302 = vadd.f32 %v1205, %v1301
  %v1303 = vpop.f32.mrf.mxu0
  %1304 = vmatprep.mubr.bf16.mxu0 %v511
  %1305 = vmatmul.mubr.bf16.gmra.mxu0 %v510
  %v1306 = vpop.f32.mrf.mxu0
  %v1307 = vadd.f32 %v1210, %v1306
  %v1308 = vpop.f32.mrf.mxu0
  %v1309 = vpop.f32.mrf.mxu0
  %v1310 = vadd.f32 %v1213, %v1309
  %v1311 = vpop.f32.mrf.mxu0
  %1312 = vmatprep.mubr.bf16.mxu0 %v520
  %1313 = vmatmul.mubr.bf16.gmra.mxu0 %v519
  %v1314 = vpop.f32.mrf.mxu0
  %v1315 = vadd.f32 %v1218, %v1314
  %v1316 = vpop.f32.mrf.mxu0
  %v1317 = vpop.f32.mrf.mxu0
  %v1318 = vadd.f32 %v1221, %v1317
  %v1319 = vpop.f32.mrf.mxu0
  %1320 = vmatprep.mubr.bf16.mxu0 %v529
  %1321 = vmatmul.mubr.bf16.gmra.mxu0 %v528
  %v1322 = vpop.f32.mrf.mxu0
  %v1323 = vadd.f32 %v1226, %v1322
  %v1324 = vpop.f32.mrf.mxu0
  %v1325 = vpop.f32.mrf.mxu0
  %v1326 = vadd.f32 %v1229, %v1325
  %v1327 = vpop.f32.mrf.mxu0
  %1328 = vmatprep.mubr.bf16.mxu0 %v538
  %1329 = vmatmul.mubr.bf16.gmra.mxu0 %v537
  %v1330 = vpop.f32.mrf.mxu0
  %v1331 = vadd.f32 %v1234, %v1330
  %v1332 = vpop.f32.mrf.mxu0
  %v1333 = vpop.f32.mrf.mxu0
  %v1334 = vadd.f32 %v1237, %v1333
  %v1335 = vpop.f32.mrf.mxu0
  %1336 = vdwg.mxu0
  %1337 = vmatprep.subr.bf16.mxu0 0
  %1338 = vmatpush1.bf16.msra.mxu0 %v957
  %1339 = vmatprep.subr.bf16.mxu0 0
  %1340 = vmatpush1.bf16.msra.mxu0 %v956
  %1341 = vmatprep.subr.bf16.mxu0 0
  %1342 = vmatpush1.bf16.msra.mxu0 %v955
  %1343 = vmatprep.subr.bf16.mxu0 0
  %1344 = vmatpush1.bf16.msra.mxu0 %v954
  %1345 = vmatprep.subr.bf16.mxu0 0
  %1346 = vmatpush1.bf16.msra.mxu0 %v953
  %1347 = vmatprep.subr.bf16.mxu0 0
  %1348 = vmatpush1.bf16.msra.mxu0 %v952
  %1349 = vmatprep.subr.bf16.mxu0 0
  %1350 = vmatpush1.bf16.msra.mxu0 %v951
  %1351 = vmatprep.subr.bf16.mxu0 0
  %1352 = vmatpush1.bf16.msra.mxu0 %v950
  %1353 = vmatprep.subr.bf16.mxu0 0
  %1354 = vmatpush2.bf16.msra.mxu0 %v965
  %1355 = vmatprep.subr.bf16.mxu0 0
  %1356 = vmatpush2.bf16.msra.mxu0 %v964
  %1357 = vmatprep.subr.bf16.mxu0 0
  %1358 = vmatpush2.bf16.msra.mxu0 %v963
  %1359 = vmatprep.subr.bf16.mxu0 0
  %1360 = vmatpush2.bf16.msra.mxu0 %v962
  %1361 = vmatprep.subr.bf16.mxu0 0
  %1362 = vmatpush2.bf16.msra.mxu0 %v961
  %1363 = vmatprep.subr.bf16.mxu0 0
  %1364 = vmatpush2.bf16.msra.mxu0 %v960
  %1365 = vmatprep.subr.bf16.mxu0 0
  %1366 = vmatpush2.bf16.msra.mxu0 %v959
  %1367 = vmatprep.subr.bf16.mxu0 0
  %1368 = vmatpush2.bf16.msra.mxu0 %v958
  %1369 = vmatprep.mubr.bf16.mxu0 %v477
  %1370 = vmatmul.mubr.bf16.gmra.mxu0 %v476
  %v1371 = vpop.f32.mrf.mxu0
  %v1372 = vadd.f32 %v1275, %v1371
  %v1373 = vpop.f32.mrf.mxu0
  %v1374 = vpop.f32.mrf.mxu0
  %v1375 = vadd.f32 %v1278, %v1374
  %v1376 = vpop.f32.mrf.mxu0
  %1377 = vmatprep.mubr.bf16.mxu0 %v486
  %1378 = vmatmul.mubr.bf16.gmra.mxu0 %v485
  %v1379 = vpop.f32.mrf.mxu0
  %v1380 = vadd.f32 %v1283, %v1379
  %v1381 = vpop.f32.mrf.mxu0
  %v1382 = vpop.f32.mrf.mxu0
  %v1383 = vadd.f32 %v1286, %v1382
  %v1384 = vpop.f32.mrf.mxu0
  %1385 = vmatprep.mubr.bf16.mxu0 %v495
  %1386 = vmatmul.mubr.bf16.gmra.mxu0 %v494
  %v1387 = vpop.f32.mrf.mxu0
  %v1388 = vadd.f32 %v1291, %v1387
  %v1389 = vpop.f32.mrf.mxu0
  %v1390 = vpop.f32.mrf.mxu0
  %v1391 = vadd.f32 %v1294, %v1390
  %v1392 = vpop.f32.mrf.mxu0
  %1393 = vmatprep.mubr.bf16.mxu0 %v504
  %1394 = vmatmul.mubr.bf16.gmra.mxu0 %v503
  %v1395 = vpop.f32.mrf.mxu0
  %v1396 = vadd.f32 %v1299, %v1395
  %v1397 = vpop.f32.mrf.mxu0
  %v1398 = vpop.f32.mrf.mxu0
  %v1399 = vadd.f32 %v1302, %v1398
  %v1400 = vpop.f32.mrf.mxu0
  %1401 = vmatprep.mubr.bf16.mxu0 %v513
  %1402 = vmatmul.mubr.bf16.gmra.mxu0 %v512
  %v1403 = vpop.f32.mrf.mxu0
  %v1404 = vadd.f32 %v1307, %v1403
  %v1405 = vpop.f32.mrf.mxu0
  %v1406 = vpop.f32.mrf.mxu0
  %v1407 = vadd.f32 %v1310, %v1406
  %v1408 = vpop.f32.mrf.mxu0
  %1409 = vmatprep.mubr.bf16.mxu0 %v522
  %1410 = vmatmul.mubr.bf16.gmra.mxu0 %v521
  %v1411 = vpop.f32.mrf.mxu0
  %v1412 = vadd.f32 %v1315, %v1411
  %v1413 = vpop.f32.mrf.mxu0
  %v1414 = vpop.f32.mrf.mxu0
  %v1415 = vadd.f32 %v1318, %v1414
  %v1416 = vpop.f32.mrf.mxu0
  %1417 = vmatprep.mubr.bf16.mxu0 %v531
  %1418 = vmatmul.mubr.bf16.gmra.mxu0 %v530
  %v1419 = vpop.f32.mrf.mxu0
  %v1420 = vadd.f32 %v1323, %v1419
  %v1421 = vpop.f32.mrf.mxu0
  %v1422 = vpop.f32.mrf.mxu0
  %v1423 = vadd.f32 %v1326, %v1422
  %v1424 = vpop.f32.mrf.mxu0
  %1425 = vmatprep.mubr.bf16.mxu0 %v540
  %1426 = vmatmul.mubr.bf16.gmra.mxu0 %v539
  %v1427 = vpop.f32.mrf.mxu0
  %v1428 = vadd.f32 %v1331, %v1427
  %v1429 = vpop.f32.mrf.mxu0
  %v1430 = vpop.f32.mrf.mxu0
  %v1431 = vadd.f32 %v1334, %v1430
  %v1432 = vpop.f32.mrf.mxu0
  %1433 = vdwg.mxu0
  %1434 = vmatprep.subr.bf16.mxu0 0
  %1435 = vmatpush1.bf16.msra.mxu0 %v973
  %1436 = vmatprep.subr.bf16.mxu0 0
  %1437 = vmatpush1.bf16.msra.mxu0 %v972
  %1438 = vmatprep.subr.bf16.mxu0 0
  %1439 = vmatpush1.bf16.msra.mxu0 %v971
  %1440 = vmatprep.subr.bf16.mxu0 0
  %1441 = vmatpush1.bf16.msra.mxu0 %v970
  %1442 = vmatprep.subr.bf16.mxu0 0
  %1443 = vmatpush1.bf16.msra.mxu0 %v969
  %1444 = vmatprep.subr.bf16.mxu0 0
  %1445 = vmatpush1.bf16.msra.mxu0 %v968
  %1446 = vmatprep.subr.bf16.mxu0 0
  %1447 = vmatpush1.bf16.msra.mxu0 %v967
  %1448 = vmatprep.subr.bf16.mxu0 0
  %1449 = vmatpush1.bf16.msra.mxu0 %v966
  %1450 = vmatprep.subr.bf16.mxu0 0
  %1451 = vmatpush2.bf16.msra.mxu0 0
  %1452 = vmatprep.subr.bf16.mxu0 0
  %1453 = vmatpush2.bf16.msra.mxu0 0
  %1454 = vmatprep.subr.bf16.mxu0 0
  %1455 = vmatpush2.bf16.msra.mxu0 0
  %1456 = vmatprep.subr.bf16.mxu0 0
  %1457 = vmatpush2.bf16.msra.mxu0 0
  %1458 = vmatprep.subr.bf16.mxu0 0
  %1459 = vmatpush2.bf16.msra.mxu0 0
  %1460 = vmatprep.subr.bf16.mxu0 0
  %1461 = vmatpush2.bf16.msra.mxu0 0
  %1462 = vmatprep.subr.bf16.mxu0 0
  %1463 = vmatpush2.bf16.msra.mxu0 0
  %1464 = vmatprep.subr.bf16.mxu0 0
  %1465 = vmatpush2.bf16.msra.mxu0 0
  %1466 = vmatprep.mubr.bf16.mxu0 0
  %1467 = vmatmul.mubr.bf16.gmra.mxu0 %v478
  %v1468 = vpop.f32.mrf.mxu0
  %v1469 = vadd.f32 %v1372, %v1468
  %v1470 = vpop.f32.mrf.mxu0
  %v1471 = vpop.f32.mrf.mxu0
  %v1472 = vadd.f32 %v1375, %v1471
  %v1473 = vpop.f32.mrf.mxu0
  %1474 = vmatprep.mubr.bf16.mxu0 0
  %1475 = vmatmul.mubr.bf16.gmra.mxu0 %v487
  %v1476 = vpop.f32.mrf.mxu0
  %v1477 = vadd.f32 %v1380, %v1476
  %v1478 = vpop.f32.mrf.mxu0
  %v1479 = vpop.f32.mrf.mxu0
  %v1480 = vadd.f32 %v1383, %v1479
  %v1481 = vpop.f32.mrf.mxu0
  %1482 = vmatprep.mubr.bf16.mxu0 0
  %1483 = vmatmul.mubr.bf16.gmra.mxu0 %v496
  %v1484 = vpop.f32.mrf.mxu0
  %v1485 = vadd.f32 %v1388, %v1484
  %v1486 = vpop.f32.mrf.mxu0
  %v1487 = vpop.f32.mrf.mxu0
  %v1488 = vadd.f32 %v1391, %v1487
  %v1489 = vpop.f32.mrf.mxu0
  %1490 = vmatprep.mubr.bf16.mxu0 0
  %1491 = vmatmul.mubr.bf16.gmra.mxu0 %v505
  %v1492 = vpop.f32.mrf.mxu0
  %v1493 = vadd.f32 %v1396, %v1492
  %v1494 = vpop.f32.mrf.mxu0
  %v1495 = vpop.f32.mrf.mxu0
  %v1496 = vadd.f32 %v1399, %v1495
  %v1497 = vpop.f32.mrf.mxu0
  %1498 = vmatprep.mubr.bf16.mxu0 0
  %1499 = vmatmul.mubr.bf16.gmra.mxu0 %v514
  %v1500 = vpop.f32.mrf.mxu0
  %v1501 = vadd.f32 %v1404, %v1500
  %v1502 = vpop.f32.mrf.mxu0
  %v1503 = vpop.f32.mrf.mxu0
  %v1504 = vadd.f32 %v1407, %v1503
  %v1505 = vpop.f32.mrf.mxu0
  %1506 = vmatprep.mubr.bf16.mxu0 0
  %1507 = vmatmul.mubr.bf16.gmra.mxu0 %v523
  %v1508 = vpop.f32.mrf.mxu0
  %v1509 = vadd.f32 %v1412, %v1508
  %v1510 = vpop.f32.mrf.mxu0
  %v1511 = vpop.f32.mrf.mxu0
  %v1512 = vadd.f32 %v1415, %v1511
  %v1513 = vpop.f32.mrf.mxu0
  %1514 = vmatprep.mubr.bf16.mxu0 0
  %1515 = vmatmul.mubr.bf16.gmra.mxu0 %v532
  %v1516 = vpop.f32.mrf.mxu0
  %v1517 = vadd.f32 %v1420, %v1516
  %v1518 = vpop.f32.mrf.mxu0
  %v1519 = vpop.f32.mrf.mxu0
  %v1520 = vadd.f32 %v1423, %v1519
  %v1521 = vpop.f32.mrf.mxu0
  %1522 = vmatprep.mubr.bf16.mxu0 0
  %1523 = vmatmul.mubr.bf16.gmra.mxu0 %v541
  %v1524 = vpop.f32.mrf.mxu0
  %v1525 = vadd.f32 %v1428, %v1524
  %v1526 = vpop.f32.mrf.mxu0
  %v1527 = vpop.f32.mrf.mxu0
  %v1528 = vadd.f32 %v1431, %v1527
  %v1529 = vpop.f32.mrf.mxu0
  %1530 = vdwg.mxu0
  %v1531 = vmax.f32 %v1469, 0.0
  %v1532 = vmax.f32 %v1472, 0.0
  %v1533 = vmax.f32 %v1477, 0.0
  %v1534 = vmax.f32 %v1480, 0.0
  %v1535 = vmax.f32 %v1485, 0.0
  %v1536 = vmax.f32 %v1488, 0.0
  %v1537 = vmax.f32 %v1493, 0.0
  %v1538 = vmax.f32 %v1496, 0.0
  %v1539 = vmax.f32 %v1501, 0.0
  %v1540 = vmax.f32 %v1504, 0.0
  %v1541 = vmax.f32 %v1509, 0.0
  %v1542 = vmax.f32 %v1512, 0.0
  %v1543 = vmax.f32 %v1517, 0.0
  %v1544 = vmax.f32 %v1520, 0.0
  %v1545 = vmax.f32 %v1525, 0.0
  %v1546 = vmax.f32 %v1528, 0.0
  %v1547 = vpack.c.bf16 %v1532, %v1531
  %v1548 = vpack.c.bf16 %v1534, %v1533
  %v1549 = vpack.c.bf16 %v1536, %v1535
  %v1550 = vpack.c.bf16 %v1538, %v1537
  %v1551 = vpack.c.bf16 %v1540, %v1539
  %v1552 = vpack.c.bf16 %v1542, %v1541
  %v1553 = vpack.c.bf16 %v1544, %v1543
  %v1554 = vpack.c.bf16 %v1546, %v1545
  %v1563 = vunpack.c.l.b16 %v1547
  %v1564 = vunpack.c.h.b16 %v1547
  %v1565 = vunpack.c.l.b16 %v1548
  %v1566 = vunpack.c.h.b16 %v1548
  %v1567 = vunpack.c.l.b16 %v1549
  %v1568 = vunpack.c.h.b16 %v1549
  %v1569 = vunpack.c.l.b16 %v1550
  %v1570 = vunpack.c.h.b16 %v1550
  %v1571 = vunpack.c.l.b16 %v1551
  %v1572 = vunpack.c.h.b16 %v1551
  %v1573 = vunpack.c.l.b16 %v1552
  %v1574 = vunpack.c.h.b16 %v1552
  %v1575 = vunpack.c.l.b16 %v1553
  %v1576 = vunpack.c.h.b16 %v1553
  %v1577 = vunpack.c.l.b16 %v1554
  %v1578 = vunpack.c.h.b16 %v1554
  %v1579 = vpack.c.b16 %v1563, %v1563
  %v1580 = vpack.c.b16 %v1564, %v1564
  %v1581 = vpack.c.b16 %v1565, %v1565
  %v1582 = vpack.c.b16 %v1566, %v1566
  %v1583 = vpack.c.b16 %v1567, %v1567
  %v1584 = vpack.c.b16 %v1568, %v1568
  %v1585 = vpack.c.b16 %v1569, %v1569
  %v1586 = vpack.c.b16 %v1570, %v1570
  %v1587 = vpack.c.b16 %v1571, %v1571
  %v1588 = vpack.c.b16 %v1572, %v1572
  %v1589 = vpack.c.b16 %v1573, %v1573
  %v1590 = vpack.c.b16 %v1574, %v1574
  %v1591 = vpack.c.b16 %v1575, %v1575
  %v1592 = vpack.c.b16 %v1576, %v1576
  %v1593 = vpack.c.b16 %v1577, %v1577
  %v1594 = vpack.c.b16 %v1578, %v1578
  %1611 = vst [vmem:[%s3] sm:$0xf] %v1579
  %1612 = vst [vmem:[%s3 + $0x4] sm:$0xf] %v1580
  %1613 = vst [vmem:[%s3 + $0x8] sm:$0xf] %v1581
  %1614 = vst [vmem:[%s3 + $0xc] sm:$0xf] %v1582
  %1615 = vst [vmem:[%s3 + $0x10] sm:$0xf] %v1583
  %1616 = vst [vmem:[%s3 + $0x14] sm:$0xf] %v1584
  %1617 = vst [vmem:[%s3 + $0x18] sm:$0xf] %v1585
  %1618 = vst [vmem:[%s3 + $0x1c] sm:$0xf] %v1586
  %1619 = vst [vmem:[%s3 + $0x20] sm:$0xf] %v1587
  %1620 = vst [vmem:[%s3 + $0x24] sm:$0xf] %v1588
  %1621 = vst [vmem:[%s3 + $0x28] sm:$0xf] %v1589
  %1622 = vst [vmem:[%s3 + $0x2c] sm:$0xf] %v1590
  %1623 = vst [vmem:[%s3 + $0x30] sm:$0xf] %v1591
  %1624 = vst [vmem:[%s3 + $0x34] sm:$0xf] %v1592
  %1625 = vst [vmem:[%s3 + $0x38] sm:$0xf] %v1593
  %1626 = vst [vmem:[%s3 + $0x3c] sm:$0xf] %v1594
  // Predicated region
  $region14: #{forward.8} parent=0 // pred_check
    _
  $region15: #{forward.8} parent=0 // pred_check_branch
    %1628 = sbr.rel (0) target = $region17
  $region16: #{forward.8} parent=0 // pred_region
    _
  $region17: #{forward.8} parent=0 // pred_fallthru
    _
  // Predicated region
  $region18: #{forward.8} parent=0 // pred_check
    _
  $region19: #{forward.8} parent=0 // pred_check_branch
    %1630 = sbr.rel (0) target = $region21
  $region20: #{forward.8} parent=0 // pred_region
    _
  $region21: #{forward.8} parent=0 // pred_fallthru
    _

// kernel: forward.11
$region0: #{forward.11}
  #allocation0 [shape = 'u32[]', space=smem, size = 0x4, offset = 0x4, fixed_abs, tag = 'smem constant byte address 0x4 - core index']
  #allocation1 [shape = 'u32[144,128]{1,0:T(1,128)}', space=vmem, size = 0x12000, scoped, tag = 'internal scratch']
  %s0 = inlined_call_operand.vmem [shape: bf16[32,512], index: 0, kind: input, shape index: {}]
  %s1 = inlined_call_operand.vmem [shape: bf16[2,512,128], index: 1, kind: input, shape index: {}]
  %s2 = inlined_call_operand.vmem [shape: f32[1,128], index: 2, kind: input, shape index: {}]
  %s3 = inlined_call_operand.vmem [shape: bf16[8,2,4,128], index: 3, kind: output, shape index: {}]
  %s4 = sld [smem:[#allocation0]]
  $region82: #{forward.11} parent=0
    _
  %s6 = ssub.s32 1, %s4
  %s7 = scalar_select 0, %s6, %s4
  $region1: #{forward.11} parent=0
    #allocation2 [shape = 'u8[16384]{0}', space=vmem, size = 0x4000, scoped, tag = 'output window, operand 0']
    loop: start=0, step=1, limit=4
    $region2: #{forward.11} parent=1 // loop_pre_header
      _
    $region3: #{forward.11} parent=1 // loop_header
      %s9 = sphi 0, %s13
      %p10 = scmp.ge.s32.totalorder %s9, 4
      %s17 = sphi 0, %s17
      %s19 = sphi 0, %s17
      %s20 = sphi 0, %s19
      %s34 = sphi 0, %s20
      %s40 = sphi 0, %s42
      %s43 = sphi 0, %s40
      %s44 = sphi 0, %s43
      %s60 = sphi 0, %s44
      %s64 = sphi 0, %s64
      %s66 = sphi 0, %s64
      %s67 = sphi 0, %s66
      %s81 = sphi 0, %s67
      %s87 = sphi 0, %s89
      %s90 = sphi 0, %s87
      %s91 = sphi 0, %s90
      %s107 = sphi 0, %s91
    $region4: #{forward.11} parent=1 // loop_header_branch
      %12 = sbr.rel (%p10) target = $region8
    $region5: #{forward.11} parent=1 // loop_body
      %s14 = ssub.s32 %s9, 1
      %s15 = ssub.s32 %s9, 2
      %s16 = sadd.s32 %s9, 1
      %s18 = sadd.s32 %s17, 1
      %p21 = scmp.eq.s32.totalorder %s9, 1
      %p22 = scmp.ne.s32.totalorder %s17, %s19
      %p23 = scmp.eq.s32.totalorder %s9, 0
      %p24 = por %p22, %p23
      %p25 = scmp.ne.s32.totalorder %s17, %s19
      %p26 = scmp.eq.s32.totalorder %s14, 1
      %p27 = por %p25, %p26
      %p28 = scmp.ne.s32.totalorder %s19, %s20
      %p29 = scmp.eq.s32.totalorder %s14, 0
      %p30 = por %p28, %p29
      %p31 = scmp.ne.s32.totalorder %s19, %s20
      %p32 = scmp.eq.s32.totalorder %s15, 1
      %p33 = por %p31, %p32
      %p35 = scmp.ne.s32.totalorder %s20, %s34
      %p36 = scmp.eq.s32.totalorder %s15, 0
      %p37 = por %p35, %p36
      %s38 = ssub.s32 %s9, %s16
      %p39 = scmp.eq.s32.totalorder %s38, 0
      %s41 = sadd.s32 %s40, 1
      %s42 = scalar_select %p39, %s40, %s41
      %p45 = pneg %p39
      %p46 = scmp.eq.s32.totalorder %s9, 1
      %p47 = por %p45, %p46
      %p48 = scmp.ne.s32.totalorder %s40, %s43
      %p49 = scmp.eq.s32.totalorder %s9, 0
      %p50 = por %p48, %p49
      %p51 = scmp.ne.s32.totalorder %s40, %s43
      %p52 = scmp.eq.s32.totalorder %s14, 1
      %p53 = por %p51, %p52
      %p54 = scmp.ne.s32.totalorder %s43, %s44
      %p55 = scmp.eq.s32.totalorder %s14, 0
      %p56 = por %p54, %p55
      %p57 = scmp.ne.s32.totalorder %s43, %s44
      %p58 = scmp.eq.s32.totalorder %s15, 1
      %p59 = por %p57, %p58
      %p61 = scmp.ne.s32.totalorder %s44, %s60
      %p62 = scmp.eq.s32.totalorder %s15, 0
      %p63 = por %p61, %p62
      %s65 = sadd.s32 %s64, 1
      %p68 = scmp.eq.s32.totalorder %s9, 1
      %p69 = scmp.ne.s32.totalorder %s64, %s66
      %p70 = scmp.eq.s32.totalorder %s9, 0
      %p71 = por %p69, %p70
      %p72 = scmp.ne.s32.totalorder %s64, %s66
      %p73 = scmp.eq.s32.totalorder %s14, 1
      %p74 = por %p72, %p73
      %p75 = scmp.ne.s32.totalorder %s66, %s67
      %p76 = scmp.eq.s32.totalorder %s14, 0
      %p77 = por %p75, %p76
      %p78 = scmp.ne.s32.totalorder %s66, %s67
      %p79 = scmp.eq.s32.totalorder %s15, 1
      %p80 = por %p78, %p79
      %p82 = scmp.ne.s32.totalorder %s67, %s81
      %p83 = scmp.eq.s32.totalorder %s15, 0
      %p84 = por %p82, %p83
      %s85 = ssub.s32 %s9, %s16
      %p86 = scmp.eq.s32.totalorder %s85, 0
      %s88 = sadd.s32 %s87, 1
      %s89 = scalar_select %p86, %s87, %s88
      %p92 = pneg %p86
      %p93 = scmp.eq.s32.totalorder %s9, 1
      %p94 = por %p92, %p93
      %p95 = scmp.ne.s32.totalorder %s87, %s90
      %p96 = scmp.eq.s32.totalorder %s9, 0
      %p97 = por %p95, %p96
      %p98 = scmp.ne.s32.totalorder %s87, %s90
      %p99 = scmp.eq.s32.totalorder %s14, 1
      %p100 = por %p98, %p99
      %p101 = scmp.ne.s32.totalorder %s90, %s91
      %p102 = scmp.eq.s32.totalorder %s14, 0
      %p103 = por %p101, %p102
      %p104 = scmp.ne.s32.totalorder %s90, %s91
      %p105 = scmp.eq.s32.totalorder %s15, 1
      %p106 = por %p104, %p105
      %p108 = scmp.ne.s32.totalorder %s91, %s107
      %p109 = scmp.eq.s32.totalorder %s15, 0
      %p110 = por %p108, %p109
      %p111 = scmp.le.s32.totalorder 1, %s9
      %p112 = scmp.lt.s32.totalorder %s9, 3
      %p113 = pnand %p111, %p112
      %p114 = pneg %p113
      // Predicated region
      $region9: #{forward.11} parent=5 // pred_check
        _
      $region10: #{forward.11} parent=5 // pred_check_branch
        %116 = sbr.rel (%p113) target = $region12
      $region11: #{forward.11} parent=5 // pred_region
        %s117 = ssub.s32 %s9, 1
        // Predicated region
        $region13: #{forward.11} parent=11 // pred_check
          %p118 = pneg %p30
        $region14: #{forward.11} parent=11 // pred_check_branch
          %120 = sbr.rel (%p118) target = $region16
        $region15: #{forward.11} parent=11 // pred_region
          _
        $region16: #{forward.11} parent=11 // pred_fallthru
          _
        // Predicated region
        $region17: #{forward.11} parent=11 // pred_check
          %p121 = pneg %p77
        $region18: #{forward.11} parent=11 // pred_check_branch
          %123 = sbr.rel (%p121) target = $region20
        $region19: #{forward.11} parent=11 // pred_region
          _
        $region20: #{forward.11} parent=11 // pred_fallthru
          _
      $region12: #{forward.11} parent=5 // pred_fallthru
        _
      %p124 = scmp.lt.s32.totalorder %s9, 2
      // Predicated region
      $region21: #{forward.11} parent=5 // pred_check
        %p125 = pneg %p124
      $region22: #{forward.11} parent=5 // pred_check_branch
        %127 = sbr.rel (%p125) target = $region24
      $region23: #{forward.11} parent=5 // pred_region
        // Predicated region
        $region25: #{forward.11} parent=23 // pred_check
          %p128 = pneg %p50
        $region26: #{forward.11} parent=23 // pred_check_branch
          %130 = sbr.rel (%p128) target = $region28
        $region27: #{forward.11} parent=23 // pred_region
          %p131 = scmp.lt.s32.totalorder %s9, 1
          %s132 = scalar_select %p131, %s9, 1
          %s133 = smul.addr %s132, 64
          %s134 = smul.addr %s133, 4
          %s135 = scalar_lea.vmem %s1, %s134
        $region28: #{forward.11} parent=23 // pred_fallthru
          _
      $region24: #{forward.11} parent=5 // pred_fallthru
        _
      %p136 = scmp.le.s32.totalorder 1, %s9
      %p137 = scmp.lt.s32.totalorder %s9, 3
      %p138 = pnand %p136, %p137
      %p139 = pneg %p138
      // Predicated region
      $region29: #{forward.11} parent=5 // pred_check
        _
      $region30: #{forward.11} parent=5 // pred_check_branch
        %141 = sbr.rel (%p138) target = $region32
      $region31: #{forward.11} parent=5 // pred_region
        %s142 = ssub.s32 %s9, 1
        %p143 = pneg %p30
        %p144 = pneg %p27
        %p145 = scmp.lt.s32.totalorder %s14, 1
        %s146 = scalar_select %p145, %s14, 1
        %s147 = smul.addr %s146, 64
        %s148 = smul.addr %s147, 4
        %s149 = scalar_lea.vmem %s1, %s148
        %p150 = pneg %p56
        %p151 = pneg %p53
        %p152 = pneg %p77
        %p153 = pneg %p74
        %p154 = pneg %p103
        %p155 = pneg %p100
        %s156 = sand.u32 %s90, 1
        %s157 = sand.u32 %s90, 1
        %s158 = smul.addr %s157, 16
        %s159 = scalar_lea.vmem [#allocation2], %s158
        %p160 = scmp.lt.s32.totalorder %s14, 1
        %s161 = scalar_select %p160, %s14, 1
        %s162 = smul.addr %s161, 64
        %s163 = smul.addr %s162, 4
        %s164 = scalar_lea.vmem %s1, %s163
        %v166 = vld [vmem:[%s0] sm:$0xff]
        %v167 = vld [vmem:[%s0 + $0x8] sm:$0xff]
        %v168 = vld [vmem:[%s0 + $0x10] sm:$0xff]
        %v169 = vld [vmem:[%s0 + $0x18] sm:$0xff]
        %v170 = vld [vmem:[%s0 + $0x20] sm:$0xff]
        %v171 = vld [vmem:[%s0 + $0x28] sm:$0xff]
        %v172 = vld [vmem:[%s0 + $0x30] sm:$0xff]
        %v173 = vld [vmem:[%s0 + $0x38] sm:$0xff]
        %v174 = vld [vmem:[%s164] sm:$0xf]
        %v175 = vld [vmem:[%s164 + $0x4] sm:$0xf]
        %v176 = vld [vmem:[%s164 + $0x8] sm:$0xf]
        %v177 = vld [vmem:[%s164 + $0xc] sm:$0xf]
        %v178 = vld [vmem:[%s164 + $0x10] sm:$0xf]
        %v179 = vld [vmem:[%s164 + $0x14] sm:$0xf]
        %v180 = vld [vmem:[%s164 + $0x18] sm:$0xf]
        %v181 = vld [vmem:[%s164 + $0x1c] sm:$0xf]
        %v182 = vld [vmem:[%s164 + $0x20] sm:$0xf]
        %v183 = vld [vmem:[%s164 + $0x24] sm:$0xf]
        %v184 = vld [vmem:[%s164 + $0x28] sm:$0xf]
        %v185 = vld [vmem:[%s164 + $0x2c] sm:$0xf]
        %v186 = vld [vmem:[%s164 + $0x30] sm:$0xf]
        %v187 = vld [vmem:[%s164 + $0x34] sm:$0xf]
        %v188 = vld [vmem:[%s164 + $0x38] sm:$0xf]
        %v189 = vld [vmem:[%s164 + $0x3c] sm:$0xf]
        %v190 = vld [vmem:[%s164 + $0x40] sm:$0xf]
        %v191 = vld [vmem:[%s164 + $0x44] sm:$0xf]
        %v192 = vld [vmem:[%s164 + $0x48] sm:$0xf]
        %v193 = vld [vmem:[%s164 + $0x4c] sm:$0xf]
        %v194 = vld [vmem:[%s164 + $0x50] sm:$0xf]
        %v195 = vld [vmem:[%s164 + $0x54] sm:$0xf]
        %v196 = vld [vmem:[%s164 + $0x58] sm:$0xf]
        %v197 = vld [vmem:[%s164 + $0x5c] sm:$0xf]
        %v198 = vld [vmem:[%s164 + $0x60] sm:$0xf]
        %v199 = vld [vmem:[%s164 + $0x64] sm:$0xf]
        %v200 = vld [vmem:[%s164 + $0x68] sm:$0xf]
        %v201 = vld [vmem:[%s164 + $0x6c] sm:$0xf]
        %v202 = vld [vmem:[%s164 + $0x70] sm:$0xf]
        %v203 = vld [vmem:[%s164 + $0x74] sm:$0xf]
        %v204 = vld [vmem:[%s164 + $0x78] sm:$0xf]
        %v205 = vld [vmem:[%s164 + $0x7c] sm:$0xf]
        %v206 = vld [vmem:[%s164 + $0x80] sm:$0xf]
        %v207 = vld [vmem:[%s164 + $0x84] sm:$0xf]
        %v208 = vld [vmem:[%s164 + $0x88] sm:$0xf]
        %v209 = vld [vmem:[%s164 + $0x8c] sm:$0xf]
        %v210 = vld [vmem:[%s164 + $0x90] sm:$0xf]
        %v211 = vld [vmem:[%s164 + $0x94] sm:$0xf]
        %v212 = vld [vmem:[%s164 + $0x98] sm:$0xf]
        %v213 = vld [vmem:[%s164 + $0x9c] sm:$0xf]
        %v214 = vld [vmem:[%s164 + $0xa0] sm:$0xf]
        %v215 = vld [vmem:[%s164 + $0xa4] sm:$0xf]
        %v216 = vld [vmem:[%s164 + $0xa8] sm:$0xf]
        %v217 = vld [vmem:[%s164 + $0xac] sm:$0xf]
        %v218 = vld [vmem:[%s164 + $0xb0] sm:$0xf]
        %v219 = vld [vmem:[%s164 + $0xb4] sm:$0xf]
        %v220 = vld [vmem:[%s164 + $0xb8] sm:$0xf]
        %v221 = vld [vmem:[%s164 + $0xbc] sm:$0xf]
        %v222 = vld [vmem:[%s164 + $0xc0] sm:$0xf]
        %v223 = vld [vmem:[%s164 + $0xc4] sm:$0xf]
        %v224 = vld [vmem:[%s164 + $0xc8] sm:$0xf]
        %v225 = vld [vmem:[%s164 + $0xcc] sm:$0xf]
        %v226 = vld [vmem:[%s164 + $0xd0] sm:$0xf]
        %v227 = vld [vmem:[%s164 + $0xd4] sm:$0xf]
        %v228 = vld [vmem:[%s164 + $0xd8] sm:$0xf]
        %v229 = vld [vmem:[%s164 + $0xdc] sm:$0xf]
        %v230 = vld [vmem:[%s164 + $0xe0] sm:$0xf]
        %v231 = vld [vmem:[%s164 + $0xe4] sm:$0xf]
        %v232 = vld [vmem:[%s164 + $0xe8] sm:$0xf]
        %v233 = vld [vmem:[%s164 + $0xec] sm:$0xf]
        %v234 = vld [vmem:[%s164 + $0xf0] sm:$0xf]
        %v235 = vld [vmem:[%s164 + $0xf4] sm:$0xf]
        %v236 = vld [vmem:[%s164 + $0xf8] sm:$0xf]
        %v237 = vld [vmem:[%s164 + $0xfc] sm:$0xf]
        %v238 = vld [vmem:[%s2] sm:$0x1]
        %v240 = vlaneseq
        %v241 = vshrl.u32 %v240, 7
        %v242 = vsub.s32 0, %v241
        %v243 = vrot.slane %v238, %v242
        %v253 = vunpack.c.l.b16 %v166
        %v254 = vunpack.c.h.b16 %v166
        %v255 = vunpack.c.l.b16 %v167
        %v256 = vunpack.c.h.b16 %v167
        %v257 = vunpack.c.l.b16 %v168
        %v258 = vunpack.c.h.b16 %v168
        %v259 = vunpack.c.l.b16 %v169
        %v260 = vunpack.c.h.b16 %v169
        %v261 = vunpack.c.l.b16 %v170
        %v262 = vunpack.c.h.b16 %v170
        %v263 = vunpack.c.l.b16 %v171
        %v264 = vunpack.c.h.b16 %v171
        %v265 = vunpack.c.l.b16 %v172
        %v266 = vunpack.c.h.b16 %v172
        %v267 = vunpack.c.l.b16 %v173
        %v268 = vunpack.c.h.b16 %v173
        %v269 = vpack.c.b16 %v257, %v253
        %v270 = vpack.c.b16 %v258, %v254
        %v271 = vpack.c.b16 %v259, %v255
        %v272 = vpack.c.b16 %v260, %v256
        %v273 = vpack.c.b16 %v265, %v261
        %v274 = vpack.c.b16 %v266, %v262
        %v275 = vpack.c.b16 %v267, %v263
        %v276 = vpack.c.b16 %v268, %v264
        %v349 = vunpack.c.l.b16 %v174
        %v350 = vunpack.c.l.b16 %v175
        %v351 = vunpack.c.l.b16 %v176
        %v352 = vunpack.c.l.b16 %v177
        %v353 = vunpack.c.l.b16 %v178
        %v354 = vunpack.c.l.b16 %v179
        %v355 = vunpack.c.l.b16 %v180
        %v356 = vunpack.c.l.b16 %v181
        %v357 = vunpack.c.l.b16 %v182
        %v358 = vunpack.c.l.b16 %v183
        %v359 = vunpack.c.l.b16 %v184
        %v360 = vunpack.c.l.b16 %v185
        %v361 = vunpack.c.l.b16 %v186
        %v362 = vunpack.c.l.b16 %v187
        %v363 = vunpack.c.l.b16 %v188
        %v364 = vunpack.c.l.b16 %v189
        %v365 = vunpack.c.l.b16 %v190
        %v366 = vunpack.c.l.b16 %v191
        %v367 = vunpack.c.l.b16 %v192
        %v368 = vunpack.c.l.b16 %v193
        %v369 = vunpack.c.l.b16 %v194
        %v370 = vunpack.c.l.b16 %v195
        %v371 = vunpack.c.l.b16 %v196
        %v372 = vunpack.c.l.b16 %v197
        %v373 = vunpack.c.l.b16 %v198
        %v374 = vunpack.c.l.b16 %v199
        %v375 = vunpack.c.l.b16 %v200
        %v376 = vunpack.c.l.b16 %v201
        %v377 = vunpack.c.l.b16 %v202
        %v378 = vunpack.c.l.b16 %v203
        %v379 = vunpack.c.l.b16 %v204
        %v380 = vunpack.c.l.b16 %v205
        %v381 = vunpack.c.l.b16 %v206
        %v382 = vunpack.c.l.b16 %v207
        %v383 = vunpack.c.l.b16 %v208
        %v384 = vunpack.c.l.b16 %v209
        %v385 = vunpack.c.l.b16 %v210
        %v386 = vunpack.c.l.b16 %v211
        %v387 = vunpack.c.l.b16 %v212
        %v388 = vunpack.c.l.b16 %v213
        %v389 = vunpack.c.l.b16 %v214
        %v390 = vunpack.c.l.b16 %v215
        %v391 = vunpack.c.l.b16 %v216
        %v392 = vunpack.c.l.b16 %v217
        %v393 = vunpack.c.l.b16 %v218
        %v394 = vunpack.c.l.b16 %v219
        %v395 = vunpack.c.l.b16 %v220
        %v396 = vunpack.c.l.b16 %v221
        %v397 = vunpack.c.l.b16 %v222
        %v398 = vunpack.c.l.b16 %v223
        %v399 = vunpack.c.l.b16 %v224
        %v400 = vunpack.c.l.b16 %v225
        %v401 = vunpack.c.l.b16 %v226
        %v402 = vunpack.c.l.b16 %v227
        %v403 = vunpack.c.l.b16 %v228
        %v404 = vunpack.c.l.b16 %v229
        %v405 = vunpack.c.l.b16 %v230
        %v406 = vunpack.c.l.b16 %v231
        %v407 = vunpack.c.l.b16 %v232
        %v408 = vunpack.c.l.b16 %v233
        %v409 = vunpack.c.l.b16 %v234
        %v410 = vunpack.c.l.b16 %v235
        %v411 = vunpack.c.l.b16 %v236
        %v412 = vunpack.c.l.b16 %v237
        %v413 = vpack.c.b16 %v350, %v349
        %v414 = vpack.c.b16 %v352, %v351
        %v415 = vpack.c.b16 %v354, %v353
        %v416 = vpack.c.b16 %v356, %v355
        %v417 = vpack.c.b16 %v358, %v357
        %v418 = vpack.c.b16 %v360, %v359
        %v419 = vpack.c.b16 %v362, %v361
        %v420 = vpack.c.b16 %v364, %v363
        %v421 = vpack.c.b16 %v366, %v365
        %v422 = vpack.c.b16 %v368, %v367
        %v423 = vpack.c.b16 %v370, %v369
        %v424 = vpack.c.b16 %v372, %v371
        %v425 = vpack.c.b16 %v374, %v373
        %v426 = vpack.c.b16 %v376, %v375
        %v427 = vpack.c.b16 %v378, %v377
        %v428 = vpack.c.b16 %v380, %v379
        %v429 = vpack.c.b16 %v382, %v381
        %v430 = vpack.c.b16 %v384, %v383
        %v431 = vpack.c.b16 %v386, %v385
        %v432 = vpack.c.b16 %v388, %v387
        %v433 = vpack.c.b16 %v390, %v389
        %v434 = vpack.c.b16 %v392, %v391
        %v435 = vpack.c.b16 %v394, %v393
        %v436 = vpack.c.b16 %v396, %v395
        %v437 = vpack.c.b16 %v398, %v397
        %v438 = vpack.c.b16 %v400, %v399
        %v439 = vpack.c.b16 %v402, %v401
        %v440 = vpack.c.b16 %v404, %v403
        %v441 = vpack.c.b16 %v406, %v405
        %v442 = vpack.c.b16 %v408, %v407
        %v443 = vpack.c.b16 %v410, %v409
        %v444 = vpack.c.b16 %v412, %v411
        %477 = vmatprep.subr.bf16.mxu0 0
        %478 = vmatpush1.bf16.msra.mxu0 %v420
        %479 = vmatprep.subr.bf16.mxu0 0
        %480 = vmatpush1.bf16.msra.mxu0 %v419
        %481 = vmatprep.subr.bf16.mxu0 0
        %482 = vmatpush1.bf16.msra.mxu0 %v418
        %483 = vmatprep.subr.bf16.mxu0 0
        %484 = vmatpush1.bf16.msra.mxu0 %v417
        %485 = vmatprep.subr.bf16.mxu0 0
        %486 = vmatpush1.bf16.msra.mxu0 %v416
        %487 = vmatprep.subr.bf16.mxu0 0
        %488 = vmatpush1.bf16.msra.mxu0 %v415
        %489 = vmatprep.subr.bf16.mxu0 0
        %490 = vmatpush1.bf16.msra.mxu0 %v414
        %491 = vmatprep.subr.bf16.mxu0 0
        %492 = vmatpush1.bf16.msra.mxu0 %v413
        %493 = vmatprep.subr.bf16.mxu0 0
        %494 = vmatpush2.bf16.msra.mxu0 %v428
        %495 = vmatprep.subr.bf16.mxu0 0
        %496 = vmatpush2.bf16.msra.mxu0 %v427
        %497 = vmatprep.subr.bf16.mxu0 0
        %498 = vmatpush2.bf16.msra.mxu0 %v426
        %499 = vmatprep.subr.bf16.mxu0 0
        %500 = vmatpush2.bf16.msra.mxu0 %v425
        %501 = vmatprep.subr.bf16.mxu0 0
        %502 = vmatpush2.bf16.msra.mxu0 %v424
        %503 = vmatprep.subr.bf16.mxu0 0
        %504 = vmatpush2.bf16.msra.mxu0 %v423
        %505 = vmatprep.subr.bf16.mxu0 0
        %506 = vmatpush2.bf16.msra.mxu0 %v422
        %507 = vmatprep.subr.bf16.mxu0 0
        %508 = vmatpush2.bf16.msra.mxu0 %v421
        %509 = vmatprep.mubr.bf16.mxu0 %v270
        %510 = vmatmul.mubr.bf16.gmra.mxu0 %v269
        %v511 = vpop.f32.mrf.mxu0
        %v512 = vadd.f32 %v243, %v511
        %v513 = vpop.f32.mrf.mxu0
        %v514 = vpop.f32.mrf.mxu0
        %v515 = vadd.f32 %v243, %v514
        %v516 = vpop.f32.mrf.mxu0
        %517 = vmatprep.mubr.bf16.mxu0 %v274
        %518 = vmatmul.mubr.bf16.gmra.mxu0 %v273
        %v519 = vpop.f32.mrf.mxu0
        %v520 = vadd.f32 %v243, %v519
        %v521 = vpop.f32.mrf.mxu0
        %v522 = vpop.f32.mrf.mxu0
        %v523 = vadd.f32 %v243, %v522
        %v524 = vpop.f32.mrf.mxu0
        %525 = vdwg.mxu0
        %526 = vmatprep.subr.bf16.mxu0 0
        %527 = vmatpush1.bf16.msra.mxu0 %v436
        %528 = vmatprep.subr.bf16.mxu0 0
        %529 = vmatpush1.bf16.msra.mxu0 %v435
        %530 = vmatprep.subr.bf16.mxu0 0
        %531 = vmatpush1.bf16.msra.mxu0 %v434
        %532 = vmatprep.subr.bf16.mxu0 0
        %533 = vmatpush1.bf16.msra.mxu0 %v433
        %534 = vmatprep.subr.bf16.mxu0 0
        %535 = vmatpush1.bf16.msra.mxu0 %v432
        %536 = vmatprep.subr.bf16.mxu0 0
        %537 = vmatpush1.bf16.msra.mxu0 %v431
        %538 = vmatprep.subr.bf16.mxu0 0
        %539 = vmatpush1.bf16.msra.mxu0 %v430
        %540 = vmatprep.subr.bf16.mxu0 0
        %541 = vmatpush1.bf16.msra.mxu0 %v429
        %542 = vmatprep.subr.bf16.mxu0 0
        %543 = vmatpush2.bf16.msra.mxu0 %v444
        %544 = vmatprep.subr.bf16.mxu0 0
        %545 = vmatpush2.bf16.msra.mxu0 %v443
        %546 = vmatprep.subr.bf16.mxu0 0
        %547 = vmatpush2.bf16.msra.mxu0 %v442
        %548 = vmatprep.subr.bf16.mxu0 0
        %549 = vmatpush2.bf16.msra.mxu0 %v441
        %550 = vmatprep.subr.bf16.mxu0 0
        %551 = vmatpush2.bf16.msra.mxu0 %v440
        %552 = vmatprep.subr.bf16.mxu0 0
        %553 = vmatpush2.bf16.msra.mxu0 %v439
        %554 = vmatprep.subr.bf16.mxu0 0
        %555 = vmatpush2.bf16.msra.mxu0 %v438
        %556 = vmatprep.subr.bf16.mxu0 0
        %557 = vmatpush2.bf16.msra.mxu0 %v437
        %558 = vmatprep.mubr.bf16.mxu0 %v272
        %559 = vmatmul.mubr.bf16.gmra.mxu0 %v271
        %v560 = vpop.f32.mrf.mxu0
        %v561 = vadd.f32 %v512, %v560
        %v562 = vpop.f32.mrf.mxu0
        %v563 = vpop.f32.mrf.mxu0
        %v564 = vadd.f32 %v515, %v563
        %v565 = vpop.f32.mrf.mxu0
        %566 = vmatprep.mubr.bf16.mxu0 %v276
        %567 = vmatmul.mubr.bf16.gmra.mxu0 %v275
        %v568 = vpop.f32.mrf.mxu0
        %v569 = vadd.f32 %v520, %v568
        %v570 = vpop.f32.mrf.mxu0
        %v571 = vpop.f32.mrf.mxu0
        %v572 = vadd.f32 %v523, %v571
        %v573 = vpop.f32.mrf.mxu0
        %574 = vdwg.mxu0
        %v575 = vmax.f32 %v561, 0.0
        %v576 = vmax.f32 %v564, 0.0
        %v577 = vmax.f32 %v569, 0.0
        %v578 = vmax.f32 %v572, 0.0
        %v583 = vcombine.high %v575, %v575
        %v584 = vcombine.high %v576, %v576
        %v585 = vcombine.high %v577, %v577
        %v586 = vcombine.high %v578, %v578
        %v591 = vpack.c.bf16 %v575, %v575
        %v592 = vpack.c.bf16 %v583, %v583
        %v593 = vpack.c.bf16 %v576, %v576
        %v594 = vpack.c.bf16 %v584, %v584
        %v595 = vpack.c.bf16 %v577, %v577
        %v596 = vpack.c.bf16 %v585, %v585
        %v597 = vpack.c.bf16 %v578, %v578
        %v598 = vpack.c.bf16 %v586, %v586
        %599 = vst [vmem:[%s159] sm:$0x3] %v591
        %600 = vst [vmem:[%s159 + $0x2] sm:$0x3] %v592
        %601 = vst [vmem:[%s159 + $0x4] sm:$0x3] %v593
        %602 = vst [vmem:[%s159 + $0x6] sm:$0x3] %v594
        %603 = vst [vmem:[%s159 + $0x8] sm:$0x3] %v595
        %604 = vst [vmem:[%s159 + $0xa] sm:$0x3] %v596
        %605 = vst [vmem:[%s159 + $0xc] sm:$0x3] %v597
        %606 = vst [vmem:[%s159 + $0xe] sm:$0x3] %v598
        %s607 = sand.u32 %s90, 1
        %s608 = sand.u32 %s90, 1
        %s609 = smul.addr %s608, 16
        %s610 = scalar_lea.vmem [#allocation2], %s609
        // Predicated region
        $region33: #{forward.11} parent=31 // pred_check
          %p611 = pneg %p100
        $region34: #{forward.11} parent=31 // pred_check_branch
          %613 = sbr.rel (%p611) target = $region36
        $region35: #{forward.11} parent=31 // pred_region
          %s614 = smul.addr %s14, 2
          %s615 = scalar_lea.vmem %s3, %s614
          // Predicated region
          $region37: #{forward.11} parent=35 // pred_check
            _
          $region38: #{forward.11} parent=35 // pred_check_branch
            %617 = sbr.rel (0) target = $region40
          $region39: #{forward.11} parent=35 // pred_region
            // Predicated region
            $region41: #{forward.11} parent=39 // pred_check
              _
            $region42: #{forward.11} parent=39 // pred_check_branch
              %619 = sbr.rel target = $region44
            $region43: #{forward.11} parent=39 // pred_region
              // Predicated region
              $region56: #{forward.11} parent=43 // pred_check
                _
              $region57: #{forward.11} parent=43 // pred_check_branch
                %649 = sbr.rel (0) target = $region59
              $region58: #{forward.11} parent=43 // pred_region
                loop: start=0, step=1, limit=1
                $region60: #{forward.11} parent=58 // loop_pre_header
                  _
                $region61: #{forward.11} parent=58 // loop_header
                  %s651 = sphi 0, %s655
                  %p652 = scmp.ge.s32.totalorder %s651, 1
                  %s656 = sphi %s610, %s610
                  %s657 = sphi %s615, %s615
                $region62: #{forward.11} parent=58 // loop_header_branch
                  %654 = sbr.rel (%p652) target = $region66
                $region63: #{forward.11} parent=58 // loop_body
                  _
                $region64: #{forward.11} parent=58 // loop_footer
                  %s655 = sadd.s32 1, %s651
                $region65: #{forward.11} parent=58 // loop_footer_branch
                  %650 = sbr.rel target = $region61
                $region66: #{forward.11} parent=58 // loop_exit
                  _
                %s659 = ssub.s32 4, 1
                loop: start=0, step=1, limit=1
                $region67: #{forward.11} parent=58 // loop_pre_header
                  _
                $region68: #{forward.11} parent=58 // loop_header
                  %s661 = sphi 0, %s665
                  %p662 = scmp.ge.s32.totalorder %s661, 1
                  %s666 = sphi %s610, %s610
                  %s667 = sphi %s615, %s615
                $region69: #{forward.11} parent=58 // loop_header_branch
                  %664 = sbr.rel (%p662) target = $region73
                $region70: #{forward.11} parent=58 // loop_body
                  %v668 = vld [vmem:[%s666] sm:%s659]
                  %669 = vst [vmem:[%s667] sm:%s659] %v668
                  %v670 = vld [vmem:[%s666 + $0x2] sm:%s659]
                  %671 = vst [vmem:[%s667 + $0x4] sm:%s659] %v670
                  %v672 = vld [vmem:[%s666 + $0x4] sm:%s659]
                  %673 = vst [vmem:[%s667 + $0x8] sm:%s659] %v672
                  %v674 = vld [vmem:[%s666 + $0x6] sm:%s659]
                  %675 = vst [vmem:[%s667 + $0xc] sm:%s659] %v674
                  %v676 = vld [vmem:[%s666 + $0x8] sm:%s659]
                  %677 = vst [vmem:[%s667 + $0x10] sm:%s659] %v676
                  %v678 = vld [vmem:[%s666 + $0xa] sm:%s659]
                  %679 = vst [vmem:[%s667 + $0x14] sm:%s659] %v678
                  %v680 = vld [vmem:[%s666 + $0xc] sm:%s659]
                  %681 = vst [vmem:[%s667 + $0x18] sm:%s659] %v680
                  %v682 = vld [vmem:[%s666 + $0xe] sm:%s659]
                  %683 = vst [vmem:[%s667 + $0x1c] sm:%s659] %v682
                $region71: #{forward.11} parent=58 // loop_footer
                  %s665 = sadd.s32 1, %s661
                $region72: #{forward.11} parent=58 // loop_footer_branch
                  %660 = sbr.rel target = $region68
                $region73: #{forward.11} parent=58 // loop_exit
                  _
              $region59: #{forward.11} parent=43 // pred_fallthru
                _
            $region44: #{forward.11} parent=39 // pred_fallthru
              _
            // Predicated region
            $region45: #{forward.11} parent=39 // pred_check
              _
            $region46: #{forward.11} parent=39 // pred_check_branch
              %621 = sbr.rel (0) target = $region48
            $region47: #{forward.11} parent=39 // pred_region
              %s623 = ssub.s32 4, 1
              loop: start=0, step=1, limit=1
              $region49: #{forward.11} parent=47 // loop_pre_header
                _
              $region50: #{forward.11} parent=47 // loop_header
                %s625 = sphi 0, %s629
                %p626 = scmp.ge.s32.totalorder %s625, 1
                %s630 = sphi %s610, %s610
                %s631 = sphi %s615, %s615
              $region51: #{forward.11} parent=47 // loop_header_branch
                %628 = sbr.rel (%p626) target = $region55
              $region52: #{forward.11} parent=47 // loop_body
                %v632 = vld [vmem:[%s630] sm:%s623]
                %633 = vst [vmem:[%s631] sm:%s623] %v632
                %v634 = vld [vmem:[%s630 + $0x2] sm:%s623]
                %635 = vst [vmem:[%s631 + $0x4] sm:%s623] %v634
                %v636 = vld [vmem:[%s630 + $0x4] sm:%s623]
                %637 = vst [vmem:[%s631 + $0x8] sm:%s623] %v636
                %v638 = vld [vmem:[%s630 + $0x6] sm:%s623]
                %639 = vst [vmem:[%s631 + $0xc] sm:%s623] %v638
                %v640 = vld [vmem:[%s630 + $0x8] sm:%s623]
                %641 = vst [vmem:[%s631 + $0x10] sm:%s623] %v640
                %v642 = vld [vmem:[%s630 + $0xa] sm:%s623]
                %643 = vst [vmem:[%s631 + $0x14] sm:%s623] %v642
                %v644 = vld [vmem:[%s630 + $0xc] sm:%s623]
                %645 = vst [vmem:[%s631 + $0x18] sm:%s623] %v644
                %v646 = vld [vmem:[%s630 + $0xe] sm:%s623]
                %647 = vst [vmem:[%s631 + $0x1c] sm:%s623] %v646
              $region53: #{forward.11} parent=47 // loop_footer
                %s629 = sadd.s32 1, %s625
              $region54: #{forward.11} parent=47 // loop_footer_branch
                %624 = sbr.rel target = $region50
              $region55: #{forward.11} parent=47 // loop_exit
                _
            $region48: #{forward.11} parent=39 // pred_fallthru
              _
          $region40: #{forward.11} parent=35 // pred_fallthru
            _
          %684 = vnop
        $region36: #{forward.11} parent=31 // pred_fallthru
          _
      $region32: #{forward.11} parent=5 // pred_fallthru
        _
      %p685 = scmp.le.s32.totalorder 2, %s9
      // Predicated region
      $region74: #{forward.11} parent=5 // pred_check
        %p686 = pneg %p685
      $region75: #{forward.11} parent=5 // pred_check_branch
        %688 = sbr.rel (%p686) target = $region77
      $region76: #{forward.11} parent=5 // pred_region
        %s689 = ssub.s32 %s9, 2
        // Predicated region
        $region78: #{forward.11} parent=76 // pred_check
          %p690 = pneg %p106
        $region79: #{forward.11} parent=76 // pred_check_branch
          %692 = sbr.rel (%p690) target = $region81
        $region80: #{forward.11} parent=76 // pred_region
          %s693 = sand.u32 %s91, 1
          %s694 = sand.u32 %s91, 1
          %s695 = smul.addr %s694, 16
          %s696 = scalar_lea.vmem [#allocation2], %s695
        $region81: #{forward.11} parent=76 // pred_fallthru
          _
      $region77: #{forward.11} parent=5 // pred_fallthru
        _
    $region6: #{forward.11} parent=1 // loop_footer
      %s13 = sadd.s32 1, %s9
    $region7: #{forward.11} parent=1 // loop_footer_branch
      %8 = sbr.rel target = $region3
    $region8: #{forward.11} parent=1 // loop_exit
      _

// kernel: forward.9
$region0: #{forward.9}
  #allocation0 [shape = 'u32[]', space=smem, size = 0x4, offset = 0x4, fixed_abs, tag = 'smem constant byte address 0x4 - core index']
  #allocation1 [shape = 'u32[144,128]{1,0:T(1,128)}', space=vmem, size = 0x12000, scoped, tag = 'internal scratch']
  %s0 = inlined_call_operand.vmem [shape: bf16[32,1152], index: 0, kind: input, shape index: {}]
  %s1 = inlined_call_operand.vmem [shape: bf16[1152,128], index: 1, kind: input, shape index: {}]
  %s2 = inlined_call_operand.vmem [shape: f32[1,128], index: 2, kind: input, shape index: {}]
  %s3 = inlined_call_operand.vmem [shape: bf16[32,128], index: 3, kind: output, shape index: {}]
  %s4 = sld [smem:[#allocation0]]
  $region22: #{forward.9} parent=0
    _
  %s6 = ssub.s32 1, %s4
  %s7 = scalar_select 0, %s6, %s4
  // Predicated region
  $region2: #{forward.9} parent=0 // pred_check
    _
  $region3: #{forward.9} parent=0 // pred_check_branch
    %9 = sbr.rel (0) target = $region5
  $region4: #{forward.9} parent=0 // pred_region
    _
  $region5: #{forward.9} parent=0 // pred_fallthru
    _
  // Predicated region
  $region6: #{forward.9} parent=0 // pred_check
    _
  $region7: #{forward.9} parent=0 // pred_check_branch
    %11 = sbr.rel (0) target = $region9
  $region8: #{forward.9} parent=0 // pred_region
    _
  $region9: #{forward.9} parent=0 // pred_fallthru
    _
  // Predicated region
  $region10: #{forward.9} parent=0 // pred_check
    _
  $region11: #{forward.9} parent=0 // pred_check_branch
    %13 = sbr.rel (0) target = $region13
  $region12: #{forward.9} parent=0 // pred_region
    _
  $region13: #{forward.9} parent=0 // pred_fallthru
    _
  %v15 = vld [vmem:[%s0] sm:$0xff]
  %v16 = vld [vmem:[%s0 + $0x8] sm:$0xff]
  %v17 = vld [vmem:[%s0 + $0x10] sm:$0xff]
  %v18 = vld [vmem:[%s0 + $0x18] sm:$0xff]
  %v19 = vld [vmem:[%s0 + $0x20] sm:$0xf]
  %v20 = vld [vmem:[%s0 + $0x24] sm:$0xff]
  %v21 = vld [vmem:[%s0 + $0x2c] sm:$0xff]
  %v22 = vld [vmem:[%s0 + $0x34] sm:$0xff]
  %v23 = vld [vmem:[%s0 + $0x3c] sm:$0xff]
  %v24 = vld [vmem:[%s0 + $0x44] sm:$0xf]
  %v25 = vld [vmem:[%s0 + $0x48] sm:$0xff]
  %v26 = vld [vmem:[%s0 + $0x50] sm:$0xff]
  %v27 = vld [vmem:[%s0 + $0x58] sm:$0xff]
  %v28 = vld [vmem:[%s0 + $0x60] sm:$0xff]
  %v29 = vld [vmem:[%s0 + $0x68] sm:$0xf]
  %v30 = vld [vmem:[%s0 + $0x6c] sm:$0xff]
  %v31 = vld [vmem:[%s0 + $0x74] sm:$0xff]
  %v32 = vld [vmem:[%s0 + $0x7c] sm:$0xff]
  %v33 = vld [vmem:[%s0 + $0x84] sm:$0xff]
  %v34 = vld [vmem:[%s0 + $0x8c] sm:$0xf]
  %v35 = vld [vmem:[%s1] sm:$0xf]
  %v36 = vld [vmem:[%s1 + $0x4] sm:$0xf]
  %v37 = vld [vmem:[%s1 + $0x8] sm:$0xf]
  %v38 = vld [vmem:[%s1 + $0xc] sm:$0xf]
  %v39 = vld [vmem:[%s1 + $0x10] sm:$0xf]
  %v40 = vld [vmem:[%s1 + $0x14] sm:$0xf]
  %v41 = vld [vmem:[%s1 + $0x18] sm:$0xf]
  %v42 = vld [vmem:[%s1 + $0x1c] sm:$0xf]
  %v43 = vld [vmem:[%s1 + $0x20] sm:$0xf]
  %v44 = vld [vmem:[%s1 + $0x24] sm:$0xf]
  %v45 = vld [vmem:[%s1 + $0x28] sm:$0xf]
  %v46 = vld [vmem:[%s1 + $0x2c] sm:$0xf]
  %v47 = vld [vmem:[%s1 + $0x30] sm:$0xf]
  %v48 = vld [vmem:[%s1 + $0x34] sm:$0xf]
  %v49 = vld [vmem:[%s1 + $0x38] sm:$0xf]
  %v50 = vld [vmem:[%s1 + $0x3c] sm:$0xf]
  %v51 = vld [vmem:[%s1 + $0x40] sm:$0xf]
  %v52 = vld [vmem:[%s1 + $0x44] sm:$0xf]
  %v53 = vld [vmem:[%s1 + $0x48] sm:$0xf]
  %v54 = vld [vmem:[%s1 + $0x4c] sm:$0xf]
  %v55 = vld [vmem:[%s1 + $0x50] sm:$0xf]
  %v56 = vld [vmem:[%s1 + $0x54] sm:$0xf]
  %v57 = vld [vmem:[%s1 + $0x58] sm:$0xf]
  %v58 = vld [vmem:[%s1 + $0x5c] sm:$0xf]
  %v59 = vld [vmem:[%s1 + $0x60] sm:$0xf]
  %v60 = vld [vmem:[%s1 + $0x64] sm:$0xf]
  %v61 = vld [vmem:[%s1 + $0x68] sm:$0xf]
  %v62 = vld [vmem:[%s1 + $0x6c] sm:$0xf]
  %v63 = vld [vmem:[%s1 + $0x70] sm:$0xf]
  %v64 = vld [vmem:[%s1 + $0x74] sm:$0xf]
  %v65 = vld [vmem:[%s1 + $0x78] sm:$0xf]
  %v66 = vld [vmem:[%s1 + $0x7c] sm:$0xf]
  %v67 = vld [vmem:[%s1 + $0x80] sm:$0xf]
  %v68 = vld [vmem:[%s1 + $0x84] sm:$0xf]
  %v69 = vld [vmem:[%s1 + $0x88] sm:$0xf]
  %v70 = vld [vmem:[%s1 + $0x8c] sm:$0xf]
  %v71 = vld [vmem:[%s1 + $0x90] sm:$0xf]
  %v72 = vld [vmem:[%s1 + $0x94] sm:$0xf]
  %v73 = vld [vmem:[%s1 + $0x98] sm:$0xf]
  %v74 = vld [vmem:[%s1 + $0x9c] sm:$0xf]
  %v75 = vld [vmem:[%s1 + $0xa0] sm:$0xf]
  %v76 = vld [vmem:[%s1 + $0xa4] sm:$0xf]
  %v77 = vld [vmem:[%s1 + $0xa8] sm:$0xf]
  %v78 = vld [vmem:[%s1 + $0xac] sm:$0xf]
  %v79 = vld [vmem:[%s1 + $0xb0] sm:$0xf]
  %v80 = vld [vmem:[%s1 + $0xb4] sm:$0xf]
  %v81 = vld [vmem:[%s1 + $0xb8] sm:$0xf]
  %v82 = vld [vmem:[%s1 + $0xbc] sm:$0xf]
  %v83 = vld [vmem:[%s1 + $0xc0] sm:$0xf]
  %v84 = vld [vmem:[%s1 + $0xc4] sm:$0xf]
  %v85 = vld [vmem:[%s1 + $0xc8] sm:$0xf]
  %v86 = vld [vmem:[%s1 + $0xcc] sm:$0xf]
  %v87 = vld [vmem:[%s1 + $0xd0] sm:$0xf]
  %v88 = vld [vmem:[%s1 + $0xd4] sm:$0xf]
  %v89 = vld [vmem:[%s1 + $0xd8] sm:$0xf]
  %v90 = vld [vmem:[%s1 + $0xdc] sm:$0xf]
  %v91 = vld [vmem:[%s1 + $0xe0] sm:$0xf]
  %v92 = vld [vmem:[%s1 + $0xe4] sm:$0xf]
  %v93 = vld [vmem:[%s1 + $0xe8] sm:$0xf]
  %v94 = vld [vmem:[%s1 + $0xec] sm:$0xf]
  %v95 = vld [vmem:[%s1 + $0xf0] sm:$0xf]
  %v96 = vld [vmem:[%s1 + $0xf4] sm:$0xf]
  %v97 = vld [vmem:[%s1 + $0xf8] sm:$0xf]
  %v98 = vld [vmem:[%s1 + $0xfc] sm:$0xf]
  %v99 = vld [vmem:[%s1 + $0x100] sm:$0xf]
  %v100 = vld [vmem:[%s1 + $0x104] sm:$0xf]
  %v101 = vld [vmem:[%s1 + $0x108] sm:$0xf]
  %v102 = vld [vmem:[%s1 + $0x10c] sm:$0xf]
  %v103 = vld [vmem:[%s1 + $0x110] sm:$0xf]
  %v104 = vld [vmem:[%s1 + $0x114] sm:$0xf]
  %v105 = vld [vmem:[%s1 + $0x118] sm:$0xf]
  %v106 = vld [vmem:[%s1 + $0x11c] sm:$0xf]
  %v107 = vld [vmem:[%s1 + $0x120] sm:$0xf]
  %v108 = vld [vmem:[%s1 + $0x124] sm:$0xf]
  %v109 = vld [vmem:[%s1 + $0x128] sm:$0xf]
  %v110 = vld [vmem:[%s1 + $0x12c] sm:$0xf]
  %v111 = vld [vmem:[%s1 + $0x130] sm:$0xf]
  %v112 = vld [vmem:[%s1 + $0x134] sm:$0xf]
  %v113 = vld [vmem:[%s1 + $0x138] sm:$0xf]
  %v114 = vld [vmem:[%s1 + $0x13c] sm:$0xf]
  %v115 = vld [vmem:[%s1 + $0x140] sm:$0xf]
  %v116 = vld [vmem:[%s1 + $0x144] sm:$0xf]
  %v117 = vld [vmem:[%s1 + $0x148] sm:$0xf]
  %v118 = vld [vmem:[%s1 + $0x14c] sm:$0xf]
  %v119 = vld [vmem:[%s1 + $0x150] sm:$0xf]
  %v120 = vld [vmem:[%s1 + $0x154] sm:$0xf]
  %v121 = vld [vmem:[%s1 + $0x158] sm:$0xf]
  %v122 = vld [vmem:[%s1 + $0x15c] sm:$0xf]
  %v123 = vld [vmem:[%s1 + $0x160] sm:$0xf]
  %v124 = vld [vmem:[%s1 + $0x164] sm:$0xf]
  %v125 = vld [vmem:[%s1 + $0x168] sm:$0xf]
  %v126 = vld [vmem:[%s1 + $0x16c] sm:$0xf]
  %v127 = vld [vmem:[%s1 + $0x170] sm:$0xf]
  %v128 = vld [vmem:[%s1 + $0x174] sm:$0xf]
  %v129 = vld [vmem:[%s1 + $0x178] sm:$0xf]
  %v130 = vld [vmem:[%s1 + $0x17c] sm:$0xf]
  %v131 = vld [vmem:[%s1 + $0x180] sm:$0xf]
  %v132 = vld [vmem:[%s1 + $0x184] sm:$0xf]
  %v133 = vld [vmem:[%s1 + $0x188] sm:$0xf]
  %v134 = vld [vmem:[%s1 + $0x18c] sm:$0xf]
  %v135 = vld [vmem:[%s1 + $0x190] sm:$0xf]
  %v136 = vld [vmem:[%s1 + $0x194] sm:$0xf]
  %v137 = vld [vmem:[%s1 + $0x198] sm:$0xf]
  %v138 = vld [vmem:[%s1 + $0x19c] sm:$0xf]
  %v139 = vld [vmem:[%s1 + $0x1a0] sm:$0xf]
  %v140 = vld [vmem:[%s1 + $0x1a4] sm:$0xf]
  %v141 = vld [vmem:[%s1 + $0x1a8] sm:$0xf]
  %v142 = vld [vmem:[%s1 + $0x1ac] sm:$0xf]
  %v143 = vld [vmem:[%s1 + $0x1b0] sm:$0xf]
  %v144 = vld [vmem:[%s1 + $0x1b4] sm:$0xf]
  %v145 = vld [vmem:[%s1 + $0x1b8] sm:$0xf]
  %v146 = vld [vmem:[%s1 + $0x1bc] sm:$0xf]
  %v147 = vld [vmem:[%s1 + $0x1c0] sm:$0xf]
  %v148 = vld [vmem:[%s1 + $0x1c4] sm:$0xf]
  %v149 = vld [vmem:[%s1 + $0x1c8] sm:$0xf]
  %v150 = vld [vmem:[%s1 + $0x1cc] sm:$0xf]
  %v151 = vld [vmem:[%s1 + $0x1d0] sm:$0xf]
  %v152 = vld [vmem:[%s1 + $0x1d4] sm:$0xf]
  %v153 = vld [vmem:[%s1 + $0x1d8] sm:$0xf]
  %v154 = vld [vmem:[%s1 + $0x1dc] sm:$0xf]
  %v155 = vld [vmem:[%s1 + $0x1e0] sm:$0xf]
  %v156 = vld [vmem:[%s1 + $0x1e4] sm:$0xf]
  %v157 = vld [vmem:[%s1 + $0x1e8] sm:$0xf]
  %v158 = vld [vmem:[%s1 + $0x1ec] sm:$0xf]
  %v159 = vld [vmem:[%s1 + $0x1f0] sm:$0xf]
  %v160 = vld [vmem:[%s1 + $0x1f4] sm:$0xf]
  %v161 = vld [vmem:[%s1 + $0x1f8] sm:$0xf]
  %v162 = vld [vmem:[%s1 + $0x1fc] sm:$0xf]
  %v163 = vld [vmem:[%s1 + $0x200] sm:$0xf]
  %v164 = vld [vmem:[%s1 + $0x204] sm:$0xf]
  %v165 = vld [vmem:[%s1 + $0x208] sm:$0xf]
  %v166 = vld [vmem:[%s1 + $0x20c] sm:$0xf]
  %v167 = vld [vmem:[%s1 + $0x210] sm:$0xf]
  %v168 = vld [vmem:[%s1 + $0x214] sm:$0xf]
  %v169 = vld [vmem:[%s1 + $0x218] sm:$0xf]
  %v170 = vld [vmem:[%s1 + $0x21c] sm:$0xf]
  %v171 = vld [vmem:[%s1 + $0x220] sm:$0xf]
  %v172 = vld [vmem:[%s1 + $0x224] sm:$0xf]
  %v173 = vld [vmem:[%s1 + $0x228] sm:$0xf]
  %v174 = vld [vmem:[%s1 + $0x22c] sm:$0xf]
  %v175 = vld [vmem:[%s1 + $0x230] sm:$0xf]
  %v176 = vld [vmem:[%s1 + $0x234] sm:$0xf]
  %v177 = vld [vmem:[%s1 + $0x238] sm:$0xf]
  %v178 = vld [vmem:[%s1 + $0x23c] sm:$0xf]
  %v179 = vld [vmem:[%s2] sm:$0x1]
  %v181 = vlaneseq
  %v182 = vshrl.u32 %v181, 7
  %v183 = vsub.s32 0, %v182
  %v184 = vrot.slane %v179, %v183
  %v206 = vunpack.c.l.b16 %v15
  %v207 = vunpack.c.h.b16 %v15
  %v208 = vunpack.c.l.b16 %v16
  %v209 = vunpack.c.h.b16 %v16
  %v210 = vunpack.c.l.b16 %v17
  %v211 = vunpack.c.h.b16 %v17
  %v212 = vunpack.c.l.b16 %v18
  %v213 = vunpack.c.h.b16 %v18
  %v214 = vunpack.c.l.b16 %v19
  %v215 = vunpack.c.l.b16 %v20
  %v216 = vunpack.c.h.b16 %v20
  %v217 = vunpack.c.l.b16 %v21
  %v218 = vunpack.c.h.b16 %v21
  %v219 = vunpack.c.l.b16 %v22
  %v220 = vunpack.c.h.b16 %v22
  %v221 = vunpack.c.l.b16 %v23
  %v222 = vunpack.c.h.b16 %v23
  %v223 = vunpack.c.l.b16 %v24
  %v224 = vunpack.c.l.b16 %v25
  %v225 = vunpack.c.h.b16 %v25
  %v226 = vunpack.c.l.b16 %v26
  %v227 = vunpack.c.h.b16 %v26
  %v228 = vunpack.c.l.b16 %v27
  %v229 = vunpack.c.h.b16 %v27
  %v230 = vunpack.c.l.b16 %v28
  %v231 = vunpack.c.h.b16 %v28
  %v232 = vunpack.c.l.b16 %v29
  %v233 = vunpack.c.l.b16 %v30
  %v234 = vunpack.c.h.b16 %v30
  %v235 = vunpack.c.l.b16 %v31
  %v236 = vunpack.c.h.b16 %v31
  %v237 = vunpack.c.l.b16 %v32
  %v238 = vunpack.c.h.b16 %v32
  %v239 = vunpack.c.l.b16 %v33
  %v240 = vunpack.c.h.b16 %v33
  %v241 = vunpack.c.l.b16 %v34
  %v242 = vpack.c.b16 %v215, %v206
  %v243 = vpack.c.b16 %v216, %v207
  %v244 = vpack.c.b16 %v217, %v208
  %v245 = vpack.c.b16 %v218, %v209
  %v246 = vpack.c.b16 %v219, %v210
  %v247 = vpack.c.b16 %v220, %v211
  %v248 = vpack.c.b16 %v221, %v212
  %v249 = vpack.c.b16 %v222, %v213
  %v250 = vpack.c.b16 %v223, %v214
  %v251 = vpack.c.b16 %v233, %v224
  %v252 = vpack.c.b16 %v234, %v225
  %v253 = vpack.c.b16 %v235, %v226
  %v254 = vpack.c.b16 %v236, %v227
  %v255 = vpack.c.b16 %v237, %v228
  %v256 = vpack.c.b16 %v238, %v229
  %v257 = vpack.c.b16 %v239, %v230
  %v258 = vpack.c.b16 %v240, %v231
  %v259 = vpack.c.b16 %v241, %v232
  %v422 = vunpack.c.l.b16 %v35
  %v423 = vunpack.c.l.b16 %v36
  %v424 = vunpack.c.l.b16 %v37
  %v425 = vunpack.c.l.b16 %v38
  %v426 = vunpack.c.l.b16 %v39
  %v427 = vunpack.c.l.b16 %v40
  %v428 = vunpack.c.l.b16 %v41
  %v429 = vunpack.c.l.b16 %v42
  %v430 = vunpack.c.l.b16 %v43
  %v431 = vunpack.c.l.b16 %v44
  %v432 = vunpack.c.l.b16 %v45
  %v433 = vunpack.c.l.b16 %v46
  %v434 = vunpack.c.l.b16 %v47
  %v435 = vunpack.c.l.b16 %v48
  %v436 = vunpack.c.l.b16 %v49
  %v437 = vunpack.c.l.b16 %v50
  %v438 = vunpack.c.l.b16 %v51
  %v439 = vunpack.c.l.b16 %v52
  %v440 = vunpack.c.l.b16 %v53
  %v441 = vunpack.c.l.b16 %v54
  %v442 = vunpack.c.l.b16 %v55
  %v443 = vunpack.c.l.b16 %v56
  %v444 = vunpack.c.l.b16 %v57
  %v445 = vunpack.c.l.b16 %v58
  %v446 = vunpack.c.l.b16 %v59
  %v447 = vunpack.c.l.b16 %v60
  %v448 = vunpack.c.l.b16 %v61
  %v449 = vunpack.c.l.b16 %v62
  %v450 = vunpack.c.l.b16 %v63
  %v451 = vunpack.c.l.b16 %v64
  %v452 = vunpack.c.l.b16 %v65
  %v453 = vunpack.c.l.b16 %v66
  %v454 = vunpack.c.l.b16 %v67
  %v455 = vunpack.c.l.b16 %v68
  %v456 = vunpack.c.l.b16 %v69
  %v457 = vunpack.c.l.b16 %v70
  %v458 = vunpack.c.l.b16 %v71
  %v459 = vunpack.c.l.b16 %v72
  %v460 = vunpack.c.l.b16 %v73
  %v461 = vunpack.c.l.b16 %v74
  %v462 = vunpack.c.l.b16 %v75
  %v463 = vunpack.c.l.b16 %v76
  %v464 = vunpack.c.l.b16 %v77
  %v465 = vunpack.c.l.b16 %v78
  %v466 = vunpack.c.l.b16 %v79
  %v467 = vunpack.c.l.b16 %v80
  %v468 = vunpack.c.l.b16 %v81
  %v469 = vunpack.c.l.b16 %v82
  %v470 = vunpack.c.l.b16 %v83
  %v471 = vunpack.c.l.b16 %v84
  %v472 = vunpack.c.l.b16 %v85
  %v473 = vunpack.c.l.b16 %v86
  %v474 = vunpack.c.l.b16 %v87
  %v475 = vunpack.c.l.b16 %v88
  %v476 = vunpack.c.l.b16 %v89
  %v477 = vunpack.c.l.b16 %v90
  %v478 = vunpack.c.l.b16 %v91
  %v479 = vunpack.c.l.b16 %v92
  %v480 = vunpack.c.l.b16 %v93
  %v481 = vunpack.c.l.b16 %v94
  %v482 = vunpack.c.l.b16 %v95
  %v483 = vunpack.c.l.b16 %v96
  %v484 = vunpack.c.l.b16 %v97
  %v485 = vunpack.c.l.b16 %v98
  %v486 = vunpack.c.l.b16 %v99
  %v487 = vunpack.c.l.b16 %v100
  %v488 = vunpack.c.l.b16 %v101
  %v489 = vunpack.c.l.b16 %v102
  %v490 = vunpack.c.l.b16 %v103
  %v491 = vunpack.c.l.b16 %v104
  %v492 = vunpack.c.l.b16 %v105
  %v493 = vunpack.c.l.b16 %v106
  %v494 = vunpack.c.l.b16 %v107
  %v495 = vunpack.c.l.b16 %v108
  %v496 = vunpack.c.l.b16 %v109
  %v497 = vunpack.c.l.b16 %v110
  %v498 = vunpack.c.l.b16 %v111
  %v499 = vunpack.c.l.b16 %v112
  %v500 = vunpack.c.l.b16 %v113
  %v501 = vunpack.c.l.b16 %v114
  %v502 = vunpack.c.l.b16 %v115
  %v503 = vunpack.c.l.b16 %v116
  %v504 = vunpack.c.l.b16 %v117
  %v505 = vunpack.c.l.b16 %v118
  %v506 = vunpack.c.l.b16 %v119
  %v507 = vunpack.c.l.b16 %v120
  %v508 = vunpack.c.l.b16 %v121
  %v509 = vunpack.c.l.b16 %v122
  %v510 = vunpack.c.l.b16 %v123
  %v511 = vunpack.c.l.b16 %v124
  %v512 = vunpack.c.l.b16 %v125
  %v513 = vunpack.c.l.b16 %v126
  %v514 = vunpack.c.l.b16 %v127
  %v515 = vunpack.c.l.b16 %v128
  %v516 = vunpack.c.l.b16 %v129
  %v517 = vunpack.c.l.b16 %v130
  %v518 = vunpack.c.l.b16 %v131
  %v519 = vunpack.c.l.b16 %v132
  %v520 = vunpack.c.l.b16 %v133
  %v521 = vunpack.c.l.b16 %v134
  %v522 = vunpack.c.l.b16 %v135
  %v523 = vunpack.c.l.b16 %v136
  %v524 = vunpack.c.l.b16 %v137
  %v525 = vunpack.c.l.b16 %v138
  %v526 = vunpack.c.l.b16 %v139
  %v527 = vunpack.c.l.b16 %v140
  %v528 = vunpack.c.l.b16 %v141
  %v529 = vunpack.c.l.b16 %v142
  %v530 = vunpack.c.l.b16 %v143
  %v531 = vunpack.c.l.b16 %v144
  %v532 = vunpack.c.l.b16 %v145
  %v533 = vunpack.c.l.b16 %v146
  %v534 = vunpack.c.l.b16 %v147
  %v535 = vunpack.c.l.b16 %v148
  %v536 = vunpack.c.l.b16 %v149
  %v537 = vunpack.c.l.b16 %v150
  %v538 = vunpack.c.l.b16 %v151
  %v539 = vunpack.c.l.b16 %v152
  %v540 = vunpack.c.l.b16 %v153
  %v541 = vunpack.c.l.b16 %v154
  %v542 = vunpack.c.l.b16 %v155
  %v543 = vunpack.c.l.b16 %v156
  %v544 = vunpack.c.l.b16 %v157
  %v545 = vunpack.c.l.b16 %v158
  %v546 = vunpack.c.l.b16 %v159
  %v547 = vunpack.c.l.b16 %v160
  %v548 = vunpack.c.l.b16 %v161
  %v549 = vunpack.c.l.b16 %v162
  %v550 = vunpack.c.l.b16 %v163
  %v551 = vunpack.c.l.b16 %v164
  %v552 = vunpack.c.l.b16 %v165
  %v553 = vunpack.c.l.b16 %v166
  %v554 = vunpack.c.l.b16 %v167
  %v555 = vunpack.c.l.b16 %v168
  %v556 = vunpack.c.l.b16 %v169
  %v557 = vunpack.c.l.b16 %v170
  %v558 = vunpack.c.l.b16 %v171
  %v559 = vunpack.c.l.b16 %v172
  %v560 = vunpack.c.l.b16 %v173
  %v561 = vunpack.c.l.b16 %v174
  %v562 = vunpack.c.l.b16 %v175
  %v563 = vunpack.c.l.b16 %v176
  %v564 = vunpack.c.l.b16 %v177
  %v565 = vunpack.c.l.b16 %v178
  %v566 = vpack.c.b16 %v423, %v422
  %v567 = vpack.c.b16 %v425, %v424
  %v568 = vpack.c.b16 %v427, %v426
  %v569 = vpack.c.b16 %v429, %v428
  %v570 = vpack.c.b16 %v431, %v430
  %v571 = vpack.c.b16 %v433, %v432
  %v572 = vpack.c.b16 %v435, %v434
  %v573 = vpack.c.b16 %v437, %v436
  %v574 = vpack.c.b16 %v439, %v438
  %v575 = vpack.c.b16 %v441, %v440
  %v576 = vpack.c.b16 %v443, %v442
  %v577 = vpack.c.b16 %v445, %v444
  %v578 = vpack.c.b16 %v447, %v446
  %v579 = vpack.c.b16 %v449, %v448
  %v580 = vpack.c.b16 %v451, %v450
  %v581 = vpack.c.b16 %v453, %v452
  %v582 = vpack.c.b16 %v455, %v454
  %v583 = vpack.c.b16 %v457, %v456
  %v584 = vpack.c.b16 %v459, %v458
  %v585 = vpack.c.b16 %v461, %v460
  %v586 = vpack.c.b16 %v463, %v462
  %v587 = vpack.c.b16 %v465, %v464
  %v588 = vpack.c.b16 %v467, %v466
  %v589 = vpack.c.b16 %v469, %v468
  %v590 = vpack.c.b16 %v471, %v470
  %v591 = vpack.c.b16 %v473, %v472
  %v592 = vpack.c.b16 %v475, %v474
  %v593 = vpack.c.b16 %v477, %v476
  %v594 = vpack.c.b16 %v479, %v478
  %v595 = vpack.c.b16 %v481, %v480
  %v596 = vpack.c.b16 %v483, %v482
  %v597 = vpack.c.b16 %v485, %v484
  %v598 = vpack.c.b16 %v487, %v486
  %v599 = vpack.c.b16 %v489, %v488
  %v600 = vpack.c.b16 %v491, %v490
  %v601 = vpack.c.b16 %v493, %v492
  %v602 = vpack.c.b16 %v495, %v494
  %v603 = vpack.c.b16 %v497, %v496
  %v604 = vpack.c.b16 %v499, %v498
  %v605 = vpack.c.b16 %v501, %v500
  %v606 = vpack.c.b16 %v503, %v502
  %v607 = vpack.c.b16 %v505, %v504
  %v608 = vpack.c.b16 %v507, %v506
  %v609 = vpack.c.b16 %v509, %v508
  %v610 = vpack.c.b16 %v511, %v510
  %v611 = vpack.c.b16 %v513, %v512
  %v612 = vpack.c.b16 %v515, %v514
  %v613 = vpack.c.b16 %v517, %v516
  %v614 = vpack.c.b16 %v519, %v518
  %v615 = vpack.c.b16 %v521, %v520
  %v616 = vpack.c.b16 %v523, %v522
  %v617 = vpack.c.b16 %v525, %v524
  %v618 = vpack.c.b16 %v527, %v526
  %v619 = vpack.c.b16 %v529, %v528
  %v620 = vpack.c.b16 %v531, %v530
  %v621 = vpack.c.b16 %v533, %v532
  %v622 = vpack.c.b16 %v535, %v534
  %v623 = vpack.c.b16 %v537, %v536
  %v624 = vpack.c.b16 %v539, %v538
  %v625 = vpack.c.b16 %v541, %v540
  %v626 = vpack.c.b16 %v543, %v542
  %v627 = vpack.c.b16 %v545, %v544
  %v628 = vpack.c.b16 %v547, %v546
  %v629 = vpack.c.b16 %v549, %v548
  %v630 = vpack.c.b16 %v551, %v550
  %v631 = vpack.c.b16 %v553, %v552
  %v632 = vpack.c.b16 %v555, %v554
  %v633 = vpack.c.b16 %v557, %v556
  %v634 = vpack.c.b16 %v559, %v558
  %v635 = vpack.c.b16 %v561, %v560
  %v636 = vpack.c.b16 %v563, %v562
  %v637 = vpack.c.b16 %v565, %v564
  %710 = vmatprep.subr.bf16.mxu0 0
  %711 = vmatpush1.bf16.msra.mxu0 %v573
  %712 = vmatprep.subr.bf16.mxu0 0
  %713 = vmatpush1.bf16.msra.mxu0 %v572
  %714 = vmatprep.subr.bf16.mxu0 0
  %715 = vmatpush1.bf16.msra.mxu0 %v571
  %716 = vmatprep.subr.bf16.mxu0 0
  %717 = vmatpush1.bf16.msra.mxu0 %v570
  %718 = vmatprep.subr.bf16.mxu0 0
  %719 = vmatpush1.bf16.msra.mxu0 %v569
  %720 = vmatprep.subr.bf16.mxu0 0
  %721 = vmatpush1.bf16.msra.mxu0 %v568
  %722 = vmatprep.subr.bf16.mxu0 0
  %723 = vmatpush1.bf16.msra.mxu0 %v567
  %724 = vmatprep.subr.bf16.mxu0 0
  %725 = vmatpush1.bf16.msra.mxu0 %v566
  %726 = vmatprep.subr.bf16.mxu0 0
  %727 = vmatpush2.bf16.msra.mxu0 %v581
  %728 = vmatprep.subr.bf16.mxu0 0
  %729 = vmatpush2.bf16.msra.mxu0 %v580
  %730 = vmatprep.subr.bf16.mxu0 0
  %731 = vmatpush2.bf16.msra.mxu0 %v579
  %732 = vmatprep.subr.bf16.mxu0 0
  %733 = vmatpush2.bf16.msra.mxu0 %v578
  %734 = vmatprep.subr.bf16.mxu0 0
  %735 = vmatpush2.bf16.msra.mxu0 %v577
  %736 = vmatprep.subr.bf16.mxu0 0
  %737 = vmatpush2.bf16.msra.mxu0 %v576
  %738 = vmatprep.subr.bf16.mxu0 0
  %739 = vmatpush2.bf16.msra.mxu0 %v575
  %740 = vmatprep.subr.bf16.mxu0 0
  %741 = vmatpush2.bf16.msra.mxu0 %v574
  %742 = vmatprep.mubr.bf16.mxu0 %v243
  %743 = vmatmul.mubr.bf16.gmra.mxu0 %v242
  %v744 = vpop.f32.mrf.mxu0
  %v745 = vadd.f32 %v184, %v744
  %v746 = vpop.f32.mrf.mxu0
  %v747 = vpop.f32.mrf.mxu0
  %v748 = vadd.f32 %v184, %v747
  %v749 = vpop.f32.mrf.mxu0
  %750 = vmatprep.mubr.bf16.mxu0 %v252
  %751 = vmatmul.mubr.bf16.gmra.mxu0 %v251
  %v752 = vpop.f32.mrf.mxu0
  %v753 = vadd.f32 %v184, %v752
  %v754 = vpop.f32.mrf.mxu0
  %v755 = vpop.f32.mrf.mxu0
  %v756 = vadd.f32 %v184, %v755
  %v757 = vpop.f32.mrf.mxu0
  %758 = vdwg.mxu0
  %759 = vmatprep.subr.bf16.mxu0 0
  %760 = vmatpush1.bf16.msra.mxu0 %v589
  %761 = vmatprep.subr.bf16.mxu0 0
  %762 = vmatpush1.bf16.msra.mxu0 %v588
  %763 = vmatprep.subr.bf16.mxu0 0
  %764 = vmatpush1.bf16.msra.mxu0 %v587
  %765 = vmatprep.subr.bf16.mxu0 0
  %766 = vmatpush1.bf16.msra.mxu0 %v586
  %767 = vmatprep.subr.bf16.mxu0 0
  %768 = vmatpush1.bf16.msra.mxu0 %v585
  %769 = vmatprep.subr.bf16.mxu0 0
  %770 = vmatpush1.bf16.msra.mxu0 %v584
  %771 = vmatprep.subr.bf16.mxu0 0
  %772 = vmatpush1.bf16.msra.mxu0 %v583
  %773 = vmatprep.subr.bf16.mxu0 0
  %774 = vmatpush1.bf16.msra.mxu0 %v582
  %775 = vmatprep.subr.bf16.mxu0 0
  %776 = vmatpush2.bf16.msra.mxu0 %v597
  %777 = vmatprep.subr.bf16.mxu0 0
  %778 = vmatpush2.bf16.msra.mxu0 %v596
  %779 = vmatprep.subr.bf16.mxu0 0
  %780 = vmatpush2.bf16.msra.mxu0 %v595
  %781 = vmatprep.subr.bf16.mxu0 0
  %782 = vmatpush2.bf16.msra.mxu0 %v594
  %783 = vmatprep.subr.bf16.mxu0 0
  %784 = vmatpush2.bf16.msra.mxu0 %v593
  %785 = vmatprep.subr.bf16.mxu0 0
  %786 = vmatpush2.bf16.msra.mxu0 %v592
  %787 = vmatprep.subr.bf16.mxu0 0
  %788 = vmatpush2.bf16.msra.mxu0 %v591
  %789 = vmatprep.subr.bf16.mxu0 0
  %790 = vmatpush2.bf16.msra.mxu0 %v590
  %791 = vmatprep.mubr.bf16.mxu0 %v245
  %792 = vmatmul.mubr.bf16.gmra.mxu0 %v244
  %v793 = vpop.f32.mrf.mxu0
  %v794 = vadd.f32 %v745, %v793
  %v795 = vpop.f32.mrf.mxu0
  %v796 = vpop.f32.mrf.mxu0
  %v797 = vadd.f32 %v748, %v796
  %v798 = vpop.f32.mrf.mxu0
  %799 = vmatprep.mubr.bf16.mxu0 %v254
  %800 = vmatmul.mubr.bf16.gmra.mxu0 %v253
  %v801 = vpop.f32.mrf.mxu0
  %v802 = vadd.f32 %v753, %v801
  %v803 = vpop.f32.mrf.mxu0
  %v804 = vpop.f32.mrf.mxu0
  %v805 = vadd.f32 %v756, %v804
  %v806 = vpop.f32.mrf.mxu0
  %807 = vdwg.mxu0
  %808 = vmatprep.subr.bf16.mxu0 0
  %809 = vmatpush1.bf16.msra.mxu0 %v605
  %810 = vmatprep.subr.bf16.mxu0 0
  %811 = vmatpush1.bf16.msra.mxu0 %v604
  %812 = vmatprep.subr.bf16.mxu0 0
  %813 = vmatpush1.bf16.msra.mxu0 %v603
  %814 = vmatprep.subr.bf16.mxu0 0
  %815 = vmatpush1.bf16.msra.mxu0 %v602
  %816 = vmatprep.subr.bf16.mxu0 0
  %817 = vmatpush1.bf16.msra.mxu0 %v601
  %818 = vmatprep.subr.bf16.mxu0 0
  %819 = vmatpush1.bf16.msra.mxu0 %v600
  %820 = vmatprep.subr.bf16.mxu0 0
  %821 = vmatpush1.bf16.msra.mxu0 %v599
  %822 = vmatprep.subr.bf16.mxu0 0
  %823 = vmatpush1.bf16.msra.mxu0 %v598
  %824 = vmatprep.subr.bf16.mxu0 0
  %825 = vmatpush2.bf16.msra.mxu0 %v613
  %826 = vmatprep.subr.bf16.mxu0 0
  %827 = vmatpush2.bf16.msra.mxu0 %v612
  %828 = vmatprep.subr.bf16.mxu0 0
  %829 = vmatpush2.bf16.msra.mxu0 %v611
  %830 = vmatprep.subr.bf16.mxu0 0
  %831 = vmatpush2.bf16.msra.mxu0 %v610
  %832 = vmatprep.subr.bf16.mxu0 0
  %833 = vmatpush2.bf16.msra.mxu0 %v609
  %834 = vmatprep.subr.bf16.mxu0 0
  %835 = vmatpush2.bf16.msra.mxu0 %v608
  %836 = vmatprep.subr.bf16.mxu0 0
  %837 = vmatpush2.bf16.msra.mxu0 %v607
  %838 = vmatprep.subr.bf16.mxu0 0
  %839 = vmatpush2.bf16.msra.mxu0 %v606
  %840 = vmatprep.mubr.bf16.mxu0 %v247
  %841 = vmatmul.mubr.bf16.gmra.mxu0 %v246
  %v842 = vpop.f32.mrf.mxu0
  %v843 = vadd.f32 %v794, %v842
  %v844 = vpop.f32.mrf.mxu0
  %v845 = vpop.f32.mrf.mxu0
  %v846 = vadd.f32 %v797, %v845
  %v847 = vpop.f32.mrf.mxu0
  %848 = vmatprep.mubr.bf16.mxu0 %v256
  %849 = vmatmul.mubr.bf16.gmra.mxu0 %v255
  %v850 = vpop.f32.mrf.mxu0
  %v851 = vadd.f32 %v802, %v850
  %v852 = vpop.f32.mrf.mxu0
  %v853 = vpop.f32.mrf.mxu0
  %v854 = vadd.f32 %v805, %v853
  %v855 = vpop.f32.mrf.mxu0
  %856 = vdwg.mxu0
  %857 = vmatprep.subr.bf16.mxu0 0
  %858 = vmatpush1.bf16.msra.mxu0 %v621
  %859 = vmatprep.subr.bf16.mxu0 0
  %860 = vmatpush1.bf16.msra.mxu0 %v620
  %861 = vmatprep.subr.bf16.mxu0 0
  %862 = vmatpush1.bf16.msra.mxu0 %v619
  %863 = vmatprep.subr.bf16.mxu0 0
  %864 = vmatpush1.bf16.msra.mxu0 %v618
  %865 = vmatprep.subr.bf16.mxu0 0
  %866 = vmatpush1.bf16.msra.mxu0 %v617
  %867 = vmatprep.subr.bf16.mxu0 0
  %868 = vmatpush1.bf16.msra.mxu0 %v616
  %869 = vmatprep.subr.bf16.mxu0 0
  %870 = vmatpush1.bf16.msra.mxu0 %v615
  %871 = vmatprep.subr.bf16.mxu0 0
  %872 = vmatpush1.bf16.msra.mxu0 %v614
  %873 = vmatprep.subr.bf16.mxu0 0
  %874 = vmatpush2.bf16.msra.mxu0 %v629
  %875 = vmatprep.subr.bf16.mxu0 0
  %876 = vmatpush2.bf16.msra.mxu0 %v628
  %877 = vmatprep.subr.bf16.mxu0 0
  %878 = vmatpush2.bf16.msra.mxu0 %v627
  %879 = vmatprep.subr.bf16.mxu0 0
  %880 = vmatpush2.bf16.msra.mxu0 %v626
  %881 = vmatprep.subr.bf16.mxu0 0
  %882 = vmatpush2.bf16.msra.mxu0 %v625
  %883 = vmatprep.subr.bf16.mxu0 0
  %884 = vmatpush2.bf16.msra.mxu0 %v624
  %885 = vmatprep.subr.bf16.mxu0 0
  %886 = vmatpush2.bf16.msra.mxu0 %v623
  %887 = vmatprep.subr.bf16.mxu0 0
  %888 = vmatpush2.bf16.msra.mxu0 %v622
  %889 = vmatprep.mubr.bf16.mxu0 %v249
  %890 = vmatmul.mubr.bf16.gmra.mxu0 %v248
  %v891 = vpop.f32.mrf.mxu0
  %v892 = vadd.f32 %v843, %v891
  %v893 = vpop.f32.mrf.mxu0
  %v894 = vpop.f32.mrf.mxu0
  %v895 = vadd.f32 %v846, %v894
  %v896 = vpop.f32.mrf.mxu0
  %897 = vmatprep.mubr.bf16.mxu0 %v258
  %898 = vmatmul.mubr.bf16.gmra.mxu0 %v257
  %v899 = vpop.f32.mrf.mxu0
  %v900 = vadd.f32 %v851, %v899
  %v901 = vpop.f32.mrf.mxu0
  %v902 = vpop.f32.mrf.mxu0
  %v903 = vadd.f32 %v854, %v902
  %v904 = vpop.f32.mrf.mxu0
  %905 = vdwg.mxu0
  %906 = vmatprep.subr.bf16.mxu0 0
  %907 = vmatpush1.bf16.msra.mxu0 %v637
  %908 = vmatprep.subr.bf16.mxu0 0
  %909 = vmatpush1.bf16.msra.mxu0 %v636
  %910 = vmatprep.subr.bf16.mxu0 0
  %911 = vmatpush1.bf16.msra.mxu0 %v635
  %912 = vmatprep.subr.bf16.mxu0 0
  %913 = vmatpush1.bf16.msra.mxu0 %v634
  %914 = vmatprep.subr.bf16.mxu0 0
  %915 = vmatpush1.bf16.msra.mxu0 %v633
  %916 = vmatprep.subr.bf16.mxu0 0
  %917 = vmatpush1.bf16.msra.mxu0 %v632
  %918 = vmatprep.subr.bf16.mxu0 0
  %919 = vmatpush1.bf16.msra.mxu0 %v631
  %920 = vmatprep.subr.bf16.mxu0 0
  %921 = vmatpush1.bf16.msra.mxu0 %v630
  %922 = vmatprep.subr.bf16.mxu0 0
  %923 = vmatpush2.bf16.msra.mxu0 0
  %924 = vmatprep.subr.bf16.mxu0 0
  %925 = vmatpush2.bf16.msra.mxu0 0
  %926 = vmatprep.subr.bf16.mxu0 0
  %927 = vmatpush2.bf16.msra.mxu0 0
  %928 = vmatprep.subr.bf16.mxu0 0
  %929 = vmatpush2.bf16.msra.mxu0 0
  %930 = vmatprep.subr.bf16.mxu0 0
  %931 = vmatpush2.bf16.msra.mxu0 0
  %932 = vmatprep.subr.bf16.mxu0 0
  %933 = vmatpush2.bf16.msra.mxu0 0
  %934 = vmatprep.subr.bf16.mxu0 0
  %935 = vmatpush2.bf16.msra.mxu0 0
  %936 = vmatprep.subr.bf16.mxu0 0
  %937 = vmatpush2.bf16.msra.mxu0 0
  %938 = vmatprep.mubr.bf16.mxu0 0
  %939 = vmatmul.mubr.bf16.gmra.mxu0 %v250
  %v940 = vpop.f32.mrf.mxu0
  %v941 = vadd.f32 %v892, %v940
  %v942 = vpop.f32.mrf.mxu0
  %v943 = vpop.f32.mrf.mxu0
  %v944 = vadd.f32 %v895, %v943
  %v945 = vpop.f32.mrf.mxu0
  %946 = vmatprep.mubr.bf16.mxu0 0
  %947 = vmatmul.mubr.bf16.gmra.mxu0 %v259
  %v948 = vpop.f32.mrf.mxu0
  %v949 = vadd.f32 %v900, %v948
  %v950 = vpop.f32.mrf.mxu0
  %v951 = vpop.f32.mrf.mxu0
  %v952 = vadd.f32 %v903, %v951
  %v953 = vpop.f32.mrf.mxu0
  %954 = vdwg.mxu0
  %v955 = vmax.f32 %v941, 0.0
  %v956 = vmax.f32 %v944, 0.0
  %v957 = vmax.f32 %v949, 0.0
  %v958 = vmax.f32 %v952, 0.0
  %v959 = vpack.c.bf16 %v956, %v955
  %v960 = vpack.c.bf16 %v958, %v957
  %v963 = vunpack.c.l.b16 %v959
  %v964 = vunpack.c.h.b16 %v959
  %v965 = vunpack.c.l.b16 %v960
  %v966 = vunpack.c.h.b16 %v960
  %v967 = vpack.c.b16 %v963, %v963
  %v968 = vpack.c.b16 %v964, %v964
  %v969 = vpack.c.b16 %v965, %v965
  %v970 = vpack.c.b16 %v966, %v966
  %975 = vst [vmem:[%s3] sm:$0xf] %v967
  %976 = vst [vmem:[%s3 + $0x4] sm:$0xf] %v968
  %977 = vst [vmem:[%s3 + $0x8] sm:$0xf] %v969
  %978 = vst [vmem:[%s3 + $0xc] sm:$0xf] %v970
  // Predicated region
  $region14: #{forward.9} parent=0 // pred_check
    _
  $region15: #{forward.9} parent=0 // pred_check_branch
    %980 = sbr.rel (0) target = $region17
  $region16: #{forward.9} parent=0 // pred_region
    _
  $region17: #{forward.9} parent=0 // pred_fallthru
    _
  // Predicated region
  $region18: #{forward.9} parent=0 // pred_check
    _
  $region19: #{forward.9} parent=0 // pred_check_branch
    %982 = sbr.rel (0) target = $region21
  $region20: #{forward.9} parent=0 // pred_region
    _
  $region21: #{forward.9} parent=0 // pred_fallthru
    _

// kernel: forward.12
$region0: #{forward.12}
  #allocation0 [shape = 'u32[]', space=smem, size = 0x4, offset = 0x4, fixed_abs, tag = 'smem constant byte address 0x4 - core index']
  #allocation1 [shape = 'u32[144,128]{1,0:T(1,128)}', space=vmem, size = 0x12000, scoped, tag = 'internal scratch']
  %s0 = inlined_call_operand.vmem [shape: bf16[128,256], index: 0, kind: input, shape index: {}]
  %s1 = inlined_call_operand.vmem [shape: bf16[2,256,128], index: 1, kind: input, shape index: {}]
  %s2 = inlined_call_operand.vmem [shape: f32[1,128], index: 2, kind: input, shape index: {}]
  %s3 = inlined_call_operand.vmem [shape: bf16[16,2,8,128], index: 3, kind: output, shape index: {}]
  %s4 = sld [smem:[#allocation0]]
  $region82: #{forward.12} parent=0
    _
  %s6 = ssub.s32 1, %s4
  %s7 = scalar_select 0, %s6, %s4
  $region1: #{forward.12} parent=0
    #allocation2 [shape = 'u8[65536]{0}', space=vmem, size = 0x10000, scoped, tag = 'output window, operand 0']
    loop: start=0, step=1, limit=4
    $region2: #{forward.12} parent=1 // loop_pre_header
      _
    $region3: #{forward.12} parent=1 // loop_header
      %s9 = sphi 0, %s13
      %p10 = scmp.ge.s32.totalorder %s9, 4
      %s17 = sphi 0, %s17
      %s19 = sphi 0, %s17
      %s20 = sphi 0, %s19
      %s34 = sphi 0, %s20
      %s40 = sphi 0, %s42
      %s43 = sphi 0, %s40
      %s44 = sphi 0, %s43
      %s60 = sphi 0, %s44
      %s64 = sphi 0, %s64
      %s66 = sphi 0, %s64
      %s67 = sphi 0, %s66
      %s81 = sphi 0, %s67
      %s87 = sphi 0, %s89
      %s90 = sphi 0, %s87
      %s91 = sphi 0, %s90
      %s107 = sphi 0, %s91
    $region4: #{forward.12} parent=1 // loop_header_branch
      %12 = sbr.rel (%p10) target = $region8
    $region5: #{forward.12} parent=1 // loop_body
      %s14 = ssub.s32 %s9, 1
      %s15 = ssub.s32 %s9, 2
      %s16 = sadd.s32 %s9, 1
      %s18 = sadd.s32 %s17, 1
      %p21 = scmp.eq.s32.totalorder %s9, 1
      %p22 = scmp.ne.s32.totalorder %s17, %s19
      %p23 = scmp.eq.s32.totalorder %s9, 0
      %p24 = por %p22, %p23
      %p25 = scmp.ne.s32.totalorder %s17, %s19
      %p26 = scmp.eq.s32.totalorder %s14, 1
      %p27 = por %p25, %p26
      %p28 = scmp.ne.s32.totalorder %s19, %s20
      %p29 = scmp.eq.s32.totalorder %s14, 0
      %p30 = por %p28, %p29
      %p31 = scmp.ne.s32.totalorder %s19, %s20
      %p32 = scmp.eq.s32.totalorder %s15, 1
      %p33 = por %p31, %p32
      %p35 = scmp.ne.s32.totalorder %s20, %s34
      %p36 = scmp.eq.s32.totalorder %s15, 0
      %p37 = por %p35, %p36
      %s38 = ssub.s32 %s9, %s16
      %p39 = scmp.eq.s32.totalorder %s38, 0
      %s41 = sadd.s32 %s40, 1
      %s42 = scalar_select %p39, %s40, %s41
      %p45 = pneg %p39
      %p46 = scmp.eq.s32.totalorder %s9, 1
      %p47 = por %p45, %p46
      %p48 = scmp.ne.s32.totalorder %s40, %s43
      %p49 = scmp.eq.s32.totalorder %s9, 0
      %p50 = por %p48, %p49
      %p51 = scmp.ne.s32.totalorder %s40, %s43
      %p52 = scmp.eq.s32.totalorder %s14, 1
      %p53 = por %p51, %p52
      %p54 = scmp.ne.s32.totalorder %s43, %s44
      %p55 = scmp.eq.s32.totalorder %s14, 0
      %p56 = por %p54, %p55
      %p57 = scmp.ne.s32.totalorder %s43, %s44
      %p58 = scmp.eq.s32.totalorder %s15, 1
      %p59 = por %p57, %p58
      %p61 = scmp.ne.s32.totalorder %s44, %s60
      %p62 = scmp.eq.s32.totalorder %s15, 0
      %p63 = por %p61, %p62
      %s65 = sadd.s32 %s64, 1
      %p68 = scmp.eq.s32.totalorder %s9, 1
      %p69 = scmp.ne.s32.totalorder %s64, %s66
      %p70 = scmp.eq.s32.totalorder %s9, 0
      %p71 = por %p69, %p70
      %p72 = scmp.ne.s32.totalorder %s64, %s66
      %p73 = scmp.eq.s32.totalorder %s14, 1
      %p74 = por %p72, %p73
      %p75 = scmp.ne.s32.totalorder %s66, %s67
      %p76 = scmp.eq.s32.totalorder %s14, 0
      %p77 = por %p75, %p76
      %p78 = scmp.ne.s32.totalorder %s66, %s67
      %p79 = scmp.eq.s32.totalorder %s15, 1
      %p80 = por %p78, %p79
      %p82 = scmp.ne.s32.totalorder %s67, %s81
      %p83 = scmp.eq.s32.totalorder %s15, 0
      %p84 = por %p82, %p83
      %s85 = ssub.s32 %s9, %s16
      %p86 = scmp.eq.s32.totalorder %s85, 0
      %s88 = sadd.s32 %s87, 1
      %s89 = scalar_select %p86, %s87, %s88
      %p92 = pneg %p86
      %p93 = scmp.eq.s32.totalorder %s9, 1
      %p94 = por %p92, %p93
      %p95 = scmp.ne.s32.totalorder %s87, %s90
      %p96 = scmp.eq.s32.totalorder %s9, 0
      %p97 = por %p95, %p96
      %p98 = scmp.ne.s32.totalorder %s87, %s90
      %p99 = scmp.eq.s32.totalorder %s14, 1
      %p100 = por %p98, %p99
      %p101 = scmp.ne.s32.totalorder %s90, %s91
      %p102 = scmp.eq.s32.totalorder %s14, 0
      %p103 = por %p101, %p102
      %p104 = scmp.ne.s32.totalorder %s90, %s91
      %p105 = scmp.eq.s32.totalorder %s15, 1
      %p106 = por %p104, %p105
      %p108 = scmp.ne.s32.totalorder %s91, %s107
      %p109 = scmp.eq.s32.totalorder %s15, 0
      %p110 = por %p108, %p109
      %p111 = scmp.le.s32.totalorder 1, %s9
      %p112 = scmp.lt.s32.totalorder %s9, 3
      %p113 = pnand %p111, %p112
      %p114 = pneg %p113
      // Predicated region
      $region9: #{forward.12} parent=5 // pred_check
        _
      $region10: #{forward.12} parent=5 // pred_check_branch
        %116 = sbr.rel (%p113) target = $region12
      $region11: #{forward.12} parent=5 // pred_region
        %s117 = ssub.s32 %s9, 1
        // Predicated region
        $region13: #{forward.12} parent=11 // pred_check
          %p118 = pneg %p30
        $region14: #{forward.12} parent=11 // pred_check_branch
          %120 = sbr.rel (%p118) target = $region16
        $region15: #{forward.12} parent=11 // pred_region
          _
        $region16: #{forward.12} parent=11 // pred_fallthru
          _
        // Predicated region
        $region17: #{forward.12} parent=11 // pred_check
          %p121 = pneg %p77
        $region18: #{forward.12} parent=11 // pred_check_branch
          %123 = sbr.rel (%p121) target = $region20
        $region19: #{forward.12} parent=11 // pred_region
          _
        $region20: #{forward.12} parent=11 // pred_fallthru
          _
      $region12: #{forward.12} parent=5 // pred_fallthru
        _
      %p124 = scmp.lt.s32.totalorder %s9, 2
      // Predicated region
      $region21: #{forward.12} parent=5 // pred_check
        %p125 = pneg %p124
      $region22: #{forward.12} parent=5 // pred_check_branch
        %127 = sbr.rel (%p125) target = $region24
      $region23: #{forward.12} parent=5 // pred_region
        // Predicated region
        $region25: #{forward.12} parent=23 // pred_check
          %p128 = pneg %p50
        $region26: #{forward.12} parent=23 // pred_check_branch
          %130 = sbr.rel (%p128) target = $region28
        $region27: #{forward.12} parent=23 // pred_region
          %p131 = scmp.lt.s32.totalorder %s9, 1
          %s132 = scalar_select %p131, %s9, 1
          %s133 = smul.addr %s132, 32
          %s134 = smul.addr %s133, 4
          %s135 = scalar_lea.vmem %s1, %s134
        $region28: #{forward.12} parent=23 // pred_fallthru
          _
      $region24: #{forward.12} parent=5 // pred_fallthru
        _
      %p136 = scmp.le.s32.totalorder 1, %s9
      %p137 = scmp.lt.s32.totalorder %s9, 3
      %p138 = pnand %p136, %p137
      %p139 = pneg %p138
      // Predicated region
      $region29: #{forward.12} parent=5 // pred_check
        _
      $region30: #{forward.12} parent=5 // pred_check_branch
        %141 = sbr.rel (%p138) target = $region32
      $region31: #{forward.12} parent=5 // pred_region
        %s142 = ssub.s32 %s9, 1
        %p143 = pneg %p30
        %p144 = pneg %p27
        %p145 = scmp.lt.s32.totalorder %s14, 1
        %s146 = scalar_select %p145, %s14, 1
        %s147 = smul.addr %s146, 32
        %s148 = smul.addr %s147, 4
        %s149 = scalar_lea.vmem %s1, %s148
        %p150 = pneg %p56
        %p151 = pneg %p53
        %p152 = pneg %p77
        %p153 = pneg %p74
        %p154 = pneg %p103
        %p155 = pneg %p100
        %s156 = sand.u32 %s90, 1
        %s157 = sand.u32 %s90, 1
        %s158 = smul.addr %s157, 64
        %s159 = scalar_lea.vmem [#allocation2], %s158
        %p160 = scmp.lt.s32.totalorder %s14, 1
        %s161 = scalar_select %p160, %s14, 1
        %s162 = smul.addr %s161, 32
        %s163 = smul.addr %s162, 4
        %s164 = scalar_lea.vmem %s1, %s163
        %v166 = vld [vmem:[%s0] sm:$0xff]
        %v167 = vld [vmem:[%s0 + $0x8] sm:$0xff]
        %v168 = vld [vmem:[%s0 + $0x10] sm:$0xff]
        %v169 = vld [vmem:[%s0 + $0x18] sm:$0xff]
        %v170 = vld [vmem:[%s0 + $0x20] sm:$0xff]
        %v171 = vld [vmem:[%s0 + $0x28] sm:$0xff]
        %v172 = vld [vmem:[%s0 + $0x30] sm:$0xff]
        %v173 = vld [vmem:[%s0 + $0x38] sm:$0xff]
        %v174 = vld [vmem:[%s0 + $0x40] sm:$0xff]
        %v175 = vld [vmem:[%s0 + $0x48] sm:$0xff]
        %v176 = vld [vmem:[%s0 + $0x50] sm:$0xff]
        %v177 = vld [vmem:[%s0 + $0x58] sm:$0xff]
        %v178 = vld [vmem:[%s0 + $0x60] sm:$0xff]
        %v179 = vld [vmem:[%s0 + $0x68] sm:$0xff]
        %v180 = vld [vmem:[%s0 + $0x70] sm:$0xff]
        %v181 = vld [vmem:[%s0 + $0x78] sm:$0xff]
        %v182 = vld [vmem:[%s164] sm:$0xf]
        %v183 = vld [vmem:[%s164 + $0x4] sm:$0xf]
        %v184 = vld [vmem:[%s164 + $0x8] sm:$0xf]
        %v185 = vld [vmem:[%s164 + $0xc] sm:$0xf]
        %v186 = vld [vmem:[%s164 + $0x10] sm:$0xf]
        %v187 = vld [vmem:[%s164 + $0x14] sm:$0xf]
        %v188 = vld [vmem:[%s164 + $0x18] sm:$0xf]
        %v189 = vld [vmem:[%s164 + $0x1c] sm:$0xf]
        %v190 = vld [vmem:[%s164 + $0x20] sm:$0xf]
        %v191 = vld [vmem:[%s164 + $0x24] sm:$0xf]
        %v192 = vld [vmem:[%s164 + $0x28] sm:$0xf]
        %v193 = vld [vmem:[%s164 + $0x2c] sm:$0xf]
        %v194 = vld [vmem:[%s164 + $0x30] sm:$0xf]
        %v195 = vld [vmem:[%s164 + $0x34] sm:$0xf]
        %v196 = vld [vmem:[%s164 + $0x38] sm:$0xf]
        %v197 = vld [vmem:[%s164 + $0x3c] sm:$0xf]
        %v198 = vld [vmem:[%s164 + $0x40] sm:$0xf]
        %v199 = vld [vmem:[%s164 + $0x44] sm:$0xf]
        %v200 = vld [vmem:[%s164 + $0x48] sm:$0xf]
        %v201 = vld [vmem:[%s164 + $0x4c] sm:$0xf]
        %v202 = vld [vmem:[%s164 + $0x50] sm:$0xf]
        %v203 = vld [vmem:[%s164 + $0x54] sm:$0xf]
        %v204 = vld [vmem:[%s164 + $0x58] sm:$0xf]
        %v205 = vld [vmem:[%s164 + $0x5c] sm:$0xf]
        %v206 = vld [vmem:[%s164 + $0x60] sm:$0xf]
        %v207 = vld [vmem:[%s164 + $0x64] sm:$0xf]
        %v208 = vld [vmem:[%s164 + $0x68] sm:$0xf]
        %v209 = vld [vmem:[%s164 + $0x6c] sm:$0xf]
        %v210 = vld [vmem:[%s164 + $0x70] sm:$0xf]
        %v211 = vld [vmem:[%s164 + $0x74] sm:$0xf]
        %v212 = vld [vmem:[%s164 + $0x78] sm:$0xf]
        %v213 = vld [vmem:[%s164 + $0x7c] sm:$0xf]
        %v214 = vld [vmem:[%s2] sm:$0x1]
        %v216 = vlaneseq
        %v217 = vshrl.u32 %v216, 7
        %v218 = vsub.s32 0, %v217
        %v219 = vrot.slane %v214, %v218
        %v237 = vunpack.c.l.b16 %v166
        %v238 = vunpack.c.h.b16 %v166
        %v239 = vunpack.c.l.b16 %v167
        %v240 = vunpack.c.h.b16 %v167
        %v241 = vunpack.c.l.b16 %v168
        %v242 = vunpack.c.h.b16 %v168
        %v243 = vunpack.c.l.b16 %v169
        %v244 = vunpack.c.h.b16 %v169
        %v245 = vunpack.c.l.b16 %v170
        %v246 = vunpack.c.h.b16 %v170
        %v247 = vunpack.c.l.b16 %v171
        %v248 = vunpack.c.h.b16 %v171
        %v249 = vunpack.c.l.b16 %v172
        %v250 = vunpack.c.h.b16 %v172
        %v251 = vunpack.c.l.b16 %v173
        %v252 = vunpack.c.h.b16 %v173
        %v253 = vunpack.c.l.b16 %v174
        %v254 = vunpack.c.h.b16 %v174
        %v255 = vunpack.c.l.b16 %v175
        %v256 = vunpack.c.h.b16 %v175
        %v257 = vunpack.c.l.b16 %v176
        %v258 = vunpack.c.h.b16 %v176
        %v259 = vunpack.c.l.b16 %v177
        %v260 = vunpack.c.h.b16 %v177
        %v261 = vunpack.c.l.b16 %v178
        %v262 = vunpack.c.h.b16 %v178
        %v263 = vunpack.c.l.b16 %v179
        %v264 = vunpack.c.h.b16 %v179
        %v265 = vunpack.c.l.b16 %v180
        %v266 = vunpack.c.h.b16 %v180
        %v267 = vunpack.c.l.b16 %v181
        %v268 = vunpack.c.h.b16 %v181
        %v269 = vpack.c.b16 %v239, %v237
        %v270 = vpack.c.b16 %v240, %v238
        %v271 = vpack.c.b16 %v243, %v241
        %v272 = vpack.c.b16 %v244, %v242
        %v273 = vpack.c.b16 %v247, %v245
        %v274 = vpack.c.b16 %v248, %v246
        %v275 = vpack.c.b16 %v251, %v249
        %v276 = vpack.c.b16 %v252, %v250
        %v277 = vpack.c.b16 %v255, %v253
        %v278 = vpack.c.b16 %v256, %v254
        %v279 = vpack.c.b16 %v259, %v257
        %v280 = vpack.c.b16 %v260, %v258
        %v281 = vpack.c.b16 %v263, %v261
        %v282 = vpack.c.b16 %v264, %v262
        %v283 = vpack.c.b16 %v267, %v265
        %v284 = vpack.c.b16 %v268, %v266
        %v333 = vunpack.c.l.b16 %v182
        %v334 = vunpack.c.l.b16 %v183
        %v335 = vunpack.c.l.b16 %v184
        %v336 = vunpack.c.l.b16 %v185
        %v337 = vunpack.c.l.b16 %v186
        %v338 = vunpack.c.l.b16 %v187
        %v339 = vunpack.c.l.b16 %v188
        %v340 = vunpack.c.l.b16 %v189
        %v341 = vunpack.c.l.b16 %v190
        %v342 = vunpack.c.l.b16 %v191
        %v343 = vunpack.c.l.b16 %v192
        %v344 = vunpack.c.l.b16 %v193
        %v345 = vunpack.c.l.b16 %v194
        %v346 = vunpack.c.l.b16 %v195
        %v347 = vunpack.c.l.b16 %v196
        %v348 = vunpack.c.l.b16 %v197
        %v349 = vunpack.c.l.b16 %v198
        %v350 = vunpack.c.l.b16 %v199
        %v351 = vunpack.c.l.b16 %v200
        %v352 = vunpack.c.l.b16 %v201
        %v353 = vunpack.c.l.b16 %v202
        %v354 = vunpack.c.l.b16 %v203
        %v355 = vunpack.c.l.b16 %v204
        %v356 = vunpack.c.l.b16 %v205
        %v357 = vunpack.c.l.b16 %v206
        %v358 = vunpack.c.l.b16 %v207
        %v359 = vunpack.c.l.b16 %v208
        %v360 = vunpack.c.l.b16 %v209
        %v361 = vunpack.c.l.b16 %v210
        %v362 = vunpack.c.l.b16 %v211
        %v363 = vunpack.c.l.b16 %v212
        %v364 = vunpack.c.l.b16 %v213
        %v365 = vpack.c.b16 %v334, %v333
        %v366 = vpack.c.b16 %v336, %v335
        %v367 = vpack.c.b16 %v338, %v337
        %v368 = vpack.c.b16 %v340, %v339
        %v369 = vpack.c.b16 %v342, %v341
        %v370 = vpack.c.b16 %v344, %v343
        %v371 = vpack.c.b16 %v346, %v345
        %v372 = vpack.c.b16 %v348, %v347
        %v373 = vpack.c.b16 %v350, %v349
        %v374 = vpack.c.b16 %v352, %v351
        %v375 = vpack.c.b16 %v354, %v353
        %v376 = vpack.c.b16 %v356, %v355
        %v377 = vpack.c.b16 %v358, %v357
        %v378 = vpack.c.b16 %v360, %v359
        %v379 = vpack.c.b16 %v362, %v361
        %v380 = vpack.c.b16 %v364, %v363
        %397 = vmatprep.subr.bf16.mxu0 0
        %398 = vmatpush1.bf16.msra.mxu0 %v372
        %399 = vmatprep.subr.bf16.mxu0 0
        %400 = vmatpush1.bf16.msra.mxu0 %v371
        %401 = vmatprep.subr.bf16.mxu0 0
        %402 = vmatpush1.bf16.msra.mxu0 %v370
        %403 = vmatprep.subr.bf16.mxu0 0
        %404 = vmatpush1.bf16.msra.mxu0 %v369
        %405 = vmatprep.subr.bf16.mxu0 0
        %406 = vmatpush1.bf16.msra.mxu0 %v368
        %407 = vmatprep.subr.bf16.mxu0 0
        %408 = vmatpush1.bf16.msra.mxu0 %v367
        %409 = vmatprep.subr.bf16.mxu0 0
        %410 = vmatpush1.bf16.msra.mxu0 %v366
        %411 = vmatprep.subr.bf16.mxu0 0
        %412 = vmatpush1.bf16.msra.mxu0 %v365
        %413 = vmatprep.subr.bf16.mxu0 0
        %414 = vmatpush2.bf16.msra.mxu0 %v380
        %415 = vmatprep.subr.bf16.mxu0 0
        %416 = vmatpush2.bf16.msra.mxu0 %v379
        %417 = vmatprep.subr.bf16.mxu0 0
        %418 = vmatpush2.bf16.msra.mxu0 %v378
        %419 = vmatprep.subr.bf16.mxu0 0
        %420 = vmatpush2.bf16.msra.mxu0 %v377
        %421 = vmatprep.subr.bf16.mxu0 0
        %422 = vmatpush2.bf16.msra.mxu0 %v376
        %423 = vmatprep.subr.bf16.mxu0 0
        %424 = vmatpush2.bf16.msra.mxu0 %v375
        %425 = vmatprep.subr.bf16.mxu0 0
        %426 = vmatpush2.bf16.msra.mxu0 %v374
        %427 = vmatprep.subr.bf16.mxu0 0
        %428 = vmatpush2.bf16.msra.mxu0 %v373
        %429 = vmatprep.mubr.bf16.mxu0 %v270
        %430 = vmatmul.mubr.bf16.gmra.mxu0 %v269
        %v431 = vpop.f32.mrf.mxu0
        %v432 = vadd.f32 %v219, %v431
        %v433 = vpop.f32.mrf.mxu0
        %v434 = vpop.f32.mrf.mxu0
        %v435 = vadd.f32 %v219, %v434
        %v436 = vpop.f32.mrf.mxu0
        %437 = vmatprep.mubr.bf16.mxu0 %v272
        %438 = vmatmul.mubr.bf16.gmra.mxu0 %v271
        %v439 = vpop.f32.mrf.mxu0
        %v440 = vadd.f32 %v219, %v439
        %v441 = vpop.f32.mrf.mxu0
        %v442 = vpop.f32.mrf.mxu0
        %v443 = vadd.f32 %v219, %v442
        %v444 = vpop.f32.mrf.mxu0
        %445 = vmatprep.mubr.bf16.mxu0 %v274
        %446 = vmatmul.mubr.bf16.gmra.mxu0 %v273
        %v447 = vpop.f32.mrf.mxu0
        %v448 = vadd.f32 %v219, %v447
        %v449 = vpop.f32.mrf.mxu0
        %v450 = vpop.f32.mrf.mxu0
        %v451 = vadd.f32 %v219, %v450
        %v452 = vpop.f32.mrf.mxu0
        %453 = vmatprep.mubr.bf16.mxu0 %v276
        %454 = vmatmul.mubr.bf16.gmra.mxu0 %v275
        %v455 = vpop.f32.mrf.mxu0
        %v456 = vadd.f32 %v219, %v455
        %v457 = vpop.f32.mrf.mxu0
        %v458 = vpop.f32.mrf.mxu0
        %v459 = vadd.f32 %v219, %v458
        %v460 = vpop.f32.mrf.mxu0
        %461 = vmatprep.mubr.bf16.mxu0 %v278
        %462 = vmatmul.mubr.bf16.gmra.mxu0 %v277
        %v463 = vpop.f32.mrf.mxu0
        %v464 = vadd.f32 %v219, %v463
        %v465 = vpop.f32.mrf.mxu0
        %v466 = vpop.f32.mrf.mxu0
        %v467 = vadd.f32 %v219, %v466
        %v468 = vpop.f32.mrf.mxu0
        %469 = vmatprep.mubr.bf16.mxu0 %v280
        %470 = vmatmul.mubr.bf16.gmra.mxu0 %v279
        %v471 = vpop.f32.mrf.mxu0
        %v472 = vadd.f32 %v219, %v471
        %v473 = vpop.f32.mrf.mxu0
        %v474 = vpop.f32.mrf.mxu0
        %v475 = vadd.f32 %v219, %v474
        %v476 = vpop.f32.mrf.mxu0
        %477 = vmatprep.mubr.bf16.mxu0 %v282
        %478 = vmatmul.mubr.bf16.gmra.mxu0 %v281
        %v479 = vpop.f32.mrf.mxu0
        %v480 = vadd.f32 %v219, %v479
        %v481 = vpop.f32.mrf.mxu0
        %v482 = vpop.f32.mrf.mxu0
        %v483 = vadd.f32 %v219, %v482
        %v484 = vpop.f32.mrf.mxu0
        %485 = vmatprep.mubr.bf16.mxu0 %v284
        %486 = vmatmul.mubr.bf16.gmra.mxu0 %v283
        %v487 = vpop.f32.mrf.mxu0
        %v488 = vadd.f32 %v219, %v487
        %v489 = vpop.f32.mrf.mxu0
        %v490 = vpop.f32.mrf.mxu0
        %v491 = vadd.f32 %v219, %v490
        %v492 = vpop.f32.mrf.mxu0
        %493 = vdwg.mxu0
        %v494 = vmax.f32 %v432, 0.0
        %v495 = vmax.f32 %v435, 0.0
        %v496 = vmax.f32 %v440, 0.0
        %v497 = vmax.f32 %v443, 0.0
        %v498 = vmax.f32 %v448, 0.0
        %v499 = vmax.f32 %v451, 0.0
        %v500 = vmax.f32 %v456, 0.0
        %v501 = vmax.f32 %v459, 0.0
        %v502 = vmax.f32 %v464, 0.0
        %v503 = vmax.f32 %v467, 0.0
        %v504 = vmax.f32 %v472, 0.0
        %v505 = vmax.f32 %v475, 0.0
        %v506 = vmax.f32 %v480, 0.0
        %v507 = vmax.f32 %v483, 0.0
        %v508 = vmax.f32 %v488, 0.0
        %v509 = vmax.f32 %v491, 0.0
        %v510 = vpack.c.bf16 %v494, %v494
        %v511 = vpack.c.bf16 %v495, %v495
        %v512 = vpack.c.bf16 %v496, %v496
        %v513 = vpack.c.bf16 %v497, %v497
        %v514 = vpack.c.bf16 %v498, %v498
        %v515 = vpack.c.bf16 %v499, %v499
        %v516 = vpack.c.bf16 %v500, %v500
        %v517 = vpack.c.bf16 %v501, %v501
        %v518 = vpack.c.bf16 %v502, %v502
        %v519 = vpack.c.bf16 %v503, %v503
        %v520 = vpack.c.bf16 %v504, %v504
        %v521 = vpack.c.bf16 %v505, %v505
        %v522 = vpack.c.bf16 %v506, %v506
        %v523 = vpack.c.bf16 %v507, %v507
        %v524 = vpack.c.bf16 %v508, %v508
        %v525 = vpack.c.bf16 %v509, %v509
        %526 = vst [vmem:[%s159] sm:$0xf] %v510
        %527 = vst [vmem:[%s159 + $0x4] sm:$0xf] %v511
        %528 = vst [vmem:[%s159 + $0x8] sm:$0xf] %v512
        %529 = vst [vmem:[%s159 + $0xc] sm:$0xf] %v513
        %530 = vst [vmem:[%s159 + $0x10] sm:$0xf] %v514
        %531 = vst [vmem:[%s159 + $0x14] sm:$0xf] %v515
        %532 = vst [vmem:[%s159 + $0x18] sm:$0xf] %v516
        %533 = vst [vmem:[%s159 + $0x1c] sm:$0xf] %v517
        %534 = vst [vmem:[%s159 + $0x20] sm:$0xf] %v518
        %535 = vst [vmem:[%s159 + $0x24] sm:$0xf] %v519
        %536 = vst [vmem:[%s159 + $0x28] sm:$0xf] %v520
        %537 = vst [vmem:[%s159 + $0x2c] sm:$0xf] %v521
        %538 = vst [vmem:[%s159 + $0x30] sm:$0xf] %v522
        %539 = vst [vmem:[%s159 + $0x34] sm:$0xf] %v523
        %540 = vst [vmem:[%s159 + $0x38] sm:$0xf] %v524
        %541 = vst [vmem:[%s159 + $0x3c] sm:$0xf] %v525
        %s542 = sand.u32 %s90, 1
        %s543 = sand.u32 %s90, 1
        %s544 = smul.addr %s543, 64
        %s545 = scalar_lea.vmem [#allocation2], %s544
        // Predicated region
        $region33: #{forward.12} parent=31 // pred_check
          %p546 = pneg %p100
        $region34: #{forward.12} parent=31 // pred_check_branch
          %548 = sbr.rel (%p546) target = $region36
        $region35: #{forward.12} parent=31 // pred_region
          %s549 = smul.addr %s14, 4
          %s550 = scalar_lea.vmem %s3, %s549
          // Predicated region
          $region37: #{forward.12} parent=35 // pred_check
            _
          $region38: #{forward.12} parent=35 // pred_check_branch
            %552 = sbr.rel (0) target = $region40
          $region39: #{forward.12} parent=35 // pred_region
            // Predicated region
            $region41: #{forward.12} parent=39 // pred_check
              _
            $region42: #{forward.12} parent=39 // pred_check_branch
              %554 = sbr.rel target = $region44
            $region43: #{forward.12} parent=39 // pred_region
              // Predicated region
              $region56: #{forward.12} parent=43 // pred_check
                _
              $region57: #{forward.12} parent=43 // pred_check_branch
                %600 = sbr.rel (0) target = $region59
              $region58: #{forward.12} parent=43 // pred_region
                loop: start=0, step=1, limit=1
                $region60: #{forward.12} parent=58 // loop_pre_header
                  _
                $region61: #{forward.12} parent=58 // loop_header
                  %s602 = sphi 0, %s606
                  %p603 = scmp.ge.s32.totalorder %s602, 1
                  %s607 = sphi %s545, %s545
                  %s608 = sphi %s550, %s550
                $region62: #{forward.12} parent=58 // loop_header_branch
                  %605 = sbr.rel (%p603) target = $region66
                $region63: #{forward.12} parent=58 // loop_body
                  _
                $region64: #{forward.12} parent=58 // loop_footer
                  %s606 = sadd.s32 1, %s602
                $region65: #{forward.12} parent=58 // loop_footer_branch
                  %601 = sbr.rel target = $region61
                $region66: #{forward.12} parent=58 // loop_exit
                  _
                %s610 = ssub.s32 16, 1
                loop: start=0, step=1, limit=1
                $region67: #{forward.12} parent=58 // loop_pre_header
                  _
                $region68: #{forward.12} parent=58 // loop_header
                  %s612 = sphi 0, %s616
                  %p613 = scmp.ge.s32.totalorder %s612, 1
                  %s617 = sphi %s545, %s545
                  %s618 = sphi %s550, %s550
                $region69: #{forward.12} parent=58 // loop_header_branch
                  %615 = sbr.rel (%p613) target = $region73
                $region70: #{forward.12} parent=58 // loop_body
                  %v619 = vld [vmem:[%s617] sm:%s610]
                  %620 = vst [vmem:[%s618] sm:%s610] %v619
                  %v621 = vld [vmem:[%s617 + $0x4] sm:%s610]
                  %622 = vst [vmem:[%s618 + $0x8] sm:%s610] %v621
                  %v623 = vld [vmem:[%s617 + $0x8] sm:%s610]
                  %624 = vst [vmem:[%s618 + $0x10] sm:%s610] %v623
                  %v625 = vld [vmem:[%s617 + $0xc] sm:%s610]
                  %626 = vst [vmem:[%s618 + $0x18] sm:%s610] %v625
                  %v627 = vld [vmem:[%s617 + $0x10] sm:%s610]
                  %628 = vst [vmem:[%s618 + $0x20] sm:%s610] %v627
                  %v629 = vld [vmem:[%s617 + $0x14] sm:%s610]
                  %630 = vst [vmem:[%s618 + $0x28] sm:%s610] %v629
                  %v631 = vld [vmem:[%s617 + $0x18] sm:%s610]
                  %632 = vst [vmem:[%s618 + $0x30] sm:%s610] %v631
                  %v633 = vld [vmem:[%s617 + $0x1c] sm:%s610]
                  %634 = vst [vmem:[%s618 + $0x38] sm:%s610] %v633
                  %v635 = vld [vmem:[%s617 + $0x20] sm:%s610]
                  %636 = vst [vmem:[%s618 + $0x40] sm:%s610] %v635
                  %v637 = vld [vmem:[%s617 + $0x24] sm:%s610]
                  %638 = vst [vmem:[%s618 + $0x48] sm:%s610] %v637
                  %v639 = vld [vmem:[%s617 + $0x28] sm:%s610]
                  %640 = vst [vmem:[%s618 + $0x50] sm:%s610] %v639
                  %v641 = vld [vmem:[%s617 + $0x2c] sm:%s610]
                  %642 = vst [vmem:[%s618 + $0x58] sm:%s610] %v641
                  %v643 = vld [vmem:[%s617 + $0x30] sm:%s610]
                  %644 = vst [vmem:[%s618 + $0x60] sm:%s610] %v643
                  %v645 = vld [vmem:[%s617 + $0x34] sm:%s610]
                  %646 = vst [vmem:[%s618 + $0x68] sm:%s610] %v645
                  %v647 = vld [vmem:[%s617 + $0x38] sm:%s610]
                  %648 = vst [vmem:[%s618 + $0x70] sm:%s610] %v647
                  %v649 = vld [vmem:[%s617 + $0x3c] sm:%s610]
                  %650 = vst [vmem:[%s618 + $0x78] sm:%s610] %v649
                $region71: #{forward.12} parent=58 // loop_footer
                  %s616 = sadd.s32 1, %s612
                $region72: #{forward.12} parent=58 // loop_footer_branch
                  %611 = sbr.rel target = $region68
                $region73: #{forward.12} parent=58 // loop_exit
                  _
              $region59: #{forward.12} parent=43 // pred_fallthru
                _
            $region44: #{forward.12} parent=39 // pred_fallthru
              _
            // Predicated region
            $region45: #{forward.12} parent=39 // pred_check
              _
            $region46: #{forward.12} parent=39 // pred_check_branch
              %556 = sbr.rel (0) target = $region48
            $region47: #{forward.12} parent=39 // pred_region
              %s558 = ssub.s32 16, 1
              loop: start=0, step=1, limit=1
              $region49: #{forward.12} parent=47 // loop_pre_header
                _
              $region50: #{forward.12} parent=47 // loop_header
                %s560 = sphi 0, %s564
                %p561 = scmp.ge.s32.totalorder %s560, 1
                %s565 = sphi %s545, %s545
                %s566 = sphi %s550, %s550
              $region51: #{forward.12} parent=47 // loop_header_branch
                %563 = sbr.rel (%p561) target = $region55
              $region52: #{forward.12} parent=47 // loop_body
                %v567 = vld [vmem:[%s565] sm:%s558]
                %568 = vst [vmem:[%s566] sm:%s558] %v567
                %v569 = vld [vmem:[%s565 + $0x4] sm:%s558]
                %570 = vst [vmem:[%s566 + $0x8] sm:%s558] %v569
                %v571 = vld [vmem:[%s565 + $0x8] sm:%s558]
                %572 = vst [vmem:[%s566 + $0x10] sm:%s558] %v571
                %v573 = vld [vmem:[%s565 + $0xc] sm:%s558]
                %574 = vst [vmem:[%s566 + $0x18] sm:%s558] %v573
                %v575 = vld [vmem:[%s565 + $0x10] sm:%s558]
                %576 = vst [vmem:[%s566 + $0x20] sm:%s558] %v575
                %v577 = vld [vmem:[%s565 + $0x14] sm:%s558]
                %578 = vst [vmem:[%s566 + $0x28] sm:%s558] %v577
                %v579 = vld [vmem:[%s565 + $0x18] sm:%s558]
                %580 = vst [vmem:[%s566 + $0x30] sm:%s558] %v579
                %v581 = vld [vmem:[%s565 + $0x1c] sm:%s558]
                %582 = vst [vmem:[%s566 + $0x38] sm:%s558] %v581
                %v583 = vld [vmem:[%s565 + $0x20] sm:%s558]
                %584 = vst [vmem:[%s566 + $0x40] sm:%s558] %v583
                %v585 = vld [vmem:[%s565 + $0x24] sm:%s558]
                %586 = vst [vmem:[%s566 + $0x48] sm:%s558] %v585
                %v587 = vld [vmem:[%s565 + $0x28] sm:%s558]
                %588 = vst [vmem:[%s566 + $0x50] sm:%s558] %v587
                %v589 = vld [vmem:[%s565 + $0x2c] sm:%s558]
                %590 = vst [vmem:[%s566 + $0x58] sm:%s558] %v589
                %v591 = vld [vmem:[%s565 + $0x30] sm:%s558]
                %592 = vst [vmem:[%s566 + $0x60] sm:%s558] %v591
                %v593 = vld [vmem:[%s565 + $0x34] sm:%s558]
                %594 = vst [vmem:[%s566 + $0x68] sm:%s558] %v593
                %v595 = vld [vmem:[%s565 + $0x38] sm:%s558]
                %596 = vst [vmem:[%s566 + $0x70] sm:%s558] %v595
                %v597 = vld [vmem:[%s565 + $0x3c] sm:%s558]
                %598 = vst [vmem:[%s566 + $0x78] sm:%s558] %v597
              $region53: #{forward.12} parent=47 // loop_footer
                %s564 = sadd.s32 1, %s560
              $region54: #{forward.12} parent=47 // loop_footer_branch
                %559 = sbr.rel target = $region50
              $region55: #{forward.12} parent=47 // loop_exit
                _
            $region48: #{forward.12} parent=39 // pred_fallthru
              _
          $region40: #{forward.12} parent=35 // pred_fallthru
            _
          %651 = vnop
        $region36: #{forward.12} parent=31 // pred_fallthru
          _
      $region32: #{forward.12} parent=5 // pred_fallthru
        _
      %p652 = scmp.le.s32.totalorder 2, %s9
      // Predicated region
      $region74: #{forward.12} parent=5 // pred_check
        %p653 = pneg %p652
      $region75: #{forward.12} parent=5 // pred_check_branch
        %655 = sbr.rel (%p653) target = $region77
      $region76: #{forward.12} parent=5 // pred_region
        %s656 = ssub.s32 %s9, 2
        // Predicated region
        $region78: #{forward.12} parent=76 // pred_check
          %p657 = pneg %p106
        $region79: #{forward.12} parent=76 // pred_check_branch
          %659 = sbr.rel (%p657) target = $region81
        $region80: #{forward.12} parent=76 // pred_region
          %s660 = sand.u32 %s91, 1
          %s661 = sand.u32 %s91, 1
          %s662 = smul.addr %s661, 64
          %s663 = scalar_lea.vmem [#allocation2], %s662
        $region81: #{forward.12} parent=76 // pred_fallthru
          _
      $region77: #{forward.12} parent=5 // pred_fallthru
        _
    $region6: #{forward.12} parent=1 // loop_footer
      %s13 = sadd.s32 1, %s9
    $region7: #{forward.12} parent=1 // loop_footer_branch
      %8 = sbr.rel target = $region3
    $region8: #{forward.12} parent=1 // loop_exit
      _

// kernel: forward.10
$region0: #{forward.10}
  #allocation0 [shape = 'u32[]', space=smem, size = 0x4, offset = 0x4, fixed_abs, tag = 'smem constant byte address 0x4 - core index']
  #allocation1 [shape = 'u32[144,128]{1,0:T(1,128)}', space=vmem, size = 0x12000, scoped, tag = 'internal scratch']
  %s0 = inlined_call_operand.vmem [shape: bf16[2,2048], index: 0, kind: input, shape index: {}]
  %s1 = inlined_call_operand.vmem [shape: bf16[2048,128], index: 1, kind: input, shape index: {}]
  %s2 = inlined_call_operand.vmem [shape: f32[1,128], index: 2, kind: input, shape index: {}]
  %s3 = inlined_call_operand.vmem [shape: bf16[128,2048], index: 3, kind: input, shape index: {}]
  %s4 = inlined_call_operand.vmem [shape: f32[1,2048], index: 4, kind: input, shape index: {}]
  %s5 = inlined_call_operand.vmem [shape: bf16[2,2048], index: 5, kind: output, shape index: {}]
  %s6 = sld [smem:[#allocation0]]
  $region30: #{forward.10} parent=0
    _
  %s8 = ssub.s32 1, %s6
  %s9 = scalar_select 0, %s8, %s6
  // Predicated region
  $region2: #{forward.10} parent=0 // pred_check
    _
  $region3: #{forward.10} parent=0 // pred_check_branch
    %11 = sbr.rel (0) target = $region5
  $region4: #{forward.10} parent=0 // pred_region
    _
  $region5: #{forward.10} parent=0 // pred_fallthru
    _
  // Predicated region
  $region6: #{forward.10} parent=0 // pred_check
    _
  $region7: #{forward.10} parent=0 // pred_check_branch
    %13 = sbr.rel (0) target = $region9
  $region8: #{forward.10} parent=0 // pred_region
    _
  $region9: #{forward.10} parent=0 // pred_fallthru
    _
  // Predicated region
  $region10: #{forward.10} parent=0 // pred_check
    _
  $region11: #{forward.10} parent=0 // pred_check_branch
    %15 = sbr.rel (0) target = $region13
  $region12: #{forward.10} parent=0 // pred_region
    _
  $region13: #{forward.10} parent=0 // pred_fallthru
    _
  // Predicated region
  $region14: #{forward.10} parent=0 // pred_check
    _
  $region15: #{forward.10} parent=0 // pred_check_branch
    %17 = sbr.rel (0) target = $region17
  $region16: #{forward.10} parent=0 // pred_region
    _
  $region17: #{forward.10} parent=0 // pred_fallthru
    _
  // Predicated region
  $region18: #{forward.10} parent=0 // pred_check
    _
  $region19: #{forward.10} parent=0 // pred_check_branch
    %19 = sbr.rel (0) target = $region21
  $region20: #{forward.10} parent=0 // pred_region
    _
  $region21: #{forward.10} parent=0 // pred_fallthru
    _
  %v21 = vld [vmem:[%s0] sm:$0xff]
  %v22 = vld [vmem:[%s0 + $0x8] sm:$0xff]
  %v23 = vld [vmem:[%s1] sm:$0xf]
  %v24 = vld [vmem:[%s1 + $0x4] sm:$0xf]
  %v25 = vld [vmem:[%s1 + $0x8] sm:$0xf]
  %v26 = vld [vmem:[%s1 + $0xc] sm:$0xf]
  %v27 = vld [vmem:[%s1 + $0x10] sm:$0xf]
  %v28 = vld [vmem:[%s1 + $0x14] sm:$0xf]
  %v29 = vld [vmem:[%s1 + $0x18] sm:$0xf]
  %v30 = vld [vmem:[%s1 + $0x1c] sm:$0xf]
  %v31 = vld [vmem:[%s1 + $0x20] sm:$0xf]
  %v32 = vld [vmem:[%s1 + $0x24] sm:$0xf]
  %v33 = vld [vmem:[%s1 + $0x28] sm:$0xf]
  %v34 = vld [vmem:[%s1 + $0x2c] sm:$0xf]
  %v35 = vld [vmem:[%s1 + $0x30] sm:$0xf]
  %v36 = vld [vmem:[%s1 + $0x34] sm:$0xf]
  %v37 = vld [vmem:[%s1 + $0x38] sm:$0xf]
  %v38 = vld [vmem:[%s1 + $0x3c] sm:$0xf]
  %v39 = vld [vmem:[%s1 + $0x40] sm:$0xf]
  %v40 = vld [vmem:[%s1 + $0x44] sm:$0xf]
  %v41 = vld [vmem:[%s1 + $0x48] sm:$0xf]
  %v42 = vld [vmem:[%s1 + $0x4c] sm:$0xf]
  %v43 = vld [vmem:[%s1 + $0x50] sm:$0xf]
  %v44 = vld [vmem:[%s1 + $0x54] sm:$0xf]
  %v45 = vld [vmem:[%s1 + $0x58] sm:$0xf]
  %v46 = vld [vmem:[%s1 + $0x5c] sm:$0xf]
  %v47 = vld [vmem:[%s1 + $0x60] sm:$0xf]
  %v48 = vld [vmem:[%s1 + $0x64] sm:$0xf]
  %v49 = vld [vmem:[%s1 + $0x68] sm:$0xf]
  %v50 = vld [vmem:[%s1 + $0x6c] sm:$0xf]
  %v51 = vld [vmem:[%s1 + $0x70] sm:$0xf]
  %v52 = vld [vmem:[%s1 + $0x74] sm:$0xf]
  %v53 = vld [vmem:[%s1 + $0x78] sm:$0xf]
  %v54 = vld [vmem:[%s1 + $0x7c] sm:$0xf]
  %v55 = vld [vmem:[%s1 + $0x80] sm:$0xf]
  %v56 = vld [vmem:[%s1 + $0x84] sm:$0xf]
  %v57 = vld [vmem:[%s1 + $0x88] sm:$0xf]
  %v58 = vld [vmem:[%s1 + $0x8c] sm:$0xf]
  %v59 = vld [vmem:[%s1 + $0x90] sm:$0xf]
  %v60 = vld [vmem:[%s1 + $0x94] sm:$0xf]
  %v61 = vld [vmem:[%s1 + $0x98] sm:$0xf]
  %v62 = vld [vmem:[%s1 + $0x9c] sm:$0xf]
  %v63 = vld [vmem:[%s1 + $0xa0] sm:$0xf]
  %v64 = vld [vmem:[%s1 + $0xa4] sm:$0xf]
  %v65 = vld [vmem:[%s1 + $0xa8] sm:$0xf]
  %v66 = vld [vmem:[%s1 + $0xac] sm:$0xf]
  %v67 = vld [vmem:[%s1 + $0xb0] sm:$0xf]
  %v68 = vld [vmem:[%s1 + $0xb4] sm:$0xf]
  %v69 = vld [vmem:[%s1 + $0xb8] sm:$0xf]
  %v70 = vld [vmem:[%s1 + $0xbc] sm:$0xf]
  %v71 = vld [vmem:[%s1 + $0xc0] sm:$0xf]
  %v72 = vld [vmem:[%s1 + $0xc4] sm:$0xf]
  %v73 = vld [vmem:[%s1 + $0xc8] sm:$0xf]
  %v74 = vld [vmem:[%s1 + $0xcc] sm:$0xf]
  %v75 = vld [vmem:[%s1 + $0xd0] sm:$0xf]
  %v76 = vld [vmem:[%s1 + $0xd4] sm:$0xf]
  %v77 = vld [vmem:[%s1 + $0xd8] sm:$0xf]
  %v78 = vld [vmem:[%s1 + $0xdc] sm:$0xf]
  %v79 = vld [vmem:[%s1 + $0xe0] sm:$0xf]
  %v80 = vld [vmem:[%s1 + $0xe4] sm:$0xf]
  %v81 = vld [vmem:[%s1 + $0xe8] sm:$0xf]
  %v82 = vld [vmem:[%s1 + $0xec] sm:$0xf]
  %v83 = vld [vmem:[%s1 + $0xf0] sm:$0xf]
  %v84 = vld [vmem:[%s1 + $0xf4] sm:$0xf]
  %v85 = vld [vmem:[%s1 + $0xf8] sm:$0xf]
  %v86 = vld [vmem:[%s1 + $0xfc] sm:$0xf]
  %v87 = vld [vmem:[%s1 + $0x100] sm:$0xf]
  %v88 = vld [vmem:[%s1 + $0x104] sm:$0xf]
  %v89 = vld [vmem:[%s1 + $0x108] sm:$0xf]
  %v90 = vld [vmem:[%s1 + $0x10c] sm:$0xf]
  %v91 = vld [vmem:[%s1 + $0x110] sm:$0xf]
  %v92 = vld [vmem:[%s1 + $0x114] sm:$0xf]
  %v93 = vld [vmem:[%s1 + $0x118] sm:$0xf]
  %v94 = vld [vmem:[%s1 + $0x11c] sm:$0xf]
  %v95 = vld [vmem:[%s1 + $0x120] sm:$0xf]
  %v96 = vld [vmem:[%s1 + $0x124] sm:$0xf]
  %v97 = vld [vmem:[%s1 + $0x128] sm:$0xf]
  %v98 = vld [vmem:[%s1 + $0x12c] sm:$0xf]
  %v99 = vld [vmem:[%s1 + $0x130] sm:$0xf]
  %v100 = vld [vmem:[%s1 + $0x134] sm:$0xf]
  %v101 = vld [vmem:[%s1 + $0x138] sm:$0xf]
  %v102 = vld [vmem:[%s1 + $0x13c] sm:$0xf]
  %v103 = vld [vmem:[%s1 + $0x140] sm:$0xf]
  %v104 = vld [vmem:[%s1 + $0x144] sm:$0xf]
  %v105 = vld [vmem:[%s1 + $0x148] sm:$0xf]
  %v106 = vld [vmem:[%s1 + $0x14c] sm:$0xf]
  %v107 = vld [vmem:[%s1 + $0x150] sm:$0xf]
  %v108 = vld [vmem:[%s1 + $0x154] sm:$0xf]
  %v109 = vld [vmem:[%s1 + $0x158] sm:$0xf]
  %v110 = vld [vmem:[%s1 + $0x15c] sm:$0xf]
  %v111 = vld [vmem:[%s1 + $0x160] sm:$0xf]
  %v112 = vld [vmem:[%s1 + $0x164] sm:$0xf]
  %v113 = vld [vmem:[%s1 + $0x168] sm:$0xf]
  %v114 = vld [vmem:[%s1 + $0x16c] sm:$0xf]
  %v115 = vld [vmem:[%s1 + $0x170] sm:$0xf]
  %v116 = vld [vmem:[%s1 + $0x174] sm:$0xf]
  %v117 = vld [vmem:[%s1 + $0x178] sm:$0xf]
  %v118 = vld [vmem:[%s1 + $0x17c] sm:$0xf]
  %v119 = vld [vmem:[%s1 + $0x180] sm:$0xf]
  %v120 = vld [vmem:[%s1 + $0x184] sm:$0xf]
  %v121 = vld [vmem:[%s1 + $0x188] sm:$0xf]
  %v122 = vld [vmem:[%s1 + $0x18c] sm:$0xf]
  %v123 = vld [vmem:[%s1 + $0x190] sm:$0xf]
  %v124 = vld [vmem:[%s1 + $0x194] sm:$0xf]
  %v125 = vld [vmem:[%s1 + $0x198] sm:$0xf]
  %v126 = vld [vmem:[%s1 + $0x19c] sm:$0xf]
  %v127 = vld [vmem:[%s1 + $0x1a0] sm:$0xf]
  %v128 = vld [vmem:[%s1 + $0x1a4] sm:$0xf]
  %v129 = vld [vmem:[%s1 + $0x1a8] sm:$0xf]
  %v130 = vld [vmem:[%s1 + $0x1ac] sm:$0xf]
  %v131 = vld [vmem:[%s1 + $0x1b0] sm:$0xf]
  %v132 = vld [vmem:[%s1 + $0x1b4] sm:$0xf]
  %v133 = vld [vmem:[%s1 + $0x1b8] sm:$0xf]
  %v134 = vld [vmem:[%s1 + $0x1bc] sm:$0xf]
  %v135 = vld [vmem:[%s1 + $0x1c0] sm:$0xf]
  %v136 = vld [vmem:[%s1 + $0x1c4] sm:$0xf]
  %v137 = vld [vmem:[%s1 + $0x1c8] sm:$0xf]
  %v138 = vld [vmem:[%s1 + $0x1cc] sm:$0xf]
  %v139 = vld [vmem:[%s1 + $0x1d0] sm:$0xf]
  %v140 = vld [vmem:[%s1 + $0x1d4] sm:$0xf]
  %v141 = vld [vmem:[%s1 + $0x1d8] sm:$0xf]
  %v142 = vld [vmem:[%s1 + $0x1dc] sm:$0xf]
  %v143 = vld [vmem:[%s1 + $0x1e0] sm:$0xf]
  %v144 = vld [vmem:[%s1 + $0x1e4] sm:$0xf]
  %v145 = vld [vmem:[%s1 + $0x1e8] sm:$0xf]
  %v146 = vld [vmem:[%s1 + $0x1ec] sm:$0xf]
  %v147 = vld [vmem:[%s1 + $0x1f0] sm:$0xf]
  %v148 = vld [vmem:[%s1 + $0x1f4] sm:$0xf]
  %v149 = vld [vmem:[%s1 + $0x1f8] sm:$0xf]
  %v150 = vld [vmem:[%s1 + $0x1fc] sm:$0xf]
  %v151 = vld [vmem:[%s1 + $0x200] sm:$0xf]
  %v152 = vld [vmem:[%s1 + $0x204] sm:$0xf]
  %v153 = vld [vmem:[%s1 + $0x208] sm:$0xf]
  %v154 = vld [vmem:[%s1 + $0x20c] sm:$0xf]
  %v155 = vld [vmem:[%s1 + $0x210] sm:$0xf]
  %v156 = vld [vmem:[%s1 + $0x214] sm:$0xf]
  %v157 = vld [vmem:[%s1 + $0x218] sm:$0xf]
  %v158 = vld [vmem:[%s1 + $0x21c] sm:$0xf]
  %v159 = vld [vmem:[%s1 + $0x220] sm:$0xf]
  %v160 = vld [vmem:[%s1 + $0x224] sm:$0xf]
  %v161 = vld [vmem:[%s1 + $0x228] sm:$0xf]
  %v162 = vld [vmem:[%s1 + $0x22c] sm:$0xf]
  %v163 = vld [vmem:[%s1 + $0x230] sm:$0xf]
  %v164 = vld [vmem:[%s1 + $0x234] sm:$0xf]
  %v165 = vld [vmem:[%s1 + $0x238] sm:$0xf]
  %v166 = vld [vmem:[%s1 + $0x23c] sm:$0xf]
  %v167 = vld [vmem:[%s1 + $0x240] sm:$0xf]
  %v168 = vld [vmem:[%s1 + $0x244] sm:$0xf]
  %v169 = vld [vmem:[%s1 + $0x248] sm:$0xf]
  %v170 = vld [vmem:[%s1 + $0x24c] sm:$0xf]
  %v171 = vld [vmem:[%s1 + $0x250] sm:$0xf]
  %v172 = vld [vmem:[%s1 + $0x254] sm:$0xf]
  %v173 = vld [vmem:[%s1 + $0x258] sm:$0xf]
  %v174 = vld [vmem:[%s1 + $0x25c] sm:$0xf]
  %v175 = vld [vmem:[%s1 + $0x260] sm:$0xf]
  %v176 = vld [vmem:[%s1 + $0x264] sm:$0xf]
  %v177 = vld [vmem:[%s1 + $0x268] sm:$0xf]
  %v178 = vld [vmem:[%s1 + $0x26c] sm:$0xf]
  %v179 = vld [vmem:[%s1 + $0x270] sm:$0xf]
  %v180 = vld [vmem:[%s1 + $0x274] sm:$0xf]
  %v181 = vld [vmem:[%s1 + $0x278] sm:$0xf]
  %v182 = vld [vmem:[%s1 + $0x27c] sm:$0xf]
  %v183 = vld [vmem:[%s1 + $0x280] sm:$0xf]
  %v184 = vld [vmem:[%s1 + $0x284] sm:$0xf]
  %v185 = vld [vmem:[%s1 + $0x288] sm:$0xf]
  %v186 = vld [vmem:[%s1 + $0x28c] sm:$0xf]
  %v187 = vld [vmem:[%s1 + $0x290] sm:$0xf]
  %v188 = vld [vmem:[%s1 + $0x294] sm:$0xf]
  %v189 = vld [vmem:[%s1 + $0x298] sm:$0xf]
  %v190 = vld [vmem:[%s1 + $0x29c] sm:$0xf]
  %v191 = vld [vmem:[%s1 + $0x2a0] sm:$0xf]
  %v192 = vld [vmem:[%s1 + $0x2a4] sm:$0xf]
  %v193 = vld [vmem:[%s1 + $0x2a8] sm:$0xf]
  %v194 = vld [vmem:[%s1 + $0x2ac] sm:$0xf]
  %v195 = vld [vmem:[%s1 + $0x2b0] sm:$0xf]
  %v196 = vld [vmem:[%s1 + $0x2b4] sm:$0xf]
  %v197 = vld [vmem:[%s1 + $0x2b8] sm:$0xf]
  %v198 = vld [vmem:[%s1 + $0x2bc] sm:$0xf]
  %v199 = vld [vmem:[%s1 + $0x2c0] sm:$0xf]
  %v200 = vld [vmem:[%s1 + $0x2c4] sm:$0xf]
  %v201 = vld [vmem:[%s1 + $0x2c8] sm:$0xf]
  %v202 = vld [vmem:[%s1 + $0x2cc] sm:$0xf]
  %v203 = vld [vmem:[%s1 + $0x2d0] sm:$0xf]
  %v204 = vld [vmem:[%s1 + $0x2d4] sm:$0xf]
  %v205 = vld [vmem:[%s1 + $0x2d8] sm:$0xf]
  %v206 = vld [vmem:[%s1 + $0x2dc] sm:$0xf]
  %v207 = vld [vmem:[%s1 + $0x2e0] sm:$0xf]
  %v208 = vld [vmem:[%s1 + $0x2e4] sm:$0xf]
  %v209 = vld [vmem:[%s1 + $0x2e8] sm:$0xf]
  %v210 = vld [vmem:[%s1 + $0x2ec] sm:$0xf]
  %v211 = vld [vmem:[%s1 + $0x2f0] sm:$0xf]
  %v212 = vld [vmem:[%s1 + $0x2f4] sm:$0xf]
  %v213 = vld [vmem:[%s1 + $0x2f8] sm:$0xf]
  %v214 = vld [vmem:[%s1 + $0x2fc] sm:$0xf]
  %v215 = vld [vmem:[%s1 + $0x300] sm:$0xf]
  %v216 = vld [vmem:[%s1 + $0x304] sm:$0xf]
  %v217 = vld [vmem:[%s1 + $0x308] sm:$0xf]
  %v218 = vld [vmem:[%s1 + $0x30c] sm:$0xf]
  %v219 = vld [vmem:[%s1 + $0x310] sm:$0xf]
  %v220 = vld [vmem:[%s1 + $0x314] sm:$0xf]
  %v221 = vld [vmem:[%s1 + $0x318] sm:$0xf]
  %v222 = vld [vmem:[%s1 + $0x31c] sm:$0xf]
  %v223 = vld [vmem:[%s1 + $0x320] sm:$0xf]
  %v224 = vld [vmem:[%s1 + $0x324] sm:$0xf]
  %v225 = vld [vmem:[%s1 + $0x328] sm:$0xf]
  %v226 = vld [vmem:[%s1 + $0x32c] sm:$0xf]
  %v227 = vld [vmem:[%s1 + $0x330] sm:$0xf]
  %v228 = vld [vmem:[%s1 + $0x334] sm:$0xf]
  %v229 = vld [vmem:[%s1 + $0x338] sm:$0xf]
  %v230 = vld [vmem:[%s1 + $0x33c] sm:$0xf]
  %v231 = vld [vmem:[%s1 + $0x340] sm:$0xf]
  %v232 = vld [vmem:[%s1 + $0x344] sm:$0xf]
  %v233 = vld [vmem:[%s1 + $0x348] sm:$0xf]
  %v234 = vld [vmem:[%s1 + $0x34c] sm:$0xf]
  %v235 = vld [vmem:[%s1 + $0x350] sm:$0xf]
  %v236 = vld [vmem:[%s1 + $0x354] sm:$0xf]
  %v237 = vld [vmem:[%s1 + $0x358] sm:$0xf]
  %v238 = vld [vmem:[%s1 + $0x35c] sm:$0xf]
  %v239 = vld [vmem:[%s1 + $0x360] sm:$0xf]
  %v240 = vld [vmem:[%s1 + $0x364] sm:$0xf]
  %v241 = vld [vmem:[%s1 + $0x368] sm:$0xf]
  %v242 = vld [vmem:[%s1 + $0x36c] sm:$0xf]
  %v243 = vld [vmem:[%s1 + $0x370] sm:$0xf]
  %v244 = vld [vmem:[%s1 + $0x374] sm:$0xf]
  %v245 = vld [vmem:[%s1 + $0x378] sm:$0xf]
  %v246 = vld [vmem:[%s1 + $0x37c] sm:$0xf]
  %v247 = vld [vmem:[%s1 + $0x380] sm:$0xf]
  %v248 = vld [vmem:[%s1 + $0x384] sm:$0xf]
  %v249 = vld [vmem:[%s1 + $0x388] sm:$0xf]
  %v250 = vld [vmem:[%s1 + $0x38c] sm:$0xf]
  %v251 = vld [vmem:[%s1 + $0x390] sm:$0xf]
  %v252 = vld [vmem:[%s1 + $0x394] sm:$0xf]
  %v253 = vld [vmem:[%s1 + $0x398] sm:$0xf]
  %v254 = vld [vmem:[%s1 + $0x39c] sm:$0xf]
  %v255 = vld [vmem:[%s1 + $0x3a0] sm:$0xf]
  %v256 = vld [vmem:[%s1 + $0x3a4] sm:$0xf]
  %v257 = vld [vmem:[%s1 + $0x3a8] sm:$0xf]
  %v258 = vld [vmem:[%s1 + $0x3ac] sm:$0xf]
  %v259 = vld [vmem:[%s1 + $0x3b0] sm:$0xf]
  %v260 = vld [vmem:[%s1 + $0x3b4] sm:$0xf]
  %v261 = vld [vmem:[%s1 + $0x3b8] sm:$0xf]
  %v262 = vld [vmem:[%s1 + $0x3bc] sm:$0xf]
  %v263 = vld [vmem:[%s1 + $0x3c0] sm:$0xf]
  %v264 = vld [vmem:[%s1 + $0x3c4] sm:$0xf]
  %v265 = vld [vmem:[%s1 + $0x3c8] sm:$0xf]
  %v266 = vld [vmem:[%s1 + $0x3cc] sm:$0xf]
  %v267 = vld [vmem:[%s1 + $0x3d0] sm:$0xf]
  %v268 = vld [vmem:[%s1 + $0x3d4] sm:$0xf]
  %v269 = vld [vmem:[%s1 + $0x3d8] sm:$0xf]
  %v270 = vld [vmem:[%s1 + $0x3dc] sm:$0xf]
  %v271 = vld [vmem:[%s1 + $0x3e0] sm:$0xf]
  %v272 = vld [vmem:[%s1 + $0x3e4] sm:$0xf]
  %v273 = vld [vmem:[%s1 + $0x3e8] sm:$0xf]
  %v274 = vld [vmem:[%s1 + $0x3ec] sm:$0xf]
  %v275 = vld [vmem:[%s1 + $0x3f0] sm:$0xf]
  %v276 = vld [vmem:[%s1 + $0x3f4] sm:$0xf]
  %v277 = vld [vmem:[%s1 + $0x3f8] sm:$0xf]
  %v278 = vld [vmem:[%s1 + $0x3fc] sm:$0xf]
  %v279 = vld [vmem:[%s2] sm:$0x1]
  %v281 = vlaneseq
  %v282 = vshrl.u32 %v281, 7
  %v283 = vsub.s32 0, %v282
  %v284 = vrot.slane %v279, %v283
  %v288 = vcombine.high %v21, %v21
  %v290 = vunpack.c.l.s4 1966171168
  %v291 = vunpack.c.0.s8 %v290
  %v292 = vlaneseq
  %v293 = vshrl.u32 %v292, 7
  %v294 = vsub.s32 %v291, %v293
  %v295 = vrot.slane %v21, %v294
  %v297 = vunpack.c.l.s4 1966171168
  %v298 = vunpack.c.0.s8 %v297
  %v299 = vlaneseq
  %v300 = vshrl.u32 %v299, 7
  %v301 = vsub.s32 %v298, %v300
  %v302 = vrot.slane %v288, %v301
  %v303 = vcombine.high %v295, %v295
  %v304 = vcombine.high %v302, %v302
  %v306 = vunpack.c.l.s4 1966171168
  %v307 = vunpack.c.0.s8 %v306
  %v308 = vlaneseq
  %v309 = vshrl.u32 %v308, 7
  %v310 = vsub.s32 %v307, %v309
  %v311 = vrot.slane %v295, %v310
  %v313 = vunpack.c.l.s4 1966171168
  %v314 = vunpack.c.0.s8 %v313
  %v315 = vlaneseq
  %v316 = vshrl.u32 %v315, 7
  %v317 = vsub.s32 %v314, %v316
  %v318 = vrot.slane %v302, %v317
  %v320 = vunpack.c.l.s4 1966171168
  %v321 = vunpack.c.0.s8 %v320
  %v322 = vlaneseq
  %v323 = vshrl.u32 %v322, 7
  %v324 = vsub.s32 %v321, %v323
  %v325 = vrot.slane %v303, %v324
  %v327 = vunpack.c.l.s4 1966171168
  %v328 = vunpack.c.0.s8 %v327
  %v329 = vlaneseq
  %v330 = vshrl.u32 %v329, 7
  %v331 = vsub.s32 %v328, %v330
  %v332 = vrot.slane %v304, %v331
  %v333 = vcombine.high %v311, %v311
  %v334 = vcombine.high %v318, %v318
  %v335 = vcombine.high %v325, %v325
  %v336 = vcombine.high %v332, %v332
  %v337 = vcombine.high %v22, %v22
  %v339 = vunpack.c.l.s4 1966171168
  %v340 = vunpack.c.0.s8 %v339
  %v341 = vlaneseq
  %v342 = vshrl.u32 %v341, 7
  %v343 = vsub.s32 %v340, %v342
  %v344 = vrot.slane %v22, %v343
  %v346 = vunpack.c.l.s4 1966171168
  %v347 = vunpack.c.0.s8 %v346
  %v348 = vlaneseq
  %v349 = vshrl.u32 %v348, 7
  %v350 = vsub.s32 %v347, %v349
  %v351 = vrot.slane %v337, %v350
  %v352 = vcombine.high %v344, %v344
  %v353 = vcombine.high %v351, %v351
  %v355 = vunpack.c.l.s4 1966171168
  %v356 = vunpack.c.0.s8 %v355
  %v357 = vlaneseq
  %v358 = vshrl.u32 %v357, 7
  %v359 = vsub.s32 %v356, %v358
  %v360 = vrot.slane %v344, %v359
  %v362 = vunpack.c.l.s4 1966171168
  %v363 = vunpack.c.0.s8 %v362
  %v364 = vlaneseq
  %v365 = vshrl.u32 %v364, 7
  %v366 = vsub.s32 %v363, %v365
  %v367 = vrot.slane %v351, %v366
  %v369 = vunpack.c.l.s4 1966171168
  %v370 = vunpack.c.0.s8 %v369
  %v371 = vlaneseq
  %v372 = vshrl.u32 %v371, 7
  %v373 = vsub.s32 %v370, %v372
  %v374 = vrot.slane %v352, %v373
  %v376 = vunpack.c.l.s4 1966171168
  %v377 = vunpack.c.0.s8 %v376
  %v378 = vlaneseq
  %v379 = vshrl.u32 %v378, 7
  %v380 = vsub.s32 %v377, %v379
  %v381 = vrot.slane %v353, %v380
  %v382 = vcombine.high %v360, %v360
  %v383 = vcombine.high %v367, %v367
  %v384 = vcombine.high %v374, %v374
  %v385 = vcombine.high %v381, %v381
  %v658 = vunpack.c.l.b16 %v23
  %v659 = vunpack.c.l.b16 %v24
  %v660 = vunpack.c.l.b16 %v25
  %v661 = vunpack.c.l.b16 %v26
  %v662 = vunpack.c.l.b16 %v27
  %v663 = vunpack.c.l.b16 %v28
  %v664 = vunpack.c.l.b16 %v29
  %v665 = vunpack.c.l.b16 %v30
  %v666 = vunpack.c.l.b16 %v31
  %v667 = vunpack.c.l.b16 %v32
  %v668 = vunpack.c.l.b16 %v33
  %v669 = vunpack.c.l.b16 %v34
  %v670 = vunpack.c.l.b16 %v35
  %v671 = vunpack.c.l.b16 %v36
  %v672 = vunpack.c.l.b16 %v37
  %v673 = vunpack.c.l.b16 %v38
  %v674 = vunpack.c.l.b16 %v39
  %v675 = vunpack.c.l.b16 %v40
  %v676 = vunpack.c.l.b16 %v41
  %v677 = vunpack.c.l.b16 %v42
  %v678 = vunpack.c.l.b16 %v43
  %v679 = vunpack.c.l.b16 %v44
  %v680 = vunpack.c.l.b16 %v45
  %v681 = vunpack.c.l.b16 %v46
  %v682 = vunpack.c.l.b16 %v47
  %v683 = vunpack.c.l.b16 %v48
  %v684 = vunpack.c.l.b16 %v49
  %v685 = vunpack.c.l.b16 %v50
  %v686 = vunpack.c.l.b16 %v51
  %v687 = vunpack.c.l.b16 %v52
  %v688 = vunpack.c.l.b16 %v53
  %v689 = vunpack.c.l.b16 %v54
  %v690 = vunpack.c.l.b16 %v55
  %v691 = vunpack.c.l.b16 %v56
  %v692 = vunpack.c.l.b16 %v57
  %v693 = vunpack.c.l.b16 %v58
  %v694 = vunpack.c.l.b16 %v59
  %v695 = vunpack.c.l.b16 %v60
  %v696 = vunpack.c.l.b16 %v61
  %v697 = vunpack.c.l.b16 %v62
  %v698 = vunpack.c.l.b16 %v63
  %v699 = vunpack.c.l.b16 %v64
  %v700 = vunpack.c.l.b16 %v65
  %v701 = vunpack.c.l.b16 %v66
  %v702 = vunpack.c.l.b16 %v67
  %v703 = vunpack.c.l.b16 %v68
  %v704 = vunpack.c.l.b16 %v69
  %v705 = vunpack.c.l.b16 %v70
  %v706 = vunpack.c.l.b16 %v71
  %v707 = vunpack.c.l.b16 %v72
  %v708 = vunpack.c.l.b16 %v73
  %v709 = vunpack.c.l.b16 %v74
  %v710 = vunpack.c.l.b16 %v75
  %v711 = vunpack.c.l.b16 %v76
  %v712 = vunpack.c.l.b16 %v77
  %v713 = vunpack.c.l.b16 %v78
  %v714 = vunpack.c.l.b16 %v79
  %v715 = vunpack.c.l.b16 %v80
  %v716 = vunpack.c.l.b16 %v81
  %v717 = vunpack.c.l.b16 %v82
  %v718 = vunpack.c.l.b16 %v83
  %v719 = vunpack.c.l.b16 %v84
  %v720 = vunpack.c.l.b16 %v85
  %v721 = vunpack.c.l.b16 %v86
  %v722 = vunpack.c.l.b16 %v87
  %v723 = vunpack.c.l.b16 %v88
  %v724 = vunpack.c.l.b16 %v89
  %v725 = vunpack.c.l.b16 %v90
  %v726 = vunpack.c.l.b16 %v91
  %v727 = vunpack.c.l.b16 %v92
  %v728 = vunpack.c.l.b16 %v93
  %v729 = vunpack.c.l.b16 %v94
  %v730 = vunpack.c.l.b16 %v95
  %v731 = vunpack.c.l.b16 %v96
  %v732 = vunpack.c.l.b16 %v97
  %v733 = vunpack.c.l.b16 %v98
  %v734 = vunpack.c.l.b16 %v99
  %v735 = vunpack.c.l.b16 %v100
  %v736 = vunpack.c.l.b16 %v101
  %v737 = vunpack.c.l.b16 %v102
  %v738 = vunpack.c.l.b16 %v103
  %v739 = vunpack.c.l.b16 %v104
  %v740 = vunpack.c.l.b16 %v105
  %v741 = vunpack.c.l.b16 %v106
  %v742 = vunpack.c.l.b16 %v107
  %v743 = vunpack.c.l.b16 %v108
  %v744 = vunpack.c.l.b16 %v109
  %v745 = vunpack.c.l.b16 %v110
  %v746 = vunpack.c.l.b16 %v111
  %v747 = vunpack.c.l.b16 %v112
  %v748 = vunpack.c.l.b16 %v113
  %v749 = vunpack.c.l.b16 %v114
  %v750 = vunpack.c.l.b16 %v115
  %v751 = vunpack.c.l.b16 %v116
  %v752 = vunpack.c.l.b16 %v117
  %v753 = vunpack.c.l.b16 %v118
  %v754 = vunpack.c.l.b16 %v119
  %v755 = vunpack.c.l.b16 %v120
  %v756 = vunpack.c.l.b16 %v121
  %v757 = vunpack.c.l.b16 %v122
  %v758 = vunpack.c.l.b16 %v123
  %v759 = vunpack.c.l.b16 %v124
  %v760 = vunpack.c.l.b16 %v125
  %v761 = vunpack.c.l.b16 %v126
  %v762 = vunpack.c.l.b16 %v127
  %v763 = vunpack.c.l.b16 %v128
  %v764 = vunpack.c.l.b16 %v129
  %v765 = vunpack.c.l.b16 %v130
  %v766 = vunpack.c.l.b16 %v131
  %v767 = vunpack.c.l.b16 %v132
  %v768 = vunpack.c.l.b16 %v133
  %v769 = vunpack.c.l.b16 %v134
  %v770 = vunpack.c.l.b16 %v135
  %v771 = vunpack.c.l.b16 %v136
  %v772 = vunpack.c.l.b16 %v137
  %v773 = vunpack.c.l.b16 %v138
  %v774 = vunpack.c.l.b16 %v139
  %v775 = vunpack.c.l.b16 %v140
  %v776 = vunpack.c.l.b16 %v141
  %v777 = vunpack.c.l.b16 %v142
  %v778 = vunpack.c.l.b16 %v143
  %v779 = vunpack.c.l.b16 %v144
  %v780 = vunpack.c.l.b16 %v145
  %v781 = vunpack.c.l.b16 %v146
  %v782 = vunpack.c.l.b16 %v147
  %v783 = vunpack.c.l.b16 %v148
  %v784 = vunpack.c.l.b16 %v149
  %v785 = vunpack.c.l.b16 %v150
  %v786 = vunpack.c.l.b16 %v151
  %v787 = vunpack.c.l.b16 %v152
  %v788 = vunpack.c.l.b16 %v153
  %v789 = vunpack.c.l.b16 %v154
  %v790 = vunpack.c.l.b16 %v155
  %v791 = vunpack.c.l.b16 %v156
  %v792 = vunpack.c.l.b16 %v157
  %v793 = vunpack.c.l.b16 %v158
  %v794 = vunpack.c.l.b16 %v159
  %v795 = vunpack.c.l.b16 %v160
  %v796 = vunpack.c.l.b16 %v161
  %v797 = vunpack.c.l.b16 %v162
  %v798 = vunpack.c.l.b16 %v163
  %v799 = vunpack.c.l.b16 %v164
  %v800 = vunpack.c.l.b16 %v165
  %v801 = vunpack.c.l.b16 %v166
  %v802 = vunpack.c.l.b16 %v167
  %v803 = vunpack.c.l.b16 %v168
  %v804 = vunpack.c.l.b16 %v169
  %v805 = vunpack.c.l.b16 %v170
  %v806 = vunpack.c.l.b16 %v171
  %v807 = vunpack.c.l.b16 %v172
  %v808 = vunpack.c.l.b16 %v173
  %v809 = vunpack.c.l.b16 %v174
  %v810 = vunpack.c.l.b16 %v175
  %v811 = vunpack.c.l.b16 %v176
  %v812 = vunpack.c.l.b16 %v177
  %v813 = vunpack.c.l.b16 %v178
  %v814 = vunpack.c.l.b16 %v179
  %v815 = vunpack.c.l.b16 %v180
  %v816 = vunpack.c.l.b16 %v181
  %v817 = vunpack.c.l.b16 %v182
  %v818 = vunpack.c.l.b16 %v183
  %v819 = vunpack.c.l.b16 %v184
  %v820 = vunpack.c.l.b16 %v185
  %v821 = vunpack.c.l.b16 %v186
  %v822 = vunpack.c.l.b16 %v187
  %v823 = vunpack.c.l.b16 %v188
  %v824 = vunpack.c.l.b16 %v189
  %v825 = vunpack.c.l.b16 %v190
  %v826 = vunpack.c.l.b16 %v191
  %v827 = vunpack.c.l.b16 %v192
  %v828 = vunpack.c.l.b16 %v193
  %v829 = vunpack.c.l.b16 %v194
  %v830 = vunpack.c.l.b16 %v195
  %v831 = vunpack.c.l.b16 %v196
  %v832 = vunpack.c.l.b16 %v197
  %v833 = vunpack.c.l.b16 %v198
  %v834 = vunpack.c.l.b16 %v199
  %v835 = vunpack.c.l.b16 %v200
  %v836 = vunpack.c.l.b16 %v201
  %v837 = vunpack.c.l.b16 %v202
  %v838 = vunpack.c.l.b16 %v203
  %v839 = vunpack.c.l.b16 %v204
  %v840 = vunpack.c.l.b16 %v205
  %v841 = vunpack.c.l.b16 %v206
  %v842 = vunpack.c.l.b16 %v207
  %v843 = vunpack.c.l.b16 %v208
  %v844 = vunpack.c.l.b16 %v209
  %v845 = vunpack.c.l.b16 %v210
  %v846 = vunpack.c.l.b16 %v211
  %v847 = vunpack.c.l.b16 %v212
  %v848 = vunpack.c.l.b16 %v213
  %v849 = vunpack.c.l.b16 %v214
  %v850 = vunpack.c.l.b16 %v215
  %v851 = vunpack.c.l.b16 %v216
  %v852 = vunpack.c.l.b16 %v217
  %v853 = vunpack.c.l.b16 %v218
  %v854 = vunpack.c.l.b16 %v219
  %v855 = vunpack.c.l.b16 %v220
  %v856 = vunpack.c.l.b16 %v221
  %v857 = vunpack.c.l.b16 %v222
  %v858 = vunpack.c.l.b16 %v223
  %v859 = vunpack.c.l.b16 %v224
  %v860 = vunpack.c.l.b16 %v225
  %v861 = vunpack.c.l.b16 %v226
  %v862 = vunpack.c.l.b16 %v227
  %v863 = vunpack.c.l.b16 %v228
  %v864 = vunpack.c.l.b16 %v229
  %v865 = vunpack.c.l.b16 %v230
  %v866 = vunpack.c.l.b16 %v231
  %v867 = vunpack.c.l.b16 %v232
  %v868 = vunpack.c.l.b16 %v233
  %v869 = vunpack.c.l.b16 %v234
  %v870 = vunpack.c.l.b16 %v235
  %v871 = vunpack.c.l.b16 %v236
  %v872 = vunpack.c.l.b16 %v237
  %v873 = vunpack.c.l.b16 %v238
  %v874 = vunpack.c.l.b16 %v239
  %v875 = vunpack.c.l.b16 %v240
  %v876 = vunpack.c.l.b16 %v241
  %v877 = vunpack.c.l.b16 %v242
  %v878 = vunpack.c.l.b16 %v243
  %v879 = vunpack.c.l.b16 %v244
  %v880 = vunpack.c.l.b16 %v245
  %v881 = vunpack.c.l.b16 %v246
  %v882 = vunpack.c.l.b16 %v247
  %v883 = vunpack.c.l.b16 %v248
  %v884 = vunpack.c.l.b16 %v249
  %v885 = vunpack.c.l.b16 %v250
  %v886 = vunpack.c.l.b16 %v251
  %v887 = vunpack.c.l.b16 %v252
  %v888 = vunpack.c.l.b16 %v253
  %v889 = vunpack.c.l.b16 %v254
  %v890 = vunpack.c.l.b16 %v255
  %v891 = vunpack.c.l.b16 %v256
  %v892 = vunpack.c.l.b16 %v257
  %v893 = vunpack.c.l.b16 %v258
  %v894 = vunpack.c.l.b16 %v259
  %v895 = vunpack.c.l.b16 %v260
  %v896 = vunpack.c.l.b16 %v261
  %v897 = vunpack.c.l.b16 %v262
  %v898 = vunpack.c.l.b16 %v263
  %v899 = vunpack.c.l.b16 %v264
  %v900 = vunpack.c.l.b16 %v265
  %v901 = vunpack.c.l.b16 %v266
  %v902 = vunpack.c.l.b16 %v267
  %v903 = vunpack.c.l.b16 %v268
  %v904 = vunpack.c.l.b16 %v269
  %v905 = vunpack.c.l.b16 %v270
  %v906 = vunpack.c.l.b16 %v271
  %v907 = vunpack.c.l.b16 %v272
  %v908 = vunpack.c.l.b16 %v273
  %v909 = vunpack.c.l.b16 %v274
  %v910 = vunpack.c.l.b16 %v275
  %v911 = vunpack.c.l.b16 %v276
  %v912 = vunpack.c.l.b16 %v277
  %v913 = vunpack.c.l.b16 %v278
  %v914 = vpack.c.b16 %v659, %v658
  %v915 = vpack.c.b16 %v661, %v660
  %v916 = vpack.c.b16 %v663, %v662
  %v917 = vpack.c.b16 %v665, %v664
  %v918 = vpack.c.b16 %v667, %v666
  %v919 = vpack.c.b16 %v669, %v668
  %v920 = vpack.c.b16 %v671, %v670
  %v921 = vpack.c.b16 %v673, %v672
  %v922 = vpack.c.b16 %v675, %v674
  %v923 = vpack.c.b16 %v677, %v676
  %v924 = vpack.c.b16 %v679, %v678
  %v925 = vpack.c.b16 %v681, %v680
  %v926 = vpack.c.b16 %v683, %v682
  %v927 = vpack.c.b16 %v685, %v684
  %v928 = vpack.c.b16 %v687, %v686
  %v929 = vpack.c.b16 %v689, %v688
  %v930 = vpack.c.b16 %v691, %v690
  %v931 = vpack.c.b16 %v693, %v692
  %v932 = vpack.c.b16 %v695, %v694
  %v933 = vpack.c.b16 %v697, %v696
  %v934 = vpack.c.b16 %v699, %v698
  %v935 = vpack.c.b16 %v701, %v700
  %v936 = vpack.c.b16 %v703, %v702
  %v937 = vpack.c.b16 %v705, %v704
  %v938 = vpack.c.b16 %v707, %v706
  %v939 = vpack.c.b16 %v709, %v708
  %v940 = vpack.c.b16 %v711, %v710
  %v941 = vpack.c.b16 %v713, %v712
  %v942 = vpack.c.b16 %v715, %v714
  %v943 = vpack.c.b16 %v717, %v716
  %v944 = vpack.c.b16 %v719, %v718
  %v945 = vpack.c.b16 %v721, %v720
  %v946 = vpack.c.b16 %v723, %v722
  %v947 = vpack.c.b16 %v725, %v724
  %v948 = vpack.c.b16 %v727, %v726
  %v949 = vpack.c.b16 %v729, %v728
  %v950 = vpack.c.b16 %v731, %v730
  %v951 = vpack.c.b16 %v733, %v732
  %v952 = vpack.c.b16 %v735, %v734
  %v953 = vpack.c.b16 %v737, %v736
  %v954 = vpack.c.b16 %v739, %v738
  %v955 = vpack.c.b16 %v741, %v740
  %v956 = vpack.c.b16 %v743, %v742
  %v957 = vpack.c.b16 %v745, %v744
  %v958 = vpack.c.b16 %v747, %v746
  %v959 = vpack.c.b16 %v749, %v748
  %v960 = vpack.c.b16 %v751, %v750
  %v961 = vpack.c.b16 %v753, %v752
  %v962 = vpack.c.b16 %v755, %v754
  %v963 = vpack.c.b16 %v757, %v756
  %v964 = vpack.c.b16 %v759, %v758
  %v965 = vpack.c.b16 %v761, %v760
  %v966 = vpack.c.b16 %v763, %v762
  %v967 = vpack.c.b16 %v765, %v764
  %v968 = vpack.c.b16 %v767, %v766
  %v969 = vpack.c.b16 %v769, %v768
  %v970 = vpack.c.b16 %v771, %v770
  %v971 = vpack.c.b16 %v773, %v772
  %v972 = vpack.c.b16 %v775, %v774
  %v973 = vpack.c.b16 %v777, %v776
  %v974 = vpack.c.b16 %v779, %v778
  %v975 = vpack.c.b16 %v781, %v780
  %v976 = vpack.c.b16 %v783, %v782
  %v977 = vpack.c.b16 %v785, %v784
  %v978 = vpack.c.b16 %v787, %v786
  %v979 = vpack.c.b16 %v789, %v788
  %v980 = vpack.c.b16 %v791, %v790
  %v981 = vpack.c.b16 %v793, %v792
  %v982 = vpack.c.b16 %v795, %v794
  %v983 = vpack.c.b16 %v797, %v796
  %v984 = vpack.c.b16 %v799, %v798
  %v985 = vpack.c.b16 %v801, %v800
  %v986 = vpack.c.b16 %v803, %v802
  %v987 = vpack.c.b16 %v805, %v804
  %v988 = vpack.c.b16 %v807, %v806
  %v989 = vpack.c.b16 %v809, %v808
  %v990 = vpack.c.b16 %v811, %v810
  %v991 = vpack.c.b16 %v813, %v812
  %v992 = vpack.c.b16 %v815, %v814
  %v993 = vpack.c.b16 %v817, %v816
  %v994 = vpack.c.b16 %v819, %v818
  %v995 = vpack.c.b16 %v821, %v820
  %v996 = vpack.c.b16 %v823, %v822
  %v997 = vpack.c.b16 %v825, %v824
  %v998 = vpack.c.b16 %v827, %v826
  %v999 = vpack.c.b16 %v829, %v828
  %v1000 = vpack.c.b16 %v831, %v830
  %v1001 = vpack.c.b16 %v833, %v832
  %v1002 = vpack.c.b16 %v835, %v834
  %v1003 = vpack.c.b16 %v837, %v836
  %v1004 = vpack.c.b16 %v839, %v838
  %v1005 = vpack.c.b16 %v841, %v840
  %v1006 = vpack.c.b16 %v843, %v842
  %v1007 = vpack.c.b16 %v845, %v844
  %v1008 = vpack.c.b16 %v847, %v846
  %v1009 = vpack.c.b16 %v849, %v848
  %v1010 = vpack.c.b16 %v851, %v850
  %v1011 = vpack.c.b16 %v853, %v852
  %v1012 = vpack.c.b16 %v855, %v854
  %v1013 = vpack.c.b16 %v857, %v856
  %v1014 = vpack.c.b16 %v859, %v858
  %v1015 = vpack.c.b16 %v861, %v860
  %v1016 = vpack.c.b16 %v863, %v862
  %v1017 = vpack.c.b16 %v865, %v864
  %v1018 = vpack.c.b16 %v867, %v866
  %v1019 = vpack.c.b16 %v869, %v868
  %v1020 = vpack.c.b16 %v871, %v870
  %v1021 = vpack.c.b16 %v873, %v872
  %v1022 = vpack.c.b16 %v875, %v874
  %v1023 = vpack.c.b16 %v877, %v876
  %v1024 = vpack.c.b16 %v879, %v878
  %v1025 = vpack.c.b16 %v881, %v880
  %v1026 = vpack.c.b16 %v883, %v882
  %v1027 = vpack.c.b16 %v885, %v884
  %v1028 = vpack.c.b16 %v887, %v886
  %v1029 = vpack.c.b16 %v889, %v888
  %v1030 = vpack.c.b16 %v891, %v890
  %v1031 = vpack.c.b16 %v893, %v892
  %v1032 = vpack.c.b16 %v895, %v894
  %v1033 = vpack.c.b16 %v897, %v896
  %v1034 = vpack.c.b16 %v899, %v898
  %v1035 = vpack.c.b16 %v901, %v900
  %v1036 = vpack.c.b16 %v903, %v902
  %v1037 = vpack.c.b16 %v905, %v904
  %v1038 = vpack.c.b16 %v907, %v906
  %v1039 = vpack.c.b16 %v909, %v908
  %v1040 = vpack.c.b16 %v911, %v910
  %v1041 = vpack.c.b16 %v913, %v912
  %1170 = vmatprep.subr.bf16.mxu0 0
  %1171 = vmatpush1.bf16.msra.mxu0 %v921
  %1172 = vmatprep.subr.bf16.mxu0 0
  %1173 = vmatpush1.bf16.msra.mxu0 %v920
  %1174 = vmatprep.subr.bf16.mxu0 0
  %1175 = vmatpush1.bf16.msra.mxu0 %v919
  %1176 = vmatprep.subr.bf16.mxu0 0
  %1177 = vmatpush1.bf16.msra.mxu0 %v918
  %1178 = vmatprep.subr.bf16.mxu0 0
  %1179 = vmatpush1.bf16.msra.mxu0 %v917
  %1180 = vmatprep.subr.bf16.mxu0 0
  %1181 = vmatpush1.bf16.msra.mxu0 %v916
  %1182 = vmatprep.subr.bf16.mxu0 0
  %1183 = vmatpush1.bf16.msra.mxu0 %v915
  %1184 = vmatprep.subr.bf16.mxu0 0
  %1185 = vmatpush1.bf16.msra.mxu0 %v914
  %1186 = vmatprep.subr.bf16.mxu0 0
  %1187 = vmatpush2.bf16.msra.mxu0 %v929
  %1188 = vmatprep.subr.bf16.mxu0 0
  %1189 = vmatpush2.bf16.msra.mxu0 %v928
  %1190 = vmatprep.subr.bf16.mxu0 0
  %1191 = vmatpush2.bf16.msra.mxu0 %v927
  %1192 = vmatprep.subr.bf16.mxu0 0
  %1193 = vmatpush2.bf16.msra.mxu0 %v926
  %1194 = vmatprep.subr.bf16.mxu0 0
  %1195 = vmatpush2.bf16.msra.mxu0 %v925
  %1196 = vmatprep.subr.bf16.mxu0 0
  %1197 = vmatpush2.bf16.msra.mxu0 %v924
  %1198 = vmatprep.subr.bf16.mxu0 0
  %1199 = vmatpush2.bf16.msra.mxu0 %v923
  %1200 = vmatprep.subr.bf16.mxu0 0
  %1201 = vmatpush2.bf16.msra.mxu0 %v922
  %1202 = vmatprep.mubr.bf16.mxu0 %v325
  %1203 = vmatmul.mubr.bf16.gmra.mxu0 %v311
  %v1204 = vpop.f32.mrf.mxu0
  %v1205 = vadd.f32 %v284, %v1204
  %v1206 = vpop.f32.mrf.mxu0
  %v1207 = vpop.f32.mrf.mxu0
  %v1208 = vpop.f32.mrf.mxu0
  %1209 = vdwg.mxu0
  %1210 = vmatprep.subr.bf16.mxu0 0
  %1211 = vmatpush1.bf16.msra.mxu0 %v937
  %1212 = vmatprep.subr.bf16.mxu0 0
  %1213 = vmatpush1.bf16.msra.mxu0 %v936
  %1214 = vmatprep.subr.bf16.mxu0 0
  %1215 = vmatpush1.bf16.msra.mxu0 %v935
  %1216 = vmatprep.subr.bf16.mxu0 0
  %1217 = vmatpush1.bf16.msra.mxu0 %v934
  %1218 = vmatprep.subr.bf16.mxu0 0
  %1219 = vmatpush1.bf16.msra.mxu0 %v933
  %1220 = vmatprep.subr.bf16.mxu0 0
  %1221 = vmatpush1.bf16.msra.mxu0 %v932
  %1222 = vmatprep.subr.bf16.mxu0 0
  %1223 = vmatpush1.bf16.msra.mxu0 %v931
  %1224 = vmatprep.subr.bf16.mxu0 0
  %1225 = vmatpush1.bf16.msra.mxu0 %v930
  %1226 = vmatprep.subr.bf16.mxu0 0
  %1227 = vmatpush2.bf16.msra.mxu0 %v945
  %1228 = vmatprep.subr.bf16.mxu0 0
  %1229 = vmatpush2.bf16.msra.mxu0 %v944
  %1230 = vmatprep.subr.bf16.mxu0 0
  %1231 = vmatpush2.bf16.msra.mxu0 %v943
  %1232 = vmatprep.subr.bf16.mxu0 0
  %1233 = vmatpush2.bf16.msra.mxu0 %v942
  %1234 = vmatprep.subr.bf16.mxu0 0
  %1235 = vmatpush2.bf16.msra.mxu0 %v941
  %1236 = vmatprep.subr.bf16.mxu0 0
  %1237 = vmatpush2.bf16.msra.mxu0 %v940
  %1238 = vmatprep.subr.bf16.mxu0 0
  %1239 = vmatpush2.bf16.msra.mxu0 %v939
  %1240 = vmatprep.subr.bf16.mxu0 0
  %1241 = vmatpush2.bf16.msra.mxu0 %v938
  %1242 = vmatprep.mubr.bf16.mxu0 %v335
  %1243 = vmatmul.mubr.bf16.gmra.mxu0 %v333
  %v1244 = vpop.f32.mrf.mxu0
  %v1245 = vadd.f32 %v1205, %v1244
  %v1246 = vpop.f32.mrf.mxu0
  %v1247 = vpop.f32.mrf.mxu0
  %v1248 = vpop.f32.mrf.mxu0
  %1249 = vdwg.mxu0
  %1250 = vmatprep.subr.bf16.mxu0 0
  %1251 = vmatpush1.bf16.msra.mxu0 %v953
  %1252 = vmatprep.subr.bf16.mxu0 0
  %1253 = vmatpush1.bf16.msra.mxu0 %v952
  %1254 = vmatprep.subr.bf16.mxu0 0
  %1255 = vmatpush1.bf16.msra.mxu0 %v951
  %1256 = vmatprep.subr.bf16.mxu0 0
  %1257 = vmatpush1.bf16.msra.mxu0 %v950
  %1258 = vmatprep.subr.bf16.mxu0 0
  %1259 = vmatpush1.bf16.msra.mxu0 %v949
  %1260 = vmatprep.subr.bf16.mxu0 0
  %1261 = vmatpush1.bf16.msra.mxu0 %v948
  %1262 = vmatprep.subr.bf16.mxu0 0
  %1263 = vmatpush1.bf16.msra.mxu0 %v947
  %1264 = vmatprep.subr.bf16.mxu0 0
  %1265 = vmatpush1.bf16.msra.mxu0 %v946
  %1266 = vmatprep.subr.bf16.mxu0 0
  %1267 = vmatpush2.bf16.msra.mxu0 %v961
  %1268 = vmatprep.subr.bf16.mxu0 0
  %1269 = vmatpush2.bf16.msra.mxu0 %v960
  %1270 = vmatprep.subr.bf16.mxu0 0
  %1271 = vmatpush2.bf16.msra.mxu0 %v959
  %1272 = vmatprep.subr.bf16.mxu0 0
  %1273 = vmatpush2.bf16.msra.mxu0 %v958
  %1274 = vmatprep.subr.bf16.mxu0 0
  %1275 = vmatpush2.bf16.msra.mxu0 %v957
  %1276 = vmatprep.subr.bf16.mxu0 0
  %1277 = vmatpush2.bf16.msra.mxu0 %v956
  %1278 = vmatprep.subr.bf16.mxu0 0
  %1279 = vmatpush2.bf16.msra.mxu0 %v955
  %1280 = vmatprep.subr.bf16.mxu0 0
  %1281 = vmatpush2.bf16.msra.mxu0 %v954
  %1282 = vmatprep.mubr.bf16.mxu0 %v332
  %1283 = vmatmul.mubr.bf16.gmra.mxu0 %v318
  %v1284 = vpop.f32.mrf.mxu0
  %v1285 = vadd.f32 %v1245, %v1284
  %v1286 = vpop.f32.mrf.mxu0
  %v1287 = vpop.f32.mrf.mxu0
  %v1288 = vpop.f32.mrf.mxu0
  %1289 = vdwg.mxu0
  %1290 = vmatprep.subr.bf16.mxu0 0
  %1291 = vmatpush1.bf16.msra.mxu0 %v969
  %1292 = vmatprep.subr.bf16.mxu0 0
  %1293 = vmatpush1.bf16.msra.mxu0 %v968
  %1294 = vmatprep.subr.bf16.mxu0 0
  %1295 = vmatpush1.bf16.msra.mxu0 %v967
  %1296 = vmatprep.subr.bf16.mxu0 0
  %1297 = vmatpush1.bf16.msra.mxu0 %v966
  %1298 = vmatprep.subr.bf16.mxu0 0
  %1299 = vmatpush1.bf16.msra.mxu0 %v965
  %1300 = vmatprep.subr.bf16.mxu0 0
  %1301 = vmatpush1.bf16.msra.mxu0 %v964
  %1302 = vmatprep.subr.bf16.mxu0 0
  %1303 = vmatpush1.bf16.msra.mxu0 %v963
  %1304 = vmatprep.subr.bf16.mxu0 0
  %1305 = vmatpush1.bf16.msra.mxu0 %v962
  %1306 = vmatprep.subr.bf16.mxu0 0
  %1307 = vmatpush2.bf16.msra.mxu0 %v977
  %1308 = vmatprep.subr.bf16.mxu0 0
  %1309 = vmatpush2.bf16.msra.mxu0 %v976
  %1310 = vmatprep.subr.bf16.mxu0 0
  %1311 = vmatpush2.bf16.msra.mxu0 %v975
  %1312 = vmatprep.subr.bf16.mxu0 0
  %1313 = vmatpush2.bf16.msra.mxu0 %v974
  %1314 = vmatprep.subr.bf16.mxu0 0
  %1315 = vmatpush2.bf16.msra.mxu0 %v973
  %1316 = vmatprep.subr.bf16.mxu0 0
  %1317 = vmatpush2.bf16.msra.mxu0 %v972
  %1318 = vmatprep.subr.bf16.mxu0 0
  %1319 = vmatpush2.bf16.msra.mxu0 %v971
  %1320 = vmatprep.subr.bf16.mxu0 0
  %1321 = vmatpush2.bf16.msra.mxu0 %v970
  %1322 = vmatprep.mubr.bf16.mxu0 %v336
  %1323 = vmatmul.mubr.bf16.gmra.mxu0 %v334
  %v1324 = vpop.f32.mrf.mxu0
  %v1325 = vadd.f32 %v1285, %v1324
  %v1326 = vpop.f32.mrf.mxu0
  %v1327 = vpop.f32.mrf.mxu0
  %v1328 = vpop.f32.mrf.mxu0
  %1329 = vdwg.mxu0
  %1330 = vmatprep.subr.bf16.mxu0 0
  %1331 = vmatpush1.bf16.msra.mxu0 %v985
  %1332 = vmatprep.subr.bf16.mxu0 0
  %1333 = vmatpush1.bf16.msra.mxu0 %v984
  %1334 = vmatprep.subr.bf16.mxu0 0
  %1335 = vmatpush1.bf16.msra.mxu0 %v983
  %1336 = vmatprep.subr.bf16.mxu0 0
  %1337 = vmatpush1.bf16.msra.mxu0 %v982
  %1338 = vmatprep.subr.bf16.mxu0 0
  %1339 = vmatpush1.bf16.msra.mxu0 %v981
  %1340 = vmatprep.subr.bf16.mxu0 0
  %1341 = vmatpush1.bf16.msra.mxu0 %v980
  %1342 = vmatprep.subr.bf16.mxu0 0
  %1343 = vmatpush1.bf16.msra.mxu0 %v979
  %1344 = vmatprep.subr.bf16.mxu0 0
  %1345 = vmatpush1.bf16.msra.mxu0 %v978
  %1346 = vmatprep.subr.bf16.mxu0 0
  %1347 = vmatpush2.bf16.msra.mxu0 %v993
  %1348 = vmatprep.subr.bf16.mxu0 0
  %1349 = vmatpush2.bf16.msra.mxu0 %v992
  %1350 = vmatprep.subr.bf16.mxu0 0
  %1351 = vmatpush2.bf16.msra.mxu0 %v991
  %1352 = vmatprep.subr.bf16.mxu0 0
  %1353 = vmatpush2.bf16.msra.mxu0 %v990
  %1354 = vmatprep.subr.bf16.mxu0 0
  %1355 = vmatpush2.bf16.msra.mxu0 %v989
  %1356 = vmatprep.subr.bf16.mxu0 0
  %1357 = vmatpush2.bf16.msra.mxu0 %v988
  %1358 = vmatprep.subr.bf16.mxu0 0
  %1359 = vmatpush2.bf16.msra.mxu0 %v987
  %1360 = vmatprep.subr.bf16.mxu0 0
  %1361 = vmatpush2.bf16.msra.mxu0 %v986
  %1362 = vmatprep.mubr.bf16.mxu0 %v374
  %1363 = vmatmul.mubr.bf16.gmra.mxu0 %v360
  %v1364 = vpop.f32.mrf.mxu0
  %v1365 = vadd.f32 %v1325, %v1364
  %v1366 = vpop.f32.mrf.mxu0
  %v1367 = vpop.f32.mrf.mxu0
  %v1368 = vpop.f32.mrf.mxu0
  %1369 = vdwg.mxu0
  %1370 = vmatprep.subr.bf16.mxu0 0
  %1371 = vmatpush1.bf16.msra.mxu0 %v1001
  %1372 = vmatprep.subr.bf16.mxu0 0
  %1373 = vmatpush1.bf16.msra.mxu0 %v1000
  %1374 = vmatprep.subr.bf16.mxu0 0
  %1375 = vmatpush1.bf16.msra.mxu0 %v999
  %1376 = vmatprep.subr.bf16.mxu0 0
  %1377 = vmatpush1.bf16.msra.mxu0 %v998
  %1378 = vmatprep.subr.bf16.mxu0 0
  %1379 = vmatpush1.bf16.msra.mxu0 %v997
  %1380 = vmatprep.subr.bf16.mxu0 0
  %1381 = vmatpush1.bf16.msra.mxu0 %v996
  %1382 = vmatprep.subr.bf16.mxu0 0
  %1383 = vmatpush1.bf16.msra.mxu0 %v995
  %1384 = vmatprep.subr.bf16.mxu0 0
  %1385 = vmatpush1.bf16.msra.mxu0 %v994
  %1386 = vmatprep.subr.bf16.mxu0 0
  %1387 = vmatpush2.bf16.msra.mxu0 %v1009
  %1388 = vmatprep.subr.bf16.mxu0 0
  %1389 = vmatpush2.bf16.msra.mxu0 %v1008
  %1390 = vmatprep.subr.bf16.mxu0 0
  %1391 = vmatpush2.bf16.msra.mxu0 %v1007
  %1392 = vmatprep.subr.bf16.mxu0 0
  %1393 = vmatpush2.bf16.msra.mxu0 %v1006
  %1394 = vmatprep.subr.bf16.mxu0 0
  %1395 = vmatpush2.bf16.msra.mxu0 %v1005
  %1396 = vmatprep.subr.bf16.mxu0 0
  %1397 = vmatpush2.bf16.msra.mxu0 %v1004
  %1398 = vmatprep.subr.bf16.mxu0 0
  %1399 = vmatpush2.bf16.msra.mxu0 %v1003
  %1400 = vmatprep.subr.bf16.mxu0 0
  %1401 = vmatpush2.bf16.msra.mxu0 %v1002
  %1402 = vmatprep.mubr.bf16.mxu0 %v384
  %1403 = vmatmul.mubr.bf16.gmra.mxu0 %v382
  %v1404 = vpop.f32.mrf.mxu0
  %v1405 = vadd.f32 %v1365, %v1404
  %v1406 = vpop.f32.mrf.mxu0
  %v1407 = vpop.f32.mrf.mxu0
  %v1408 = vpop.f32.mrf.mxu0
  %1409 = vdwg.mxu0
  %1410 = vmatprep.subr.bf16.mxu0 0
  %1411 = vmatpush1.bf16.msra.mxu0 %v1017
  %1412 = vmatprep.subr.bf16.mxu0 0
  %1413 = vmatpush1.bf16.msra.mxu0 %v1016
  %1414 = vmatprep.subr.bf16.mxu0 0
  %1415 = vmatpush1.bf16.msra.mxu0 %v1015
  %1416 = vmatprep.subr.bf16.mxu0 0
  %1417 = vmatpush1.bf16.msra.mxu0 %v1014
  %1418 = vmatprep.subr.bf16.mxu0 0
  %1419 = vmatpush1.bf16.msra.mxu0 %v1013
  %1420 = vmatprep.subr.bf16.mxu0 0
  %1421 = vmatpush1.bf16.msra.mxu0 %v1012
  %1422 = vmatprep.subr.bf16.mxu0 0
  %1423 = vmatpush1.bf16.msra.mxu0 %v1011
  %1424 = vmatprep.subr.bf16.mxu0 0
  %1425 = vmatpush1.bf16.msra.mxu0 %v1010
  %1426 = vmatprep.subr.bf16.mxu0 0
  %1427 = vmatpush2.bf16.msra.mxu0 %v1025
  %1428 = vmatprep.subr.bf16.mxu0 0
  %1429 = vmatpush2.bf16.msra.mxu0 %v1024
  %1430 = vmatprep.subr.bf16.mxu0 0
  %1431 = vmatpush2.bf16.msra.mxu0 %v1023
  %1432 = vmatprep.subr.bf16.mxu0 0
  %1433 = vmatpush2.bf16.msra.mxu0 %v1022
  %1434 = vmatprep.subr.bf16.mxu0 0
  %1435 = vmatpush2.bf16.msra.mxu0 %v1021
  %1436 = vmatprep.subr.bf16.mxu0 0
  %1437 = vmatpush2.bf16.msra.mxu0 %v1020
  %1438 = vmatprep.subr.bf16.mxu0 0
  %1439 = vmatpush2.bf16.msra.mxu0 %v1019
  %1440 = vmatprep.subr.bf16.mxu0 0
  %1441 = vmatpush2.bf16.msra.mxu0 %v1018
  %1442 = vmatprep.mubr.bf16.mxu0 %v381
  %1443 = vmatmul.mubr.bf16.gmra.mxu0 %v367
  %v1444 = vpop.f32.mrf.mxu0
  %v1445 = vadd.f32 %v1405, %v1444
  %v1446 = vpop.f32.mrf.mxu0
  %v1447 = vpop.f32.mrf.mxu0
  %v1448 = vpop.f32.mrf.mxu0
  %1449 = vdwg.mxu0
  %1450 = vmatprep.subr.bf16.mxu0 0
  %1451 = vmatpush1.bf16.msra.mxu0 %v1033
  %1452 = vmatprep.subr.bf16.mxu0 0
  %1453 = vmatpush1.bf16.msra.mxu0 %v1032
  %1454 = vmatprep.subr.bf16.mxu0 0
  %1455 = vmatpush1.bf16.msra.mxu0 %v1031
  %1456 = vmatprep.subr.bf16.mxu0 0
  %1457 = vmatpush1.bf16.msra.mxu0 %v1030
  %1458 = vmatprep.subr.bf16.mxu0 0
  %1459 = vmatpush1.bf16.msra.mxu0 %v1029
  %1460 = vmatprep.subr.bf16.mxu0 0
  %1461 = vmatpush1.bf16.msra.mxu0 %v1028
  %1462 = vmatprep.subr.bf16.mxu0 0
  %1463 = vmatpush1.bf16.msra.mxu0 %v1027
  %1464 = vmatprep.subr.bf16.mxu0 0
  %1465 = vmatpush1.bf16.msra.mxu0 %v1026
  %1466 = vmatprep.subr.bf16.mxu0 0
  %1467 = vmatpush2.bf16.msra.mxu0 %v1041
  %1468 = vmatprep.subr.bf16.mxu0 0
  %1469 = vmatpush2.bf16.msra.mxu0 %v1040
  %1470 = vmatprep.subr.bf16.mxu0 0
  %1471 = vmatpush2.bf16.msra.mxu0 %v1039
  %1472 = vmatprep.subr.bf16.mxu0 0
  %1473 = vmatpush2.bf16.msra.mxu0 %v1038
  %1474 = vmatprep.subr.bf16.mxu0 0
  %1475 = vmatpush2.bf16.msra.mxu0 %v1037
  %1476 = vmatprep.subr.bf16.mxu0 0
  %1477 = vmatpush2.bf16.msra.mxu0 %v1036
  %1478 = vmatprep.subr.bf16.mxu0 0
  %1479 = vmatpush2.bf16.msra.mxu0 %v1035
  %1480 = vmatprep.subr.bf16.mxu0 0
  %1481 = vmatpush2.bf16.msra.mxu0 %v1034
  %1482 = vmatprep.mubr.bf16.mxu0 %v385
  %1483 = vmatmul.mubr.bf16.gmra.mxu0 %v383
  %v1484 = vpop.f32.mrf.mxu0
  %v1485 = vadd.f32 %v1445, %v1484
  %v1486 = vpop.f32.mrf.mxu0
  %v1487 = vpop.f32.mrf.mxu0
  %v1488 = vpop.f32.mrf.mxu0
  %1489 = vdwg.mxu0
  %v1490 = vpack.c.bf16 %v1485, %v1485
  %v1491 = vld [vmem:[%s3] sm:$0xff]
  %v1492 = vld [vmem:[%s3 + $0x8] sm:$0xff]
  %v1493 = vld [vmem:[%s3 + $0x10] sm:$0xff]
  %v1494 = vld [vmem:[%s3 + $0x18] sm:$0xff]
  %v1495 = vld [vmem:[%s3 + $0x20] sm:$0xff]
  %v1496 = vld [vmem:[%s3 + $0x28] sm:$0xff]
  %v1497 = vld [vmem:[%s3 + $0x30] sm:$0xff]
  %v1498 = vld [vmem:[%s3 + $0x38] sm:$0xff]
  %v1499 = vld [vmem:[%s3 + $0x40] sm:$0xff]
  %v1500 = vld [vmem:[%s3 + $0x48] sm:$0xff]
  %v1501 = vld [vmem:[%s3 + $0x50] sm:$0xff]
  %v1502 = vld [vmem:[%s3 + $0x58] sm:$0xff]
  %v1503 = vld [vmem:[%s3 + $0x60] sm:$0xff]
  %v1504 = vld [vmem:[%s3 + $0x68] sm:$0xff]
  %v1505 = vld [vmem:[%s3 + $0x70] sm:$0xff]
  %v1506 = vld [vmem:[%s3 + $0x78] sm:$0xff]
  %v1507 = vld [vmem:[%s3 + $0x80] sm:$0xff]
  %v1508 = vld [vmem:[%s3 + $0x88] sm:$0xff]
  %v1509 = vld [vmem:[%s3 + $0x90] sm:$0xff]
  %v1510 = vld [vmem:[%s3 + $0x98] sm:$0xff]
  %v1511 = vld [vmem:[%s3 + $0xa0] sm:$0xff]
  %v1512 = vld [vmem:[%s3 + $0xa8] sm:$0xff]
  %v1513 = vld [vmem:[%s3 + $0xb0] sm:$0xff]
  %v1514 = vld [vmem:[%s3 + $0xb8] sm:$0xff]
  %v1515 = vld [vmem:[%s3 + $0xc0] sm:$0xff]
  %v1516 = vld [vmem:[%s3 + $0xc8] sm:$0xff]
  %v1517 = vld [vmem:[%s3 + $0xd0] sm:$0xff]
  %v1518 = vld [vmem:[%s3 + $0xd8] sm:$0xff]
  %v1519 = vld [vmem:[%s3 + $0xe0] sm:$0xff]
  %v1520 = vld [vmem:[%s3 + $0xe8] sm:$0xff]
  %v1521 = vld [vmem:[%s3 + $0xf0] sm:$0xff]
  %v1522 = vld [vmem:[%s3 + $0xf8] sm:$0xff]
  %v1523 = vld [vmem:[%s3 + $0x100] sm:$0xff]
  %v1524 = vld [vmem:[%s3 + $0x108] sm:$0xff]
  %v1525 = vld [vmem:[%s3 + $0x110] sm:$0xff]
  %v1526 = vld [vmem:[%s3 + $0x118] sm:$0xff]
  %v1527 = vld [vmem:[%s3 + $0x120] sm:$0xff]
  %v1528 = vld [vmem:[%s3 + $0x128] sm:$0xff]
  %v1529 = vld [vmem:[%s3 + $0x130] sm:$0xff]
  %v1530 = vld [vmem:[%s3 + $0x138] sm:$0xff]
  %v1531 = vld [vmem:[%s3 + $0x140] sm:$0xff]
  %v1532 = vld [vmem:[%s3 + $0x148] sm:$0xff]
  %v1533 = vld [vmem:[%s3 + $0x150] sm:$0xff]
  %v1534 = vld [vmem:[%s3 + $0x158] sm:$0xff]
  %v1535 = vld [vmem:[%s3 + $0x160] sm:$0xff]
  %v1536 = vld [vmem:[%s3 + $0x168] sm:$0xff]
  %v1537 = vld [vmem:[%s3 + $0x170] sm:$0xff]
  %v1538 = vld [vmem:[%s3 + $0x178] sm:$0xff]
  %v1539 = vld [vmem:[%s3 + $0x180] sm:$0xff]
  %v1540 = vld [vmem:[%s3 + $0x188] sm:$0xff]
  %v1541 = vld [vmem:[%s3 + $0x190] sm:$0xff]
  %v1542 = vld [vmem:[%s3 + $0x198] sm:$0xff]
  %v1543 = vld [vmem:[%s3 + $0x1a0] sm:$0xff]
  %v1544 = vld [vmem:[%s3 + $0x1a8] sm:$0xff]
  %v1545 = vld [vmem:[%s3 + $0x1b0] sm:$0xff]
  %v1546 = vld [vmem:[%s3 + $0x1b8] sm:$0xff]
  %v1547 = vld [vmem:[%s3 + $0x1c0] sm:$0xff]
  %v1548 = vld [vmem:[%s3 + $0x1c8] sm:$0xff]
  %v1549 = vld [vmem:[%s3 + $0x1d0] sm:$0xff]
  %v1550 = vld [vmem:[%s3 + $0x1d8] sm:$0xff]
  %v1551 = vld [vmem:[%s3 + $0x1e0] sm:$0xff]
  %v1552 = vld [vmem:[%s3 + $0x1e8] sm:$0xff]
  %v1553 = vld [vmem:[%s3 + $0x1f0] sm:$0xff]
  %v1554 = vld [vmem:[%s3 + $0x1f8] sm:$0xff]
  %v1555 = vld [vmem:[%s3 + $0x200] sm:$0xff]
  %v1556 = vld [vmem:[%s3 + $0x208] sm:$0xff]
  %v1557 = vld [vmem:[%s3 + $0x210] sm:$0xff]
  %v1558 = vld [vmem:[%s3 + $0x218] sm:$0xff]
  %v1559 = vld [vmem:[%s3 + $0x220] sm:$0xff]
  %v1560 = vld [vmem:[%s3 + $0x228] sm:$0xff]
  %v1561 = vld [vmem:[%s3 + $0x230] sm:$0xff]
  %v1562 = vld [vmem:[%s3 + $0x238] sm:$0xff]
  %v1563 = vld [vmem:[%s3 + $0x240] sm:$0xff]
  %v1564 = vld [vmem:[%s3 + $0x248] sm:$0xff]
  %v1565 = vld [vmem:[%s3 + $0x250] sm:$0xff]
  %v1566 = vld [vmem:[%s3 + $0x258] sm:$0xff]
  %v1567 = vld [vmem:[%s3 + $0x260] sm:$0xff]
  %v1568 = vld [vmem:[%s3 + $0x268] sm:$0xff]
  %v1569 = vld [vmem:[%s3 + $0x270] sm:$0xff]
  %v1570 = vld [vmem:[%s3 + $0x278] sm:$0xff]
  %v1571 = vld [vmem:[%s3 + $0x280] sm:$0xff]
  %v1572 = vld [vmem:[%s3 + $0x288] sm:$0xff]
  %v1573 = vld [vmem:[%s3 + $0x290] sm:$0xff]
  %v1574 = vld [vmem:[%s3 + $0x298] sm:$0xff]
  %v1575 = vld [vmem:[%s3 + $0x2a0] sm:$0xff]
  %v1576 = vld [vmem:[%s3 + $0x2a8] sm:$0xff]
  %v1577 = vld [vmem:[%s3 + $0x2b0] sm:$0xff]
  %v1578 = vld [vmem:[%s3 + $0x2b8] sm:$0xff]
  %v1579 = vld [vmem:[%s3 + $0x2c0] sm:$0xff]
  %v1580 = vld [vmem:[%s3 + $0x2c8] sm:$0xff]
  %v1581 = vld [vmem:[%s3 + $0x2d0] sm:$0xff]
  %v1582 = vld [vmem:[%s3 + $0x2d8] sm:$0xff]
  %v1583 = vld [vmem:[%s3 + $0x2e0] sm:$0xff]
  %v1584 = vld [vmem:[%s3 + $0x2e8] sm:$0xff]
  %v1585 = vld [vmem:[%s3 + $0x2f0] sm:$0xff]
  %v1586 = vld [vmem:[%s3 + $0x2f8] sm:$0xff]
  %v1587 = vld [vmem:[%s3 + $0x300] sm:$0xff]
  %v1588 = vld [vmem:[%s3 + $0x308] sm:$0xff]
  %v1589 = vld [vmem:[%s3 + $0x310] sm:$0xff]
  %v1590 = vld [vmem:[%s3 + $0x318] sm:$0xff]
  %v1591 = vld [vmem:[%s3 + $0x320] sm:$0xff]
  %v1592 = vld [vmem:[%s3 + $0x328] sm:$0xff]
  %v1593 = vld [vmem:[%s3 + $0x330] sm:$0xff]
  %v1594 = vld [vmem:[%s3 + $0x338] sm:$0xff]
  %v1595 = vld [vmem:[%s3 + $0x340] sm:$0xff]
  %v1596 = vld [vmem:[%s3 + $0x348] sm:$0xff]
  %v1597 = vld [vmem:[%s3 + $0x350] sm:$0xff]
  %v1598 = vld [vmem:[%s3 + $0x358] sm:$0xff]
  %v1599 = vld [vmem:[%s3 + $0x360] sm:$0xff]
  %v1600 = vld [vmem:[%s3 + $0x368] sm:$0xff]
  %v1601 = vld [vmem:[%s3 + $0x370] sm:$0xff]
  %v1602 = vld [vmem:[%s3 + $0x378] sm:$0xff]
  %v1603 = vld [vmem:[%s3 + $0x380] sm:$0xff]
  %v1604 = vld [vmem:[%s3 + $0x388] sm:$0xff]
  %v1605 = vld [vmem:[%s3 + $0x390] sm:$0xff]
  %v1606 = vld [vmem:[%s3 + $0x398] sm:$0xff]
  %v1607 = vld [vmem:[%s3 + $0x3a0] sm:$0xff]
  %v1608 = vld [vmem:[%s3 + $0x3a8] sm:$0xff]
  %v1609 = vld [vmem:[%s3 + $0x3b0] sm:$0xff]
  %v1610 = vld [vmem:[%s3 + $0x3b8] sm:$0xff]
  %v1611 = vld [vmem:[%s3 + $0x3c0] sm:$0xff]
  %v1612 = vld [vmem:[%s3 + $0x3c8] sm:$0xff]
  %v1613 = vld [vmem:[%s3 + $0x3d0] sm:$0xff]
  %v1614 = vld [vmem:[%s3 + $0x3d8] sm:$0xff]
  %v1615 = vld [vmem:[%s3 + $0x3e0] sm:$0xff]
  %v1616 = vld [vmem:[%s3 + $0x3e8] sm:$0xff]
  %v1617 = vld [vmem:[%s3 + $0x3f0] sm:$0xff]
  %v1618 = vld [vmem:[%s3 + $0x3f8] sm:$0xff]
  %v1619 = vld [vmem:[%s4] sm:$0xff]
  %v1620 = vld [vmem:[%s4 + $0x8] sm:$0xff]
  %v1623 = vlaneseq
  %v1624 = vshrl.u32 %v1623, 7
  %v1625 = vsub.s32 0, %v1624
  %v1626 = vrot.slane %v1619, %v1625
  %v1627 = vlaneseq
  %v1628 = vshrl.u32 %v1627, 7
  %v1629 = vsub.s32 1, %v1628
  %v1630 = vrot.slane %v1619, %v1629
  %v1631 = vlaneseq
  %v1632 = vshrl.u32 %v1631, 7
  %v1633 = vsub.s32 2, %v1632
  %v1634 = vrot.slane %v1619, %v1633
  %v1635 = vlaneseq
  %v1636 = vshrl.u32 %v1635, 7
  %v1637 = vsub.s32 3, %v1636
  %v1638 = vrot.slane %v1619, %v1637
  %v1639 = vlaneseq
  %v1640 = vshrl.u32 %v1639, 7
  %v1641 = vsub.s32 4, %v1640
  %v1642 = vrot.slane %v1619, %v1641
  %v1643 = vlaneseq
  %v1644 = vshrl.u32 %v1643, 7
  %v1645 = vsub.s32 5, %v1644
  %v1646 = vrot.slane %v1619, %v1645
  %v1647 = vlaneseq
  %v1648 = vshrl.u32 %v1647, 7
  %v1649 = vsub.s32 6, %v1648
  %v1650 = vrot.slane %v1619, %v1649
  %v1651 = vlaneseq
  %v1652 = vshrl.u32 %v1651, 7
  %v1653 = vsub.s32 7, %v1652
  %v1654 = vrot.slane %v1619, %v1653
  %v1655 = vlaneseq
  %v1656 = vshrl.u32 %v1655, 7
  %v1657 = vsub.s32 0, %v1656
  %v1658 = vrot.slane %v1620, %v1657
  %v1659 = vlaneseq
  %v1660 = vshrl.u32 %v1659, 7
  %v1661 = vsub.s32 1, %v1660
  %v1662 = vrot.slane %v1620, %v1661
  %v1663 = vlaneseq
  %v1664 = vshrl.u32 %v1663, 7
  %v1665 = vsub.s32 2, %v1664
  %v1666 = vrot.slane %v1620, %v1665
  %v1667 = vlaneseq
  %v1668 = vshrl.u32 %v1667, 7
  %v1669 = vsub.s32 3, %v1668
  %v1670 = vrot.slane %v1620, %v1669
  %v1671 = vlaneseq
  %v1672 = vshrl.u32 %v1671, 7
  %v1673 = vsub.s32 4, %v1672
  %v1674 = vrot.slane %v1620, %v1673
  %v1675 = vlaneseq
  %v1676 = vshrl.u32 %v1675, 7
  %v1677 = vsub.s32 5, %v1676
  %v1678 = vrot.slane %v1620, %v1677
  %v1679 = vlaneseq
  %v1680 = vshrl.u32 %v1679, 7
  %v1681 = vsub.s32 6, %v1680
  %v1682 = vrot.slane %v1620, %v1681
  %v1683 = vlaneseq
  %v1684 = vshrl.u32 %v1683, 7
  %v1685 = vsub.s32 7, %v1684
  %v1686 = vrot.slane %v1620, %v1685
  %v1831 = vunpack.c.l.b16 %v1491
  %v1832 = vunpack.c.h.b16 %v1491
  %v1833 = vunpack.c.l.b16 %v1492
  %v1834 = vunpack.c.h.b16 %v1492
  %v1835 = vunpack.c.l.b16 %v1493
  %v1836 = vunpack.c.h.b16 %v1493
  %v1837 = vunpack.c.l.b16 %v1494
  %v1838 = vunpack.c.h.b16 %v1494
  %v1839 = vunpack.c.l.b16 %v1495
  %v1840 = vunpack.c.h.b16 %v1495
  %v1841 = vunpack.c.l.b16 %v1496
  %v1842 = vunpack.c.h.b16 %v1496
  %v1843 = vunpack.c.l.b16 %v1497
  %v1844 = vunpack.c.h.b16 %v1497
  %v1845 = vunpack.c.l.b16 %v1498
  %v1846 = vunpack.c.h.b16 %v1498
  %v1847 = vunpack.c.l.b16 %v1499
  %v1848 = vunpack.c.h.b16 %v1499
  %v1849 = vunpack.c.l.b16 %v1500
  %v1850 = vunpack.c.h.b16 %v1500
  %v1851 = vunpack.c.l.b16 %v1501
  %v1852 = vunpack.c.h.b16 %v1501
  %v1853 = vunpack.c.l.b16 %v1502
  %v1854 = vunpack.c.h.b16 %v1502
  %v1855 = vunpack.c.l.b16 %v1503
  %v1856 = vunpack.c.h.b16 %v1503
  %v1857 = vunpack.c.l.b16 %v1504
  %v1858 = vunpack.c.h.b16 %v1504
  %v1859 = vunpack.c.l.b16 %v1505
  %v1860 = vunpack.c.h.b16 %v1505
  %v1861 = vunpack.c.l.b16 %v1506
  %v1862 = vunpack.c.h.b16 %v1506
  %v1863 = vunpack.c.l.b16 %v1507
  %v1864 = vunpack.c.h.b16 %v1507
  %v1865 = vunpack.c.l.b16 %v1508
  %v1866 = vunpack.c.h.b16 %v1508
  %v1867 = vunpack.c.l.b16 %v1509
  %v1868 = vunpack.c.h.b16 %v1509
  %v1869 = vunpack.c.l.b16 %v1510
  %v1870 = vunpack.c.h.b16 %v1510
  %v1871 = vunpack.c.l.b16 %v1511
  %v1872 = vunpack.c.h.b16 %v1511
  %v1873 = vunpack.c.l.b16 %v1512
  %v1874 = vunpack.c.h.b16 %v1512
  %v1875 = vunpack.c.l.b16 %v1513
  %v1876 = vunpack.c.h.b16 %v1513
  %v1877 = vunpack.c.l.b16 %v1514
  %v1878 = vunpack.c.h.b16 %v1514
  %v1879 = vunpack.c.l.b16 %v1515
  %v1880 = vunpack.c.h.b16 %v1515
  %v1881 = vunpack.c.l.b16 %v1516
  %v1882 = vunpack.c.h.b16 %v1516
  %v1883 = vunpack.c.l.b16 %v1517
  %v1884 = vunpack.c.h.b16 %v1517
  %v1885 = vunpack.c.l.b16 %v1518
  %v1886 = vunpack.c.h.b16 %v1518
  %v1887 = vunpack.c.l.b16 %v1519
  %v1888 = vunpack.c.h.b16 %v1519
  %v1889 = vunpack.c.l.b16 %v1520
  %v1890 = vunpack.c.h.b16 %v1520
  %v1891 = vunpack.c.l.b16 %v1521
  %v1892 = vunpack.c.h.b16 %v1521
  %v1893 = vunpack.c.l.b16 %v1522
  %v1894 = vunpack.c.h.b16 %v1522
  %v1895 = vunpack.c.l.b16 %v1523
  %v1896 = vunpack.c.h.b16 %v1523
  %v1897 = vunpack.c.l.b16 %v1524
  %v1898 = vunpack.c.h.b16 %v1524
  %v1899 = vunpack.c.l.b16 %v1525
  %v1900 = vunpack.c.h.b16 %v1525
  %v1901 = vunpack.c.l.b16 %v1526
  %v1902 = vunpack.c.h.b16 %v1526
  %v1903 = vunpack.c.l.b16 %v1527
  %v1904 = vunpack.c.h.b16 %v1527
  %v1905 = vunpack.c.l.b16 %v1528
  %v1906 = vunpack.c.h.b16 %v1528
  %v1907 = vunpack.c.l.b16 %v1529
  %v1908 = vunpack.c.h.b16 %v1529
  %v1909 = vunpack.c.l.b16 %v1530
  %v1910 = vunpack.c.h.b16 %v1530
  %v1911 = vunpack.c.l.b16 %v1531
  %v1912 = vunpack.c.h.b16 %v1531
  %v1913 = vunpack.c.l.b16 %v1532
  %v1914 = vunpack.c.h.b16 %v1532
  %v1915 = vunpack.c.l.b16 %v1533
  %v1916 = vunpack.c.h.b16 %v1533
  %v1917 = vunpack.c.l.b16 %v1534
  %v1918 = vunpack.c.h.b16 %v1534
  %v1919 = vunpack.c.l.b16 %v1535
  %v1920 = vunpack.c.h.b16 %v1535
  %v1921 = vunpack.c.l.b16 %v1536
  %v1922 = vunpack.c.h.b16 %v1536
  %v1923 = vunpack.c.l.b16 %v1537
  %v1924 = vunpack.c.h.b16 %v1537
  %v1925 = vunpack.c.l.b16 %v1538
  %v1926 = vunpack.c.h.b16 %v1538
  %v1927 = vunpack.c.l.b16 %v1539
  %v1928 = vunpack.c.h.b16 %v1539
  %v1929 = vunpack.c.l.b16 %v1540
  %v1930 = vunpack.c.h.b16 %v1540
  %v1931 = vunpack.c.l.b16 %v1541
  %v1932 = vunpack.c.h.b16 %v1541
  %v1933 = vunpack.c.l.b16 %v1542
  %v1934 = vunpack.c.h.b16 %v1542
  %v1935 = vunpack.c.l.b16 %v1543
  %v1936 = vunpack.c.h.b16 %v1543
  %v1937 = vunpack.c.l.b16 %v1544
  %v1938 = vunpack.c.h.b16 %v1544
  %v1939 = vunpack.c.l.b16 %v1545
  %v1940 = vunpack.c.h.b16 %v1545
  %v1941 = vunpack.c.l.b16 %v1546
  %v1942 = vunpack.c.h.b16 %v1546
  %v1943 = vunpack.c.l.b16 %v1547
  %v1944 = vunpack.c.h.b16 %v1547
  %v1945 = vunpack.c.l.b16 %v1548
  %v1946 = vunpack.c.h.b16 %v1548
  %v1947 = vunpack.c.l.b16 %v1549
  %v1948 = vunpack.c.h.b16 %v1549
  %v1949 = vunpack.c.l.b16 %v1550
  %v1950 = vunpack.c.h.b16 %v1550
  %v1951 = vunpack.c.l.b16 %v1551
  %v1952 = vunpack.c.h.b16 %v1551
  %v1953 = vunpack.c.l.b16 %v1552
  %v1954 = vunpack.c.h.b16 %v1552
  %v1955 = vunpack.c.l.b16 %v1553
  %v1956 = vunpack.c.h.b16 %v1553
  %v1957 = vunpack.c.l.b16 %v1554
  %v1958 = vunpack.c.h.b16 %v1554
  %v1959 = vunpack.c.l.b16 %v1555
  %v1960 = vunpack.c.h.b16 %v1555
  %v1961 = vunpack.c.l.b16 %v1556
  %v1962 = vunpack.c.h.b16 %v1556
  %v1963 = vunpack.c.l.b16 %v1557
  %v1964 = vunpack.c.h.b16 %v1557
  %v1965 = vunpack.c.l.b16 %v1558
  %v1966 = vunpack.c.h.b16 %v1558
  %v1967 = vunpack.c.l.b16 %v1559
  %v1968 = vunpack.c.h.b16 %v1559
  %v1969 = vunpack.c.l.b16 %v1560
  %v1970 = vunpack.c.h.b16 %v1560
  %v1971 = vunpack.c.l.b16 %v1561
  %v1972 = vunpack.c.h.b16 %v1561
  %v1973 = vunpack.c.l.b16 %v1562
  %v1974 = vunpack.c.h.b16 %v1562
  %v1975 = vunpack.c.l.b16 %v1563
  %v1976 = vunpack.c.h.b16 %v1563
  %v1977 = vunpack.c.l.b16 %v1564
  %v1978 = vunpack.c.h.b16 %v1564
  %v1979 = vunpack.c.l.b16 %v1565
  %v1980 = vunpack.c.h.b16 %v1565
  %v1981 = vunpack.c.l.b16 %v1566
  %v1982 = vunpack.c.h.b16 %v1566
  %v1983 = vunpack.c.l.b16 %v1567
  %v1984 = vunpack.c.h.b16 %v1567
  %v1985 = vunpack.c.l.b16 %v1568
  %v1986 = vunpack.c.h.b16 %v1568
  %v1987 = vunpack.c.l.b16 %v1569
  %v1988 = vunpack.c.h.b16 %v1569
  %v1989 = vunpack.c.l.b16 %v1570
  %v1990 = vunpack.c.h.b16 %v1570
  %v1991 = vunpack.c.l.b16 %v1571
  %v1992 = vunpack.c.h.b16 %v1571
  %v1993 = vunpack.c.l.b16 %v1572
  %v1994 = vunpack.c.h.b16 %v1572
  %v1995 = vunpack.c.l.b16 %v1573
  %v1996 = vunpack.c.h.b16 %v1573
  %v1997 = vunpack.c.l.b16 %v1574
  %v1998 = vunpack.c.h.b16 %v1574
  %v1999 = vunpack.c.l.b16 %v1575
  %v2000 = vunpack.c.h.b16 %v1575
  %v2001 = vunpack.c.l.b16 %v1576
  %v2002 = vunpack.c.h.b16 %v1576
  %v2003 = vunpack.c.l.b16 %v1577
  %v2004 = vunpack.c.h.b16 %v1577
  %v2005 = vunpack.c.l.b16 %v1578
  %v2006 = vunpack.c.h.b16 %v1578
  %v2007 = vunpack.c.l.b16 %v1579
  %v2008 = vunpack.c.h.b16 %v1579
  %v2009 = vunpack.c.l.b16 %v1580
  %v2010 = vunpack.c.h.b16 %v1580
  %v2011 = vunpack.c.l.b16 %v1581
  %v2012 = vunpack.c.h.b16 %v1581
  %v2013 = vunpack.c.l.b16 %v1582
  %v2014 = vunpack.c.h.b16 %v1582
  %v2015 = vunpack.c.l.b16 %v1583
  %v2016 = vunpack.c.h.b16 %v1583
  %v2017 = vunpack.c.l.b16 %v1584
  %v2018 = vunpack.c.h.b16 %v1584
  %v2019 = vunpack.c.l.b16 %v1585
  %v2020 = vunpack.c.h.b16 %v1585
  %v2021 = vunpack.c.l.b16 %v1586
  %v2022 = vunpack.c.h.b16 %v1586
  %v2023 = vunpack.c.l.b16 %v1587
  %v2024 = vunpack.c.h.b16 %v1587
  %v2025 = vunpack.c.l.b16 %v1588
  %v2026 = vunpack.c.h.b16 %v1588
  %v2027 = vunpack.c.l.b16 %v1589
  %v2028 = vunpack.c.h.b16 %v1589
  %v2029 = vunpack.c.l.b16 %v1590
  %v2030 = vunpack.c.h.b16 %v1590
  %v2031 = vunpack.c.l.b16 %v1591
  %v2032 = vunpack.c.h.b16 %v1591
  %v2033 = vunpack.c.l.b16 %v1592
  %v2034 = vunpack.c.h.b16 %v1592
  %v2035 = vunpack.c.l.b16 %v1593
  %v2036 = vunpack.c.h.b16 %v1593
  %v2037 = vunpack.c.l.b16 %v1594
  %v2038 = vunpack.c.h.b16 %v1594
  %v2039 = vunpack.c.l.b16 %v1595
  %v2040 = vunpack.c.h.b16 %v1595
  %v2041 = vunpack.c.l.b16 %v1596
  %v2042 = vunpack.c.h.b16 %v1596
  %v2043 = vunpack.c.l.b16 %v1597
  %v2044 = vunpack.c.h.b16 %v1597
  %v2045 = vunpack.c.l.b16 %v1598
  %v2046 = vunpack.c.h.b16 %v1598
  %v2047 = vunpack.c.l.b16 %v1599
  %v2048 = vunpack.c.h.b16 %v1599
  %v2049 = vunpack.c.l.b16 %v1600
  %v2050 = vunpack.c.h.b16 %v1600
  %v2051 = vunpack.c.l.b16 %v1601
  %v2052 = vunpack.c.h.b16 %v1601
  %v2053 = vunpack.c.l.b16 %v1602
  %v2054 = vunpack.c.h.b16 %v1602
  %v2055 = vunpack.c.l.b16 %v1603
  %v2056 = vunpack.c.h.b16 %v1603
  %v2057 = vunpack.c.l.b16 %v1604
  %v2058 = vunpack.c.h.b16 %v1604
  %v2059 = vunpack.c.l.b16 %v1605
  %v2060 = vunpack.c.h.b16 %v1605
  %v2061 = vunpack.c.l.b16 %v1606
  %v2062 = vunpack.c.h.b16 %v1606
  %v2063 = vunpack.c.l.b16 %v1607
  %v2064 = vunpack.c.h.b16 %v1607
  %v2065 = vunpack.c.l.b16 %v1608
  %v2066 = vunpack.c.h.b16 %v1608
  %v2067 = vunpack.c.l.b16 %v1609
  %v2068 = vunpack.c.h.b16 %v1609
  %v2069 = vunpack.c.l.b16 %v1610
  %v2070 = vunpack.c.h.b16 %v1610
  %v2071 = vunpack.c.l.b16 %v1611
  %v2072 = vunpack.c.h.b16 %v1611
  %v2073 = vunpack.c.l.b16 %v1612
  %v2074 = vunpack.c.h.b16 %v1612
  %v2075 = vunpack.c.l.b16 %v1613
  %v2076 = vunpack.c.h.b16 %v1613
  %v2077 = vunpack.c.l.b16 %v1614
  %v2078 = vunpack.c.h.b16 %v1614
  %v2079 = vunpack.c.l.b16 %v1615
  %v2080 = vunpack.c.h.b16 %v1615
  %v2081 = vunpack.c.l.b16 %v1616
  %v2082 = vunpack.c.h.b16 %v1616
  %v2083 = vunpack.c.l.b16 %v1617
  %v2084 = vunpack.c.h.b16 %v1617
  %v2085 = vunpack.c.l.b16 %v1618
  %v2086 = vunpack.c.h.b16 %v1618
  %v2087 = vpack.c.b16 %v1847, %v1831
  %v2088 = vpack.c.b16 %v1848, %v1832
  %v2089 = vpack.c.b16 %v1849, %v1833
  %v2090 = vpack.c.b16 %v1850, %v1834
  %v2091 = vpack.c.b16 %v1851, %v1835
  %v2092 = vpack.c.b16 %v1852, %v1836
  %v2093 = vpack.c.b16 %v1853, %v1837
  %v2094 = vpack.c.b16 %v1854, %v1838
  %v2095 = vpack.c.b16 %v1855, %v1839
  %v2096 = vpack.c.b16 %v1856, %v1840
  %v2097 = vpack.c.b16 %v1857, %v1841
  %v2098 = vpack.c.b16 %v1858, %v1842
  %v2099 = vpack.c.b16 %v1859, %v1843
  %v2100 = vpack.c.b16 %v1860, %v1844
  %v2101 = vpack.c.b16 %v1861, %v1845
  %v2102 = vpack.c.b16 %v1862, %v1846
  %v2103 = vpack.c.b16 %v1879, %v1863
  %v2104 = vpack.c.b16 %v1880, %v1864
  %v2105 = vpack.c.b16 %v1881, %v1865
  %v2106 = vpack.c.b16 %v1882, %v1866
  %v2107 = vpack.c.b16 %v1883, %v1867
  %v2108 = vpack.c.b16 %v1884, %v1868
  %v2109 = vpack.c.b16 %v1885, %v1869
  %v2110 = vpack.c.b16 %v1886, %v1870
  %v2111 = vpack.c.b16 %v1887, %v1871
  %v2112 = vpack.c.b16 %v1888, %v1872
  %v2113 = vpack.c.b16 %v1889, %v1873
  %v2114 = vpack.c.b16 %v1890, %v1874
  %v2115 = vpack.c.b16 %v1891, %v1875
  %v2116 = vpack.c.b16 %v1892, %v1876
  %v2117 = vpack.c.b16 %v1893, %v1877
  %v2118 = vpack.c.b16 %v1894, %v1878
  %v2119 = vpack.c.b16 %v1911, %v1895
  %v2120 = vpack.c.b16 %v1912, %v1896
  %v2121 = vpack.c.b16 %v1913, %v1897
  %v2122 = vpack.c.b16 %v1914, %v1898
  %v2123 = vpack.c.b16 %v1915, %v1899
  %v2124 = vpack.c.b16 %v1916, %v1900
  %v2125 = vpack.c.b16 %v1917, %v1901
  %v2126 = vpack.c.b16 %v1918, %v1902
  %v2127 = vpack.c.b16 %v1919, %v1903
  %v2128 = vpack.c.b16 %v1920, %v1904
  %v2129 = vpack.c.b16 %v1921, %v1905
  %v2130 = vpack.c.b16 %v1922, %v1906
  %v2131 = vpack.c.b16 %v1923, %v1907
  %v2132 = vpack.c.b16 %v1924, %v1908
  %v2133 = vpack.c.b16 %v1925, %v1909
  %v2134 = vpack.c.b16 %v1926, %v1910
  %v2135 = vpack.c.b16 %v1943, %v1927
  %v2136 = vpack.c.b16 %v1944, %v1928
  %v2137 = vpack.c.b16 %v1945, %v1929
  %v2138 = vpack.c.b16 %v1946, %v1930
  %v2139 = vpack.c.b16 %v1947, %v1931
  %v2140 = vpack.c.b16 %v1948, %v1932
  %v2141 = vpack.c.b16 %v1949, %v1933
  %v2142 = vpack.c.b16 %v1950, %v1934
  %v2143 = vpack.c.b16 %v1951, %v1935
  %v2144 = vpack.c.b16 %v1952, %v1936
  %v2145 = vpack.c.b16 %v1953, %v1937
  %v2146 = vpack.c.b16 %v1954, %v1938
  %v2147 = vpack.c.b16 %v1955, %v1939
  %v2148 = vpack.c.b16 %v1956, %v1940
  %v2149 = vpack.c.b16 %v1957, %v1941
  %v2150 = vpack.c.b16 %v1958, %v1942
  %v2151 = vpack.c.b16 %v1975, %v1959
  %v2152 = vpack.c.b16 %v1976, %v1960
  %v2153 = vpack.c.b16 %v1977, %v1961
  %v2154 = vpack.c.b16 %v1978, %v1962
  %v2155 = vpack.c.b16 %v1979, %v1963
  %v2156 = vpack.c.b16 %v1980, %v1964
  %v2157 = vpack.c.b16 %v1981, %v1965
  %v2158 = vpack.c.b16 %v1982, %v1966
  %v2159 = vpack.c.b16 %v1983, %v1967
  %v2160 = vpack.c.b16 %v1984, %v1968
  %v2161 = vpack.c.b16 %v1985, %v1969
  %v2162 = vpack.c.b16 %v1986, %v1970
  %v2163 = vpack.c.b16 %v1987, %v1971
  %v2164 = vpack.c.b16 %v1988, %v1972
  %v2165 = vpack.c.b16 %v1989, %v1973
  %v2166 = vpack.c.b16 %v1990, %v1974
  %v2167 = vpack.c.b16 %v2007, %v1991
  %v2168 = vpack.c.b16 %v2008, %v1992
  %v2169 = vpack.c.b16 %v2009, %v1993
  %v2170 = vpack.c.b16 %v2010, %v1994
  %v2171 = vpack.c.b16 %v2011, %v1995
  %v2172 = vpack.c.b16 %v2012, %v1996
  %v2173 = vpack.c.b16 %v2013, %v1997
  %v2174 = vpack.c.b16 %v2014, %v1998
  %v2175 = vpack.c.b16 %v2015, %v1999
  %v2176 = vpack.c.b16 %v2016, %v2000
  %v2177 = vpack.c.b16 %v2017, %v2001
  %v2178 = vpack.c.b16 %v2018, %v2002
  %v2179 = vpack.c.b16 %v2019, %v2003
  %v2180 = vpack.c.b16 %v2020, %v2004
  %v2181 = vpack.c.b16 %v2021, %v2005
  %v2182 = vpack.c.b16 %v2022, %v2006
  %v2183 = vpack.c.b16 %v2039, %v2023
  %v2184 = vpack.c.b16 %v2040, %v2024
  %v2185 = vpack.c.b16 %v2041, %v2025
  %v2186 = vpack.c.b16 %v2042, %v2026
  %v2187 = vpack.c.b16 %v2043, %v2027
  %v2188 = vpack.c.b16 %v2044, %v2028
  %v2189 = vpack.c.b16 %v2045, %v2029
  %v2190 = vpack.c.b16 %v2046, %v2030
  %v2191 = vpack.c.b16 %v2047, %v2031
  %v2192 = vpack.c.b16 %v2048, %v2032
  %v2193 = vpack.c.b16 %v2049, %v2033
  %v2194 = vpack.c.b16 %v2050, %v2034
  %v2195 = vpack.c.b16 %v2051, %v2035
  %v2196 = vpack.c.b16 %v2052, %v2036
  %v2197 = vpack.c.b16 %v2053, %v2037
  %v2198 = vpack.c.b16 %v2054, %v2038
  %v2199 = vpack.c.b16 %v2071, %v2055
  %v2200 = vpack.c.b16 %v2072, %v2056
  %v2201 = vpack.c.b16 %v2073, %v2057
  %v2202 = vpack.c.b16 %v2074, %v2058
  %v2203 = vpack.c.b16 %v2075, %v2059
  %v2204 = vpack.c.b16 %v2076, %v2060
  %v2205 = vpack.c.b16 %v2077, %v2061
  %v2206 = vpack.c.b16 %v2078, %v2062
  %v2207 = vpack.c.b16 %v2079, %v2063
  %v2208 = vpack.c.b16 %v2080, %v2064
  %v2209 = vpack.c.b16 %v2081, %v2065
  %v2210 = vpack.c.b16 %v2082, %v2066
  %v2211 = vpack.c.b16 %v2083, %v2067
  %v2212 = vpack.c.b16 %v2084, %v2068
  %v2213 = vpack.c.b16 %v2085, %v2069
  %v2214 = vpack.c.b16 %v2086, %v2070
  %2343 = vmatprep.subr.bf16.mxu0 %v2200
  %2344 = vmatpush1.bf16.msra.mxu0 %v2199
  %2345 = vmatprep.subr.bf16.mxu0 %v2184
  %2346 = vmatpush1.bf16.msra.mxu0 %v2183
  %2347 = vmatprep.subr.bf16.mxu0 %v2168
  %2348 = vmatpush1.bf16.msra.mxu0 %v2167
  %2349 = vmatprep.subr.bf16.mxu0 %v2152
  %2350 = vmatpush1.bf16.msra.mxu0 %v2151
  %2351 = vmatprep.subr.bf16.mxu0 %v2136
  %2352 = vmatpush1.bf16.msra.mxu0 %v2135
  %2353 = vmatprep.subr.bf16.mxu0 %v2120
  %2354 = vmatpush1.bf16.msra.mxu0 %v2119
  %2355 = vmatprep.subr.bf16.mxu0 %v2104
  %2356 = vmatpush1.bf16.msra.mxu0 %v2103
  %2357 = vmatprep.subr.bf16.mxu0 %v2088
  %2358 = vmatpush1.bf16.msra.mxu0 %v2087
  %2359 = vmatprep.subr.bf16.mxu0 0
  %2360 = vmatpush2.bf16.msra.mxu0 0
  %2361 = vmatprep.subr.bf16.mxu0 0
  %2362 = vmatpush2.bf16.msra.mxu0 0
  %2363 = vmatprep.subr.bf16.mxu0 0
  %2364 = vmatpush2.bf16.msra.mxu0 0
  %2365 = vmatprep.subr.bf16.mxu0 0
  %2366 = vmatpush2.bf16.msra.mxu0 0
  %2367 = vmatprep.subr.bf16.mxu0 0
  %2368 = vmatpush2.bf16.msra.mxu0 0
  %2369 = vmatprep.subr.bf16.mxu0 0
  %2370 = vmatpush2.bf16.msra.mxu0 0
  %2371 = vmatprep.subr.bf16.mxu0 0
  %2372 = vmatpush2.bf16.msra.mxu0 0
  %2373 = vmatprep.subr.bf16.mxu0 0
  %2374 = vmatpush2.bf16.msra.mxu0 0
  %2375 = vmatprep.mubr.bf16.mxu0 0
  %2376 = vmatmul.mubr.bf16.gmra.mxu0 %v1490
  %v2377 = vpop.f32.mrf.mxu0
  %v2378 = vadd.f32 %v1626, %v2377
  %v2379 = vpop.f32.mrf.mxu0
  %v2380 = vadd.f32 %v1630, %v2379
  %v2381 = vpop.f32.mrf.mxu0
  %v2382 = vpop.f32.mrf.mxu0
  %2383 = vdwg.mxu0
  %2384 = vmatprep.subr.bf16.mxu0 %v2202
  %2385 = vmatpush1.bf16.msra.mxu0 %v2201
  %2386 = vmatprep.subr.bf16.mxu0 %v2186
  %2387 = vmatpush1.bf16.msra.mxu0 %v2185
  %2388 = vmatprep.subr.bf16.mxu0 %v2170
  %2389 = vmatpush1.bf16.msra.mxu0 %v2169
  %2390 = vmatprep.subr.bf16.mxu0 %v2154
  %2391 = vmatpush1.bf16.msra.mxu0 %v2153
  %2392 = vmatprep.subr.bf16.mxu0 %v2138
  %2393 = vmatpush1.bf16.msra.mxu0 %v2137
  %2394 = vmatprep.subr.bf16.mxu0 %v2122
  %2395 = vmatpush1.bf16.msra.mxu0 %v2121
  %2396 = vmatprep.subr.bf16.mxu0 %v2106
  %2397 = vmatpush1.bf16.msra.mxu0 %v2105
  %2398 = vmatprep.subr.bf16.mxu0 %v2090
  %2399 = vmatpush1.bf16.msra.mxu0 %v2089
  %2400 = vmatprep.subr.bf16.mxu0 0
  %2401 = vmatpush2.bf16.msra.mxu0 0
  %2402 = vmatprep.subr.bf16.mxu0 0
  %2403 = vmatpush2.bf16.msra.mxu0 0
  %2404 = vmatprep.subr.bf16.mxu0 0
  %2405 = vmatpush2.bf16.msra.mxu0 0
  %2406 = vmatprep.subr.bf16.mxu0 0
  %2407 = vmatpush2.bf16.msra.mxu0 0
  %2408 = vmatprep.subr.bf16.mxu0 0
  %2409 = vmatpush2.bf16.msra.mxu0 0
  %2410 = vmatprep.subr.bf16.mxu0 0
  %2411 = vmatpush2.bf16.msra.mxu0 0
  %2412 = vmatprep.subr.bf16.mxu0 0
  %2413 = vmatpush2.bf16.msra.mxu0 0
  %2414 = vmatprep.subr.bf16.mxu0 0
  %2415 = vmatpush2.bf16.msra.mxu0 0
  %2416 = vmatprep.mubr.bf16.mxu0 0
  %2417 = vmatmul.mubr.bf16.gmra.mxu0 %v1490
  %v2418 = vpop.f32.mrf.mxu0
  %v2419 = vadd.f32 %v1634, %v2418
  %v2420 = vpop.f32.mrf.mxu0
  %v2421 = vadd.f32 %v1638, %v2420
  %v2422 = vpop.f32.mrf.mxu0
  %v2423 = vpop.f32.mrf.mxu0
  %2424 = vdwg.mxu0
  %2425 = vmatprep.subr.bf16.mxu0 %v2204
  %2426 = vmatpush1.bf16.msra.mxu0 %v2203
  %2427 = vmatprep.subr.bf16.mxu0 %v2188
  %2428 = vmatpush1.bf16.msra.mxu0 %v2187
  %2429 = vmatprep.subr.bf16.mxu0 %v2172
  %2430 = vmatpush1.bf16.msra.mxu0 %v2171
  %2431 = vmatprep.subr.bf16.mxu0 %v2156
  %2432 = vmatpush1.bf16.msra.mxu0 %v2155
  %2433 = vmatprep.subr.bf16.mxu0 %v2140
  %2434 = vmatpush1.bf16.msra.mxu0 %v2139
  %2435 = vmatprep.subr.bf16.mxu0 %v2124
  %2436 = vmatpush1.bf16.msra.mxu0 %v2123
  %2437 = vmatprep.subr.bf16.mxu0 %v2108
  %2438 = vmatpush1.bf16.msra.mxu0 %v2107
  %2439 = vmatprep.subr.bf16.mxu0 %v2092
  %2440 = vmatpush1.bf16.msra.mxu0 %v2091
  %2441 = vmatprep.subr.bf16.mxu0 0
  %2442 = vmatpush2.bf16.msra.mxu0 0
  %2443 = vmatprep.subr.bf16.mxu0 0
  %2444 = vmatpush2.bf16.msra.mxu0 0
  %2445 = vmatprep.subr.bf16.mxu0 0
  %2446 = vmatpush2.bf16.msra.mxu0 0
  %2447 = vmatprep.subr.bf16.mxu0 0
  %2448 = vmatpush2.bf16.msra.mxu0 0
  %2449 = vmatprep.subr.bf16.mxu0 0
  %2450 = vmatpush2.bf16.msra.mxu0 0
  %2451 = vmatprep.subr.bf16.mxu0 0
  %2452 = vmatpush2.bf16.msra.mxu0 0
  %2453 = vmatprep.subr.bf16.mxu0 0
  %2454 = vmatpush2.bf16.msra.mxu0 0
  %2455 = vmatprep.subr.bf16.mxu0 0
  %2456 = vmatpush2.bf16.msra.mxu0 0
  %2457 = vmatprep.mubr.bf16.mxu0 0
  %2458 = vmatmul.mubr.bf16.gmra.mxu0 %v1490
  %v2459 = vpop.f32.mrf.mxu0
  %v2460 = vadd.f32 %v1642, %v2459
  %v2461 = vpop.f32.mrf.mxu0
  %v2462 = vadd.f32 %v1646, %v2461
  %v2463 = vpop.f32.mrf.mxu0
  %v2464 = vpop.f32.mrf.mxu0
  %2465 = vdwg.mxu0
  %2466 = vmatprep.subr.bf16.mxu0 %v2206
  %2467 = vmatpush1.bf16.msra.mxu0 %v2205
  %2468 = vmatprep.subr.bf16.mxu0 %v2190
  %2469 = vmatpush1.bf16.msra.mxu0 %v2189
  %2470 = vmatprep.subr.bf16.mxu0 %v2174
  %2471 = vmatpush1.bf16.msra.mxu0 %v2173
  %2472 = vmatprep.subr.bf16.mxu0 %v2158
  %2473 = vmatpush1.bf16.msra.mxu0 %v2157
  %2474 = vmatprep.subr.bf16.mxu0 %v2142
  %2475 = vmatpush1.bf16.msra.mxu0 %v2141
  %2476 = vmatprep.subr.bf16.mxu0 %v2126
  %2477 = vmatpush1.bf16.msra.mxu0 %v2125
  %2478 = vmatprep.subr.bf16.mxu0 %v2110
  %2479 = vmatpush1.bf16.msra.mxu0 %v2109
  %2480 = vmatprep.subr.bf16.mxu0 %v2094
  %2481 = vmatpush1.bf16.msra.mxu0 %v2093
  %2482 = vmatprep.subr.bf16.mxu0 0
  %2483 = vmatpush2.bf16.msra.mxu0 0
  %2484 = vmatprep.subr.bf16.mxu0 0
  %2485 = vmatpush2.bf16.msra.mxu0 0
  %2486 = vmatprep.subr.bf16.mxu0 0
  %2487 = vmatpush2.bf16.msra.mxu0 0
  %2488 = vmatprep.subr.bf16.mxu0 0
  %2489 = vmatpush2.bf16.msra.mxu0 0
  %2490 = vmatprep.subr.bf16.mxu0 0
  %2491 = vmatpush2.bf16.msra.mxu0 0
  %2492 = vmatprep.subr.bf16.mxu0 0
  %2493 = vmatpush2.bf16.msra.mxu0 0
  %2494 = vmatprep.subr.bf16.mxu0 0
  %2495 = vmatpush2.bf16.msra.mxu0 0
  %2496 = vmatprep.subr.bf16.mxu0 0
  %2497 = vmatpush2.bf16.msra.mxu0 0
  %2498 = vmatprep.mubr.bf16.mxu0 0
  %2499 = vmatmul.mubr.bf16.gmra.mxu0 %v1490
  %v2500 = vpop.f32.mrf.mxu0
  %v2501 = vadd.f32 %v1650, %v2500
  %v2502 = vpop.f32.mrf.mxu0
  %v2503 = vadd.f32 %v1654, %v2502
  %v2504 = vpop.f32.mrf.mxu0
  %v2505 = vpop.f32.mrf.mxu0
  %2506 = vdwg.mxu0
  %2507 = vmatprep.subr.bf16.mxu0 %v2208
  %2508 = vmatpush1.bf16.msra.mxu0 %v2207
  %2509 = vmatprep.subr.bf16.mxu0 %v2192
  %2510 = vmatpush1.bf16.msra.mxu0 %v2191
  %2511 = vmatprep.subr.bf16.mxu0 %v2176
  %2512 = vmatpush1.bf16.msra.mxu0 %v2175
  %2513 = vmatprep.subr.bf16.mxu0 %v2160
  %2514 = vmatpush1.bf16.msra.mxu0 %v2159
  %2515 = vmatprep.subr.bf16.mxu0 %v2144
  %2516 = vmatpush1.bf16.msra.mxu0 %v2143
  %2517 = vmatprep.subr.bf16.mxu0 %v2128
  %2518 = vmatpush1.bf16.msra.mxu0 %v2127
  %2519 = vmatprep.subr.bf16.mxu0 %v2112
  %2520 = vmatpush1.bf16.msra.mxu0 %v2111
  %2521 = vmatprep.subr.bf16.mxu0 %v2096
  %2522 = vmatpush1.bf16.msra.mxu0 %v2095
  %2523 = vmatprep.subr.bf16.mxu0 0
  %2524 = vmatpush2.bf16.msra.mxu0 0
  %2525 = vmatprep.subr.bf16.mxu0 0
  %2526 = vmatpush2.bf16.msra.mxu0 0
  %2527 = vmatprep.subr.bf16.mxu0 0
  %2528 = vmatpush2.bf16.msra.mxu0 0
  %2529 = vmatprep.subr.bf16.mxu0 0
  %2530 = vmatpush2.bf16.msra.mxu0 0
  %2531 = vmatprep.subr.bf16.mxu0 0
  %2532 = vmatpush2.bf16.msra.mxu0 0
  %2533 = vmatprep.subr.bf16.mxu0 0
  %2534 = vmatpush2.bf16.msra.mxu0 0
  %2535 = vmatprep.subr.bf16.mxu0 0
  %2536 = vmatpush2.bf16.msra.mxu0 0
  %2537 = vmatprep.subr.bf16.mxu0 0
  %2538 = vmatpush2.bf16.msra.mxu0 0
  %2539 = vmatprep.mubr.bf16.mxu0 0
  %2540 = vmatmul.mubr.bf16.gmra.mxu0 %v1490
  %v2541 = vpop.f32.mrf.mxu0
  %v2542 = vadd.f32 %v1658, %v2541
  %v2543 = vpop.f32.mrf.mxu0
  %v2544 = vadd.f32 %v1662, %v2543
  %v2545 = vpop.f32.mrf.mxu0
  %v2546 = vpop.f32.mrf.mxu0
  %2547 = vdwg.mxu0
  %2548 = vmatprep.subr.bf16.mxu0 %v2210
  %2549 = vmatpush1.bf16.msra.mxu0 %v2209
  %2550 = vmatprep.subr.bf16.mxu0 %v2194
  %2551 = vmatpush1.bf16.msra.mxu0 %v2193
  %2552 = vmatprep.subr.bf16.mxu0 %v2178
  %2553 = vmatpush1.bf16.msra.mxu0 %v2177
  %2554 = vmatprep.subr.bf16.mxu0 %v2162
  %2555 = vmatpush1.bf16.msra.mxu0 %v2161
  %2556 = vmatprep.subr.bf16.mxu0 %v2146
  %2557 = vmatpush1.bf16.msra.mxu0 %v2145
  %2558 = vmatprep.subr.bf16.mxu0 %v2130
  %2559 = vmatpush1.bf16.msra.mxu0 %v2129
  %2560 = vmatprep.subr.bf16.mxu0 %v2114
  %2561 = vmatpush1.bf16.msra.mxu0 %v2113
  %2562 = vmatprep.subr.bf16.mxu0 %v2098
  %2563 = vmatpush1.bf16.msra.mxu0 %v2097
  %2564 = vmatprep.subr.bf16.mxu0 0
  %2565 = vmatpush2.bf16.msra.mxu0 0
  %2566 = vmatprep.subr.bf16.mxu0 0
  %2567 = vmatpush2.bf16.msra.mxu0 0
  %2568 = vmatprep.subr.bf16.mxu0 0
  %2569 = vmatpush2.bf16.msra.mxu0 0
  %2570 = vmatprep.subr.bf16.mxu0 0
  %2571 = vmatpush2.bf16.msra.mxu0 0
  %2572 = vmatprep.subr.bf16.mxu0 0
  %2573 = vmatpush2.bf16.msra.mxu0 0
  %2574 = vmatprep.subr.bf16.mxu0 0
  %2575 = vmatpush2.bf16.msra.mxu0 0
  %2576 = vmatprep.subr.bf16.mxu0 0
  %2577 = vmatpush2.bf16.msra.mxu0 0
  %2578 = vmatprep.subr.bf16.mxu0 0
  %2579 = vmatpush2.bf16.msra.mxu0 0
  %2580 = vmatprep.mubr.bf16.mxu0 0
  %2581 = vmatmul.mubr.bf16.gmra.mxu0 %v1490
  %v2582 = vpop.f32.mrf.mxu0
  %v2583 = vadd.f32 %v1666, %v2582
  %v2584 = vpop.f32.mrf.mxu0
  %v2585 = vadd.f32 %v1670, %v2584
  %v2586 = vpop.f32.mrf.mxu0
  %v2587 = vpop.f32.mrf.mxu0
  %2588 = vdwg.mxu0
  %2589 = vmatprep.subr.bf16.mxu0 %v2212
  %2590 = vmatpush1.bf16.msra.mxu0 %v2211
  %2591 = vmatprep.subr.bf16.mxu0 %v2196
  %2592 = vmatpush1.bf16.msra.mxu0 %v2195
  %2593 = vmatprep.subr.bf16.mxu0 %v2180
  %2594 = vmatpush1.bf16.msra.mxu0 %v2179
  %2595 = vmatprep.subr.bf16.mxu0 %v2164
  %2596 = vmatpush1.bf16.msra.mxu0 %v2163
  %2597 = vmatprep.subr.bf16.mxu0 %v2148
  %2598 = vmatpush1.bf16.msra.mxu0 %v2147
  %2599 = vmatprep.subr.bf16.mxu0 %v2132
  %2600 = vmatpush1.bf16.msra.mxu0 %v2131
  %2601 = vmatprep.subr.bf16.mxu0 %v2116
  %2602 = vmatpush1.bf16.msra.mxu0 %v2115
  %2603 = vmatprep.subr.bf16.mxu0 %v2100
  %2604 = vmatpush1.bf16.msra.mxu0 %v2099
  %2605 = vmatprep.subr.bf16.mxu0 0
  %2606 = vmatpush2.bf16.msra.mxu0 0
  %2607 = vmatprep.subr.bf16.mxu0 0
  %2608 = vmatpush2.bf16.msra.mxu0 0
  %2609 = vmatprep.subr.bf16.mxu0 0
  %2610 = vmatpush2.bf16.msra.mxu0 0
  %2611 = vmatprep.subr.bf16.mxu0 0
  %2612 = vmatpush2.bf16.msra.mxu0 0
  %2613 = vmatprep.subr.bf16.mxu0 0
  %2614 = vmatpush2.bf16.msra.mxu0 0
  %2615 = vmatprep.subr.bf16.mxu0 0
  %2616 = vmatpush2.bf16.msra.mxu0 0
  %2617 = vmatprep.subr.bf16.mxu0 0
  %2618 = vmatpush2.bf16.msra.mxu0 0
  %2619 = vmatprep.subr.bf16.mxu0 0
  %2620 = vmatpush2.bf16.msra.mxu0 0
  %2621 = vmatprep.mubr.bf16.mxu0 0
  %2622 = vmatmul.mubr.bf16.gmra.mxu0 %v1490
  %v2623 = vpop.f32.mrf.mxu0
  %v2624 = vadd.f32 %v1674, %v2623
  %v2625 = vpop.f32.mrf.mxu0
  %v2626 = vadd.f32 %v1678, %v2625
  %v2627 = vpop.f32.mrf.mxu0
  %v2628 = vpop.f32.mrf.mxu0
  %2629 = vdwg.mxu0
  %2630 = vmatprep.subr.bf16.mxu0 %v2214
  %2631 = vmatpush1.bf16.msra.mxu0 %v2213
  %2632 = vmatprep.subr.bf16.mxu0 %v2198
  %2633 = vmatpush1.bf16.msra.mxu0 %v2197
  %2634 = vmatprep.subr.bf16.mxu0 %v2182
  %2635 = vmatpush1.bf16.msra.mxu0 %v2181
  %2636 = vmatprep.subr.bf16.mxu0 %v2166
  %2637 = vmatpush1.bf16.msra.mxu0 %v2165
  %2638 = vmatprep.subr.bf16.mxu0 %v2150
  %2639 = vmatpush1.bf16.msra.mxu0 %v2149
  %2640 = vmatprep.subr.bf16.mxu0 %v2134
  %2641 = vmatpush1.bf16.msra.mxu0 %v2133
  %2642 = vmatprep.subr.bf16.mxu0 %v2118
  %2643 = vmatpush1.bf16.msra.mxu0 %v2117
  %2644 = vmatprep.subr.bf16.mxu0 %v2102
  %2645 = vmatpush1.bf16.msra.mxu0 %v2101
  %2646 = vmatprep.subr.bf16.mxu0 0
  %2647 = vmatpush2.bf16.msra.mxu0 0
  %2648 = vmatprep.subr.bf16.mxu0 0
  %2649 = vmatpush2.bf16.msra.mxu0 0
  %2650 = vmatprep.subr.bf16.mxu0 0
  %2651 = vmatpush2.bf16.msra.mxu0 0
  %2652 = vmatprep.subr.bf16.mxu0 0
  %2653 = vmatpush2.bf16.msra.mxu0 0
  %2654 = vmatprep.subr.bf16.mxu0 0
  %2655 = vmatpush2.bf16.msra.mxu0 0
  %2656 = vmatprep.subr.bf16.mxu0 0
  %2657 = vmatpush2.bf16.msra.mxu0 0
  %2658 = vmatprep.subr.bf16.mxu0 0
  %2659 = vmatpush2.bf16.msra.mxu0 0
  %2660 = vmatprep.subr.bf16.mxu0 0
  %2661 = vmatpush2.bf16.msra.mxu0 0
  %2662 = vmatprep.mubr.bf16.mxu0 0
  %2663 = vmatmul.mubr.bf16.gmra.mxu0 %v1490
  %v2664 = vpop.f32.mrf.mxu0
  %v2665 = vadd.f32 %v1682, %v2664
  %v2666 = vpop.f32.mrf.mxu0
  %v2667 = vadd.f32 %v1686, %v2666
  %v2668 = vpop.f32.mrf.mxu0
  %v2669 = vpop.f32.mrf.mxu0
  %2670 = vdwg.mxu0
  %v2671 = vmax.f32 %v2378, 0.0
  %v2672 = vmax.f32 %v2380, 0.0
  %v2673 = vmax.f32 %v2419, 0.0
  %v2674 = vmax.f32 %v2421, 0.0
  %v2675 = vmax.f32 %v2460, 0.0
  %v2676 = vmax.f32 %v2462, 0.0
  %v2677 = vmax.f32 %v2501, 0.0
  %v2678 = vmax.f32 %v2503, 0.0
  %v2679 = vmax.f32 %v2542, 0.0
  %v2680 = vmax.f32 %v2544, 0.0
  %v2681 = vmax.f32 %v2583, 0.0
  %v2682 = vmax.f32 %v2585, 0.0
  %v2683 = vmax.f32 %v2624, 0.0
  %v2684 = vmax.f32 %v2626, 0.0
  %v2685 = vmax.f32 %v2665, 0.0
  %v2686 = vmax.f32 %v2667, 0.0
  %v2687 = vpack.c.bf16 %v2671, %v2671
  %v2688 = vpack.c.bf16 %v2672, %v2672
  %v2689 = vpack.c.bf16 %v2673, %v2673
  %v2690 = vpack.c.bf16 %v2674, %v2674
  %v2691 = vpack.c.bf16 %v2675, %v2675
  %v2692 = vpack.c.bf16 %v2676, %v2676
  %v2693 = vpack.c.bf16 %v2677, %v2677
  %v2694 = vpack.c.bf16 %v2678, %v2678
  %v2695 = vpack.c.bf16 %v2679, %v2679
  %v2696 = vpack.c.bf16 %v2680, %v2680
  %v2697 = vpack.c.bf16 %v2681, %v2681
  %v2698 = vpack.c.bf16 %v2682, %v2682
  %v2699 = vpack.c.bf16 %v2683, %v2683
  %v2700 = vpack.c.bf16 %v2684, %v2684
  %v2701 = vpack.c.bf16 %v2685, %v2685
  %v2702 = vpack.c.bf16 %v2686, %v2686
  %v2719 = vcombine.low %v2687, %v2688
  %v2720 = vcombine.low %v2689, %v2690
  %v2721 = vcombine.low %v2691, %v2692
  %v2722 = vcombine.low %v2693, %v2694
  %v2724 = vunpack.c.l.s4 1966171168
  %v2725 = vunpack.c.0.s8 %v2724
  %v2726 = vlaneseq
  %v2727 = vshrl.u32 %v2726, 7
  %v2728 = vsub.s32 %v2725, %v2727
  %v2729 = vrot.slane %v2719, %v2728
  %v2731 = vunpack.c.l.s4 1966171168
  %v2732 = vunpack.c.0.s8 %v2731
  %v2733 = vlaneseq
  %v2734 = vshrl.u32 %v2733, 7
  %v2735 = vsub.s32 %v2732, %v2734
  %v2736 = vrot.slane %v2720, %v2735
  %v2738 = vunpack.c.l.s4 1966171168
  %v2739 = vunpack.c.0.s8 %v2738
  %v2740 = vlaneseq
  %v2741 = vshrl.u32 %v2740, 7
  %v2742 = vsub.s32 %v2739, %v2741
  %v2743 = vrot.slane %v2721, %v2742
  %v2745 = vunpack.c.l.s4 1966171168
  %v2746 = vunpack.c.0.s8 %v2745
  %v2747 = vlaneseq
  %v2748 = vshrl.u32 %v2747, 7
  %v2749 = vsub.s32 %v2746, %v2748
  %v2750 = vrot.slane %v2722, %v2749
  %v2751 = vcombine.low %v2729, %v2736
  %v2752 = vcombine.low %v2743, %v2750
  %v2754 = vunpack.c.l.s4 1966171168
  %v2755 = vunpack.c.0.s8 %v2754
  %v2756 = vlaneseq
  %v2757 = vshrl.u32 %v2756, 7
  %v2758 = vsub.s32 %v2755, %v2757
  %v2759 = vrot.slane %v2751, %v2758
  %v2761 = vunpack.c.l.s4 1966171168
  %v2762 = vunpack.c.0.s8 %v2761
  %v2763 = vlaneseq
  %v2764 = vshrl.u32 %v2763, 7
  %v2765 = vsub.s32 %v2762, %v2764
  %v2766 = vrot.slane %v2752, %v2765
  %v2767 = vcombine.low %v2759, %v2766
  %v2768 = vcombine.low %v2695, %v2696
  %v2769 = vcombine.low %v2697, %v2698
  %v2770 = vcombine.low %v2699, %v2700
  %v2771 = vcombine.low %v2701, %v2702
  %v2773 = vunpack.c.l.s4 1966171168
  %v2774 = vunpack.c.0.s8 %v2773
  %v2775 = vlaneseq
  %v2776 = vshrl.u32 %v2775, 7
  %v2777 = vsub.s32 %v2774, %v2776
  %v2778 = vrot.slane %v2768, %v2777
  %v2780 = vunpack.c.l.s4 1966171168
  %v2781 = vunpack.c.0.s8 %v2780
  %v2782 = vlaneseq
  %v2783 = vshrl.u32 %v2782, 7
  %v2784 = vsub.s32 %v2781, %v2783
  %v2785 = vrot.slane %v2769, %v2784
  %v2787 = vunpack.c.l.s4 1966171168
  %v2788 = vunpack.c.0.s8 %v2787
  %v2789 = vlaneseq
  %v2790 = vshrl.u32 %v2789, 7
  %v2791 = vsub.s32 %v2788, %v2790
  %v2792 = vrot.slane %v2770, %v2791
  %v2794 = vunpack.c.l.s4 1966171168
  %v2795 = vunpack.c.0.s8 %v2794
  %v2796 = vlaneseq
  %v2797 = vshrl.u32 %v2796, 7
  %v2798 = vsub.s32 %v2795, %v2797
  %v2799 = vrot.slane %v2771, %v2798
  %v2800 = vcombine.low %v2778, %v2785
  %v2801 = vcombine.low %v2792, %v2799
  %v2803 = vunpack.c.l.s4 1966171168
  %v2804 = vunpack.c.0.s8 %v2803
  %v2805 = vlaneseq
  %v2806 = vshrl.u32 %v2805, 7
  %v2807 = vsub.s32 %v2804, %v2806
  %v2808 = vrot.slane %v2800, %v2807
  %v2810 = vunpack.c.l.s4 1966171168
  %v2811 = vunpack.c.0.s8 %v2810
  %v2812 = vlaneseq
  %v2813 = vshrl.u32 %v2812, 7
  %v2814 = vsub.s32 %v2811, %v2813
  %v2815 = vrot.slane %v2801, %v2814
  %v2816 = vcombine.low %v2808, %v2815
  %2819 = vst [vmem:[%s5] sm:$0xff] %v2767
  %2820 = vst [vmem:[%s5 + $0x8] sm:$0xff] %v2816
  // Predicated region
  $region22: #{forward.10} parent=0 // pred_check
    _
  $region23: #{forward.10} parent=0 // pred_check_branch
    %2822 = sbr.rel (0) target = $region25
  $region24: #{forward.10} parent=0 // pred_region
    _
  $region25: #{forward.10} parent=0 // pred_fallthru
    _
  // Predicated region
  $region26: #{forward.10} parent=0 // pred_check
    _
  $region27: #{forward.10} parent=0 // pred_check_branch
    %2824 = sbr.rel (0) target = $region29
  $region28: #{forward.10} parent=0 // pred_region
    _
  $region29: #{forward.10} parent=0 // pred_fallthru
    _

// kernel: forward.13
$region0: #{forward.13}
  #allocation0 [shape = 'u32[]', space=smem, size = 0x4, offset = 0x4, fixed_abs, tag = 'smem constant byte address 0x4 - core index']
  #allocation1 [shape = 'u32[144,128]{1,0:T(1,128)}', space=vmem, size = 0x12000, scoped, tag = 'internal scratch']
  %s0 = inlined_call_operand.vmem [shape: bf16[512,256], index: 0, kind: input, shape index: {}]
  %s1 = inlined_call_operand.vmem [shape: bf16[2,256,128], index: 1, kind: input, shape index: {}]
  %s2 = inlined_call_operand.vmem [shape: f32[1,128], index: 2, kind: input, shape index: {}]
  %s3 = inlined_call_operand.vmem [shape: f32[32,2,16,128], index: 3, kind: output, shape index: {}]
  %s4 = sld [smem:[#allocation0]]
  $region79: #{forward.13} parent=0
    _
  %s6 = ssub.s32 1, %s4
  %s7 = scalar_select 0, %s6, %s4
  $region1: #{forward.13} parent=0
    #allocation2 [shape = 'u8[524288]{0}', space=vmem, size = 0x80000, scoped, tag = 'output window, operand 0']
    loop: start=0, step=1, limit=4
    $region2: #{forward.13} parent=1 // loop_pre_header
      _
    $region3: #{forward.13} parent=1 // loop_header
      %s9 = sphi 0, %s13
      %p10 = scmp.ge.s32.totalorder %s9, 4
      %s17 = sphi 0, %s17
      %s19 = sphi 0, %s17
      %s20 = sphi 0, %s19
      %s34 = sphi 0, %s20
      %s40 = sphi 0, %s42
      %s43 = sphi 0, %s40
      %s44 = sphi 0, %s43
      %s60 = sphi 0, %s44
      %s64 = sphi 0, %s64
      %s66 = sphi 0, %s64
      %s67 = sphi 0, %s66
      %s81 = sphi 0, %s67
      %s87 = sphi 0, %s89
      %s90 = sphi 0, %s87
      %s91 = sphi 0, %s90
      %s107 = sphi 0, %s91
    $region4: #{forward.13} parent=1 // loop_header_branch
      %12 = sbr.rel (%p10) target = $region8
    $region5: #{forward.13} parent=1 // loop_body
      %s14 = ssub.s32 %s9, 1
      %s15 = ssub.s32 %s9, 2
      %s16 = sadd.s32 %s9, 1
      %s18 = sadd.s32 %s17, 1
      %p21 = scmp.eq.s32.totalorder %s9, 1
      %p22 = scmp.ne.s32.totalorder %s17, %s19
      %p23 = scmp.eq.s32.totalorder %s9, 0
      %p24 = por %p22, %p23
      %p25 = scmp.ne.s32.totalorder %s17, %s19
      %p26 = scmp.eq.s32.totalorder %s14, 1
      %p27 = por %p25, %p26
      %p28 = scmp.ne.s32.totalorder %s19, %s20
      %p29 = scmp.eq.s32.totalorder %s14, 0
      %p30 = por %p28, %p29
      %p31 = scmp.ne.s32.totalorder %s19, %s20
      %p32 = scmp.eq.s32.totalorder %s15, 1
      %p33 = por %p31, %p32
      %p35 = scmp.ne.s32.totalorder %s20, %s34
      %p36 = scmp.eq.s32.totalorder %s15, 0
      %p37 = por %p35, %p36
      %s38 = ssub.s32 %s9, %s16
      %p39 = scmp.eq.s32.totalorder %s38, 0
      %s41 = sadd.s32 %s40, 1
      %s42 = scalar_select %p39, %s40, %s41
      %p45 = pneg %p39
      %p46 = scmp.eq.s32.totalorder %s9, 1
      %p47 = por %p45, %p46
      %p48 = scmp.ne.s32.totalorder %s40, %s43
      %p49 = scmp.eq.s32.totalorder %s9, 0
      %p50 = por %p48, %p49
      %p51 = scmp.ne.s32.totalorder %s40, %s43
      %p52 = scmp.eq.s32.totalorder %s14, 1
      %p53 = por %p51, %p52
      %p54 = scmp.ne.s32.totalorder %s43, %s44
      %p55 = scmp.eq.s32.totalorder %s14, 0
      %p56 = por %p54, %p55
      %p57 = scmp.ne.s32.totalorder %s43, %s44
      %p58 = scmp.eq.s32.totalorder %s15, 1
      %p59 = por %p57, %p58
      %p61 = scmp.ne.s32.totalorder %s44, %s60
      %p62 = scmp.eq.s32.totalorder %s15, 0
      %p63 = por %p61, %p62
      %s65 = sadd.s32 %s64, 1
      %p68 = scmp.eq.s32.totalorder %s9, 1
      %p69 = scmp.ne.s32.totalorder %s64, %s66
      %p70 = scmp.eq.s32.totalorder %s9, 0
      %p71 = por %p69, %p70
      %p72 = scmp.ne.s32.totalorder %s64, %s66
      %p73 = scmp.eq.s32.totalorder %s14, 1
      %p74 = por %p72, %p73
      %p75 = scmp.ne.s32.totalorder %s66, %s67
      %p76 = scmp.eq.s32.totalorder %s14, 0
      %p77 = por %p75, %p76
      %p78 = scmp.ne.s32.totalorder %s66, %s67
      %p79 = scmp.eq.s32.totalorder %s15, 1
      %p80 = por %p78, %p79
      %p82 = scmp.ne.s32.totalorder %s67, %s81
      %p83 = scmp.eq.s32.totalorder %s15, 0
      %p84 = por %p82, %p83
      %s85 = ssub.s32 %s9, %s16
      %p86 = scmp.eq.s32.totalorder %s85, 0
      %s88 = sadd.s32 %s87, 1
      %s89 = scalar_select %p86, %s87, %s88
      %p92 = pneg %p86
      %p93 = scmp.eq.s32.totalorder %s9, 1
      %p94 = por %p92, %p93
      %p95 = scmp.ne.s32.totalorder %s87, %s90
      %p96 = scmp.eq.s32.totalorder %s9, 0
      %p97 = por %p95, %p96
      %p98 = scmp.ne.s32.totalorder %s87, %s90
      %p99 = scmp.eq.s32.totalorder %s14, 1
      %p100 = por %p98, %p99
      %p101 = scmp.ne.s32.totalorder %s90, %s91
      %p102 = scmp.eq.s32.totalorder %s14, 0
      %p103 = por %p101, %p102
      %p104 = scmp.ne.s32.totalorder %s90, %s91
      %p105 = scmp.eq.s32.totalorder %s15, 1
      %p106 = por %p104, %p105
      %p108 = scmp.ne.s32.totalorder %s91, %s107
      %p109 = scmp.eq.s32.totalorder %s15, 0
      %p110 = por %p108, %p109
      %p111 = scmp.le.s32.totalorder 1, %s9
      %p112 = scmp.lt.s32.totalorder %s9, 3
      %p113 = pnand %p111, %p112
      %p114 = pneg %p113
      // Predicated region
      $region9: #{forward.13} parent=5 // pred_check
        _
      $region10: #{forward.13} parent=5 // pred_check_branch
        %116 = sbr.rel (%p113) target = $region12
      $region11: #{forward.13} parent=5 // pred_region
        %s117 = ssub.s32 %s9, 1
        // Predicated region
        $region13: #{forward.13} parent=11 // pred_check
          %p118 = pneg %p30
        $region14: #{forward.13} parent=11 // pred_check_branch
          %120 = sbr.rel (%p118) target = $region16
        $region15: #{forward.13} parent=11 // pred_region
          _
        $region16: #{forward.13} parent=11 // pred_fallthru
          _
        // Predicated region
        $region17: #{forward.13} parent=11 // pred_check
          %p121 = pneg %p77
        $region18: #{forward.13} parent=11 // pred_check_branch
          %123 = sbr.rel (%p121) target = $region20
        $region19: #{forward.13} parent=11 // pred_region
          _
        $region20: #{forward.13} parent=11 // pred_fallthru
          _
      $region12: #{forward.13} parent=5 // pred_fallthru
        _
      %p124 = scmp.lt.s32.totalorder %s9, 2
      // Predicated region
      $region21: #{forward.13} parent=5 // pred_check
        %p125 = pneg %p124
      $region22: #{forward.13} parent=5 // pred_check_branch
        %127 = sbr.rel (%p125) target = $region24
      $region23: #{forward.13} parent=5 // pred_region
        // Predicated region
        $region25: #{forward.13} parent=23 // pred_check
          %p128 = pneg %p50
        $region26: #{forward.13} parent=23 // pred_check_branch
          %130 = sbr.rel (%p128) target = $region28
        $region27: #{forward.13} parent=23 // pred_region
          %p131 = scmp.lt.s32.totalorder %s9, 1
          %s132 = scalar_select %p131, %s9, 1
          %s133 = smul.addr %s132, 32
          %s134 = smul.addr %s133, 4
          %s135 = scalar_lea.vmem %s1, %s134
        $region28: #{forward.13} parent=23 // pred_fallthru
          _
      $region24: #{forward.13} parent=5 // pred_fallthru
        _
      %p136 = scmp.le.s32.totalorder 1, %s9
      %p137 = scmp.lt.s32.totalorder %s9, 3
      %p138 = pnand %p136, %p137
      %p139 = pneg %p138
      // Predicated region
      $region29: #{forward.13} parent=5 // pred_check
        _
      $region30: #{forward.13} parent=5 // pred_check_branch
        %141 = sbr.rel (%p138) target = $region32
      $region31: #{forward.13} parent=5 // pred_region
        %s142 = ssub.s32 %s9, 1
        %p143 = pneg %p30
        %p144 = pneg %p27
        %p145 = scmp.lt.s32.totalorder %s14, 1
        %s146 = scalar_select %p145, %s14, 1
        %s147 = smul.addr %s146, 32
        %s148 = smul.addr %s147, 4
        %s149 = scalar_lea.vmem %s1, %s148
        %p150 = pneg %p56
        %p151 = pneg %p53
        %p152 = pneg %p77
        %p153 = pneg %p74
        %p154 = pneg %p103
        %p155 = pneg %p100
        %s156 = sand.u32 %s90, 1
        %s157 = sand.u32 %s90, 1
        %s158 = smul.addr %s157, 512
        %s159 = scalar_lea.vmem [#allocation2], %s158
        %p160 = scmp.lt.s32.totalorder %s14, 1
        %s161 = scalar_select %p160, %s14, 1
        %s162 = smul.addr %s161, 32
        %s163 = smul.addr %s162, 4
        %s164 = scalar_lea.vmem %s1, %s163
        %v166 = vld [vmem:[%s0] sm:$0xff]
        %v167 = vld [vmem:[%s0 + $0x8] sm:$0xff]
        %v168 = vld [vmem:[%s0 + $0x10] sm:$0xff]
        %v169 = vld [vmem:[%s0 + $0x18] sm:$0xff]
        %v170 = vld [vmem:[%s0 + $0x20] sm:$0xff]
        %v171 = vld [vmem:[%s0 + $0x28] sm:$0xff]
        %v172 = vld [vmem:[%s0 + $0x30] sm:$0xff]
        %v173 = vld [vmem:[%s0 + $0x38] sm:$0xff]
        %v174 = vld [vmem:[%s0 + $0x40] sm:$0xff]
        %v175 = vld [vmem:[%s0 + $0x48] sm:$0xff]
        %v176 = vld [vmem:[%s0 + $0x50] sm:$0xff]
        %v177 = vld [vmem:[%s0 + $0x58] sm:$0xff]
        %v178 = vld [vmem:[%s0 + $0x60] sm:$0xff]
        %v179 = vld [vmem:[%s0 + $0x68] sm:$0xff]
        %v180 = vld [vmem:[%s0 + $0x70] sm:$0xff]
        %v181 = vld [vmem:[%s0 + $0x78] sm:$0xff]
        %v182 = vld [vmem:[%s0 + $0x80] sm:$0xff]
        %v183 = vld [vmem:[%s0 + $0x88] sm:$0xff]
        %v184 = vld [vmem:[%s0 + $0x90] sm:$0xff]
        %v185 = vld [vmem:[%s0 + $0x98] sm:$0xff]
        %v186 = vld [vmem:[%s0 + $0xa0] sm:$0xff]
        %v187 = vld [vmem:[%s0 + $0xa8] sm:$0xff]
        %v188 = vld [vmem:[%s0 + $0xb0] sm:$0xff]
        %v189 = vld [vmem:[%s0 + $0xb8] sm:$0xff]
        %v190 = vld [vmem:[%s0 + $0xc0] sm:$0xff]
        %v191 = vld [vmem:[%s0 + $0xc8] sm:$0xff]
        %v192 = vld [vmem:[%s0 + $0xd0] sm:$0xff]
        %v193 = vld [vmem:[%s0 + $0xd8] sm:$0xff]
        %v194 = vld [vmem:[%s0 + $0xe0] sm:$0xff]
        %v195 = vld [vmem:[%s0 + $0xe8] sm:$0xff]
        %v196 = vld [vmem:[%s0 + $0xf0] sm:$0xff]
        %v197 = vld [vmem:[%s0 + $0xf8] sm:$0xff]
        %v198 = vld [vmem:[%s0 + $0x100] sm:$0xff]
        %v199 = vld [vmem:[%s0 + $0x108] sm:$0xff]
        %v200 = vld [vmem:[%s0 + $0x110] sm:$0xff]
        %v201 = vld [vmem:[%s0 + $0x118] sm:$0xff]
        %v202 = vld [vmem:[%s0 + $0x120] sm:$0xff]
        %v203 = vld [vmem:[%s0 + $0x128] sm:$0xff]
        %v204 = vld [vmem:[%s0 + $0x130] sm:$0xff]
        %v205 = vld [vmem:[%s0 + $0x138] sm:$0xff]
        %v206 = vld [vmem:[%s0 + $0x140] sm:$0xff]
        %v207 = vld [vmem:[%s0 + $0x148] sm:$0xff]
        %v208 = vld [vmem:[%s0 + $0x150] sm:$0xff]
        %v209 = vld [vmem:[%s0 + $0x158] sm:$0xff]
        %v210 = vld [vmem:[%s0 + $0x160] sm:$0xff]
        %v211 = vld [vmem:[%s0 + $0x168] sm:$0xff]
        %v212 = vld [vmem:[%s0 + $0x170] sm:$0xff]
        %v213 = vld [vmem:[%s0 + $0x178] sm:$0xff]
        %v214 = vld [vmem:[%s0 + $0x180] sm:$0xff]
        %v215 = vld [vmem:[%s0 + $0x188] sm:$0xff]
        %v216 = vld [vmem:[%s0 + $0x190] sm:$0xff]
        %v217 = vld [vmem:[%s0 + $0x198] sm:$0xff]
        %v218 = vld [vmem:[%s0 + $0x1a0] sm:$0xff]
        %v219 = vld [vmem:[%s0 + $0x1a8] sm:$0xff]
        %v220 = vld [vmem:[%s0 + $0x1b0] sm:$0xff]
        %v221 = vld [vmem:[%s0 + $0x1b8] sm:$0xff]
        %v222 = vld [vmem:[%s0 + $0x1c0] sm:$0xff]
        %v223 = vld [vmem:[%s0 + $0x1c8] sm:$0xff]
        %v224 = vld [vmem:[%s0 + $0x1d0] sm:$0xff]
        %v225 = vld [vmem:[%s0 + $0x1d8] sm:$0xff]
        %v226 = vld [vmem:[%s0 + $0x1e0] sm:$0xff]
        %v227 = vld [vmem:[%s0 + $0x1e8] sm:$0xff]
        %v228 = vld [vmem:[%s0 + $0x1f0] sm:$0xff]
        %v229 = vld [vmem:[%s0 + $0x1f8] sm:$0xff]
        %v230 = vld [vmem:[%s164] sm:$0xf]
        %v231 = vld [vmem:[%s164 + $0x4] sm:$0xf]
        %v232 = vld [vmem:[%s164 + $0x8] sm:$0xf]
        %v233 = vld [vmem:[%s164 + $0xc] sm:$0xf]
        %v234 = vld [vmem:[%s164 + $0x10] sm:$0xf]
        %v235 = vld [vmem:[%s164 + $0x14] sm:$0xf]
        %v236 = vld [vmem:[%s164 + $0x18] sm:$0xf]
        %v237 = vld [vmem:[%s164 + $0x1c] sm:$0xf]
        %v238 = vld [vmem:[%s164 + $0x20] sm:$0xf]
        %v239 = vld [vmem:[%s164 + $0x24] sm:$0xf]
        %v240 = vld [vmem:[%s164 + $0x28] sm:$0xf]
        %v241 = vld [vmem:[%s164 + $0x2c] sm:$0xf]
        %v242 = vld [vmem:[%s164 + $0x30] sm:$0xf]
        %v243 = vld [vmem:[%s164 + $0x34] sm:$0xf]
        %v244 = vld [vmem:[%s164 + $0x38] sm:$0xf]
        %v245 = vld [vmem:[%s164 + $0x3c] sm:$0xf]
        %v246 = vld [vmem:[%s164 + $0x40] sm:$0xf]
        %v247 = vld [vmem:[%s164 + $0x44] sm:$0xf]
        %v248 = vld [vmem:[%s164 + $0x48] sm:$0xf]
        %v249 = vld [vmem:[%s164 + $0x4c] sm:$0xf]
        %v250 = vld [vmem:[%s164 + $0x50] sm:$0xf]
        %v251 = vld [vmem:[%s164 + $0x54] sm:$0xf]
        %v252 = vld [vmem:[%s164 + $0x58] sm:$0xf]
        %v253 = vld [vmem:[%s164 + $0x5c] sm:$0xf]
        %v254 = vld [vmem:[%s164 + $0x60] sm:$0xf]
        %v255 = vld [vmem:[%s164 + $0x64] sm:$0xf]
        %v256 = vld [vmem:[%s164 + $0x68] sm:$0xf]
        %v257 = vld [vmem:[%s164 + $0x6c] sm:$0xf]
        %v258 = vld [vmem:[%s164 + $0x70] sm:$0xf]
        %v259 = vld [vmem:[%s164 + $0x74] sm:$0xf]
        %v260 = vld [vmem:[%s164 + $0x78] sm:$0xf]
        %v261 = vld [vmem:[%s164 + $0x7c] sm:$0xf]
        %v262 = vld [vmem:[%s2] sm:$0x1]
        %v264 = vlaneseq
        %v265 = vshrl.u32 %v264, 7
        %v266 = vsub.s32 0, %v265
        %v267 = vrot.slane %v262, %v266
        %v333 = vunpack.c.l.b16 %v166
        %v334 = vunpack.c.h.b16 %v166
        %v335 = vunpack.c.l.b16 %v167
        %v336 = vunpack.c.h.b16 %v167
        %v337 = vunpack.c.l.b16 %v168
        %v338 = vunpack.c.h.b16 %v168
        %v339 = vunpack.c.l.b16 %v169
        %v340 = vunpack.c.h.b16 %v169
        %v341 = vunpack.c.l.b16 %v170
        %v342 = vunpack.c.h.b16 %v170
        %v343 = vunpack.c.l.b16 %v171
        %v344 = vunpack.c.h.b16 %v171
        %v345 = vunpack.c.l.b16 %v172
        %v346 = vunpack.c.h.b16 %v172
        %v347 = vunpack.c.l.b16 %v173
        %v348 = vunpack.c.h.b16 %v173
        %v349 = vunpack.c.l.b16 %v174
        %v350 = vunpack.c.h.b16 %v174
        %v351 = vunpack.c.l.b16 %v175
        %v352 = vunpack.c.h.b16 %v175
        %v353 = vunpack.c.l.b16 %v176
        %v354 = vunpack.c.h.b16 %v176
        %v355 = vunpack.c.l.b16 %v177
        %v356 = vunpack.c.h.b16 %v177
        %v357 = vunpack.c.l.b16 %v178
        %v358 = vunpack.c.h.b16 %v178
        %v359 = vunpack.c.l.b16 %v179
        %v360 = vunpack.c.h.b16 %v179
        %v361 = vunpack.c.l.b16 %v180
        %v362 = vunpack.c.h.b16 %v180
        %v363 = vunpack.c.l.b16 %v181
        %v364 = vunpack.c.h.b16 %v181
        %v365 = vunpack.c.l.b16 %v182
        %v366 = vunpack.c.h.b16 %v182
        %v367 = vunpack.c.l.b16 %v183
        %v368 = vunpack.c.h.b16 %v183
        %v369 = vunpack.c.l.b16 %v184
        %v370 = vunpack.c.h.b16 %v184
        %v371 = vunpack.c.l.b16 %v185
        %v372 = vunpack.c.h.b16 %v185
        %v373 = vunpack.c.l.b16 %v186
        %v374 = vunpack.c.h.b16 %v186
        %v375 = vunpack.c.l.b16 %v187
        %v376 = vunpack.c.h.b16 %v187
        %v377 = vunpack.c.l.b16 %v188
        %v378 = vunpack.c.h.b16 %v188
        %v379 = vunpack.c.l.b16 %v189
        %v380 = vunpack.c.h.b16 %v189
        %v381 = vunpack.c.l.b16 %v190
        %v382 = vunpack.c.h.b16 %v190
        %v383 = vunpack.c.l.b16 %v191
        %v384 = vunpack.c.h.b16 %v191
        %v385 = vunpack.c.l.b16 %v192
        %v386 = vunpack.c.h.b16 %v192
        %v387 = vunpack.c.l.b16 %v193
        %v388 = vunpack.c.h.b16 %v193
        %v389 = vunpack.c.l.b16 %v194
        %v390 = vunpack.c.h.b16 %v194
        %v391 = vunpack.c.l.b16 %v195
        %v392 = vunpack.c.h.b16 %v195
        %v393 = vunpack.c.l.b16 %v196
        %v394 = vunpack.c.h.b16 %v196
        %v395 = vunpack.c.l.b16 %v197
        %v396 = vunpack.c.h.b16 %v197
        %v397 = vunpack.c.l.b16 %v198
        %v398 = vunpack.c.h.b16 %v198
        %v399 = vunpack.c.l.b16 %v199
        %v400 = vunpack.c.h.b16 %v199
        %v401 = vunpack.c.l.b16 %v200
        %v402 = vunpack.c.h.b16 %v200
        %v403 = vunpack.c.l.b16 %v201
        %v404 = vunpack.c.h.b16 %v201
        %v405 = vunpack.c.l.b16 %v202
        %v406 = vunpack.c.h.b16 %v202
        %v407 = vunpack.c.l.b16 %v203
        %v408 = vunpack.c.h.b16 %v203
        %v409 = vunpack.c.l.b16 %v204
        %v410 = vunpack.c.h.b16 %v204
        %v411 = vunpack.c.l.b16 %v205
        %v412 = vunpack.c.h.b16 %v205
        %v413 = vunpack.c.l.b16 %v206
        %v414 = vunpack.c.h.b16 %v206
        %v415 = vunpack.c.l.b16 %v207
        %v416 = vunpack.c.h.b16 %v207
        %v417 = vunpack.c.l.b16 %v208
        %v418 = vunpack.c.h.b16 %v208
        %v419 = vunpack.c.l.b16 %v209
        %v420 = vunpack.c.h.b16 %v209
        %v421 = vunpack.c.l.b16 %v210
        %v422 = vunpack.c.h.b16 %v210
        %v423 = vunpack.c.l.b16 %v211
        %v424 = vunpack.c.h.b16 %v211
        %v425 = vunpack.c.l.b16 %v212
        %v426 = vunpack.c.h.b16 %v212
        %v427 = vunpack.c.l.b16 %v213
        %v428 = vunpack.c.h.b16 %v213
        %v429 = vunpack.c.l.b16 %v214
        %v430 = vunpack.c.h.b16 %v214
        %v431 = vunpack.c.l.b16 %v215
        %v432 = vunpack.c.h.b16 %v215
        %v433 = vunpack.c.l.b16 %v216
        %v434 = vunpack.c.h.b16 %v216
        %v435 = vunpack.c.l.b16 %v217
        %v436 = vunpack.c.h.b16 %v217
        %v437 = vunpack.c.l.b16 %v218
        %v438 = vunpack.c.h.b16 %v218
        %v439 = vunpack.c.l.b16 %v219
        %v440 = vunpack.c.h.b16 %v219
        %v441 = vunpack.c.l.b16 %v220
        %v442 = vunpack.c.h.b16 %v220
        %v443 = vunpack.c.l.b16 %v221
        %v444 = vunpack.c.h.b16 %v221
        %v445 = vunpack.c.l.b16 %v222
        %v446 = vunpack.c.h.b16 %v222
        %v447 = vunpack.c.l.b16 %v223
        %v448 = vunpack.c.h.b16 %v223
        %v449 = vunpack.c.l.b16 %v224
        %v450 = vunpack.c.h.b16 %v224
        %v451 = vunpack.c.l.b16 %v225
        %v452 = vunpack.c.h.b16 %v225
        %v453 = vunpack.c.l.b16 %v226
        %v454 = vunpack.c.h.b16 %v226
        %v455 = vunpack.c.l.b16 %v227
        %v456 = vunpack.c.h.b16 %v227
        %v457 = vunpack.c.l.b16 %v228
        %v458 = vunpack.c.h.b16 %v228
        %v459 = vunpack.c.l.b16 %v229
        %v460 = vunpack.c.h.b16 %v229
        %v461 = vpack.c.b16 %v335, %v333
        %v462 = vpack.c.b16 %v336, %v334
        %v463 = vpack.c.b16 %v339, %v337
        %v464 = vpack.c.b16 %v340, %v338
        %v465 = vpack.c.b16 %v343, %v341
        %v466 = vpack.c.b16 %v344, %v342
        %v467 = vpack.c.b16 %v347, %v345
        %v468 = vpack.c.b16 %v348, %v346
        %v469 = vpack.c.b16 %v351, %v349
        %v470 = vpack.c.b16 %v352, %v350
        %v471 = vpack.c.b16 %v355, %v353
        %v472 = vpack.c.b16 %v356, %v354
        %v473 = vpack.c.b16 %v359, %v357
        %v474 = vpack.c.b16 %v360, %v358
        %v475 = vpack.c.b16 %v363, %v361
        %v476 = vpack.c.b16 %v364, %v362
        %v477 = vpack.c.b16 %v367, %v365
        %v478 = vpack.c.b16 %v368, %v366
        %v479 = vpack.c.b16 %v371, %v369
        %v480 = vpack.c.b16 %v372, %v370
        %v481 = vpack.c.b16 %v375, %v373
        %v482 = vpack.c.b16 %v376, %v374
        %v483 = vpack.c.b16 %v379, %v377
        %v484 = vpack.c.b16 %v380, %v378
        %v485 = vpack.c.b16 %v383, %v381
        %v486 = vpack.c.b16 %v384, %v382
        %v487 = vpack.c.b16 %v387, %v385
        %v488 = vpack.c.b16 %v388, %v386
        %v489 = vpack.c.b16 %v391, %v389
        %v490 = vpack.c.b16 %v392, %v390
        %v491 = vpack.c.b16 %v395, %v393
        %v492 = vpack.c.b16 %v396, %v394
        %v493 = vpack.c.b16 %v399, %v397
        %v494 = vpack.c.b16 %v400, %v398
        %v495 = vpack.c.b16 %v403, %v401
        %v496 = vpack.c.b16 %v404, %v402
        %v497 = vpack.c.b16 %v407, %v405
        %v498 = vpack.c.b16 %v408, %v406
        %v499 = vpack.c.b16 %v411, %v409
        %v500 = vpack.c.b16 %v412, %v410
        %v501 = vpack.c.b16 %v415, %v413
        %v502 = vpack.c.b16 %v416, %v414
        %v503 = vpack.c.b16 %v419, %v417
        %v504 = vpack.c.b16 %v420, %v418
        %v505 = vpack.c.b16 %v423, %v421
        %v506 = vpack.c.b16 %v424, %v422
        %v507 = vpack.c.b16 %v427, %v425
        %v508 = vpack.c.b16 %v428, %v426
        %v509 = vpack.c.b16 %v431, %v429
        %v510 = vpack.c.b16 %v432, %v430
        %v511 = vpack.c.b16 %v435, %v433
        %v512 = vpack.c.b16 %v436, %v434
        %v513 = vpack.c.b16 %v439, %v437
        %v514 = vpack.c.b16 %v440, %v438
        %v515 = vpack.c.b16 %v443, %v441
        %v516 = vpack.c.b16 %v444, %v442
        %v517 = vpack.c.b16 %v447, %v445
        %v518 = vpack.c.b16 %v448, %v446
        %v519 = vpack.c.b16 %v451, %v449
        %v520 = vpack.c.b16 %v452, %v450
        %v521 = vpack.c.b16 %v455, %v453
        %v522 = vpack.c.b16 %v456, %v454
        %v523 = vpack.c.b16 %v459, %v457
        %v524 = vpack.c.b16 %v460, %v458
        %v621 = vunpack.c.l.b16 %v230
        %v622 = vunpack.c.l.b16 %v231
        %v623 = vunpack.c.l.b16 %v232
        %v624 = vunpack.c.l.b16 %v233
        %v625 = vunpack.c.l.b16 %v234
        %v626 = vunpack.c.l.b16 %v235
        %v627 = vunpack.c.l.b16 %v236
        %v628 = vunpack.c.l.b16 %v237
        %v629 = vunpack.c.l.b16 %v238
        %v630 = vunpack.c.l.b16 %v239
        %v631 = vunpack.c.l.b16 %v240
        %v632 = vunpack.c.l.b16 %v241
        %v633 = vunpack.c.l.b16 %v242
        %v634 = vunpack.c.l.b16 %v243
        %v635 = vunpack.c.l.b16 %v244
        %v636 = vunpack.c.l.b16 %v245
        %v637 = vunpack.c.l.b16 %v246
        %v638 = vunpack.c.l.b16 %v247
        %v639 = vunpack.c.l.b16 %v248
        %v640 = vunpack.c.l.b16 %v249
        %v641 = vunpack.c.l.b16 %v250
        %v642 = vunpack.c.l.b16 %v251
        %v643 = vunpack.c.l.b16 %v252
        %v644 = vunpack.c.l.b16 %v253
        %v645 = vunpack.c.l.b16 %v254
        %v646 = vunpack.c.l.b16 %v255
        %v647 = vunpack.c.l.b16 %v256
        %v648 = vunpack.c.l.b16 %v257
        %v649 = vunpack.c.l.b16 %v258
        %v650 = vunpack.c.l.b16 %v259
        %v651 = vunpack.c.l.b16 %v260
        %v652 = vunpack.c.l.b16 %v261
        %v653 = vpack.c.b16 %v622, %v621
        %v654 = vpack.c.b16 %v624, %v623
        %v655 = vpack.c.b16 %v626, %v625
        %v656 = vpack.c.b16 %v628, %v627
        %v657 = vpack.c.b16 %v630, %v629
        %v658 = vpack.c.b16 %v632, %v631
        %v659 = vpack.c.b16 %v634, %v633
        %v660 = vpack.c.b16 %v636, %v635
        %v661 = vpack.c.b16 %v638, %v637
        %v662 = vpack.c.b16 %v640, %v639
        %v663 = vpack.c.b16 %v642, %v641
        %v664 = vpack.c.b16 %v644, %v643
        %v665 = vpack.c.b16 %v646, %v645
        %v666 = vpack.c.b16 %v648, %v647
        %v667 = vpack.c.b16 %v650, %v649
        %v668 = vpack.c.b16 %v652, %v651
        %685 = vmatprep.subr.bf16.mxu0 0
        %686 = vmatpush1.bf16.msra.mxu0 %v660
        %687 = vmatprep.subr.bf16.mxu0 0
        %688 = vmatpush1.bf16.msra.mxu0 %v659
        %689 = vmatprep.subr.bf16.mxu0 0
        %690 = vmatpush1.bf16.msra.mxu0 %v658
        %691 = vmatprep.subr.bf16.mxu0 0
        %692 = vmatpush1.bf16.msra.mxu0 %v657
        %693 = vmatprep.subr.bf16.mxu0 0
        %694 = vmatpush1.bf16.msra.mxu0 %v656
        %695 = vmatprep.subr.bf16.mxu0 0
        %696 = vmatpush1.bf16.msra.mxu0 %v655
        %697 = vmatprep.subr.bf16.mxu0 0
        %698 = vmatpush1.bf16.msra.mxu0 %v654
        %699 = vmatprep.subr.bf16.mxu0 0
        %700 = vmatpush1.bf16.msra.mxu0 %v653
        %701 = vmatprep.subr.bf16.mxu0 0
        %702 = vmatpush2.bf16.msra.mxu0 %v668
        %703 = vmatprep.subr.bf16.mxu0 0
        %704 = vmatpush2.bf16.msra.mxu0 %v667
        %705 = vmatprep.subr.bf16.mxu0 0
        %706 = vmatpush2.bf16.msra.mxu0 %v666
        %707 = vmatprep.subr.bf16.mxu0 0
        %708 = vmatpush2.bf16.msra.mxu0 %v665
        %709 = vmatprep.subr.bf16.mxu0 0
        %710 = vmatpush2.bf16.msra.mxu0 %v664
        %711 = vmatprep.subr.bf16.mxu0 0
        %712 = vmatpush2.bf16.msra.mxu0 %v663
        %713 = vmatprep.subr.bf16.mxu0 0
        %714 = vmatpush2.bf16.msra.mxu0 %v662
        %715 = vmatprep.subr.bf16.mxu0 0
        %716 = vmatpush2.bf16.msra.mxu0 %v661
        %717 = vmatprep.mubr.bf16.mxu0 %v462
        %718 = vmatmul.mubr.bf16.gmra.mxu0 %v461
        %v719 = vpop.f32.mrf.mxu0
        %v720 = vadd.f32 %v267, %v719
        %v721 = vpop.f32.mrf.mxu0
        %v722 = vpop.f32.mrf.mxu0
        %v723 = vadd.f32 %v267, %v722
        %v724 = vpop.f32.mrf.mxu0
        %725 = vmatprep.mubr.bf16.mxu0 %v464
        %726 = vmatmul.mubr.bf16.gmra.mxu0 %v463
        %v727 = vpop.f32.mrf.mxu0
        %v728 = vadd.f32 %v267, %v727
        %v729 = vpop.f32.mrf.mxu0
        %v730 = vpop.f32.mrf.mxu0
        %v731 = vadd.f32 %v267, %v730
        %v732 = vpop.f32.mrf.mxu0
        %733 = vmatprep.mubr.bf16.mxu0 %v466
        %734 = vmatmul.mubr.bf16.gmra.mxu0 %v465
        %v735 = vpop.f32.mrf.mxu0
        %v736 = vadd.f32 %v267, %v735
        %v737 = vpop.f32.mrf.mxu0
        %v738 = vpop.f32.mrf.mxu0
        %v739 = vadd.f32 %v267, %v738
        %v740 = vpop.f32.mrf.mxu0
        %741 = vmatprep.mubr.bf16.mxu0 %v468
        %742 = vmatmul.mubr.bf16.gmra.mxu0 %v467
        %v743 = vpop.f32.mrf.mxu0
        %v744 = vadd.f32 %v267, %v743
        %v745 = vpop.f32.mrf.mxu0
        %v746 = vpop.f32.mrf.mxu0
        %v747 = vadd.f32 %v267, %v746
        %v748 = vpop.f32.mrf.mxu0
        %749 = vmatprep.mubr.bf16.mxu0 %v470
        %750 = vmatmul.mubr.bf16.gmra.mxu0 %v469
        %v751 = vpop.f32.mrf.mxu0
        %v752 = vadd.f32 %v267, %v751
        %v753 = vpop.f32.mrf.mxu0
        %v754 = vpop.f32.mrf.mxu0
        %v755 = vadd.f32 %v267, %v754
        %v756 = vpop.f32.mrf.mxu0
        %757 = vmatprep.mubr.bf16.mxu0 %v472
        %758 = vmatmul.mubr.bf16.gmra.mxu0 %v471
        %v759 = vpop.f32.mrf.mxu0
        %v760 = vadd.f32 %v267, %v759
        %v761 = vpop.f32.mrf.mxu0
        %v762 = vpop.f32.mrf.mxu0
        %v763 = vadd.f32 %v267, %v762
        %v764 = vpop.f32.mrf.mxu0
        %765 = vmatprep.mubr.bf16.mxu0 %v474
        %766 = vmatmul.mubr.bf16.gmra.mxu0 %v473
        %v767 = vpop.f32.mrf.mxu0
        %v768 = vadd.f32 %v267, %v767
        %v769 = vpop.f32.mrf.mxu0
        %v770 = vpop.f32.mrf.mxu0
        %v771 = vadd.f32 %v267, %v770
        %v772 = vpop.f32.mrf.mxu0
        %773 = vmatprep.mubr.bf16.mxu0 %v476
        %774 = vmatmul.mubr.bf16.gmra.mxu0 %v475
        %v775 = vpop.f32.mrf.mxu0
        %v776 = vadd.f32 %v267, %v775
        %v777 = vpop.f32.mrf.mxu0
        %v778 = vpop.f32.mrf.mxu0
        %v779 = vadd.f32 %v267, %v778
        %v780 = vpop.f32.mrf.mxu0
        %781 = vmatprep.mubr.bf16.mxu0 %v478
        %782 = vmatmul.mubr.bf16.gmra.mxu0 %v477
        %v783 = vpop.f32.mrf.mxu0
        %v784 = vadd.f32 %v267, %v783
        %v785 = vpop.f32.mrf.mxu0
        %v786 = vpop.f32.mrf.mxu0
        %v787 = vadd.f32 %v267, %v786
        %v788 = vpop.f32.mrf.mxu0
        %789 = vmatprep.mubr.bf16.mxu0 %v480
        %790 = vmatmul.mubr.bf16.gmra.mxu0 %v479
        %v791 = vpop.f32.mrf.mxu0
        %v792 = vadd.f32 %v267, %v791
        %v793 = vpop.f32.mrf.mxu0
        %v794 = vpop.f32.mrf.mxu0
        %v795 = vadd.f32 %v267, %v794
        %v796 = vpop.f32.mrf.mxu0
        %797 = vmatprep.mubr.bf16.mxu0 %v482
        %798 = vmatmul.mubr.bf16.gmra.mxu0 %v481
        %v799 = vpop.f32.mrf.mxu0
        %v800 = vadd.f32 %v267, %v799
        %v801 = vpop.f32.mrf.mxu0
        %v802 = vpop.f32.mrf.mxu0
        %v803 = vadd.f32 %v267, %v802
        %v804 = vpop.f32.mrf.mxu0
        %805 = vmatprep.mubr.bf16.mxu0 %v484
        %806 = vmatmul.mubr.bf16.gmra.mxu0 %v483
        %v807 = vpop.f32.mrf.mxu0
        %v808 = vadd.f32 %v267, %v807
        %v809 = vpop.f32.mrf.mxu0
        %v810 = vpop.f32.mrf.mxu0
        %v811 = vadd.f32 %v267, %v810
        %v812 = vpop.f32.mrf.mxu0
        %813 = vmatprep.mubr.bf16.mxu0 %v486
        %814 = vmatmul.mubr.bf16.gmra.mxu0 %v485
        %v815 = vpop.f32.mrf.mxu0
        %v816 = vadd.f32 %v267, %v815
        %v817 = vpop.f32.mrf.mxu0
        %v818 = vpop.f32.mrf.mxu0
        %v819 = vadd.f32 %v267, %v818
        %v820 = vpop.f32.mrf.mxu0
        %821 = vmatprep.mubr.bf16.mxu0 %v488
        %822 = vmatmul.mubr.bf16.gmra.mxu0 %v487
        %v823 = vpop.f32.mrf.mxu0
        %v824 = vadd.f32 %v267, %v823
        %v825 = vpop.f32.mrf.mxu0
        %v826 = vpop.f32.mrf.mxu0
        %v827 = vadd.f32 %v267, %v826
        %v828 = vpop.f32.mrf.mxu0
        %829 = vmatprep.mubr.bf16.mxu0 %v490
        %830 = vmatmul.mubr.bf16.gmra.mxu0 %v489
        %v831 = vpop.f32.mrf.mxu0
        %v832 = vadd.f32 %v267, %v831
        %v833 = vpop.f32.mrf.mxu0
        %v834 = vpop.f32.mrf.mxu0
        %v835 = vadd.f32 %v267, %v834
        %v836 = vpop.f32.mrf.mxu0
        %837 = vmatprep.mubr.bf16.mxu0 %v492
        %838 = vmatmul.mubr.bf16.gmra.mxu0 %v491
        %v839 = vpop.f32.mrf.mxu0
        %v840 = vadd.f32 %v267, %v839
        %v841 = vpop.f32.mrf.mxu0
        %v842 = vpop.f32.mrf.mxu0
        %v843 = vadd.f32 %v267, %v842
        %v844 = vpop.f32.mrf.mxu0
        %845 = vmatprep.mubr.bf16.mxu0 %v494
        %846 = vmatmul.mubr.bf16.gmra.mxu0 %v493
        %v847 = vpop.f32.mrf.mxu0
        %v848 = vadd.f32 %v267, %v847
        %v849 = vpop.f32.mrf.mxu0
        %v850 = vpop.f32.mrf.mxu0
        %v851 = vadd.f32 %v267, %v850
        %v852 = vpop.f32.mrf.mxu0
        %853 = vmatprep.mubr.bf16.mxu0 %v496
        %854 = vmatmul.mubr.bf16.gmra.mxu0 %v495
        %v855 = vpop.f32.mrf.mxu0
        %v856 = vadd.f32 %v267, %v855
        %v857 = vpop.f32.mrf.mxu0
        %v858 = vpop.f32.mrf.mxu0
        %v859 = vadd.f32 %v267, %v858
        %v860 = vpop.f32.mrf.mxu0
        %861 = vmatprep.mubr.bf16.mxu0 %v498
        %862 = vmatmul.mubr.bf16.gmra.mxu0 %v497
        %v863 = vpop.f32.mrf.mxu0
        %v864 = vadd.f32 %v267, %v863
        %v865 = vpop.f32.mrf.mxu0
        %v866 = vpop.f32.mrf.mxu0
        %v867 = vadd.f32 %v267, %v866
        %v868 = vpop.f32.mrf.mxu0
        %869 = vmatprep.mubr.bf16.mxu0 %v500
        %870 = vmatmul.mubr.bf16.gmra.mxu0 %v499
        %v871 = vpop.f32.mrf.mxu0
        %v872 = vadd.f32 %v267, %v871
        %v873 = vpop.f32.mrf.mxu0
        %v874 = vpop.f32.mrf.mxu0
        %v875 = vadd.f32 %v267, %v874
        %v876 = vpop.f32.mrf.mxu0
        %877 = vmatprep.mubr.bf16.mxu0 %v502
        %878 = vmatmul.mubr.bf16.gmra.mxu0 %v501
        %v879 = vpop.f32.mrf.mxu0
        %v880 = vadd.f32 %v267, %v879
        %v881 = vpop.f32.mrf.mxu0
        %v882 = vpop.f32.mrf.mxu0
        %v883 = vadd.f32 %v267, %v882
        %v884 = vpop.f32.mrf.mxu0
        %885 = vmatprep.mubr.bf16.mxu0 %v504
        %886 = vmatmul.mubr.bf16.gmra.mxu0 %v503
        %v887 = vpop.f32.mrf.mxu0
        %v888 = vadd.f32 %v267, %v887
        %v889 = vpop.f32.mrf.mxu0
        %v890 = vpop.f32.mrf.mxu0
        %v891 = vadd.f32 %v267, %v890
        %v892 = vpop.f32.mrf.mxu0
        %893 = vmatprep.mubr.bf16.mxu0 %v506
        %894 = vmatmul.mubr.bf16.gmra.mxu0 %v505
        %v895 = vpop.f32.mrf.mxu0
        %v896 = vadd.f32 %v267, %v895
        %v897 = vpop.f32.mrf.mxu0
        %v898 = vpop.f32.mrf.mxu0
        %v899 = vadd.f32 %v267, %v898
        %v900 = vpop.f32.mrf.mxu0
        %901 = vmatprep.mubr.bf16.mxu0 %v508
        %902 = vmatmul.mubr.bf16.gmra.mxu0 %v507
        %v903 = vpop.f32.mrf.mxu0
        %v904 = vadd.f32 %v267, %v903
        %v905 = vpop.f32.mrf.mxu0
        %v906 = vpop.f32.mrf.mxu0
        %v907 = vadd.f32 %v267, %v906
        %v908 = vpop.f32.mrf.mxu0
        %909 = vmatprep.mubr.bf16.mxu0 %v510
        %910 = vmatmul.mubr.bf16.gmra.mxu0 %v509
        %v911 = vpop.f32.mrf.mxu0
        %v912 = vadd.f32 %v267, %v911
        %v913 = vpop.f32.mrf.mxu0
        %v914 = vpop.f32.mrf.mxu0
        %v915 = vadd.f32 %v267, %v914
        %v916 = vpop.f32.mrf.mxu0
        %917 = vmatprep.mubr.bf16.mxu0 %v512
        %918 = vmatmul.mubr.bf16.gmra.mxu0 %v511
        %v919 = vpop.f32.mrf.mxu0
        %v920 = vadd.f32 %v267, %v919
        %v921 = vpop.f32.mrf.mxu0
        %v922 = vpop.f32.mrf.mxu0
        %v923 = vadd.f32 %v267, %v922
        %v924 = vpop.f32.mrf.mxu0
        %925 = vmatprep.mubr.bf16.mxu0 %v514
        %926 = vmatmul.mubr.bf16.gmra.mxu0 %v513
        %v927 = vpop.f32.mrf.mxu0
        %v928 = vadd.f32 %v267, %v927
        %v929 = vpop.f32.mrf.mxu0
        %v930 = vpop.f32.mrf.mxu0
        %v931 = vadd.f32 %v267, %v930
        %v932 = vpop.f32.mrf.mxu0
        %933 = vmatprep.mubr.bf16.mxu0 %v516
        %934 = vmatmul.mubr.bf16.gmra.mxu0 %v515
        %v935 = vpop.f32.mrf.mxu0
        %v936 = vadd.f32 %v267, %v935
        %v937 = vpop.f32.mrf.mxu0
        %v938 = vpop.f32.mrf.mxu0
        %v939 = vadd.f32 %v267, %v938
        %v940 = vpop.f32.mrf.mxu0
        %941 = vmatprep.mubr.bf16.mxu0 %v518
        %942 = vmatmul.mubr.bf16.gmra.mxu0 %v517
        %v943 = vpop.f32.mrf.mxu0
        %v944 = vadd.f32 %v267, %v943
        %v945 = vpop.f32.mrf.mxu0
        %v946 = vpop.f32.mrf.mxu0
        %v947 = vadd.f32 %v267, %v946
        %v948 = vpop.f32.mrf.mxu0
        %949 = vmatprep.mubr.bf16.mxu0 %v520
        %950 = vmatmul.mubr.bf16.gmra.mxu0 %v519
        %v951 = vpop.f32.mrf.mxu0
        %v952 = vadd.f32 %v267, %v951
        %v953 = vpop.f32.mrf.mxu0
        %v954 = vpop.f32.mrf.mxu0
        %v955 = vadd.f32 %v267, %v954
        %v956 = vpop.f32.mrf.mxu0
        %957 = vmatprep.mubr.bf16.mxu0 %v522
        %958 = vmatmul.mubr.bf16.gmra.mxu0 %v521
        %v959 = vpop.f32.mrf.mxu0
        %v960 = vadd.f32 %v267, %v959
        %v961 = vpop.f32.mrf.mxu0
        %v962 = vpop.f32.mrf.mxu0
        %v963 = vadd.f32 %v267, %v962
        %v964 = vpop.f32.mrf.mxu0
        %965 = vmatprep.mubr.bf16.mxu0 %v524
        %966 = vmatmul.mubr.bf16.gmra.mxu0 %v523
        %v967 = vpop.f32.mrf.mxu0
        %v968 = vadd.f32 %v267, %v967
        %v969 = vpop.f32.mrf.mxu0
        %v970 = vpop.f32.mrf.mxu0
        %v971 = vadd.f32 %v267, %v970
        %v972 = vpop.f32.mrf.mxu0
        %973 = vdwg.mxu0
        %v974 = vtanh.pop %v720
        %v975 = vtanh.pop %v723
        %v976 = vtanh.pop %v728
        %v977 = vtanh.pop %v731
        %v978 = vtanh.pop %v736
        %v979 = vtanh.pop %v739
        %v980 = vtanh.pop %v744
        %v981 = vtanh.pop %v747
        %v982 = vtanh.pop %v752
        %v983 = vtanh.pop %v755
        %v984 = vtanh.pop %v760
        %v985 = vtanh.pop %v763
        %v986 = vtanh.pop %v768
        %v987 = vtanh.pop %v771
        %v988 = vtanh.pop %v776
        %v989 = vtanh.pop %v779
        %v990 = vtanh.pop %v784
        %v991 = vtanh.pop %v787
        %v992 = vtanh.pop %v792
        %v993 = vtanh.pop %v795
        %v994 = vtanh.pop %v800
        %v995 = vtanh.pop %v803
        %v996 = vtanh.pop %v808
        %v997 = vtanh.pop %v811
        %v998 = vtanh.pop %v816
        %v999 = vtanh.pop %v819
        %v1000 = vtanh.pop %v824
        %v1001 = vtanh.pop %v827
        %v1002 = vtanh.pop %v832
        %v1003 = vtanh.pop %v835
        %v1004 = vtanh.pop %v840
        %v1005 = vtanh.pop %v843
        %v1006 = vtanh.pop %v848
        %v1007 = vtanh.pop %v851
        %v1008 = vtanh.pop %v856
        %v1009 = vtanh.pop %v859
        %v1010 = vtanh.pop %v864
        %v1011 = vtanh.pop %v867
        %v1012 = vtanh.pop %v872
        %v1013 = vtanh.pop %v875
        %v1014 = vtanh.pop %v880
        %v1015 = vtanh.pop %v883
        %v1016 = vtanh.pop %v888
        %v1017 = vtanh.pop %v891
        %v1018 = vtanh.pop %v896
        %v1019 = vtanh.pop %v899
        %v1020 = vtanh.pop %v904
        %v1021 = vtanh.pop %v907
        %v1022 = vtanh.pop %v912
        %v1023 = vtanh.pop %v915
        %v1024 = vtanh.pop %v920
        %v1025 = vtanh.pop %v923
        %v1026 = vtanh.pop %v928
        %v1027 = vtanh.pop %v931
        %v1028 = vtanh.pop %v936
        %v1029 = vtanh.pop %v939
        %v1030 = vtanh.pop %v944
        %v1031 = vtanh.pop %v947
        %v1032 = vtanh.pop %v952
        %v1033 = vtanh.pop %v955
        %v1034 = vtanh.pop %v960
        %v1035 = vtanh.pop %v963
        %v1036 = vtanh.pop %v968
        %v1037 = vtanh.pop %v971
        %1038 = vst [vmem:[%s159] sm:$0xff] %v974
        %1039 = vst [vmem:[%s159 + $0x8] sm:$0xff] %v975
        %1040 = vst [vmem:[%s159 + $0x10] sm:$0xff] %v976
        %1041 = vst [vmem:[%s159 + $0x18] sm:$0xff] %v977
        %1042 = vst [vmem:[%s159 + $0x20] sm:$0xff] %v978
        %1043 = vst [vmem:[%s159 + $0x28] sm:$0xff] %v979
        %1044 = vst [vmem:[%s159 + $0x30] sm:$0xff] %v980
        %1045 = vst [vmem:[%s159 + $0x38] sm:$0xff] %v981
        %1046 = vst [vmem:[%s159 + $0x40] sm:$0xff] %v982
        %1047 = vst [vmem:[%s159 + $0x48] sm:$0xff] %v983
        %1048 = vst [vmem:[%s159 + $0x50] sm:$0xff] %v984
        %1049 = vst [vmem:[%s159 + $0x58] sm:$0xff] %v985
        %1050 = vst [vmem:[%s159 + $0x60] sm:$0xff] %v986
        %1051 = vst [vmem:[%s159 + $0x68] sm:$0xff] %v987
        %1052 = vst [vmem:[%s159 + $0x70] sm:$0xff] %v988
        %1053 = vst [vmem:[%s159 + $0x78] sm:$0xff] %v989
        %1054 = vst [vmem:[%s159 + $0x80] sm:$0xff] %v990
        %1055 = vst [vmem:[%s159 + $0x88] sm:$0xff] %v991
        %1056 = vst [vmem:[%s159 + $0x90] sm:$0xff] %v992
        %1057 = vst [vmem:[%s159 + $0x98] sm:$0xff] %v993
        %1058 = vst [vmem:[%s159 + $0xa0] sm:$0xff] %v994
        %1059 = vst [vmem:[%s159 + $0xa8] sm:$0xff] %v995
        %1060 = vst [vmem:[%s159 + $0xb0] sm:$0xff] %v996
        %1061 = vst [vmem:[%s159 + $0xb8] sm:$0xff] %v997
        %1062 = vst [vmem:[%s159 + $0xc0] sm:$0xff] %v998
        %1063 = vst [vmem:[%s159 + $0xc8] sm:$0xff] %v999
        %1064 = vst [vmem:[%s159 + $0xd0] sm:$0xff] %v1000
        %1065 = vst [vmem:[%s159 + $0xd8] sm:$0xff] %v1001
        %1066 = vst [vmem:[%s159 + $0xe0] sm:$0xff] %v1002
        %1067 = vst [vmem:[%s159 + $0xe8] sm:$0xff] %v1003
        %1068 = vst [vmem:[%s159 + $0xf0] sm:$0xff] %v1004
        %1069 = vst [vmem:[%s159 + $0xf8] sm:$0xff] %v1005
        %1070 = vst [vmem:[%s159 + $0x100] sm:$0xff] %v1006
        %1071 = vst [vmem:[%s159 + $0x108] sm:$0xff] %v1007
        %1072 = vst [vmem:[%s159 + $0x110] sm:$0xff] %v1008
        %1073 = vst [vmem:[%s159 + $0x118] sm:$0xff] %v1009
        %1074 = vst [vmem:[%s159 + $0x120] sm:$0xff] %v1010
        %1075 = vst [vmem:[%s159 + $0x128] sm:$0xff] %v1011
        %1076 = vst [vmem:[%s159 + $0x130] sm:$0xff] %v1012
        %1077 = vst [vmem:[%s159 + $0x138] sm:$0xff] %v1013
        %1078 = vst [vmem:[%s159 + $0x140] sm:$0xff] %v1014
        %1079 = vst [vmem:[%s159 + $0x148] sm:$0xff] %v1015
        %1080 = vst [vmem:[%s159 + $0x150] sm:$0xff] %v1016
        %1081 = vst [vmem:[%s159 + $0x158] sm:$0xff] %v1017
        %1082 = vst [vmem:[%s159 + $0x160] sm:$0xff] %v1018
        %1083 = vst [vmem:[%s159 + $0x168] sm:$0xff] %v1019
        %1084 = vst [vmem:[%s159 + $0x170] sm:$0xff] %v1020
        %1085 = vst [vmem:[%s159 + $0x178] sm:$0xff] %v1021
        %1086 = vst [vmem:[%s159 + $0x180] sm:$0xff] %v1022
        %1087 = vst [vmem:[%s159 + $0x188] sm:$0xff] %v1023
        %1088 = vst [vmem:[%s159 + $0x190] sm:$0xff] %v1024
        %1089 = vst [vmem:[%s159 + $0x198] sm:$0xff] %v1025
        %1090 = vst [vmem:[%s159 + $0x1a0] sm:$0xff] %v1026
        %1091 = vst [vmem:[%s159 + $0x1a8] sm:$0xff] %v1027
        %1092 = vst [vmem:[%s159 + $0x1b0] sm:$0xff] %v1028
        %1093 = vst [vmem:[%s159 + $0x1b8] sm:$0xff] %v1029
        %1094 = vst [vmem:[%s159 + $0x1c0] sm:$0xff] %v1030
        %1095 = vst [vmem:[%s159 + $0x1c8] sm:$0xff] %v1031
        %1096 = vst [vmem:[%s159 + $0x1d0] sm:$0xff] %v1032
        %1097 = vst [vmem:[%s159 + $0x1d8] sm:$0xff] %v1033
        %1098 = vst [vmem:[%s159 + $0x1e0] sm:$0xff] %v1034
        %1099 = vst [vmem:[%s159 + $0x1e8] sm:$0xff] %v1035
        %1100 = vst [vmem:[%s159 + $0x1f0] sm:$0xff] %v1036
        %1101 = vst [vmem:[%s159 + $0x1f8] sm:$0xff] %v1037
        %s1102 = sand.u32 %s90, 1
        %s1103 = sand.u32 %s90, 1
        %s1104 = smul.addr %s1103, 512
        %s1105 = scalar_lea.vmem [#allocation2], %s1104
        // Predicated region
        $region33: #{forward.13} parent=31 // pred_check
          %p1106 = pneg %p100
        $region34: #{forward.13} parent=31 // pred_check_branch
          %1108 = sbr.rel (%p1106) target = $region36
        $region35: #{forward.13} parent=31 // pred_region
          %s1109 = smul.addr %s14, 2
          %s1110 = smul.addr %s1109, 8
          %s1111 = scalar_lea.vmem %s3, %s1110
          // Predicated region
          $region37: #{forward.13} parent=35 // pred_check
            _
          $region38: #{forward.13} parent=35 // pred_check_branch
            %1113 = sbr.rel (0) target = $region40
          $region39: #{forward.13} parent=35 // pred_region
            // Predicated region
            $region41: #{forward.13} parent=39 // pred_check
              _
            $region42: #{forward.13} parent=39 // pred_check_branch
              %1115 = sbr.rel (0) target = $region44
            $region43: #{forward.13} parent=39 // pred_region
              // Predicated region
              $region56: #{forward.13} parent=43 // pred_check
                _
              $region57: #{forward.13} parent=43 // pred_check_branch
                %1257 = sbr.rel (0) target = $region59
              $region58: #{forward.13} parent=43 // pred_region
                loop: start=0, step=1, limit=1
                $region60: #{forward.13} parent=58 // loop_pre_header
                  _
                $region61: #{forward.13} parent=58 // loop_header
                  %s1259 = sphi 0, %s1263
                  %p1260 = scmp.ge.s32.totalorder %s1259, 1
                  %s1264 = sphi %s1105, %s1105
                  %s1265 = sphi %s1111, %s1111
                $region62: #{forward.13} parent=58 // loop_header_branch
                  %1262 = sbr.rel (%p1260) target = $region66
                $region63: #{forward.13} parent=58 // loop_body
                  %v1266 = vld [vmem:[%s1264] sm:$0xff]
                  %1267 = vst [vmem:[%s1265] sm:$0xff] %v1266
                  %v1268 = vld [vmem:[%s1264 + $0x8] sm:$0xff]
                  %1269 = vst [vmem:[%s1265 + $0x8] sm:$0xff] %v1268
                  %v1270 = vld [vmem:[%s1264 + $0x10] sm:$0xff]
                  %1271 = vst [vmem:[%s1265 + $0x20] sm:$0xff] %v1270
                  %v1272 = vld [vmem:[%s1264 + $0x18] sm:$0xff]
                  %1273 = vst [vmem:[%s1265 + $0x28] sm:$0xff] %v1272
                  %v1274 = vld [vmem:[%s1264 + $0x20] sm:$0xff]
                  %1275 = vst [vmem:[%s1265 + $0x40] sm:$0xff] %v1274
                  %v1276 = vld [vmem:[%s1264 + $0x28] sm:$0xff]
                  %1277 = vst [vmem:[%s1265 + $0x48] sm:$0xff] %v1276
                  %v1278 = vld [vmem:[%s1264 + $0x30] sm:$0xff]
                  %1279 = vst [vmem:[%s1265 + $0x60] sm:$0xff] %v1278
                  %v1280 = vld [vmem:[%s1264 + $0x38] sm:$0xff]
                  %1281 = vst [vmem:[%s1265 + $0x68] sm:$0xff] %v1280
                  %v1282 = vld [vmem:[%s1264 + $0x40] sm:$0xff]
                  %1283 = vst [vmem:[%s1265 + $0x80] sm:$0xff] %v1282
                  %v1284 = vld [vmem:[%s1264 + $0x48] sm:$0xff]
                  %1285 = vst [vmem:[%s1265 + $0x88] sm:$0xff] %v1284
                  %v1286 = vld [vmem:[%s1264 + $0x50] sm:$0xff]
                  %1287 = vst [vmem:[%s1265 + $0xa0] sm:$0xff] %v1286
                  %v1288 = vld [vmem:[%s1264 + $0x58] sm:$0xff]
                  %1289 = vst [vmem:[%s1265 + $0xa8] sm:$0xff] %v1288
                  %v1290 = vld [vmem:[%s1264 + $0x60] sm:$0xff]
                  %1291 = vst [vmem:[%s1265 + $0xc0] sm:$0xff] %v1290
                  %v1292 = vld [vmem:[%s1264 + $0x68] sm:$0xff]
                  %1293 = vst [vmem:[%s1265 + $0xc8] sm:$0xff] %v1292
                  %v1294 = vld [vmem:[%s1264 + $0x70] sm:$0xff]
                  %1295 = vst [vmem:[%s1265 + $0xe0] sm:$0xff] %v1294
                  %v1296 = vld [vmem:[%s1264 + $0x78] sm:$0xff]
                  %1297 = vst [vmem:[%s1265 + $0xe8] sm:$0xff] %v1296
                  %v1298 = vld [vmem:[%s1264 + $0x80] sm:$0xff]
                  %1299 = vst [vmem:[%s1265 + $0x100] sm:$0xff] %v1298
                  %v1300 = vld [vmem:[%s1264 + $0x88] sm:$0xff]
                  %1301 = vst [vmem:[%s1265 + $0x108] sm:$0xff] %v1300
                  %v1302 = vld [vmem:[%s1264 + $0x90] sm:$0xff]
                  %1303 = vst [vmem:[%s1265 + $0x120] sm:$0xff] %v1302
                  %v1304 = vld [vmem:[%s1264 + $0x98] sm:$0xff]
                  %1305 = vst [vmem:[%s1265 + $0x128] sm:$0xff] %v1304
                  %v1306 = vld [vmem:[%s1264 + $0xa0] sm:$0xff]
                  %1307 = vst [vmem:[%s1265 + $0x140] sm:$0xff] %v1306
                  %v1308 = vld [vmem:[%s1264 + $0xa8] sm:$0xff]
                  %1309 = vst [vmem:[%s1265 + $0x148] sm:$0xff] %v1308
                  %v1310 = vld [vmem:[%s1264 + $0xb0] sm:$0xff]
                  %1311 = vst [vmem:[%s1265 + $0x160] sm:$0xff] %v1310
                  %v1312 = vld [vmem:[%s1264 + $0xb8] sm:$0xff]
                  %1313 = vst [vmem:[%s1265 + $0x168] sm:$0xff] %v1312
                  %v1314 = vld [vmem:[%s1264 + $0xc0] sm:$0xff]
                  %1315 = vst [vmem:[%s1265 + $0x180] sm:$0xff] %v1314
                  %v1316 = vld [vmem:[%s1264 + $0xc8] sm:$0xff]
                  %1317 = vst [vmem:[%s1265 + $0x188] sm:$0xff] %v1316
                  %v1318 = vld [vmem:[%s1264 + $0xd0] sm:$0xff]
                  %1319 = vst [vmem:[%s1265 + $0x1a0] sm:$0xff] %v1318
                  %v1320 = vld [vmem:[%s1264 + $0xd8] sm:$0xff]
                  %1321 = vst [vmem:[%s1265 + $0x1a8] sm:$0xff] %v1320
                  %v1322 = vld [vmem:[%s1264 + $0xe0] sm:$0xff]
                  %1323 = vst [vmem:[%s1265 + $0x1c0] sm:$0xff] %v1322
                  %v1324 = vld [vmem:[%s1264 + $0xe8] sm:$0xff]
                  %1325 = vst [vmem:[%s1265 + $0x1c8] sm:$0xff] %v1324
                  %v1326 = vld [vmem:[%s1264 + $0xf0] sm:$0xff]
                  %1327 = vst [vmem:[%s1265 + $0x1e0] sm:$0xff] %v1326
                  %v1328 = vld [vmem:[%s1264 + $0xf8] sm:$0xff]
                  %1329 = vst [vmem:[%s1265 + $0x1e8] sm:$0xff] %v1328
                  %v1330 = vld [vmem:[%s1264 + $0x100] sm:$0xff]
                  %1331 = vst [vmem:[%s1265 + $0x200] sm:$0xff] %v1330
                  %v1332 = vld [vmem:[%s1264 + $0x108] sm:$0xff]
                  %1333 = vst [vmem:[%s1265 + $0x208] sm:$0xff] %v1332
                  %v1334 = vld [vmem:[%s1264 + $0x110] sm:$0xff]
                  %1335 = vst [vmem:[%s1265 + $0x220] sm:$0xff] %v1334
                  %v1336 = vld [vmem:[%s1264 + $0x118] sm:$0xff]
                  %1337 = vst [vmem:[%s1265 + $0x228] sm:$0xff] %v1336
                  %v1338 = vld [vmem:[%s1264 + $0x120] sm:$0xff]
                  %1339 = vst [vmem:[%s1265 + $0x240] sm:$0xff] %v1338
                  %v1340 = vld [vmem:[%s1264 + $0x128] sm:$0xff]
                  %1341 = vst [vmem:[%s1265 + $0x248] sm:$0xff] %v1340
                  %v1342 = vld [vmem:[%s1264 + $0x130] sm:$0xff]
                  %1343 = vst [vmem:[%s1265 + $0x260] sm:$0xff] %v1342
                  %v1344 = vld [vmem:[%s1264 + $0x138] sm:$0xff]
                  %1345 = vst [vmem:[%s1265 + $0x268] sm:$0xff] %v1344
                  %v1346 = vld [vmem:[%s1264 + $0x140] sm:$0xff]
                  %1347 = vst [vmem:[%s1265 + $0x280] sm:$0xff] %v1346
                  %v1348 = vld [vmem:[%s1264 + $0x148] sm:$0xff]
                  %1349 = vst [vmem:[%s1265 + $0x288] sm:$0xff] %v1348
                  %v1350 = vld [vmem:[%s1264 + $0x150] sm:$0xff]
                  %1351 = vst [vmem:[%s1265 + $0x2a0] sm:$0xff] %v1350
                  %v1352 = vld [vmem:[%s1264 + $0x158] sm:$0xff]
                  %1353 = vst [vmem:[%s1265 + $0x2a8] sm:$0xff] %v1352
                  %v1354 = vld [vmem:[%s1264 + $0x160] sm:$0xff]
                  %1355 = vst [vmem:[%s1265 + $0x2c0] sm:$0xff] %v1354
                  %v1356 = vld [vmem:[%s1264 + $0x168] sm:$0xff]
                  %1357 = vst [vmem:[%s1265 + $0x2c8] sm:$0xff] %v1356
                  %v1358 = vld [vmem:[%s1264 + $0x170] sm:$0xff]
                  %1359 = vst [vmem:[%s1265 + $0x2e0] sm:$0xff] %v1358
                  %v1360 = vld [vmem:[%s1264 + $0x178] sm:$0xff]
                  %1361 = vst [vmem:[%s1265 + $0x2e8] sm:$0xff] %v1360
                  %v1362 = vld [vmem:[%s1264 + $0x180] sm:$0xff]
                  %1363 = vst [vmem:[%s1265 + $0x300] sm:$0xff] %v1362
                  %v1364 = vld [vmem:[%s1264 + $0x188] sm:$0xff]
                  %1365 = vst [vmem:[%s1265 + $0x308] sm:$0xff] %v1364
                  %v1366 = vld [vmem:[%s1264 + $0x190] sm:$0xff]
                  %1367 = vst [vmem:[%s1265 + $0x320] sm:$0xff] %v1366
                  %v1368 = vld [vmem:[%s1264 + $0x198] sm:$0xff]
                  %1369 = vst [vmem:[%s1265 + $0x328] sm:$0xff] %v1368
                  %v1370 = vld [vmem:[%s1264 + $0x1a0] sm:$0xff]
                  %1371 = vst [vmem:[%s1265 + $0x340] sm:$0xff] %v1370
                  %v1372 = vld [vmem:[%s1264 + $0x1a8] sm:$0xff]
                  %1373 = vst [vmem:[%s1265 + $0x348] sm:$0xff] %v1372
                  %v1374 = vld [vmem:[%s1264 + $0x1b0] sm:$0xff]
                  %1375 = vst [vmem:[%s1265 + $0x360] sm:$0xff] %v1374
                  %v1376 = vld [vmem:[%s1264 + $0x1b8] sm:$0xff]
                  %1377 = vst [vmem:[%s1265 + $0x368] sm:$0xff] %v1376
                  %v1378 = vld [vmem:[%s1264 + $0x1c0] sm:$0xff]
                  %1379 = vst [vmem:[%s1265 + $0x380] sm:$0xff] %v1378
                  %v1380 = vld [vmem:[%s1264 + $0x1c8] sm:$0xff]
                  %1381 = vst [vmem:[%s1265 + $0x388] sm:$0xff] %v1380
                  %v1382 = vld [vmem:[%s1264 + $0x1d0] sm:$0xff]
                  %1383 = vst [vmem:[%s1265 + $0x3a0] sm:$0xff] %v1382
                  %v1384 = vld [vmem:[%s1264 + $0x1d8] sm:$0xff]
                  %1385 = vst [vmem:[%s1265 + $0x3a8] sm:$0xff] %v1384
                  %v1386 = vld [vmem:[%s1264 + $0x1e0] sm:$0xff]
                  %1387 = vst [vmem:[%s1265 + $0x3c0] sm:$0xff] %v1386
                  %v1388 = vld [vmem:[%s1264 + $0x1e8] sm:$0xff]
                  %1389 = vst [vmem:[%s1265 + $0x3c8] sm:$0xff] %v1388
                  %v1390 = vld [vmem:[%s1264 + $0x1f0] sm:$0xff]
                  %1391 = vst [vmem:[%s1265 + $0x3e0] sm:$0xff] %v1390
                  %v1392 = vld [vmem:[%s1264 + $0x1f8] sm:$0xff]
                  %1393 = vst [vmem:[%s1265 + $0x3e8] sm:$0xff] %v1392
                $region64: #{forward.13} parent=58 // loop_footer
                  %s1263 = sadd.s32 1, %s1259
                $region65: #{forward.13} parent=58 // loop_footer_branch
                  %1258 = sbr.rel target = $region61
                $region66: #{forward.13} parent=58 // loop_exit
                  _
              $region59: #{forward.13} parent=43 // pred_fallthru
                _
              // Predicated region
              $region67: #{forward.13} parent=43 // pred_check
                _
              $region68: #{forward.13} parent=43 // pred_check_branch
                %1395 = sbr.rel target = $region70
              $region69: #{forward.13} parent=43 // pred_region
                _
              $region70: #{forward.13} parent=43 // pred_fallthru
                _
            $region44: #{forward.13} parent=39 // pred_fallthru
              _
            // Predicated region
            $region45: #{forward.13} parent=39 // pred_check
              _
            $region46: #{forward.13} parent=39 // pred_check_branch
              %1117 = sbr.rel target = $region48
            $region47: #{forward.13} parent=39 // pred_region
              %s1119 = ssub.s32 256, 1
              loop: start=0, step=1, limit=1
              $region49: #{forward.13} parent=47 // loop_pre_header
                _
              $region50: #{forward.13} parent=47 // loop_header
                %s1121 = sphi 0, %s1125
                %p1122 = scmp.ge.s32.totalorder %s1121, 1
                %s1126 = sphi %s1105, %s1105
                %s1127 = sphi %s1111, %s1111
              $region51: #{forward.13} parent=47 // loop_header_branch
                %1124 = sbr.rel (%p1122) target = $region55
              $region52: #{forward.13} parent=47 // loop_body
                %v1128 = vld [vmem:[%s1126] sm:%s1119]
                %1129 = vst [vmem:[%s1127] sm:%s1119] %v1128
                %v1130 = vld [vmem:[%s1126 + $0x8] sm:%s1119]
                %1131 = vst [vmem:[%s1127 + $0x8] sm:%s1119] %v1130
                %v1132 = vld [vmem:[%s1126 + $0x10] sm:%s1119]
                %1133 = vst [vmem:[%s1127 + $0x20] sm:%s1119] %v1132
                %v1134 = vld [vmem:[%s1126 + $0x18] sm:%s1119]
                %1135 = vst [vmem:[%s1127 + $0x28] sm:%s1119] %v1134
                %v1136 = vld [vmem:[%s1126 + $0x20] sm:%s1119]
                %1137 = vst [vmem:[%s1127 + $0x40] sm:%s1119] %v1136
                %v1138 = vld [vmem:[%s1126 + $0x28] sm:%s1119]
                %1139 = vst [vmem:[%s1127 + $0x48] sm:%s1119] %v1138
                %v1140 = vld [vmem:[%s1126 + $0x30] sm:%s1119]
                %1141 = vst [vmem:[%s1127 + $0x60] sm:%s1119] %v1140
                %v1142 = vld [vmem:[%s1126 + $0x38] sm:%s1119]
                %1143 = vst [vmem:[%s1127 + $0x68] sm:%s1119] %v1142
                %v1144 = vld [vmem:[%s1126 + $0x40] sm:%s1119]
                %1145 = vst [vmem:[%s1127 + $0x80] sm:%s1119] %v1144
                %v1146 = vld [vmem:[%s1126 + $0x48] sm:%s1119]
                %1147 = vst [vmem:[%s1127 + $0x88] sm:%s1119] %v1146
                %v1148 = vld [vmem:[%s1126 + $0x50] sm:%s1119]
                %1149 = vst [vmem:[%s1127 + $0xa0] sm:%s1119] %v1148
                %v1150 = vld [vmem:[%s1126 + $0x58] sm:%s1119]
                %1151 = vst [vmem:[%s1127 + $0xa8] sm:%s1119] %v1150
                %v1152 = vld [vmem:[%s1126 + $0x60] sm:%s1119]
                %1153 = vst [vmem:[%s1127 + $0xc0] sm:%s1119] %v1152
                %v1154 = vld [vmem:[%s1126 + $0x68] sm:%s1119]
                %1155 = vst [vmem:[%s1127 + $0xc8] sm:%s1119] %v1154
                %v1156 = vld [vmem:[%s1126 + $0x70] sm:%s1119]
                %1157 = vst [vmem:[%s1127 + $0xe0] sm:%s1119] %v1156
                %v1158 = vld [vmem:[%s1126 + $0x78] sm:%s1119]
                %1159 = vst [vmem:[%s1127 + $0xe8] sm:%s1119] %v1158
                %v1160 = vld [vmem:[%s1126 + $0x80] sm:%s1119]
                %1161 = vst [vmem:[%s1127 + $0x100] sm:%s1119] %v1160
                %v1162 = vld [vmem:[%s1126 + $0x88] sm:%s1119]
                %1163 = vst [vmem:[%s1127 + $0x108] sm:%s1119] %v1162
                %v1164 = vld [vmem:[%s1126 + $0x90] sm:%s1119]
                %1165 = vst [vmem:[%s1127 + $0x120] sm:%s1119] %v1164
                %v1166 = vld [vmem:[%s1126 + $0x98] sm:%s1119]
                %1167 = vst [vmem:[%s1127 + $0x128] sm:%s1119] %v1166
                %v1168 = vld [vmem:[%s1126 + $0xa0] sm:%s1119]
                %1169 = vst [vmem:[%s1127 + $0x140] sm:%s1119] %v1168
                %v1170 = vld [vmem:[%s1126 + $0xa8] sm:%s1119]
                %1171 = vst [vmem:[%s1127 + $0x148] sm:%s1119] %v1170
                %v1172 = vld [vmem:[%s1126 + $0xb0] sm:%s1119]
                %1173 = vst [vmem:[%s1127 + $0x160] sm:%s1119] %v1172
                %v1174 = vld [vmem:[%s1126 + $0xb8] sm:%s1119]
                %1175 = vst [vmem:[%s1127 + $0x168] sm:%s1119] %v1174
                %v1176 = vld [vmem:[%s1126 + $0xc0] sm:%s1119]
                %1177 = vst [vmem:[%s1127 + $0x180] sm:%s1119] %v1176
                %v1178 = vld [vmem:[%s1126 + $0xc8] sm:%s1119]
                %1179 = vst [vmem:[%s1127 + $0x188] sm:%s1119] %v1178
                %v1180 = vld [vmem:[%s1126 + $0xd0] sm:%s1119]
                %1181 = vst [vmem:[%s1127 + $0x1a0] sm:%s1119] %v1180
                %v1182 = vld [vmem:[%s1126 + $0xd8] sm:%s1119]
                %1183 = vst [vmem:[%s1127 + $0x1a8] sm:%s1119] %v1182
                %v1184 = vld [vmem:[%s1126 + $0xe0] sm:%s1119]
                %1185 = vst [vmem:[%s1127 + $0x1c0] sm:%s1119] %v1184
                %v1186 = vld [vmem:[%s1126 + $0xe8] sm:%s1119]
                %1187 = vst [vmem:[%s1127 + $0x1c8] sm:%s1119] %v1186
                %v1188 = vld [vmem:[%s1126 + $0xf0] sm:%s1119]
                %1189 = vst [vmem:[%s1127 + $0x1e0] sm:%s1119] %v1188
                %v1190 = vld [vmem:[%s1126 + $0xf8] sm:%s1119]
                %1191 = vst [vmem:[%s1127 + $0x1e8] sm:%s1119] %v1190
                %v1192 = vld [vmem:[%s1126 + $0x100] sm:%s1119]
                %1193 = vst [vmem:[%s1127 + $0x200] sm:%s1119] %v1192
                %v1194 = vld [vmem:[%s1126 + $0x108] sm:%s1119]
                %1195 = vst [vmem:[%s1127 + $0x208] sm:%s1119] %v1194
                %v1196 = vld [vmem:[%s1126 + $0x110] sm:%s1119]
                %1197 = vst [vmem:[%s1127 + $0x220] sm:%s1119] %v1196
                %v1198 = vld [vmem:[%s1126 + $0x118] sm:%s1119]
                %1199 = vst [vmem:[%s1127 + $0x228] sm:%s1119] %v1198
                %v1200 = vld [vmem:[%s1126 + $0x120] sm:%s1119]
                %1201 = vst [vmem:[%s1127 + $0x240] sm:%s1119] %v1200
                %v1202 = vld [vmem:[%s1126 + $0x128] sm:%s1119]
                %1203 = vst [vmem:[%s1127 + $0x248] sm:%s1119] %v1202
                %v1204 = vld [vmem:[%s1126 + $0x130] sm:%s1119]
                %1205 = vst [vmem:[%s1127 + $0x260] sm:%s1119] %v1204
                %v1206 = vld [vmem:[%s1126 + $0x138] sm:%s1119]
                %1207 = vst [vmem:[%s1127 + $0x268] sm:%s1119] %v1206
                %v1208 = vld [vmem:[%s1126 + $0x140] sm:%s1119]
                %1209 = vst [vmem:[%s1127 + $0x280] sm:%s1119] %v1208
                %v1210 = vld [vmem:[%s1126 + $0x148] sm:%s1119]
                %1211 = vst [vmem:[%s1127 + $0x288] sm:%s1119] %v1210
                %v1212 = vld [vmem:[%s1126 + $0x150] sm:%s1119]
                %1213 = vst [vmem:[%s1127 + $0x2a0] sm:%s1119] %v1212
                %v1214 = vld [vmem:[%s1126 + $0x158] sm:%s1119]
                %1215 = vst [vmem:[%s1127 + $0x2a8] sm:%s1119] %v1214
                %v1216 = vld [vmem:[%s1126 + $0x160] sm:%s1119]
                %1217 = vst [vmem:[%s1127 + $0x2c0] sm:%s1119] %v1216
                %v1218 = vld [vmem:[%s1126 + $0x168] sm:%s1119]
                %1219 = vst [vmem:[%s1127 + $0x2c8] sm:%s1119] %v1218
                %v1220 = vld [vmem:[%s1126 + $0x170] sm:%s1119]
                %1221 = vst [vmem:[%s1127 + $0x2e0] sm:%s1119] %v1220
                %v1222 = vld [vmem:[%s1126 + $0x178] sm:%s1119]
                %1223 = vst [vmem:[%s1127 + $0x2e8] sm:%s1119] %v1222
                %v1224 = vld [vmem:[%s1126 + $0x180] sm:%s1119]
                %1225 = vst [vmem:[%s1127 + $0x300] sm:%s1119] %v1224
                %v1226 = vld [vmem:[%s1126 + $0x188] sm:%s1119]
                %1227 = vst [vmem:[%s1127 + $0x308] sm:%s1119] %v1226
                %v1228 = vld [vmem:[%s1126 + $0x190] sm:%s1119]
                %1229 = vst [vmem:[%s1127 + $0x320] sm:%s1119] %v1228
                %v1230 = vld [vmem:[%s1126 + $0x198] sm:%s1119]
                %1231 = vst [vmem:[%s1127 + $0x328] sm:%s1119] %v1230
                %v1232 = vld [vmem:[%s1126 + $0x1a0] sm:%s1119]
                %1233 = vst [vmem:[%s1127 + $0x340] sm:%s1119] %v1232
                %v1234 = vld [vmem:[%s1126 + $0x1a8] sm:%s1119]
                %1235 = vst [vmem:[%s1127 + $0x348] sm:%s1119] %v1234
                %v1236 = vld [vmem:[%s1126 + $0x1b0] sm:%s1119]
                %1237 = vst [vmem:[%s1127 + $0x360] sm:%s1119] %v1236
                %v1238 = vld [vmem:[%s1126 + $0x1b8] sm:%s1119]
                %1239 = vst [vmem:[%s1127 + $0x368] sm:%s1119] %v1238
                %v1240 = vld [vmem:[%s1126 + $0x1c0] sm:%s1119]
                %1241 = vst [vmem:[%s1127 + $0x380] sm:%s1119] %v1240
                %v1242 = vld [vmem:[%s1126 + $0x1c8] sm:%s1119]
                %1243 = vst [vmem:[%s1127 + $0x388] sm:%s1119] %v1242
                %v1244 = vld [vmem:[%s1126 + $0x1d0] sm:%s1119]
                %1245 = vst [vmem:[%s1127 + $0x3a0] sm:%s1119] %v1244
                %v1246 = vld [vmem:[%s1126 + $0x1d8] sm:%s1119]
                %1247 = vst [vmem:[%s1127 + $0x3a8] sm:%s1119] %v1246
                %v1248 = vld [vmem:[%s1126 + $0x1e0] sm:%s1119]
                %1249 = vst [vmem:[%s1127 + $0x3c0] sm:%s1119] %v1248
                %v1250 = vld [vmem:[%s1126 + $0x1e8] sm:%s1119]
                %1251 = vst [vmem:[%s1127 + $0x3c8] sm:%s1119] %v1250
                %v1252 = vld [vmem:[%s1126 + $0x1f0] sm:%s1119]
                %1253 = vst [vmem:[%s1127 + $0x3e0] sm:%s1119] %v1252
                %v1254 = vld [vmem:[%s1126 + $0x1f8] sm:%s1119]
                %1255 = vst [vmem:[%s1127 + $0x3e8] sm:%s1119] %v1254
              $region53: #{forward.13} parent=47 // loop_footer
                %s1125 = sadd.s32 1, %s1121
              $region54: #{forward.13} parent=47 // loop_footer_branch
                %1120 = sbr.rel target = $region50
              $region55: #{forward.13} parent=47 // loop_exit
                _
            $region48: #{forward.13} parent=39 // pred_fallthru
              _
          $region40: #{forward.13} parent=35 // pred_fallthru
            _
          %1396 = vnop
        $region36: #{forward.13} parent=31 // pred_fallthru
          _
      $region32: #{forward.13} parent=5 // pred_fallthru
        _
      %p1397 = scmp.le.s32.totalorder 2, %s9
      // Predicated region
      $region71: #{forward.13} parent=5 // pred_check
        %p1398 = pneg %p1397
      $region72: #{forward.13} parent=5 // pred_check_branch
        %1400 = sbr.rel (%p1398) target = $region74
      $region73: #{forward.13} parent=5 // pred_region
        %s1401 = ssub.s32 %s9, 2
        // Predicated region
        $region75: #{forward.13} parent=73 // pred_check
          %p1402 = pneg %p106
        $region76: #{forward.13} parent=73 // pred_check_branch
          %1404 = sbr.rel (%p1402) target = $region78
        $region77: #{forward.13} parent=73 // pred_region
          %s1405 = sand.u32 %s91, 1
          %s1406 = sand.u32 %s91, 1
          %s1407 = smul.addr %s1406, 512
          %s1408 = scalar_lea.vmem [#allocation2], %s1407
        $region78: #{forward.13} parent=73 // pred_fallthru
          _
      $region74: #{forward.13} parent=5 // pred_fallthru
        _
    $region6: #{forward.13} parent=1 // loop_footer
      %s13 = sadd.s32 1, %s9
    $region7: #{forward.13} parent=1 // loop_footer_branch
      %8 = sbr.rel target = $region3
    $region8: #{forward.13} parent=1 // loop_exit
      _

</llo_original>
